<compile_context>
chip_gen: v7x
topology: tpu7x:2x2x1
jax: 0.10.0
libtpu: 0.0.40
codegen_flags: <defaults>
</compile_context>

<pallas_src>
import functools
import math

import jax
import jax.numpy as jnp
import numpy as np
from jax.experimental import pallas as pl
from jax.experimental.pallas import tpu as pltpu


# Single-buffer grid-invariant weights when this Pallas version supports it.
if hasattr(pl, "Buffered"):
    _WEIGHT_PIPELINE = {"pipeline_mode": pl.Buffered(1)}
else:  # pragma: no cover - older JAX fallback
    _WEIGHT_PIPELINE = {}


def _layernorm(x, gamma, beta, eps=1e-5):
    mu = jnp.mean(x, axis=-1, keepdims=True)
    var = jnp.mean((x - mu) ** 2, axis=-1, keepdims=True)
    return (x - mu) * jax.lax.rsqrt(var + eps) * gamma + beta


def _block_kernel(x_ref, g1_ref, b1_ref,
                  wq_ref, bq_ref, wk_ref, bk_ref, wv_ref, bv_ref,
                  wo_ref, bo_ref, g2_ref, b2_ref,
                  w1_ref, bf1_ref, w2_ref, bf2_ref,
                  o_ref,
                  k_scr, v_scr, attn_scr,
                  *, num_heads, q_tile, kv_chunk):
    d_model = attn_scr.shape[-1]
    head_dim = d_model // num_heads
    qi = pl.program_id(1)
    seq_len = x_ref.shape[1]
    bf16 = jnp.bfloat16

    # ---- once per batch element: LN1 + K/V projection, chunked over S ------
    # Bounds the f32 projection temporaries to (kv_chunk, D) and spreads the
    # bf16 stores into k_scr/v_scr instead of one O(S*D) f32 burst.
    @pl.when(qi == 0)
    def _():
        n_chunks = seq_len // kv_chunk

        def project_chunk(c, carry):
            r0 = pl.multiple_of(c * kv_chunk, kv_chunk)
            xc = x_ref[0, pl.ds(r0, kv_chunk), :]                     # (C, D) f32
            xcn = _layernorm(xc, g1_ref[0], b1_ref[0]).astype(bf16)
            kc = jnp.dot(xcn, wk_ref[...],
                         preferred_element_type=jnp.float32) + bk_ref[0]
            vc = jnp.dot(xcn, wv_ref[...],
                         preferred_element_type=jnp.float32) + bv_ref[0]
            k_scr[pl.ds(r0, kv_chunk), :] = kc.astype(bf16)
            v_scr[pl.ds(r0, kv_chunk), :] = vc.astype(bf16)
            return carry

        jax.lax.fori_loop(0, n_chunks, project_chunk, 0)

    # ---- this query tile: LN1 + Q projection (scale folded into wq/bq) -----
    row0 = pl.multiple_of(qi * q_tile, q_tile)
    xq = x_ref[0, pl.ds(row0, q_tile), :]                             # (TQ, D) f32
    xqn = _layernorm(xq, g1_ref[0], b1_ref[0]).astype(bf16)
    q = (jnp.dot(xqn, wq_ref[...], preferred_element_type=jnp.float32)
         + bq_ref[0]).astype(bf16)                                    # (TQ, D) bf16

    # ---- attention: loop heads; live f32 scores bounded to (TQ, S) ----------
    for h in range(num_heads):                                        # static, small
        sl = slice(h * head_dim, (h + 1) * head_dim)                  # lane-aligned
        k_h = k_scr[:, sl]                                            # (S, hd) bf16
        v_h = v_scr[:, sl]                                            # (S, hd) bf16
        s = jax.lax.dot_general(q[:, sl], k_h, (((1,), (1,)), ((), ())),
                                preferred_element_type=jnp.float32)   # (TQ, S) f32
        s = s - jnp.max(s, axis=-1, keepdims=True)
        p = jnp.exp(s)
        inv_l = pl.reciprocal(jnp.sum(p, axis=-1, keepdims=True), approx=True)
        o_h = jnp.dot(p.astype(bf16), v_h,
                      preferred_element_type=jnp.float32)             # (TQ, hd) f32
        attn_scr[:, sl] = (o_h * inv_l).astype(bf16)                  # fold 1/denom

    # ---- output projection + residual (kept fused over full D) -------------
    attn_out = jnp.dot(attn_scr[...], wo_ref[...],
                       preferred_element_type=jnp.float32) + bo_ref[0]
    x1 = xq + attn_out                                                # f32 residual

    # ---- LayerNorm 2 + FFN + residual (fused over full D / hidden) ---------
    x1n = _layernorm(x1, g2_ref[0], b2_ref[0]).astype(bf16)
    h1 = jnp.dot(x1n, w1_ref[...], preferred_element_type=jnp.float32) + bf1_ref[0]
    h1 = jnp.maximum(h1, 0.0).astype(bf16)
    ffn = jnp.dot(h1, w2_ref[...], preferred_element_type=jnp.float32) + bf2_ref[0]

    o_ref[0] = (x1 + ffn).astype(o_ref.dtype)


def _vmem_limit_bytes():
    """~3/4 of physical VMEM: ≈96 MiB on v5e/v6e (128 MiB), ≈48 MiB on v7x (64 MiB)."""
    try:
        cap = int(pltpu.get_tpu_info().vmem_capacity_bytes)
        if cap >= 32 * 1024 * 1024:
            return (cap * 3) // 4
    except Exception:
        pass
    return 64 * 1024 * 1024


def _default_q_tile(seq_len):
    """v6e: 256-wide MXU + 128 MiB VMEM -> q_tile 256; v5e (128-wide MXU) and
    v7x (64 MiB VMEM) keep 128."""
    try:
        kind = jax.devices()[0].device_kind.lower()
    except Exception:
        kind = ""
    if "v6" in kind and seq_len % 256 == 0:
        return min(256, seq_len)
    return min(128, seq_len)


def prepare_params(params, *, num_heads):
    """One-time weight prep: split fused in_proj, fold 1/sqrt(head_dim) into
    wq/bq, cast matmul weights to bf16 (MXU-native). Call once and reuse the
    result — the casts are separate XLA ops and must not run per step."""
    D = params["wo"].shape[0]
    head_dim = D // num_heads
    scale = 1.0 / math.sqrt(head_dim)
    bf16 = jnp.bfloat16
    wqkv, bqkv = params["wqkv"], params["bqkv"]
    return {
        "g1": params["g1"], "b1": params["b1"],
        "wq": (wqkv[:, :D] * scale).astype(bf16),
        "bq": bqkv[:, :D] * scale,
        "wk": wqkv[:, D:2 * D].astype(bf16),
        "bk": bqkv[:, D:2 * D],
        "wv": wqkv[:, 2 * D:].astype(bf16),
        "bv": bqkv[:, 2 * D:],
        "wo": params["wo"].astype(bf16), "bo": params["bo"],
        "g2": params["g2"], "b2": params["b2"],
        "w1": params["w1"].astype(bf16), "bf1": params["bf1"],
        "w2": params["w2"].astype(bf16), "bf2": params["bf2"],
    }


def self_attention_layer(x, prepped, *, num_heads, q_tile=None, kv_chunk=None):
    """x: (B, S, D) float32. prepped: output of prepare_params (x @ W layout)."""
    B, S, D = x.shape
    hidden = prepped["w1"].shape[1]
    assert D % num_heads == 0
    head_dim = D // num_heads

    if q_tile is None:
        q_tile = _default_q_tile(S)
    q_tile = min(q_tile, S)
    assert S % q_tile == 0
    n_q = S // q_tile

    if kv_chunk is None:
        kv_chunk = S
        for c in (512, 256, 128):
            if S % c == 0:
                kv_chunk = c
                break
    kv_chunk = min(kv_chunk, S)
    assert S % kv_chunk == 0

    bf16 = jnp.bfloat16
    kernel = functools.partial(_block_kernel, num_heads=num_heads,
                               q_tile=q_tile, kv_chunk=kv_chunk)

    # Grid-invariant weights: constant index_map (never re-DMA'd) + single
    # buffering, so resident weight VMEM is 1x, not 2x.
    def w_spec(r, c):
        return pl.BlockSpec((r, c), lambda b, qi: (0, 0), **_WEIGHT_PIPELINE)

    in_specs = [
        # x: full sequence per batch element; block index changes with b only,
        # so default double-buffering prefetches the next batch's x.
        pl.BlockSpec((1, S, D), lambda b, qi: (b, 0, 0)),
        w_spec(1, D),          # ln1 gamma
        w_spec(1, D),          # ln1 beta
        w_spec(D, D),          # wq (pre-scaled)
        w_spec(1, D),          # bq (pre-scaled)
        w_spec(D, D),          # wk
        w_spec(1, D),          # bk
        w_spec(D, D),          # wv
        w_spec(1, D),          # bv
        w_spec(D, D),          # out proj weight
        w_spec(1, D),          # out proj bias
        w_spec(1, D),          # ln2 gamma
        w_spec(1, D),          # ln2 beta
        w_spec(D, hidden),     # ffn w1
        w_spec(1, hidden),     # ffn b1
        w_spec(hidden, D),     # ffn w2
        w_spec(1, D),          # ffn b2
    ]

    scratch_shapes = [
        pltpu.VMEM((S, D), bf16),        # K, head-sliced by lane offset (carried)
        pltpu.VMEM((S, D), bf16),        # V (carried over q tiles)
        pltpu.VMEM((q_tile, D), bf16),   # recombined per-head attention output
    ]

    flops = B * (8 * S * D * D + 4 * S * S * D + 4 * S * D * hidden)
    transcendentals = B * num_heads * S * S
    bytes_accessed = 8 * B * S * D + 2 * (4 * D * D + 2 * D * hidden)
    cost = pl.CostEstimate(flops=flops, transcendentals=transcendentals,
                           bytes_accessed=bytes_accessed)

    return pl.pallas_call(
        kernel,
        out_shape=jax.ShapeDtypeStruct((B, S, D), x.dtype),
        grid=(B, n_q),
        in_specs=in_specs,
        out_specs=pl.BlockSpec((1, q_tile, D), lambda b, qi: (b, qi, 0)),
        scratch_shapes=scratch_shapes,
        compiler_params=pltpu.CompilerParams(
            # batch axis parallel (megacore; keep B >= 2 on v7x),
            # q-tile axis arbitrary (K/V scratch carried across it)
            dimension_semantics=("parallel", "arbitrary"),
            vmem_limit_bytes=_vmem_limit_bytes(),
        ),
        cost_estimate=cost,
    )(x, prepped["g1"], prepped["b1"],
      prepped["wq"], prepped["bq"], prepped["wk"], prepped["bk"],
      prepped["wv"], prepped["bv"], prepped["wo"], prepped["bo"],
      prepped["g2"], prepped["b2"],
      prepped["w1"], prepped["bf1"], prepped["w2"], prepped["bf2"])


def reference(x, params, *, num_heads):
    """Pure-JAX f32 reference mirroring PyTorch semantics (eval mode)."""
    hi = jax.lax.Precision.HIGHEST
    D = x.shape[-1]
    hd = D // num_heads

    def ln(y, g, b):
        mu = y.mean(-1, keepdims=True)
        var = ((y - mu) ** 2).mean(-1, keepdims=True)
        return (y - mu) / jnp.sqrt(var + 1e-5) * g[0] + b[0]

    xn = ln(x, params["g1"], params["b1"])
    qkv = jnp.einsum("bsd,de->bse", xn, params["wqkv"], precision=hi) + params["bqkv"][0]
    q, k, v = qkv[..., :D], qkv[..., D:2 * D], qkv[..., 2 * D:]

    def split(t):  # (B,S,D) -> (B,H,S,hd)
        B, S, _ = t.shape
        return t.reshape(B, S, num_heads, hd).transpose(0, 2, 1, 3)

    qh, kh, vh = split(q) / math.sqrt(hd), split(k), split(v)
    s = jnp.einsum("bhqe,bhke->bhqk", qh, kh, precision=hi)
    p = jax.nn.softmax(s, axis=-1)
    o = jnp.einsum("bhqk,bhke->bhqe", p, vh, precision=hi)
    B, H, S, _ = o.shape
    attn = o.transpose(0, 2, 1, 3).reshape(B, S, D)
    attn_out = jnp.einsum("bsd,de->bse", attn, params["wo"], precision=hi) + params["bo"][0]

    x1 = x + attn_out
    x1n = ln(x1, params["g2"], params["b2"])
    h1 = jax.nn.relu(jnp.einsum("bsd,dh->bsh", x1n, params["w1"], precision=hi) + params["bf1"][0])
    ffn = jnp.einsum("bsh,hd->bsd", h1, params["w2"], precision=hi) + params["bf2"][0]
    return x1 + ffn


def make_params(key, d_model, hidden_dim):
    ks = jax.random.split(key, 8)
    s = 0.02
    return {
        "g1": jnp.ones((1, d_model), jnp.float32),
        "b1": jnp.zeros((1, d_model), jnp.float32),
        # stored transposed so kernel computes x @ W
        "wqkv": s * jax.random.normal(ks[0], (d_model, 3 * d_model), jnp.float32),
        "bqkv": s * jax.random.normal(ks[1], (1, 3 * d_model), jnp.float32),
        "wo": s * jax.random.normal(ks[2], (d_model, d_model), jnp.float32),
        "bo": s * jax.random.normal(ks[3], (1, d_model), jnp.float32),
        "g2": jnp.ones((1, d_model), jnp.float32),
        "b2": jnp.zeros((1, d_model), jnp.float32),
        "w1": s * jax.random.normal(ks[4], (d_model, hidden_dim), jnp.float32),
        "bf1": s * jax.random.normal(ks[5], (1, hidden_dim), jnp.float32),
        "w2": s * jax.random.normal(ks[6], (hidden_dim, d_model), jnp.float32),
        "bf2": s * jax.random.normal(ks[7], (1, d_model), jnp.float32),
    }


if __name__ == "__main__":
    # Lane-dense small config: D, hidden, head_dim multiples of 128; S multiple of 128.
    B, S, D, H, HID = 2, 256, 256, 2, 512
    key = jax.random.PRNGKey(0)
    kx, kp = jax.random.split(key)
    x = jax.random.normal(kx, (B, S, D), jnp.float32)
    params = make_params(kp, D, HID)

    prepped = prepare_params(params, num_heads=H)        # one-time weight prep
    out = self_attention_layer(x, prepped, num_heads=H)
    out = jax.block_until_ready(out)

    ref = jax.block_until_ready(reference(x, params, num_heads=H))
    # bf16 MXU operands + approx reciprocal vs f32-HIGHEST reference
    np.testing.assert_allclose(np.asarray(out), np.asarray(ref), rtol=2e-2, atol=2e-2)

    print("KERNEL_OK")
</pallas_src>

<mosaic_0001>
module attributes {stable_mosaic.version = 11 : i64} {
  func.func @_block_kernel(%arg0: i32, %arg1: i32, %arg2: memref<1x256x256xf32, #tpu.memory_space<vmem>>, %arg3: memref<1x256xf32, #tpu.memory_space<vmem>>, %arg4: memref<1x256xf32, #tpu.memory_space<vmem>>, %arg5: memref<256x256xbf16, #tpu.memory_space<vmem>>, %arg6: memref<1x256xf32, #tpu.memory_space<vmem>>, %arg7: memref<256x256xbf16, #tpu.memory_space<vmem>>, %arg8: memref<1x256xf32, #tpu.memory_space<vmem>>, %arg9: memref<256x256xbf16, #tpu.memory_space<vmem>>, %arg10: memref<1x256xf32, #tpu.memory_space<vmem>>, %arg11: memref<256x256xbf16, #tpu.memory_space<vmem>>, %arg12: memref<1x256xf32, #tpu.memory_space<vmem>>, %arg13: memref<1x256xf32, #tpu.memory_space<vmem>>, %arg14: memref<1x256xf32, #tpu.memory_space<vmem>>, %arg15: memref<256x512xbf16, #tpu.memory_space<vmem>>, %arg16: memref<1x512xf32, #tpu.memory_space<vmem>>, %arg17: memref<512x256xbf16, #tpu.memory_space<vmem>>, %arg18: memref<1x256xf32, #tpu.memory_space<vmem>>, %arg19: memref<1x128x256xf32, #tpu.memory_space<vmem>>, %arg20: memref<256x256xbf16, #tpu.memory_space<vmem>>, %arg21: memref<256x256xbf16, #tpu.memory_space<vmem>>, %arg22: memref<128x256xbf16, #tpu.memory_space<vmem>>) attributes {dimension_semantics = [#tpu.dimension_semantics<parallel>, #tpu.dimension_semantics<arbitrary>], iteration_bounds = array<i64: 2, 2>, scalar_prefetch = 0 : i64, scratch_operands = 3 : i64, tpu.core_type = #tpu.core_type<tc>, window_params = [{transform_indices = @transform_0, window_bounds = array<i64: 1, 256, 256>}, {pipeline_mode = #tpu.pipeline_mode<synchronous>, transform_indices = @transform_1, window_bounds = array<i64: 1, 256>}, {pipeline_mode = #tpu.pipeline_mode<synchronous>, transform_indices = @transform_2, window_bounds = array<i64: 1, 256>}, {pipeline_mode = #tpu.pipeline_mode<synchronous>, transform_indices = @transform_3, window_bounds = array<i64: 256, 256>}, {pipeline_mode = #tpu.pipeline_mode<synchronous>, transform_indices = @transform_4, window_bounds = array<i64: 1, 256>}, {pipeline_mode = #tpu.pipeline_mode<synchronous>, transform_indices = @transform_5, window_bounds = array<i64: 256, 256>}, {pipeline_mode = #tpu.pipeline_mode<synchronous>, transform_indices = @transform_6, window_bounds = array<i64: 1, 256>}, {pipeline_mode = #tpu.pipeline_mode<synchronous>, transform_indices = @transform_7, window_bounds = array<i64: 256, 256>}, {pipeline_mode = #tpu.pipeline_mode<synchronous>, transform_indices = @transform_8, window_bounds = array<i64: 1, 256>}, {pipeline_mode = #tpu.pipeline_mode<synchronous>, transform_indices = @transform_9, window_bounds = array<i64: 256, 256>}, {pipeline_mode = #tpu.pipeline_mode<synchronous>, transform_indices = @transform_10, window_bounds = array<i64: 1, 256>}, {pipeline_mode = #tpu.pipeline_mode<synchronous>, transform_indices = @transform_11, window_bounds = array<i64: 1, 256>}, {pipeline_mode = #tpu.pipeline_mode<synchronous>, transform_indices = @transform_12, window_bounds = array<i64: 1, 256>}, {pipeline_mode = #tpu.pipeline_mode<synchronous>, transform_indices = @transform_13, window_bounds = array<i64: 256, 512>}, {pipeline_mode = #tpu.pipeline_mode<synchronous>, transform_indices = @transform_14, window_bounds = array<i64: 1, 512>}, {pipeline_mode = #tpu.pipeline_mode<synchronous>, transform_indices = @transform_15, window_bounds = array<i64: 512, 256>}, {pipeline_mode = #tpu.pipeline_mode<synchronous>, transform_indices = @transform_16, window_bounds = array<i64: 1, 256>}, {transform_indices = @transform_17, window_bounds = array<i64: 1, 128, 256>}]} {
    %c0_i32 = arith.constant 0 : i32
    %0 = arith.cmpi eq, %arg1, %c0_i32 : i32
    %1 = arith.extui %0 : i1 to i32
    %c0_i32_0 = arith.constant 0 : i32
    %2 = arith.cmpi ne, %1, %c0_i32_0 : i32
    scf.if %2 {
      %c0_i32_64 = arith.constant 0 : i32
      %c256_i32 = arith.constant 256 : i32
      %140 = arith.muli %c0_i32_64, %c256_i32 : i32
      %141 = tpu.assume_multiple %140, 256 : i32
      %c0_65 = arith.constant 0 : index
      %142 = arith.index_cast %141 : i32 to index
      %c0_66 = arith.constant 0 : index
      %143 = vector.load %arg2[%c0_65, %142, %c0_66] : memref<1x256x256xf32, #tpu.memory_space<vmem>>, vector<1x256x256xf32>
      %144 = vector.shape_cast %143 : vector<1x256x256xf32> to vector<256x256xf32>
      %c0_67 = arith.constant 0 : index
      %c0_68 = arith.constant 0 : index
      %145 = vector.load %arg3[%c0_67, %c0_68] : memref<1x256xf32, #tpu.memory_space<vmem>>, vector<1x256xf32>
      %146 = vector.shape_cast %145 : vector<1x256xf32> to vector<256xf32>
      %c0_69 = arith.constant 0 : index
      %c0_70 = arith.constant 0 : index
      %147 = vector.load %arg4[%c0_69, %c0_70] : memref<1x256xf32, #tpu.memory_space<vmem>>, vector<1x256xf32>
      %148 = vector.shape_cast %147 : vector<1x256xf32> to vector<256xf32>
      %cst_71 = arith.constant dense<0.000000e+00> : vector<256xf32>
      %149 = vector.multi_reduction <add>, %144, %cst_71 [1] : vector<256x256xf32> to vector<256xf32>
      %150 = vector.shape_cast %149 : vector<256xf32> to vector<256x1xf32>
      %cst_72 = arith.constant 2.560000e+02 : f32
      %151 = vector.broadcast %cst_72 : f32 to vector<256x1xf32>
      %152 = arith.divf %150, %151 : vector<256x1xf32>
      %153 = vector.broadcast %152 : vector<256x1xf32> to vector<256x256xf32>
      %154 = arith.subf %144, %153 : vector<256x256xf32>
      %155 = arith.mulf %154, %154 : vector<256x256xf32>
      %cst_73 = arith.constant dense<0.000000e+00> : vector<256xf32>
      %156 = vector.multi_reduction <add>, %155, %cst_73 [1] : vector<256x256xf32> to vector<256xf32>
      %157 = vector.shape_cast %156 : vector<256xf32> to vector<256x1xf32>
      %cst_74 = arith.constant 2.560000e+02 : f32
      %158 = vector.broadcast %cst_74 : f32 to vector<256x1xf32>
      %159 = arith.divf %157, %158 : vector<256x1xf32>
      %160 = vector.broadcast %152 : vector<256x1xf32> to vector<256x256xf32>
      %161 = arith.subf %144, %160 : vector<256x256xf32>
      %cst_75 = arith.constant 9.99999974E-6 : f32
      %162 = vector.broadcast %cst_75 : f32 to vector<256x1xf32>
      %163 = arith.addf %159, %162 : vector<256x1xf32>
      %164 = math.rsqrt %163 : vector<256x1xf32>
      %165 = vector.broadcast %164 : vector<256x1xf32> to vector<256x256xf32>
      %166 = arith.mulf %161, %165 : vector<256x256xf32>
      %167 = vector.shape_cast %146 : vector<256xf32> to vector<1x256xf32>
      %168 = vector.broadcast %167 : vector<1x256xf32> to vector<256x256xf32>
      %169 = arith.mulf %166, %168 : vector<256x256xf32>
      %170 = vector.shape_cast %148 : vector<256xf32> to vector<1x256xf32>
      %171 = vector.broadcast %170 : vector<1x256xf32> to vector<256x256xf32>
      %172 = arith.addf %169, %171 : vector<256x256xf32>
      %173 = arith.truncf %172 : vector<256x256xf32> to vector<256x256xbf16>
      %c0_76 = arith.constant 0 : index
      %c0_77 = arith.constant 0 : index
      %174 = vector.load %arg7[%c0_76, %c0_77] : memref<256x256xbf16, #tpu.memory_space<vmem>>, vector<256x256xbf16>
      %cst_78 = arith.constant dense<0.000000e+00> : vector<256x256xf32>
      %175 = tpu.matmul %173, %174, %cst_78 {dimension_numbers = #tpu.dot_dimension_numbers<[1], [0], [0], [1], [0, 0, 1, 1], [], []>} : vector<256x256xbf16>, vector<256x256xbf16>, vector<256x256xf32> -> vector<256x256xf32>
      %c0_79 = arith.constant 0 : index
      %c0_80 = arith.constant 0 : index
      %176 = vector.load %arg8[%c0_79, %c0_80] : memref<1x256xf32, #tpu.memory_space<vmem>>, vector<1x256xf32>
      %177 = vector.shape_cast %176 : vector<1x256xf32> to vector<256xf32>
      %178 = vector.shape_cast %177 : vector<256xf32> to vector<1x256xf32>
      %179 = vector.broadcast %178 : vector<1x256xf32> to vector<256x256xf32>
      %180 = arith.addf %175, %179 : vector<256x256xf32>
      %c0_81 = arith.constant 0 : index
      %c0_82 = arith.constant 0 : index
      %181 = vector.load %arg9[%c0_81, %c0_82] : memref<256x256xbf16, #tpu.memory_space<vmem>>, vector<256x256xbf16>
      %cst_83 = arith.constant dense<0.000000e+00> : vector<256x256xf32>
      %182 = tpu.matmul %173, %181, %cst_83 {dimension_numbers = #tpu.dot_dimension_numbers<[1], [0], [0], [1], [0, 0, 1, 1], [], []>} : vector<256x256xbf16>, vector<256x256xbf16>, vector<256x256xf32> -> vector<256x256xf32>
      %c0_84 = arith.constant 0 : index
      %c0_85 = arith.constant 0 : index
      %183 = vector.load %arg10[%c0_84, %c0_85] : memref<1x256xf32, #tpu.memory_space<vmem>>, vector<1x256xf32>
      %184 = vector.shape_cast %183 : vector<1x256xf32> to vector<256xf32>
      %185 = vector.shape_cast %184 : vector<256xf32> to vector<1x256xf32>
      %186 = vector.broadcast %185 : vector<1x256xf32> to vector<256x256xf32>
      %187 = arith.addf %182, %186 : vector<256x256xf32>
      %188 = arith.truncf %180 : vector<256x256xf32> to vector<256x256xbf16>
      %189 = arith.index_cast %141 : i32 to index
      %c0_86 = arith.constant 0 : index
      %190 = vector.load %arg20[%189, %c0_86] : memref<256x256xbf16, #tpu.memory_space<vmem>>, vector<256x256xbf16>
      tpu.vector_store %arg20[%189, %c0_86], %188 {strides = array<i32>} : memref<256x256xbf16, #tpu.memory_space<vmem>>, vector<256x256xbf16>,
      %191 = arith.truncf %187 : vector<256x256xf32> to vector<256x256xbf16>
      %192 = arith.index_cast %141 : i32 to index
      %c0_87 = arith.constant 0 : index
      %193 = vector.load %arg21[%192, %c0_87] : memref<256x256xbf16, #tpu.memory_space<vmem>>, vector<256x256xbf16>
      tpu.vector_store %arg21[%192, %c0_87], %191 {strides = array<i32>} : memref<256x256xbf16, #tpu.memory_space<vmem>>, vector<256x256xbf16>,
      %c1_i32 = arith.constant 1 : i32
    } else {
    }
    %c128_i32 = arith.constant 128 : i32
    %3 = arith.muli %arg1, %c128_i32 : i32
    %4 = tpu.assume_multiple %3, 128 : i32
    %c0 = arith.constant 0 : index
    %5 = arith.index_cast %4 : i32 to index
    %c0_1 = arith.constant 0 : index
    %6 = vector.load %arg2[%c0, %5, %c0_1] : memref<1x256x256xf32, #tpu.memory_space<vmem>>, vector<1x128x256xf32>
    %7 = vector.shape_cast %6 : vector<1x128x256xf32> to vector<128x256xf32>
    %c0_2 = arith.constant 0 : index
    %c0_3 = arith.constant 0 : index
    %8 = vector.load %arg3[%c0_2, %c0_3] : memref<1x256xf32, #tpu.memory_space<vmem>>, vector<1x256xf32>
    %9 = vector.shape_cast %8 : vector<1x256xf32> to vector<256xf32>
    %c0_4 = arith.constant 0 : index
    %c0_5 = arith.constant 0 : index
    %10 = vector.load %arg4[%c0_4, %c0_5] : memref<1x256xf32, #tpu.memory_space<vmem>>, vector<1x256xf32>
    %11 = vector.shape_cast %10 : vector<1x256xf32> to vector<256xf32>
    %cst = arith.constant dense<0.000000e+00> : vector<128xf32>
    %12 = vector.multi_reduction <add>, %7, %cst [1] : vector<128x256xf32> to vector<128xf32>
    %13 = vector.shape_cast %12 : vector<128xf32> to vector<128x1xf32>
    %cst_6 = arith.constant 2.560000e+02 : f32
    %14 = vector.broadcast %cst_6 : f32 to vector<128x1xf32>
    %15 = arith.divf %13, %14 : vector<128x1xf32>
    %16 = vector.broadcast %15 : vector<128x1xf32> to vector<128x256xf32>
    %17 = arith.subf %7, %16 : vector<128x256xf32>
    %18 = arith.mulf %17, %17 : vector<128x256xf32>
    %cst_7 = arith.constant dense<0.000000e+00> : vector<128xf32>
    %19 = vector.multi_reduction <add>, %18, %cst_7 [1] : vector<128x256xf32> to vector<128xf32>
    %20 = vector.shape_cast %19 : vector<128xf32> to vector<128x1xf32>
    %cst_8 = arith.constant 2.560000e+02 : f32
    %21 = vector.broadcast %cst_8 : f32 to vector<128x1xf32>
    %22 = arith.divf %20, %21 : vector<128x1xf32>
    %23 = vector.broadcast %15 : vector<128x1xf32> to vector<128x256xf32>
    %24 = arith.subf %7, %23 : vector<128x256xf32>
    %cst_9 = arith.constant 9.99999974E-6 : f32
    %25 = vector.broadcast %cst_9 : f32 to vector<128x1xf32>
    %26 = arith.addf %22, %25 : vector<128x1xf32>
    %27 = math.rsqrt %26 : vector<128x1xf32>
    %28 = vector.broadcast %27 : vector<128x1xf32> to vector<128x256xf32>
    %29 = arith.mulf %24, %28 : vector<128x256xf32>
    %30 = vector.shape_cast %9 : vector<256xf32> to vector<1x256xf32>
    %31 = vector.broadcast %30 : vector<1x256xf32> to vector<128x256xf32>
    %32 = arith.mulf %29, %31 : vector<128x256xf32>
    %33 = vector.shape_cast %11 : vector<256xf32> to vector<1x256xf32>
    %34 = vector.broadcast %33 : vector<1x256xf32> to vector<128x256xf32>
    %35 = arith.addf %32, %34 : vector<128x256xf32>
    %36 = arith.truncf %35 : vector<128x256xf32> to vector<128x256xbf16>
    %c0_10 = arith.constant 0 : index
    %c0_11 = arith.constant 0 : index
    %37 = vector.load %arg5[%c0_10, %c0_11] : memref<256x256xbf16, #tpu.memory_space<vmem>>, vector<256x256xbf16>
    %cst_12 = arith.constant dense<0.000000e+00> : vector<128x256xf32>
    %38 = tpu.matmul %36, %37, %cst_12 {dimension_numbers = #tpu.dot_dimension_numbers<[1], [0], [0], [1], [0, 0, 1, 1], [], []>} : vector<128x256xbf16>, vector<256x256xbf16>, vector<128x256xf32> -> vector<128x256xf32>
    %c0_13 = arith.constant 0 : index
    %c0_14 = arith.constant 0 : index
    %39 = vector.load %arg6[%c0_13, %c0_14] : memref<1x256xf32, #tpu.memory_space<vmem>>, vector<1x256xf32>
    %40 = vector.shape_cast %39 : vector<1x256xf32> to vector<256xf32>
    %41 = vector.shape_cast %40 : vector<256xf32> to vector<1x256xf32>
    %42 = vector.broadcast %41 : vector<1x256xf32> to vector<128x256xf32>
    %43 = arith.addf %38, %42 : vector<128x256xf32>
    %44 = arith.truncf %43 : vector<128x256xf32> to vector<128x256xbf16>
    %c0_15 = arith.constant 0 : index
    %c0_16 = arith.constant 0 : index
    %45 = vector.load %arg20[%c0_15, %c0_16] : memref<256x256xbf16, #tpu.memory_space<vmem>>, vector<256x128xbf16>
    %c0_17 = arith.constant 0 : index
    %c0_18 = arith.constant 0 : index
    %46 = vector.load %arg21[%c0_17, %c0_18] : memref<256x256xbf16, #tpu.memory_space<vmem>>, vector<256x128xbf16>
    %47 = vector.extract_strided_slice %44 {offsets = [0, 0], sizes = [128, 128], strides = [1, 1]} : vector<128x256xbf16> to vector<128x128xbf16>
    %cst_19 = arith.constant dense<0.000000e+00> : vector<128x256xf32>
    %48 = tpu.matmul %47, %45, %cst_19 {dimension_numbers = #tpu.dot_dimension_numbers<[1], [1], [0], [0], [0, 0, 1, 0], [], []>} : vector<128x128xbf16>, vector<256x128xbf16>, vector<128x256xf32> -> vector<128x256xf32>
    %cst_20 = arith.constant dense<0xFF800000> : vector<128xf32>
    %49 = vector.multi_reduction <maximumf>, %48, %cst_20 [1] : vector<128x256xf32> to vector<128xf32>
    %50 = vector.shape_cast %49 : vector<128xf32> to vector<128x1xf32>
    %51 = vector.broadcast %50 : vector<128x1xf32> to vector<128x256xf32>
    %52 = arith.subf %48, %51 : vector<128x256xf32>
    %53 = math.exp %52 : vector<128x256xf32>
    %cst_21 = arith.constant dense<0.000000e+00> : vector<128xf32>
    %54 = vector.multi_reduction <add>, %53, %cst_21 [1] : vector<128x256xf32> to vector<128xf32>
    %55 = vector.shape_cast %54 : vector<128xf32> to vector<128x1xf32>
    %56 = tpu.reciprocal %55 {approx = true} : vector<128x1xf32> -> vector<128x1xf32>
    %57 = arith.truncf %53 : vector<128x256xf32> to vector<128x256xbf16>
    %cst_22 = arith.constant dense<0.000000e+00> : vector<128x128xf32>
    %58 = tpu.matmul %57, %46, %cst_22 {dimension_numbers = #tpu.dot_dimension_numbers<[1], [0], [0], [1], [0, 0, 1, 1], [], []>} : vector<128x256xbf16>, vector<256x128xbf16>, vector<128x128xf32> -> vector<128x128xf32>
    %59 = vector.broadcast %56 : vector<128x1xf32> to vector<128x128xf32>
    %60 = arith.mulf %58, %59 : vector<128x128xf32>
    %61 = arith.truncf %60 : vector<128x128xf32> to vector<128x128xbf16>
    %c0_23 = arith.constant 0 : index
    %c0_24 = arith.constant 0 : index
    %62 = vector.load %arg22[%c0_23, %c0_24] : memref<128x256xbf16, #tpu.memory_space<vmem>>, vector<128x128xbf16>
    tpu.vector_store %arg22[%c0_23, %c0_24], %61 {strides = array<i32>} : memref<128x256xbf16, #tpu.memory_space<vmem>>, vector<128x128xbf16>,
    %c0_25 = arith.constant 0 : index
    %c128 = arith.constant 128 : index
    %63 = vector.load %arg20[%c0_25, %c128] : memref<256x256xbf16, #tpu.memory_space<vmem>>, vector<256x128xbf16>
    %c0_26 = arith.constant 0 : index
    %c128_27 = arith.constant 128 : index
    %64 = vector.load %arg21[%c0_26, %c128_27] : memref<256x256xbf16, #tpu.memory_space<vmem>>, vector<256x128xbf16>
    %65 = vector.extract_strided_slice %44 {offsets = [0, 128], sizes = [128, 128], strides = [1, 1]} : vector<128x256xbf16> to vector<128x128xbf16>
    %cst_28 = arith.constant dense<0.000000e+00> : vector<128x256xf32>
    %66 = tpu.matmul %65, %63, %cst_28 {dimension_numbers = #tpu.dot_dimension_numbers<[1], [1], [0], [0], [0, 0, 1, 0], [], []>} : vector<128x128xbf16>, vector<256x128xbf16>, vector<128x256xf32> -> vector<128x256xf32>
    %cst_29 = arith.constant dense<0xFF800000> : vector<128xf32>
    %67 = vector.multi_reduction <maximumf>, %66, %cst_29 [1] : vector<128x256xf32> to vector<128xf32>
    %68 = vector.shape_cast %67 : vector<128xf32> to vector<128x1xf32>
    %69 = vector.broadcast %68 : vector<128x1xf32> to vector<128x256xf32>
    %70 = arith.subf %66, %69 : vector<128x256xf32>
    %71 = math.exp %70 : vector<128x256xf32>
    %cst_30 = arith.constant dense<0.000000e+00> : vector<128xf32>
    %72 = vector.multi_reduction <add>, %71, %cst_30 [1] : vector<128x256xf32> to vector<128xf32>
    %73 = vector.shape_cast %72 : vector<128xf32> to vector<128x1xf32>
    %74 = tpu.reciprocal %73 {approx = true} : vector<128x1xf32> -> vector<128x1xf32>
    %75 = arith.truncf %71 : vector<128x256xf32> to vector<128x256xbf16>
    %cst_31 = arith.constant dense<0.000000e+00> : vector<128x128xf32>
    %76 = tpu.matmul %75, %64, %cst_31 {dimension_numbers = #tpu.dot_dimension_numbers<[1], [0], [0], [1], [0, 0, 1, 1], [], []>} : vector<128x256xbf16>, vector<256x128xbf16>, vector<128x128xf32> -> vector<128x128xf32>
    %77 = vector.broadcast %74 : vector<128x1xf32> to vector<128x128xf32>
    %78 = arith.mulf %76, %77 : vector<128x128xf32>
    %79 = arith.truncf %78 : vector<128x128xf32> to vector<128x128xbf16>
    %c0_32 = arith.constant 0 : index
    %c128_33 = arith.constant 128 : index
    %80 = vector.load %arg22[%c0_32, %c128_33] : memref<128x256xbf16, #tpu.memory_space<vmem>>, vector<128x128xbf16>
    tpu.vector_store %arg22[%c0_32, %c128_33], %79 {strides = array<i32>} : memref<128x256xbf16, #tpu.memory_space<vmem>>, vector<128x128xbf16>,
    %c0_34 = arith.constant 0 : index
    %c0_35 = arith.constant 0 : index
    %81 = vector.load %arg22[%c0_34, %c0_35] : memref<128x256xbf16, #tpu.memory_space<vmem>>, vector<128x256xbf16>
    %c0_36 = arith.constant 0 : index
    %c0_37 = arith.constant 0 : index
    %82 = vector.load %arg11[%c0_36, %c0_37] : memref<256x256xbf16, #tpu.memory_space<vmem>>, vector<256x256xbf16>
    %cst_38 = arith.constant dense<0.000000e+00> : vector<128x256xf32>
    %83 = tpu.matmul %81, %82, %cst_38 {dimension_numbers = #tpu.dot_dimension_numbers<[1], [0], [0], [1], [0, 0, 1, 1], [], []>} : vector<128x256xbf16>, vector<256x256xbf16>, vector<128x256xf32> -> vector<128x256xf32>
    %c0_39 = arith.constant 0 : index
    %c0_40 = arith.constant 0 : index
    %84 = vector.load %arg12[%c0_39, %c0_40] : memref<1x256xf32, #tpu.memory_space<vmem>>, vector<1x256xf32>
    %85 = vector.shape_cast %84 : vector<1x256xf32> to vector<256xf32>
    %86 = vector.shape_cast %85 : vector<256xf32> to vector<1x256xf32>
    %87 = vector.broadcast %86 : vector<1x256xf32> to vector<128x256xf32>
    %88 = arith.addf %83, %87 : vector<128x256xf32>
    %89 = arith.addf %7, %88 : vector<128x256xf32>
    %c0_41 = arith.constant 0 : index
    %c0_42 = arith.constant 0 : index
    %90 = vector.load %arg13[%c0_41, %c0_42] : memref<1x256xf32, #tpu.memory_space<vmem>>, vector<1x256xf32>
    %91 = vector.shape_cast %90 : vector<1x256xf32> to vector<256xf32>
    %c0_43 = arith.constant 0 : index
    %c0_44 = arith.constant 0 : index
    %92 = vector.load %arg14[%c0_43, %c0_44] : memref<1x256xf32, #tpu.memory_space<vmem>>, vector<1x256xf32>
    %93 = vector.shape_cast %92 : vector<1x256xf32> to vector<256xf32>
    %cst_45 = arith.constant dense<0.000000e+00> : vector<128xf32>
    %94 = vector.multi_reduction <add>, %89, %cst_45 [1] : vector<128x256xf32> to vector<128xf32>
    %95 = vector.shape_cast %94 : vector<128xf32> to vector<128x1xf32>
    %cst_46 = arith.constant 2.560000e+02 : f32
    %96 = vector.broadcast %cst_46 : f32 to vector<128x1xf32>
    %97 = arith.divf %95, %96 : vector<128x1xf32>
    %98 = vector.broadcast %97 : vector<128x1xf32> to vector<128x256xf32>
    %99 = arith.subf %89, %98 : vector<128x256xf32>
    %100 = arith.mulf %99, %99 : vector<128x256xf32>
    %cst_47 = arith.constant dense<0.000000e+00> : vector<128xf32>
    %101 = vector.multi_reduction <add>, %100, %cst_47 [1] : vector<128x256xf32> to vector<128xf32>
    %102 = vector.shape_cast %101 : vector<128xf32> to vector<128x1xf32>
    %cst_48 = arith.constant 2.560000e+02 : f32
    %103 = vector.broadcast %cst_48 : f32 to vector<128x1xf32>
    %104 = arith.divf %102, %103 : vector<128x1xf32>
    %105 = vector.broadcast %97 : vector<128x1xf32> to vector<128x256xf32>
    %106 = arith.subf %89, %105 : vector<128x256xf32>
    %cst_49 = arith.constant 9.99999974E-6 : f32
    %107 = vector.broadcast %cst_49 : f32 to vector<128x1xf32>
    %108 = arith.addf %104, %107 : vector<128x1xf32>
    %109 = math.rsqrt %108 : vector<128x1xf32>
    %110 = vector.broadcast %109 : vector<128x1xf32> to vector<128x256xf32>
    %111 = arith.mulf %106, %110 : vector<128x256xf32>
    %112 = vector.shape_cast %91 : vector<256xf32> to vector<1x256xf32>
    %113 = vector.broadcast %112 : vector<1x256xf32> to vector<128x256xf32>
    %114 = arith.mulf %111, %113 : vector<128x256xf32>
    %115 = vector.shape_cast %93 : vector<256xf32> to vector<1x256xf32>
    %116 = vector.broadcast %115 : vector<1x256xf32> to vector<128x256xf32>
    %117 = arith.addf %114, %116 : vector<128x256xf32>
    %118 = arith.truncf %117 : vector<128x256xf32> to vector<128x256xbf16>
    %c0_50 = arith.constant 0 : index
    %c0_51 = arith.constant 0 : index
    %119 = vector.load %arg15[%c0_50, %c0_51] : memref<256x512xbf16, #tpu.memory_space<vmem>>, vector<256x512xbf16>
    %cst_52 = arith.constant dense<0.000000e+00> : vector<128x512xf32>
    %120 = tpu.matmul %118, %119, %cst_52 {dimension_numbers = #tpu.dot_dimension_numbers<[1], [0], [0], [1], [0, 0, 1, 1], [], []>} : vector<128x256xbf16>, vector<256x512xbf16>, vector<128x512xf32> -> vector<128x512xf32>
    %c0_53 = arith.constant 0 : index
    %c0_54 = arith.constant 0 : index
    %121 = vector.load %arg16[%c0_53, %c0_54] : memref<1x512xf32, #tpu.memory_space<vmem>>, vector<1x512xf32>
    %122 = vector.shape_cast %121 : vector<1x512xf32> to vector<512xf32>
    %123 = vector.shape_cast %122 : vector<512xf32> to vector<1x512xf32>
    %124 = vector.broadcast %123 : vector<1x512xf32> to vector<128x512xf32>
    %125 = arith.addf %120, %124 : vector<128x512xf32>
    %cst_55 = arith.constant 0.000000e+00 : f32
    %126 = vector.broadcast %cst_55 : f32 to vector<128x512xf32>
    %127 = arith.maximumf %125, %126 : vector<128x512xf32>
    %128 = arith.truncf %127 : vector<128x512xf32> to vector<128x512xbf16>
    %c0_56 = arith.constant 0 : index
    %c0_57 = arith.constant 0 : index
    %129 = vector.load %arg17[%c0_56, %c0_57] : memref<512x256xbf16, #tpu.memory_space<vmem>>, vector<512x256xbf16>
    %cst_58 = arith.constant dense<0.000000e+00> : vector<128x256xf32>
    %130 = tpu.matmul %128, %129, %cst_58 {dimension_numbers = #tpu.dot_dimension_numbers<[1], [0], [0], [1], [0, 0, 1, 1], [], []>} : vector<128x512xbf16>, vector<512x256xbf16>, vector<128x256xf32> -> vector<128x256xf32>
    %c0_59 = arith.constant 0 : index
    %c0_60 = arith.constant 0 : index
    %131 = vector.load %arg18[%c0_59, %c0_60] : memref<1x256xf32, #tpu.memory_space<vmem>>, vector<1x256xf32>
    %132 = vector.shape_cast %131 : vector<1x256xf32> to vector<256xf32>
    %133 = vector.shape_cast %132 : vector<256xf32> to vector<1x256xf32>
    %134 = vector.broadcast %133 : vector<1x256xf32> to vector<128x256xf32>
    %135 = arith.addf %130, %134 : vector<128x256xf32>
    %136 = arith.addf %89, %135 : vector<128x256xf32>
    %c0_61 = arith.constant 0 : index
    %c0_62 = arith.constant 0 : index
    %c0_63 = arith.constant 0 : index
    %137 = vector.load %arg19[%c0_61, %c0_62, %c0_63] : memref<1x128x256xf32, #tpu.memory_space<vmem>>, vector<1x128x256xf32>
    %138 = vector.shape_cast %137 : vector<1x128x256xf32> to vector<128x256xf32>
    %139 = vector.shape_cast %136 : vector<128x256xf32> to vector<1x128x256xf32>
    tpu.vector_store %arg19[%c0_61, %c0_62, %c0_63], %139 {strides = array<i32>} : memref<1x128x256xf32, #tpu.memory_space<vmem>>, vector<1x128x256xf32>,
    return
  }
  func.func @transform_0(%arg0: i32, %arg1: i32) -> (i32, i32, i32) {
    %c0_i32 = arith.constant 0 : i32
    %c0_i32_0 = arith.constant 0 : i32
    %c0_i32_1 = arith.constant 0 : i32
    return %arg0, %c0_i32, %c0_i32_0 : i32, i32, i32
  }
  func.func @transform_1(%arg0: i32, %arg1: i32) -> (i32, i32) {
    %c0_i32 = arith.constant 0 : i32
    %c0_i32_0 = arith.constant 0 : i32
    %c0_i32_1 = arith.constant 0 : i32
    return %c0_i32, %c0_i32_0 : i32, i32
  }
  func.func @transform_2(%arg0: i32, %arg1: i32) -> (i32, i32) {
    %c0_i32 = arith.constant 0 : i32
    %c0_i32_0 = arith.constant 0 : i32
    %c0_i32_1 = arith.constant 0 : i32
    return %c0_i32, %c0_i32_0 : i32, i32
  }
  func.func @transform_3(%arg0: i32, %arg1: i32) -> (i32, i32) {
    %c0_i32 = arith.constant 0 : i32
    %c0_i32_0 = arith.constant 0 : i32
    %c0_i32_1 = arith.constant 0 : i32
    return %c0_i32, %c0_i32_0 : i32, i32
  }
  func.func @transform_4(%arg0: i32, %arg1: i32) -> (i32, i32) {
    %c0_i32 = arith.constant 0 : i32
    %c0_i32_0 = arith.constant 0 : i32
    %c0_i32_1 = arith.constant 0 : i32
    return %c0_i32, %c0_i32_0 : i32, i32
  }
  func.func @transform_5(%arg0: i32, %arg1: i32) -> (i32, i32) {
    %c0_i32 = arith.constant 0 : i32
    %c0_i32_0 = arith.constant 0 : i32
    %c0_i32_1 = arith.constant 0 : i32
    return %c0_i32, %c0_i32_0 : i32, i32
  }
  func.func @transform_6(%arg0: i32, %arg1: i32) -> (i32, i32) {
    %c0_i32 = arith.constant 0 : i32
    %c0_i32_0 = arith.constant 0 : i32
    %c0_i32_1 = arith.constant 0 : i32
    return %c0_i32, %c0_i32_0 : i32, i32
  }
  func.func @transform_7(%arg0: i32, %arg1: i32) -> (i32, i32) {
    %c0_i32 = arith.constant 0 : i32
    %c0_i32_0 = arith.constant 0 : i32
    %c0_i32_1 = arith.constant 0 : i32
    return %c0_i32, %c0_i32_0 : i32, i32
  }
  func.func @transform_8(%arg0: i32, %arg1: i32) -> (i32, i32) {
    %c0_i32 = arith.constant 0 : i32
    %c0_i32_0 = arith.constant 0 : i32
    %c0_i32_1 = arith.constant 0 : i32
    return %c0_i32, %c0_i32_0 : i32, i32
  }
  func.func @transform_9(%arg0: i32, %arg1: i32) -> (i32, i32) {
    %c0_i32 = arith.constant 0 : i32
    %c0_i32_0 = arith.constant 0 : i32
    %c0_i32_1 = arith.constant 0 : i32
    return %c0_i32, %c0_i32_0 : i32, i32
  }
  func.func @transform_10(%arg0: i32, %arg1: i32) -> (i32, i32) {
    %c0_i32 = arith.constant 0 : i32
    %c0_i32_0 = arith.constant 0 : i32
    %c0_i32_1 = arith.constant 0 : i32
    return %c0_i32, %c0_i32_0 : i32, i32
  }
  func.func @transform_11(%arg0: i32, %arg1: i32) -> (i32, i32) {
    %c0_i32 = arith.constant 0 : i32
    %c0_i32_0 = arith.constant 0 : i32
    %c0_i32_1 = arith.constant 0 : i32
    return %c0_i32, %c0_i32_0 : i32, i32
  }
  func.func @transform_12(%arg0: i32, %arg1: i32) -> (i32, i32) {
    %c0_i32 = arith.constant 0 : i32
    %c0_i32_0 = arith.constant 0 : i32
    %c0_i32_1 = arith.constant 0 : i32
    return %c0_i32, %c0_i32_0 : i32, i32
  }
  func.func @transform_13(%arg0: i32, %arg1: i32) -> (i32, i32) {
    %c0_i32 = arith.constant 0 : i32
    %c0_i32_0 = arith.constant 0 : i32
    %c0_i32_1 = arith.constant 0 : i32
    return %c0_i32, %c0_i32_0 : i32, i32
  }
  func.func @transform_14(%arg0: i32, %arg1: i32) -> (i32, i32) {
    %c0_i32 = arith.constant 0 : i32
    %c0_i32_0 = arith.constant 0 : i32
    %c0_i32_1 = arith.constant 0 : i32
    return %c0_i32, %c0_i32_0 : i32, i32
  }
  func.func @transform_15(%arg0: i32, %arg1: i32) -> (i32, i32) {
    %c0_i32 = arith.constant 0 : i32
    %c0_i32_0 = arith.constant 0 : i32
    %c0_i32_1 = arith.constant 0 : i32
    return %c0_i32, %c0_i32_0 : i32, i32
  }
  func.func @transform_16(%arg0: i32, %arg1: i32) -> (i32, i32) {
    %c0_i32 = arith.constant 0 : i32
    %c0_i32_0 = arith.constant 0 : i32
    %c0_i32_1 = arith.constant 0 : i32
    return %c0_i32, %c0_i32_0 : i32, i32
  }
  func.func @transform_17(%arg0: i32, %arg1: i32) -> (i32, i32, i32) {
    %c0_i32 = arith.constant 0 : i32
    %c0_i32_0 = arith.constant 0 : i32
    return %arg0, %arg1, %c0_i32 : i32, i32, i32
  }
}

</mosaic_0001>

<llo_original>
// kernel: tpu_custom_call.1
$region0: #{tpu_custom_call.1}
  #allocation0 [shape = 'u32[]', space=smem, size = 0x4, offset = 0x4, fixed_abs, tag = 'smem constant byte address 0x4 - core index']
  #allocation1 [shape = 'u32[144,128]{1,0:T(1,128)}', space=vmem, size = 0x12000, scoped, tag = 'internal scratch']
  #allocation2 [shape = 'bf16[256,256]{1,0:T(16,128)(2,1)}', space=vmem, size = 0x20000, scoped, tag = 'scratch operand']
  #allocation3 [shape = 'bf16[256,256]{1,0:T(16,128)(2,1)}', space=vmem, size = 0x20000, scoped, tag = 'scratch operand']
  #allocation4 [shape = 'bf16[128,256]{1,0:T(16,128)(2,1)}', space=vmem, size = 0x10000, scoped, tag = 'scratch operand']
  %s0 = inlined_call_operand.hbm [shape: f32[2,256,256], index: 0, kind: input, shape index: {}]
  %s1 = inlined_call_operand.hbm [shape: f32[1,256], index: 1, kind: input, shape index: {}]
  %s2 = inlined_call_operand.hbm [shape: f32[1,256], index: 2, kind: input, shape index: {}]
  %s3 = inlined_call_operand.hbm [shape: bf16[256,256], index: 3, kind: input, shape index: {}]
  %s4 = inlined_call_operand.hbm [shape: f32[1,256], index: 4, kind: input, shape index: {}]
  %s5 = inlined_call_operand.hbm [shape: bf16[256,256], index: 5, kind: input, shape index: {}]
  %s6 = inlined_call_operand.hbm [shape: f32[1,256], index: 6, kind: input, shape index: {}]
  %s7 = inlined_call_operand.hbm [shape: bf16[256,256], index: 7, kind: input, shape index: {}]
  %s8 = inlined_call_operand.hbm [shape: f32[1,256], index: 8, kind: input, shape index: {}]
  %s9 = inlined_call_operand.hbm [shape: bf16[256,256], index: 9, kind: input, shape index: {}]
  %s10 = inlined_call_operand.hbm [shape: f32[1,256], index: 10, kind: input, shape index: {}]
  %s11 = inlined_call_operand.hbm [shape: f32[1,256], index: 11, kind: input, shape index: {}]
  %s12 = inlined_call_operand.hbm [shape: f32[1,256], index: 12, kind: input, shape index: {}]
  %s13 = inlined_call_operand.hbm [shape: bf16[256,512], index: 13, kind: input, shape index: {}]
  %s14 = inlined_call_operand.hbm [shape: f32[1,512], index: 14, kind: input, shape index: {}]
  %s15 = inlined_call_operand.hbm [shape: bf16[512,256], index: 15, kind: input, shape index: {}]
  %s16 = inlined_call_operand.hbm [shape: f32[1,256], index: 16, kind: input, shape index: {}]
  %s17 = inlined_call_operand.hbm [shape: f32[2,256,256], index: 17, kind: output, shape index: {}]
  %s18 = sld [smem:[#allocation0]]
  $region173: #{tpu_custom_call.1} parent=0
    _
  %s20 = ssub.s32 1, %s18
  %s21 = scalar_select 0, %s20, %s18
  $region1: #{tpu_custom_call.1} parent=0
    #allocation5 [shape = 'u8[524288]{0}', space=vmem, size = 0x80000, scoped, tag = 'input window, operand 0']
    #allocation6 [shape = 's32[2]{0}', space=sflag, size = 0x8, scoped, tag = 'scoped memory for tpu_custom_call.1']
    #allocation7 [shape = 's32[2]{0}', space=sflag, size = 0x8, scoped, tag = 'scoped memory for tpu_custom_call.1']
    #allocation8 [shape = 'u8[1024]{0}', space=vmem, size = 0x400, scoped, tag = 'input window, operand 1, single buffered']
    #allocation9 [shape = 's32[1]{0}', space=sflag, size = 0x4, scoped, tag = 'scoped memory for tpu_custom_call.1']
    #allocation10 [shape = 'u8[1024]{0}', space=vmem, size = 0x400, scoped, tag = 'input window, operand 2, single buffered']
    #allocation11 [shape = 'u8[131072]{0}', space=vmem, size = 0x20000, scoped, tag = 'input window, operand 3, single buffered']
    #allocation12 [shape = 's32[1]{0}', space=sflag, size = 0x4, scoped, tag = 'scoped memory for tpu_custom_call.1']
    #allocation13 [shape = 'u8[1024]{0}', space=vmem, size = 0x400, scoped, tag = 'input window, operand 4, single buffered']
    #allocation14 [shape = 'u8[131072]{0}', space=vmem, size = 0x20000, scoped, tag = 'input window, operand 5, single buffered']
    #allocation15 [shape = 's32[1]{0}', space=sflag, size = 0x4, scoped, tag = 'scoped memory for tpu_custom_call.1']
    #allocation16 [shape = 'u8[1024]{0}', space=vmem, size = 0x400, scoped, tag = 'input window, operand 6, single buffered']
    #allocation17 [shape = 'u8[131072]{0}', space=vmem, size = 0x20000, scoped, tag = 'input window, operand 7, single buffered']
    #allocation18 [shape = 's32[1]{0}', space=sflag, size = 0x4, scoped, tag = 'scoped memory for tpu_custom_call.1']
    #allocation19 [shape = 'u8[1024]{0}', space=vmem, size = 0x400, scoped, tag = 'input window, operand 8, single buffered']
    #allocation20 [shape = 'u8[131072]{0}', space=vmem, size = 0x20000, scoped, tag = 'input window, operand 9, single buffered']
    #allocation21 [shape = 's32[1]{0}', space=sflag, size = 0x4, scoped, tag = 'scoped memory for tpu_custom_call.1']
    #allocation22 [shape = 'u8[1024]{0}', space=vmem, size = 0x400, scoped, tag = 'input window, operand 10, single buffered']
    #allocation23 [shape = 'u8[1024]{0}', space=vmem, size = 0x400, scoped, tag = 'input window, operand 11, single buffered']
    #allocation24 [shape = 's32[1]{0}', space=sflag, size = 0x4, scoped, tag = 'scoped memory for tpu_custom_call.1']
    #allocation25 [shape = 'u8[1024]{0}', space=vmem, size = 0x400, scoped, tag = 'input window, operand 12, single buffered']
    #allocation26 [shape = 'u8[262144]{0}', space=vmem, size = 0x40000, scoped, tag = 'input window, operand 13, single buffered']
    #allocation27 [shape = 's32[1]{0}', space=sflag, size = 0x4, scoped, tag = 'scoped memory for tpu_custom_call.1']
    #allocation28 [shape = 'u8[2048]{0}', space=vmem, size = 0x800, scoped, tag = 'input window, operand 14, single buffered']
    #allocation29 [shape = 'u8[262144]{0}', space=vmem, size = 0x40000, scoped, tag = 'input window, operand 15, single buffered']
    #allocation30 [shape = 's32[1]{0}', space=sflag, size = 0x4, scoped, tag = 'scoped memory for tpu_custom_call.1']
    #allocation31 [shape = 'u8[1024]{0}', space=vmem, size = 0x400, scoped, tag = 'input window, operand 16, single buffered']
    #allocation32 [shape = 'u8[262144]{0}', space=vmem, size = 0x40000, scoped, tag = 'output window, operand 0']
    %22 = vsyncpa [#allocation6], 0
    %s23 = scalar_lea.sflag [#allocation6], 1
    %24 = vsyncpa %s23, 0
    %25 = vsyncpa [#allocation9], 0
    %26 = vsyncpa [#allocation12], 0
    %27 = vsyncpa [#allocation15], 0
    %28 = vsyncpa [#allocation18], 0
    %29 = vsyncpa [#allocation21], 0
    %30 = vsyncpa [#allocation24], 0
    %31 = vsyncpa [#allocation27], 0
    %32 = vsyncpa [#allocation30], 0
    %33 = vsyncpa [#allocation7], 0
    %s34 = scalar_lea.sflag [#allocation7], 1
    %35 = vsyncpa %s34, 0
    loop: start=0, step=1, limit=6
    $region2: #{tpu_custom_call.1} parent=1 // loop_pre_header
      _
    $region3: #{tpu_custom_call.1} parent=1 // loop_header
      %s37 = sphi 0, %s41
      %p38 = scmp.ge.s32.totalorder %s37, 6
      %s44 = sphi 0, %s56
      %s45 = sphi 0, %s52
      %s46 = sphi 0, %s44
      %s47 = sphi 0, %s45
      %s48 = sphi 0, %s46
      %s49 = sphi 0, %s47
      %s59 = sphi 0, %s61
      %s62 = sphi 0, %s59
      %s63 = sphi 0, %s62
      %s79 = sphi 0, %s63
      %s83 = sphi 0, %s83
      %s85 = sphi 0, %s83
      %s86 = sphi 0, %s85
      %s100 = sphi 0, %s86
      %s104 = sphi 0, %s104
      %s106 = sphi 0, %s104
      %s107 = sphi 0, %s106
      %s121 = sphi 0, %s107
      %s125 = sphi 0, %s125
      %s127 = sphi 0, %s125
      %s128 = sphi 0, %s127
      %s142 = sphi 0, %s128
      %s146 = sphi 0, %s146
      %s148 = sphi 0, %s146
      %s149 = sphi 0, %s148
      %s163 = sphi 0, %s149
      %s167 = sphi 0, %s167
      %s169 = sphi 0, %s167
      %s170 = sphi 0, %s169
      %s184 = sphi 0, %s170
      %s188 = sphi 0, %s188
      %s190 = sphi 0, %s188
      %s191 = sphi 0, %s190
      %s205 = sphi 0, %s191
      %s209 = sphi 0, %s209
      %s211 = sphi 0, %s209
      %s212 = sphi 0, %s211
      %s226 = sphi 0, %s212
      %s230 = sphi 0, %s230
      %s232 = sphi 0, %s230
      %s233 = sphi 0, %s232
      %s247 = sphi 0, %s233
      %s251 = sphi 0, %s251
      %s253 = sphi 0, %s251
      %s254 = sphi 0, %s253
      %s268 = sphi 0, %s254
      %s272 = sphi 0, %s272
      %s274 = sphi 0, %s272
      %s275 = sphi 0, %s274
      %s289 = sphi 0, %s275
      %s293 = sphi 0, %s293
      %s295 = sphi 0, %s293
      %s296 = sphi 0, %s295
      %s310 = sphi 0, %s296
      %s314 = sphi 0, %s314
      %s316 = sphi 0, %s314
      %s317 = sphi 0, %s316
      %s331 = sphi 0, %s317
      %s335 = sphi 0, %s335
      %s337 = sphi 0, %s335
      %s338 = sphi 0, %s337
      %s352 = sphi 0, %s338
      %s356 = sphi 0, %s356
      %s358 = sphi 0, %s356
      %s359 = sphi 0, %s358
      %s373 = sphi 0, %s359
      %s377 = sphi 0, %s377
      %s379 = sphi 0, %s377
      %s380 = sphi 0, %s379
      %s394 = sphi 0, %s380
      %s398 = sphi 0, %s398
      %s400 = sphi 0, %s398
      %s401 = sphi 0, %s400
      %s415 = sphi 0, %s401
      %s423 = sphi 0, %s425
      %s426 = sphi 0, %s423
      %s427 = sphi 0, %s426
      %s443 = sphi 0, %s427
    $region4: #{tpu_custom_call.1} parent=1 // loop_header_branch
      %40 = sbr.rel (%p38) target = $region8
    $region5: #{tpu_custom_call.1} parent=1 // loop_body
      %s42 = ssub.s32 %s37, 1
      %s43 = ssub.s32 %s37, 2
      %s50 = sadd.s32 1, %s45
      %p51 = scmp.ge.s32.totalorder %s50, 2
      %s52 = scalar_select %p51, 0, %s50
      %s53 = sadd.s32 1, %s44
      %s54 = scalar_select %p51, %s53, %s44
      %p55 = scmp.ge.s32.totalorder %s54, 2
      %s56 = scalar_select %p55, 0, %s54
      %s57 = ssub.s32 %s44, %s56
      %p58 = scmp.eq.s32.totalorder %s57, 0
      %s60 = sadd.s32 %s59, 1
      %s61 = scalar_select %p58, %s59, %s60
      %p64 = pneg %p58
      %p65 = scmp.eq.s32.totalorder %s37, 3
      %p66 = por %p64, %p65
      %p67 = scmp.ne.s32.totalorder %s59, %s62
      %p68 = scmp.eq.s32.totalorder %s37, 0
      %p69 = por %p67, %p68
      %p70 = scmp.ne.s32.totalorder %s59, %s62
      %p71 = scmp.eq.s32.totalorder %s42, 3
      %p72 = por %p70, %p71
      %p73 = scmp.ne.s32.totalorder %s62, %s63
      %p74 = scmp.eq.s32.totalorder %s42, 0
      %p75 = por %p73, %p74
      %p76 = scmp.ne.s32.totalorder %s62, %s63
      %p77 = scmp.eq.s32.totalorder %s43, 3
      %p78 = por %p76, %p77
      %p80 = scmp.ne.s32.totalorder %s63, %s79
      %p81 = scmp.eq.s32.totalorder %s43, 0
      %p82 = por %p80, %p81
      %s84 = sadd.s32 %s83, 1
      %p87 = scmp.eq.s32.totalorder %s37, 3
      %p88 = scmp.ne.s32.totalorder %s83, %s85
      %p89 = scmp.eq.s32.totalorder %s37, 0
      %p90 = por %p88, %p89
      %p91 = scmp.ne.s32.totalorder %s83, %s85
      %p92 = scmp.eq.s32.totalorder %s42, 3
      %p93 = por %p91, %p92
      %p94 = scmp.ne.s32.totalorder %s85, %s86
      %p95 = scmp.eq.s32.totalorder %s42, 0
      %p96 = por %p94, %p95
      %p97 = scmp.ne.s32.totalorder %s85, %s86
      %p98 = scmp.eq.s32.totalorder %s43, 3
      %p99 = por %p97, %p98
      %p101 = scmp.ne.s32.totalorder %s86, %s100
      %p102 = scmp.eq.s32.totalorder %s43, 0
      %p103 = por %p101, %p102
      %s105 = sadd.s32 %s104, 1
      %p108 = scmp.eq.s32.totalorder %s37, 3
      %p109 = scmp.ne.s32.totalorder %s104, %s106
      %p110 = scmp.eq.s32.totalorder %s37, 0
      %p111 = por %p109, %p110
      %p112 = scmp.ne.s32.totalorder %s104, %s106
      %p113 = scmp.eq.s32.totalorder %s42, 3
      %p114 = por %p112, %p113
      %p115 = scmp.ne.s32.totalorder %s106, %s107
      %p116 = scmp.eq.s32.totalorder %s42, 0
      %p117 = por %p115, %p116
      %p118 = scmp.ne.s32.totalorder %s106, %s107
      %p119 = scmp.eq.s32.totalorder %s43, 3
      %p120 = por %p118, %p119
      %p122 = scmp.ne.s32.totalorder %s107, %s121
      %p123 = scmp.eq.s32.totalorder %s43, 0
      %p124 = por %p122, %p123
      %s126 = sadd.s32 %s125, 1
      %p129 = scmp.eq.s32.totalorder %s37, 3
      %p130 = scmp.ne.s32.totalorder %s125, %s127
      %p131 = scmp.eq.s32.totalorder %s37, 0
      %p132 = por %p130, %p131
      %p133 = scmp.ne.s32.totalorder %s125, %s127
      %p134 = scmp.eq.s32.totalorder %s42, 3
      %p135 = por %p133, %p134
      %p136 = scmp.ne.s32.totalorder %s127, %s128
      %p137 = scmp.eq.s32.totalorder %s42, 0
      %p138 = por %p136, %p137
      %p139 = scmp.ne.s32.totalorder %s127, %s128
      %p140 = scmp.eq.s32.totalorder %s43, 3
      %p141 = por %p139, %p140
      %p143 = scmp.ne.s32.totalorder %s128, %s142
      %p144 = scmp.eq.s32.totalorder %s43, 0
      %p145 = por %p143, %p144
      %s147 = sadd.s32 %s146, 1
      %p150 = scmp.eq.s32.totalorder %s37, 3
      %p151 = scmp.ne.s32.totalorder %s146, %s148
      %p152 = scmp.eq.s32.totalorder %s37, 0
      %p153 = por %p151, %p152
      %p154 = scmp.ne.s32.totalorder %s146, %s148
      %p155 = scmp.eq.s32.totalorder %s42, 3
      %p156 = por %p154, %p155
      %p157 = scmp.ne.s32.totalorder %s148, %s149
      %p158 = scmp.eq.s32.totalorder %s42, 0
      %p159 = por %p157, %p158
      %p160 = scmp.ne.s32.totalorder %s148, %s149
      %p161 = scmp.eq.s32.totalorder %s43, 3
      %p162 = por %p160, %p161
      %p164 = scmp.ne.s32.totalorder %s149, %s163
      %p165 = scmp.eq.s32.totalorder %s43, 0
      %p166 = por %p164, %p165
      %s168 = sadd.s32 %s167, 1
      %p171 = scmp.eq.s32.totalorder %s37, 3
      %p172 = scmp.ne.s32.totalorder %s167, %s169
      %p173 = scmp.eq.s32.totalorder %s37, 0
      %p174 = por %p172, %p173
      %p175 = scmp.ne.s32.totalorder %s167, %s169
      %p176 = scmp.eq.s32.totalorder %s42, 3
      %p177 = por %p175, %p176
      %p178 = scmp.ne.s32.totalorder %s169, %s170
      %p179 = scmp.eq.s32.totalorder %s42, 0
      %p180 = por %p178, %p179
      %p181 = scmp.ne.s32.totalorder %s169, %s170
      %p182 = scmp.eq.s32.totalorder %s43, 3
      %p183 = por %p181, %p182
      %p185 = scmp.ne.s32.totalorder %s170, %s184
      %p186 = scmp.eq.s32.totalorder %s43, 0
      %p187 = por %p185, %p186
      %s189 = sadd.s32 %s188, 1
      %p192 = scmp.eq.s32.totalorder %s37, 3
      %p193 = scmp.ne.s32.totalorder %s188, %s190
      %p194 = scmp.eq.s32.totalorder %s37, 0
      %p195 = por %p193, %p194
      %p196 = scmp.ne.s32.totalorder %s188, %s190
      %p197 = scmp.eq.s32.totalorder %s42, 3
      %p198 = por %p196, %p197
      %p199 = scmp.ne.s32.totalorder %s190, %s191
      %p200 = scmp.eq.s32.totalorder %s42, 0
      %p201 = por %p199, %p200
      %p202 = scmp.ne.s32.totalorder %s190, %s191
      %p203 = scmp.eq.s32.totalorder %s43, 3
      %p204 = por %p202, %p203
      %p206 = scmp.ne.s32.totalorder %s191, %s205
      %p207 = scmp.eq.s32.totalorder %s43, 0
      %p208 = por %p206, %p207
      %s210 = sadd.s32 %s209, 1
      %p213 = scmp.eq.s32.totalorder %s37, 3
      %p214 = scmp.ne.s32.totalorder %s209, %s211
      %p215 = scmp.eq.s32.totalorder %s37, 0
      %p216 = por %p214, %p215
      %p217 = scmp.ne.s32.totalorder %s209, %s211
      %p218 = scmp.eq.s32.totalorder %s42, 3
      %p219 = por %p217, %p218
      %p220 = scmp.ne.s32.totalorder %s211, %s212
      %p221 = scmp.eq.s32.totalorder %s42, 0
      %p222 = por %p220, %p221
      %p223 = scmp.ne.s32.totalorder %s211, %s212
      %p224 = scmp.eq.s32.totalorder %s43, 3
      %p225 = por %p223, %p224
      %p227 = scmp.ne.s32.totalorder %s212, %s226
      %p228 = scmp.eq.s32.totalorder %s43, 0
      %p229 = por %p227, %p228
      %s231 = sadd.s32 %s230, 1
      %p234 = scmp.eq.s32.totalorder %s37, 3
      %p235 = scmp.ne.s32.totalorder %s230, %s232
      %p236 = scmp.eq.s32.totalorder %s37, 0
      %p237 = por %p235, %p236
      %p238 = scmp.ne.s32.totalorder %s230, %s232
      %p239 = scmp.eq.s32.totalorder %s42, 3
      %p240 = por %p238, %p239
      %p241 = scmp.ne.s32.totalorder %s232, %s233
      %p242 = scmp.eq.s32.totalorder %s42, 0
      %p243 = por %p241, %p242
      %p244 = scmp.ne.s32.totalorder %s232, %s233
      %p245 = scmp.eq.s32.totalorder %s43, 3
      %p246 = por %p244, %p245
      %p248 = scmp.ne.s32.totalorder %s233, %s247
      %p249 = scmp.eq.s32.totalorder %s43, 0
      %p250 = por %p248, %p249
      %s252 = sadd.s32 %s251, 1
      %p255 = scmp.eq.s32.totalorder %s37, 3
      %p256 = scmp.ne.s32.totalorder %s251, %s253
      %p257 = scmp.eq.s32.totalorder %s37, 0
      %p258 = por %p256, %p257
      %p259 = scmp.ne.s32.totalorder %s251, %s253
      %p260 = scmp.eq.s32.totalorder %s42, 3
      %p261 = por %p259, %p260
      %p262 = scmp.ne.s32.totalorder %s253, %s254
      %p263 = scmp.eq.s32.totalorder %s42, 0
      %p264 = por %p262, %p263
      %p265 = scmp.ne.s32.totalorder %s253, %s254
      %p266 = scmp.eq.s32.totalorder %s43, 3
      %p267 = por %p265, %p266
      %p269 = scmp.ne.s32.totalorder %s254, %s268
      %p270 = scmp.eq.s32.totalorder %s43, 0
      %p271 = por %p269, %p270
      %s273 = sadd.s32 %s272, 1
      %p276 = scmp.eq.s32.totalorder %s37, 3
      %p277 = scmp.ne.s32.totalorder %s272, %s274
      %p278 = scmp.eq.s32.totalorder %s37, 0
      %p279 = por %p277, %p278
      %p280 = scmp.ne.s32.totalorder %s272, %s274
      %p281 = scmp.eq.s32.totalorder %s42, 3
      %p282 = por %p280, %p281
      %p283 = scmp.ne.s32.totalorder %s274, %s275
      %p284 = scmp.eq.s32.totalorder %s42, 0
      %p285 = por %p283, %p284
      %p286 = scmp.ne.s32.totalorder %s274, %s275
      %p287 = scmp.eq.s32.totalorder %s43, 3
      %p288 = por %p286, %p287
      %p290 = scmp.ne.s32.totalorder %s275, %s289
      %p291 = scmp.eq.s32.totalorder %s43, 0
      %p292 = por %p290, %p291
      %s294 = sadd.s32 %s293, 1
      %p297 = scmp.eq.s32.totalorder %s37, 3
      %p298 = scmp.ne.s32.totalorder %s293, %s295
      %p299 = scmp.eq.s32.totalorder %s37, 0
      %p300 = por %p298, %p299
      %p301 = scmp.ne.s32.totalorder %s293, %s295
      %p302 = scmp.eq.s32.totalorder %s42, 3
      %p303 = por %p301, %p302
      %p304 = scmp.ne.s32.totalorder %s295, %s296
      %p305 = scmp.eq.s32.totalorder %s42, 0
      %p306 = por %p304, %p305
      %p307 = scmp.ne.s32.totalorder %s295, %s296
      %p308 = scmp.eq.s32.totalorder %s43, 3
      %p309 = por %p307, %p308
      %p311 = scmp.ne.s32.totalorder %s296, %s310
      %p312 = scmp.eq.s32.totalorder %s43, 0
      %p313 = por %p311, %p312
      %s315 = sadd.s32 %s314, 1
      %p318 = scmp.eq.s32.totalorder %s37, 3
      %p319 = scmp.ne.s32.totalorder %s314, %s316
      %p320 = scmp.eq.s32.totalorder %s37, 0
      %p321 = por %p319, %p320
      %p322 = scmp.ne.s32.totalorder %s314, %s316
      %p323 = scmp.eq.s32.totalorder %s42, 3
      %p324 = por %p322, %p323
      %p325 = scmp.ne.s32.totalorder %s316, %s317
      %p326 = scmp.eq.s32.totalorder %s42, 0
      %p327 = por %p325, %p326
      %p328 = scmp.ne.s32.totalorder %s316, %s317
      %p329 = scmp.eq.s32.totalorder %s43, 3
      %p330 = por %p328, %p329
      %p332 = scmp.ne.s32.totalorder %s317, %s331
      %p333 = scmp.eq.s32.totalorder %s43, 0
      %p334 = por %p332, %p333
      %s336 = sadd.s32 %s335, 1
      %p339 = scmp.eq.s32.totalorder %s37, 3
      %p340 = scmp.ne.s32.totalorder %s335, %s337
      %p341 = scmp.eq.s32.totalorder %s37, 0
      %p342 = por %p340, %p341
      %p343 = scmp.ne.s32.totalorder %s335, %s337
      %p344 = scmp.eq.s32.totalorder %s42, 3
      %p345 = por %p343, %p344
      %p346 = scmp.ne.s32.totalorder %s337, %s338
      %p347 = scmp.eq.s32.totalorder %s42, 0
      %p348 = por %p346, %p347
      %p349 = scmp.ne.s32.totalorder %s337, %s338
      %p350 = scmp.eq.s32.totalorder %s43, 3
      %p351 = por %p349, %p350
      %p353 = scmp.ne.s32.totalorder %s338, %s352
      %p354 = scmp.eq.s32.totalorder %s43, 0
      %p355 = por %p353, %p354
      %s357 = sadd.s32 %s356, 1
      %p360 = scmp.eq.s32.totalorder %s37, 3
      %p361 = scmp.ne.s32.totalorder %s356, %s358
      %p362 = scmp.eq.s32.totalorder %s37, 0
      %p363 = por %p361, %p362
      %p364 = scmp.ne.s32.totalorder %s356, %s358
      %p365 = scmp.eq.s32.totalorder %s42, 3
      %p366 = por %p364, %p365
      %p367 = scmp.ne.s32.totalorder %s358, %s359
      %p368 = scmp.eq.s32.totalorder %s42, 0
      %p369 = por %p367, %p368
      %p370 = scmp.ne.s32.totalorder %s358, %s359
      %p371 = scmp.eq.s32.totalorder %s43, 3
      %p372 = por %p370, %p371
      %p374 = scmp.ne.s32.totalorder %s359, %s373
      %p375 = scmp.eq.s32.totalorder %s43, 0
      %p376 = por %p374, %p375
      %s378 = sadd.s32 %s377, 1
      %p381 = scmp.eq.s32.totalorder %s37, 3
      %p382 = scmp.ne.s32.totalorder %s377, %s379
      %p383 = scmp.eq.s32.totalorder %s37, 0
      %p384 = por %p382, %p383
      %p385 = scmp.ne.s32.totalorder %s377, %s379
      %p386 = scmp.eq.s32.totalorder %s42, 3
      %p387 = por %p385, %p386
      %p388 = scmp.ne.s32.totalorder %s379, %s380
      %p389 = scmp.eq.s32.totalorder %s42, 0
      %p390 = por %p388, %p389
      %p391 = scmp.ne.s32.totalorder %s379, %s380
      %p392 = scmp.eq.s32.totalorder %s43, 3
      %p393 = por %p391, %p392
      %p395 = scmp.ne.s32.totalorder %s380, %s394
      %p396 = scmp.eq.s32.totalorder %s43, 0
      %p397 = por %p395, %p396
      %s399 = sadd.s32 %s398, 1
      %p402 = scmp.eq.s32.totalorder %s37, 3
      %p403 = scmp.ne.s32.totalorder %s398, %s400
      %p404 = scmp.eq.s32.totalorder %s37, 0
      %p405 = por %p403, %p404
      %p406 = scmp.ne.s32.totalorder %s398, %s400
      %p407 = scmp.eq.s32.totalorder %s42, 3
      %p408 = por %p406, %p407
      %p409 = scmp.ne.s32.totalorder %s400, %s401
      %p410 = scmp.eq.s32.totalorder %s42, 0
      %p411 = por %p409, %p410
      %p412 = scmp.ne.s32.totalorder %s400, %s401
      %p413 = scmp.eq.s32.totalorder %s43, 3
      %p414 = por %p412, %p413
      %p416 = scmp.ne.s32.totalorder %s401, %s415
      %p417 = scmp.eq.s32.totalorder %s43, 0
      %p418 = por %p416, %p417
      %s419 = ssub.s32 %s44, %s56
      %s420 = ssub.s32 %s45, %s52
      %s421 = sor.u32 %s419, %s420
      %p422 = scmp.eq.s32.totalorder %s421, 0
      %s424 = sadd.s32 %s423, 1
      %s425 = scalar_select %p422, %s423, %s424
      %p428 = pneg %p422
      %p429 = scmp.eq.s32.totalorder %s37, 3
      %p430 = por %p428, %p429
      %p431 = scmp.ne.s32.totalorder %s423, %s426
      %p432 = scmp.eq.s32.totalorder %s37, 0
      %p433 = por %p431, %p432
      %p434 = scmp.ne.s32.totalorder %s423, %s426
      %p435 = scmp.eq.s32.totalorder %s42, 3
      %p436 = por %p434, %p435
      %p437 = scmp.ne.s32.totalorder %s426, %s427
      %p438 = scmp.eq.s32.totalorder %s42, 0
      %p439 = por %p437, %p438
      %p440 = scmp.ne.s32.totalorder %s426, %s427
      %p441 = scmp.eq.s32.totalorder %s43, 3
      %p442 = por %p440, %p441
      %p444 = scmp.ne.s32.totalorder %s427, %s443
      %p445 = scmp.eq.s32.totalorder %s43, 0
      %p446 = por %p444, %p445
      %p447 = scmp.le.s32.totalorder 1, %s37
      %p448 = scmp.lt.s32.totalorder %s37, 5
      %p449 = pnand %p447, %p448
      %p450 = pneg %p449
      // Predicated region
      $region9: #{tpu_custom_call.1} parent=5 // pred_check
        _
      $region10: #{tpu_custom_call.1} parent=5 // pred_check_branch
        %452 = sbr.rel (%p449) target = $region12
      $region11: #{tpu_custom_call.1} parent=5 // pred_region
        %s453 = ssub.s32 %s37, 1
        // Predicated region
        $region13: #{tpu_custom_call.1} parent=11 // pred_check
          %p454 = pneg %p96
        $region14: #{tpu_custom_call.1} parent=11 // pred_check_branch
          %456 = sbr.rel (%p454) target = $region16
        $region15: #{tpu_custom_call.1} parent=11 // pred_region
          %s458 = ssub.s32 32, 32
          %459 = vsyncadd [#allocation9], %s458
          %s461 = sshll.u32 [#allocation8], 4
          %s462 = int_to_ptr.vmem [resolvable:$true] %s461
          %464 = dma.hbm_to_vmem [thread:$0]  %s1, 32, %s462, [#allocation9]
        $region16: #{tpu_custom_call.1} parent=11 // pred_fallthru
          _
        // Predicated region
        $region17: #{tpu_custom_call.1} parent=11 // pred_check
          %p465 = pneg %p117
        $region18: #{tpu_custom_call.1} parent=11 // pred_check_branch
          %467 = sbr.rel (%p465) target = $region20
        $region19: #{tpu_custom_call.1} parent=11 // pred_region
          %s469 = ssub.s32 32, 32
          %470 = vsyncadd [#allocation9], %s469
          %s472 = sshll.u32 [#allocation10], 4
          %s473 = int_to_ptr.vmem [resolvable:$true] %s472
          %475 = dma.hbm_to_vmem [thread:$0]  %s2, 32, %s473, [#allocation9]
        $region20: #{tpu_custom_call.1} parent=11 // pred_fallthru
          _
        // Predicated region
        $region21: #{tpu_custom_call.1} parent=11 // pred_check
          %p476 = pneg %p138
        $region22: #{tpu_custom_call.1} parent=11 // pred_check_branch
          %478 = sbr.rel (%p476) target = $region24
        $region23: #{tpu_custom_call.1} parent=11 // pred_region
          %s480 = ssub.s32 4096, 4096
          %481 = vsyncadd [#allocation12], %s480
          %s482 = sshll.u32 [#allocation11], 4
          %s483 = int_to_ptr.vmem [resolvable:$true] %s482
          %488 = dma.hbm_to_vmem [thread:$0]  %s3, 4096, %s483, [#allocation12], 128, 128, 8
        $region24: #{tpu_custom_call.1} parent=11 // pred_fallthru
          _
        // Predicated region
        $region25: #{tpu_custom_call.1} parent=11 // pred_check
          %p489 = pneg %p159
        $region26: #{tpu_custom_call.1} parent=11 // pred_check_branch
          %491 = sbr.rel (%p489) target = $region28
        $region27: #{tpu_custom_call.1} parent=11 // pred_region
          %s493 = ssub.s32 32, 32
          %494 = vsyncadd [#allocation12], %s493
          %s496 = sshll.u32 [#allocation13], 4
          %s497 = int_to_ptr.vmem [resolvable:$true] %s496
          %499 = dma.hbm_to_vmem [thread:$0]  %s4, 32, %s497, [#allocation12]
        $region28: #{tpu_custom_call.1} parent=11 // pred_fallthru
          _
        // Predicated region
        $region29: #{tpu_custom_call.1} parent=11 // pred_check
          %p500 = pneg %p180
        $region30: #{tpu_custom_call.1} parent=11 // pred_check_branch
          %502 = sbr.rel (%p500) target = $region32
        $region31: #{tpu_custom_call.1} parent=11 // pred_region
          %s504 = ssub.s32 4096, 4096
          %505 = vsyncadd [#allocation15], %s504
          %s506 = sshll.u32 [#allocation14], 4
          %s507 = int_to_ptr.vmem [resolvable:$true] %s506
          %512 = dma.hbm_to_vmem [thread:$0]  %s5, 4096, %s507, [#allocation15], 128, 128, 8
        $region32: #{tpu_custom_call.1} parent=11 // pred_fallthru
          _
        // Predicated region
        $region33: #{tpu_custom_call.1} parent=11 // pred_check
          %p513 = pneg %p201
        $region34: #{tpu_custom_call.1} parent=11 // pred_check_branch
          %515 = sbr.rel (%p513) target = $region36
        $region35: #{tpu_custom_call.1} parent=11 // pred_region
          %s517 = ssub.s32 32, 32
          %518 = vsyncadd [#allocation15], %s517
          %s520 = sshll.u32 [#allocation16], 4
          %s521 = int_to_ptr.vmem [resolvable:$true] %s520
          %523 = dma.hbm_to_vmem [thread:$0]  %s6, 32, %s521, [#allocation15]
        $region36: #{tpu_custom_call.1} parent=11 // pred_fallthru
          _
        // Predicated region
        $region37: #{tpu_custom_call.1} parent=11 // pred_check
          %p524 = pneg %p222
        $region38: #{tpu_custom_call.1} parent=11 // pred_check_branch
          %526 = sbr.rel (%p524) target = $region40
        $region39: #{tpu_custom_call.1} parent=11 // pred_region
          %s528 = ssub.s32 4096, 4096
          %529 = vsyncadd [#allocation18], %s528
          %s530 = sshll.u32 [#allocation17], 4
          %s531 = int_to_ptr.vmem [resolvable:$true] %s530
          %536 = dma.hbm_to_vmem [thread:$0]  %s7, 4096, %s531, [#allocation18], 128, 128, 8
        $region40: #{tpu_custom_call.1} parent=11 // pred_fallthru
          _
        // Predicated region
        $region41: #{tpu_custom_call.1} parent=11 // pred_check
          %p537 = pneg %p243
        $region42: #{tpu_custom_call.1} parent=11 // pred_check_branch
          %539 = sbr.rel (%p537) target = $region44
        $region43: #{tpu_custom_call.1} parent=11 // pred_region
          %s541 = ssub.s32 32, 32
          %542 = vsyncadd [#allocation18], %s541
          %s544 = sshll.u32 [#allocation19], 4
          %s545 = int_to_ptr.vmem [resolvable:$true] %s544
          %547 = dma.hbm_to_vmem [thread:$0]  %s8, 32, %s545, [#allocation18]
        $region44: #{tpu_custom_call.1} parent=11 // pred_fallthru
          _
        // Predicated region
        $region45: #{tpu_custom_call.1} parent=11 // pred_check
          %p548 = pneg %p264
        $region46: #{tpu_custom_call.1} parent=11 // pred_check_branch
          %550 = sbr.rel (%p548) target = $region48
        $region47: #{tpu_custom_call.1} parent=11 // pred_region
          %s552 = ssub.s32 4096, 4096
          %553 = vsyncadd [#allocation21], %s552
          %s554 = sshll.u32 [#allocation20], 4
          %s555 = int_to_ptr.vmem [resolvable:$true] %s554
          %560 = dma.hbm_to_vmem [thread:$0]  %s9, 4096, %s555, [#allocation21], 128, 128, 8
        $region48: #{tpu_custom_call.1} parent=11 // pred_fallthru
          _
        // Predicated region
        $region49: #{tpu_custom_call.1} parent=11 // pred_check
          %p561 = pneg %p285
        $region50: #{tpu_custom_call.1} parent=11 // pred_check_branch
          %563 = sbr.rel (%p561) target = $region52
        $region51: #{tpu_custom_call.1} parent=11 // pred_region
          %s565 = ssub.s32 32, 32
          %566 = vsyncadd [#allocation21], %s565
          %s568 = sshll.u32 [#allocation22], 4
          %s569 = int_to_ptr.vmem [resolvable:$true] %s568
          %571 = dma.hbm_to_vmem [thread:$0]  %s10, 32, %s569, [#allocation21]
        $region52: #{tpu_custom_call.1} parent=11 // pred_fallthru
          _
        // Predicated region
        $region53: #{tpu_custom_call.1} parent=11 // pred_check
          %p572 = pneg %p306
        $region54: #{tpu_custom_call.1} parent=11 // pred_check_branch
          %574 = sbr.rel (%p572) target = $region56
        $region55: #{tpu_custom_call.1} parent=11 // pred_region
          %s576 = ssub.s32 32, 32
          %577 = vsyncadd [#allocation24], %s576
          %s579 = sshll.u32 [#allocation23], 4
          %s580 = int_to_ptr.vmem [resolvable:$true] %s579
          %582 = dma.hbm_to_vmem [thread:$0]  %s11, 32, %s580, [#allocation24]
        $region56: #{tpu_custom_call.1} parent=11 // pred_fallthru
          _
        // Predicated region
        $region57: #{tpu_custom_call.1} parent=11 // pred_check
          %p583 = pneg %p327
        $region58: #{tpu_custom_call.1} parent=11 // pred_check_branch
          %585 = sbr.rel (%p583) target = $region60
        $region59: #{tpu_custom_call.1} parent=11 // pred_region
          %s587 = ssub.s32 32, 32
          %588 = vsyncadd [#allocation24], %s587
          %s590 = sshll.u32 [#allocation25], 4
          %s591 = int_to_ptr.vmem [resolvable:$true] %s590
          %593 = dma.hbm_to_vmem [thread:$0]  %s12, 32, %s591, [#allocation24]
        $region60: #{tpu_custom_call.1} parent=11 // pred_fallthru
          _
        // Predicated region
        $region61: #{tpu_custom_call.1} parent=11 // pred_check
          %p594 = pneg %p348
        $region62: #{tpu_custom_call.1} parent=11 // pred_check_branch
          %596 = sbr.rel (%p594) target = $region64
        $region63: #{tpu_custom_call.1} parent=11 // pred_region
          %s598 = ssub.s32 8192, 8192
          %599 = vsyncadd [#allocation27], %s598
          %s600 = sshll.u32 [#allocation26], 4
          %s601 = int_to_ptr.vmem [resolvable:$true] %s600
          %606 = dma.hbm_to_vmem [thread:$0]  %s13, 8192, %s601, [#allocation27], 256, 256, 16
        $region64: #{tpu_custom_call.1} parent=11 // pred_fallthru
          _
        // Predicated region
        $region65: #{tpu_custom_call.1} parent=11 // pred_check
          %p607 = pneg %p369
        $region66: #{tpu_custom_call.1} parent=11 // pred_check_branch
          %609 = sbr.rel (%p607) target = $region68
        $region67: #{tpu_custom_call.1} parent=11 // pred_region
          %s611 = ssub.s32 64, 64
          %612 = vsyncadd [#allocation27], %s611
          %s614 = sshll.u32 [#allocation28], 4
          %s615 = int_to_ptr.vmem [resolvable:$true] %s614
          %617 = dma.hbm_to_vmem [thread:$0]  %s14, 64, %s615, [#allocation27]
        $region68: #{tpu_custom_call.1} parent=11 // pred_fallthru
          _
        // Predicated region
        $region69: #{tpu_custom_call.1} parent=11 // pred_check
          %p618 = pneg %p390
        $region70: #{tpu_custom_call.1} parent=11 // pred_check_branch
          %620 = sbr.rel (%p618) target = $region72
        $region71: #{tpu_custom_call.1} parent=11 // pred_region
          %s622 = ssub.s32 8192, 8192
          %623 = vsyncadd [#allocation30], %s622
          %s624 = sshll.u32 [#allocation29], 4
          %s625 = int_to_ptr.vmem [resolvable:$true] %s624
          %630 = dma.hbm_to_vmem [thread:$0]  %s15, 8192, %s625, [#allocation30], 128, 128, 8
        $region72: #{tpu_custom_call.1} parent=11 // pred_fallthru
          _
        // Predicated region
        $region73: #{tpu_custom_call.1} parent=11 // pred_check
          %p631 = pneg %p411
        $region74: #{tpu_custom_call.1} parent=11 // pred_check_branch
          %633 = sbr.rel (%p631) target = $region76
        $region75: #{tpu_custom_call.1} parent=11 // pred_region
          %s635 = ssub.s32 32, 32
          %636 = vsyncadd [#allocation30], %s635
          %s638 = sshll.u32 [#allocation31], 4
          %s639 = int_to_ptr.vmem [resolvable:$true] %s638
          %641 = dma.hbm_to_vmem [thread:$0]  %s16, 32, %s639, [#allocation30]
        $region76: #{tpu_custom_call.1} parent=11 // pred_fallthru
          _
      $region12: #{tpu_custom_call.1} parent=5 // pred_fallthru
        _
      %p642 = scmp.lt.s32.totalorder %s37, 4
      // Predicated region
      $region77: #{tpu_custom_call.1} parent=5 // pred_check
        %p643 = pneg %p642
      $region78: #{tpu_custom_call.1} parent=5 // pred_check_branch
        %645 = sbr.rel (%p643) target = $region80
      $region79: #{tpu_custom_call.1} parent=5 // pred_region
        // Predicated region
        $region81: #{tpu_custom_call.1} parent=79 // pred_check
          %p646 = pneg %p69
        $region82: #{tpu_custom_call.1} parent=79 // pred_check_branch
          %648 = sbr.rel (%p646) target = $region84
        $region83: #{tpu_custom_call.1} parent=79 // pred_region
          %s649 = sand.u32 %s59, 1
          %s650 = scalar_lea.sflag [#allocation6], %s649
          %s651 = sand.u32 %s59, 1
          %s652 = smul.addr %s651, 512
          %s653 = scalar_lea.vmem [#allocation5], %s652
          %s655 = ssub.s32 8192, 8192
          %656 = vsyncadd %s650, %s655
          %s657 = smul.addr %s44, 64
          %s658 = smul.addr %s657, 128
          %s659 = scalar_lea.hbm %s0, %s658
          %s660 = sshll.u32 %s653, 4
          %s661 = int_to_ptr.vmem [resolvable:$true] %s660
          %666 = dma.hbm_to_vmem [thread:$0]  %s659, 8192, %s661, %s650, 256, 256, 16
        $region84: #{tpu_custom_call.1} parent=79 // pred_fallthru
          _
      $region80: #{tpu_custom_call.1} parent=5 // pred_fallthru
        _
      %p667 = scmp.le.s32.totalorder 1, %s37
      %p668 = scmp.lt.s32.totalorder %s37, 5
      %p669 = pnand %p667, %p668
      %p670 = pneg %p669
      // Predicated region
      $region85: #{tpu_custom_call.1} parent=5 // pred_check
        _
      $region86: #{tpu_custom_call.1} parent=5 // pred_check_branch
        %672 = sbr.rel (%p669) target = $region88
      $region87: #{tpu_custom_call.1} parent=5 // pred_region
        %s673 = ssub.s32 %s37, 1
        %s674 = sand.u32 %s62, 1
        %s675 = scalar_lea.sflag [#allocation6], %s674
        %s676 = sand.u32 %s62, 1
        %s677 = smul.addr %s676, 512
        %s678 = scalar_lea.vmem [#allocation5], %s677
        // Predicated region
        $region89: #{tpu_custom_call.1} parent=87 // pred_check
          %p679 = pneg %p75
        $region90: #{tpu_custom_call.1} parent=87 // pred_check_branch
          %681 = sbr.rel (%p679) target = $region92
        $region91: #{tpu_custom_call.1} parent=87 // pred_region
          %682 = dma.done %s675, 8192
        $region92: #{tpu_custom_call.1} parent=87 // pred_fallthru
          _
        // Predicated region
        $region93: #{tpu_custom_call.1} parent=87 // pred_check
          %p683 = pneg %p96
        $region94: #{tpu_custom_call.1} parent=87 // pred_check_branch
          %685 = sbr.rel (%p683) target = $region96
        $region95: #{tpu_custom_call.1} parent=87 // pred_region
          %686 = dma.done [#allocation9], 32
        $region96: #{tpu_custom_call.1} parent=87 // pred_fallthru
          _
        // Predicated region
        $region97: #{tpu_custom_call.1} parent=87 // pred_check
          %p687 = pneg %p117
        $region98: #{tpu_custom_call.1} parent=87 // pred_check_branch
          %689 = sbr.rel (%p687) target = $region100
        $region99: #{tpu_custom_call.1} parent=87 // pred_region
          %690 = dma.done [#allocation9], 32
        $region100: #{tpu_custom_call.1} parent=87 // pred_fallthru
          _
        // Predicated region
        $region101: #{tpu_custom_call.1} parent=87 // pred_check
          %p691 = pneg %p138
        $region102: #{tpu_custom_call.1} parent=87 // pred_check_branch
          %693 = sbr.rel (%p691) target = $region104
        $region103: #{tpu_custom_call.1} parent=87 // pred_region
          %694 = dma.done [#allocation12], 4096
        $region104: #{tpu_custom_call.1} parent=87 // pred_fallthru
          _
        // Predicated region
        $region105: #{tpu_custom_call.1} parent=87 // pred_check
          %p695 = pneg %p159
        $region106: #{tpu_custom_call.1} parent=87 // pred_check_branch
          %697 = sbr.rel (%p695) target = $region108
        $region107: #{tpu_custom_call.1} parent=87 // pred_region
          %698 = dma.done [#allocation12], 32
        $region108: #{tpu_custom_call.1} parent=87 // pred_fallthru
          _
        // Predicated region
        $region109: #{tpu_custom_call.1} parent=87 // pred_check
          %p699 = pneg %p180
        $region110: #{tpu_custom_call.1} parent=87 // pred_check_branch
          %701 = sbr.rel (%p699) target = $region112
        $region111: #{tpu_custom_call.1} parent=87 // pred_region
          %702 = dma.done [#allocation15], 4096
        $region112: #{tpu_custom_call.1} parent=87 // pred_fallthru
          _
        // Predicated region
        $region113: #{tpu_custom_call.1} parent=87 // pred_check
          %p703 = pneg %p201
        $region114: #{tpu_custom_call.1} parent=87 // pred_check_branch
          %705 = sbr.rel (%p703) target = $region116
        $region115: #{tpu_custom_call.1} parent=87 // pred_region
          %706 = dma.done [#allocation15], 32
        $region116: #{tpu_custom_call.1} parent=87 // pred_fallthru
          _
        // Predicated region
        $region117: #{tpu_custom_call.1} parent=87 // pred_check
          %p707 = pneg %p222
        $region118: #{tpu_custom_call.1} parent=87 // pred_check_branch
          %709 = sbr.rel (%p707) target = $region120
        $region119: #{tpu_custom_call.1} parent=87 // pred_region
          %710 = dma.done [#allocation18], 4096
        $region120: #{tpu_custom_call.1} parent=87 // pred_fallthru
          _
        // Predicated region
        $region121: #{tpu_custom_call.1} parent=87 // pred_check
          %p711 = pneg %p243
        $region122: #{tpu_custom_call.1} parent=87 // pred_check_branch
          %713 = sbr.rel (%p711) target = $region124
        $region123: #{tpu_custom_call.1} parent=87 // pred_region
          %714 = dma.done [#allocation18], 32
        $region124: #{tpu_custom_call.1} parent=87 // pred_fallthru
          _
        // Predicated region
        $region125: #{tpu_custom_call.1} parent=87 // pred_check
          %p715 = pneg %p264
        $region126: #{tpu_custom_call.1} parent=87 // pred_check_branch
          %717 = sbr.rel (%p715) target = $region128
        $region127: #{tpu_custom_call.1} parent=87 // pred_region
          %718 = dma.done [#allocation21], 4096
        $region128: #{tpu_custom_call.1} parent=87 // pred_fallthru
          _
        // Predicated region
        $region129: #{tpu_custom_call.1} parent=87 // pred_check
          %p719 = pneg %p285
        $region130: #{tpu_custom_call.1} parent=87 // pred_check_branch
          %721 = sbr.rel (%p719) target = $region132
        $region131: #{tpu_custom_call.1} parent=87 // pred_region
          %722 = dma.done [#allocation21], 32
        $region132: #{tpu_custom_call.1} parent=87 // pred_fallthru
          _
        // Predicated region
        $region133: #{tpu_custom_call.1} parent=87 // pred_check
          %p723 = pneg %p306
        $region134: #{tpu_custom_call.1} parent=87 // pred_check_branch
          %725 = sbr.rel (%p723) target = $region136
        $region135: #{tpu_custom_call.1} parent=87 // pred_region
          %726 = dma.done [#allocation24], 32
        $region136: #{tpu_custom_call.1} parent=87 // pred_fallthru
          _
        // Predicated region
        $region137: #{tpu_custom_call.1} parent=87 // pred_check
          %p727 = pneg %p327
        $region138: #{tpu_custom_call.1} parent=87 // pred_check_branch
          %729 = sbr.rel (%p727) target = $region140
        $region139: #{tpu_custom_call.1} parent=87 // pred_region
          %730 = dma.done [#allocation24], 32
        $region140: #{tpu_custom_call.1} parent=87 // pred_fallthru
          _
        // Predicated region
        $region141: #{tpu_custom_call.1} parent=87 // pred_check
          %p731 = pneg %p348
        $region142: #{tpu_custom_call.1} parent=87 // pred_check_branch
          %733 = sbr.rel (%p731) target = $region144
        $region143: #{tpu_custom_call.1} parent=87 // pred_region
          %734 = dma.done [#allocation27], 8192
        $region144: #{tpu_custom_call.1} parent=87 // pred_fallthru
          _
        // Predicated region
        $region145: #{tpu_custom_call.1} parent=87 // pred_check
          %p735 = pneg %p369
        $region146: #{tpu_custom_call.1} parent=87 // pred_check_branch
          %737 = sbr.rel (%p735) target = $region148
        $region147: #{tpu_custom_call.1} parent=87 // pred_region
          %738 = dma.done [#allocation27], 64
        $region148: #{tpu_custom_call.1} parent=87 // pred_fallthru
          _
        // Predicated region
        $region149: #{tpu_custom_call.1} parent=87 // pred_check
          %p739 = pneg %p390
        $region150: #{tpu_custom_call.1} parent=87 // pred_check_branch
          %741 = sbr.rel (%p739) target = $region152
        $region151: #{tpu_custom_call.1} parent=87 // pred_region
          %742 = dma.done [#allocation30], 8192
        $region152: #{tpu_custom_call.1} parent=87 // pred_fallthru
          _
        // Predicated region
        $region153: #{tpu_custom_call.1} parent=87 // pred_check
          %p743 = pneg %p411
        $region154: #{tpu_custom_call.1} parent=87 // pred_check_branch
          %745 = sbr.rel (%p743) target = $region156
        $region155: #{tpu_custom_call.1} parent=87 // pred_region
          %746 = dma.done [#allocation30], 32
        $region156: #{tpu_custom_call.1} parent=87 // pred_fallthru
          _
        %s747 = sand.u32 %s62, 1
        %s748 = scalar_lea.sflag [#allocation6], %s747
        %s749 = sand.u32 %s62, 1
        %s750 = smul.addr %s749, 512
        %s751 = scalar_lea.vmem [#allocation5], %s750
        %p752 = pneg %p75
        %p753 = pneg %p72
        %p754 = pneg %p96
        %p755 = pneg %p93
        %p756 = pneg %p117
        %p757 = pneg %p114
        %p758 = pneg %p138
        %p759 = pneg %p135
        %p760 = pneg %p159
        %p761 = pneg %p156
        %p762 = pneg %p180
        %p763 = pneg %p177
        %p764 = pneg %p201
        %p765 = pneg %p198
        %p766 = pneg %p222
        %p767 = pneg %p219
        %p768 = pneg %p243
        %p769 = pneg %p240
        %p770 = pneg %p264
        %p771 = pneg %p261
        %p772 = pneg %p285
        %p773 = pneg %p282
        %p774 = pneg %p306
        %p775 = pneg %p303
        %p776 = pneg %p327
        %p777 = pneg %p324
        %p778 = pneg %p348
        %p779 = pneg %p345
        %p780 = pneg %p369
        %p781 = pneg %p366
        %p782 = pneg %p390
        %p783 = pneg %p387
        %p784 = pneg %p411
        %p785 = pneg %p408
        %p786 = pneg %p439
        %p787 = pneg %p436
        %s788 = sand.u32 %s426, 1
        %s789 = scalar_lea.sflag [#allocation7], %s788
        %s790 = sand.u32 %s426, 1
        %s791 = smul.addr %s790, 256
        %s792 = scalar_lea.vmem [#allocation32], %s791
        %s793 = smul.u32 16, %s47
        %p795 = scmp.eq.s32.totalorder %s47, 0
        // Predicated region
        $region157: #{tpu_custom_call.1} parent=87 // pred_check
          %p796 = pneg %p795
        $region158: #{tpu_custom_call.1} parent=87 // pred_check_branch
          %798 = sbr.rel (%p796) target = $region160
        $region159: #{tpu_custom_call.1} parent=87 // pred_region
          %s799 = smul.u32 0, 2
          %s800 = smul.addr %s799, 8
          %s801 = scalar_lea.vmem %s678, %s800 [#allocation5]
          %v802 = vld [vmem:[%s801] sm:$0xff]
          %v803 = vld [vmem:[%s801 + $0x8] sm:$0xff]
          %v804 = vld [vmem:[%s801 + $0x10] sm:$0xff]
          %v805 = vld [vmem:[%s801 + $0x18] sm:$0xff]
          %v806 = vld [vmem:[%s801 + $0x20] sm:$0xff]
          %v807 = vld [vmem:[%s801 + $0x28] sm:$0xff]
          %v808 = vld [vmem:[%s801 + $0x30] sm:$0xff]
          %v809 = vld [vmem:[%s801 + $0x38] sm:$0xff]
          %v810 = vld [vmem:[%s801 + $0x40] sm:$0xff]
          %v811 = vld [vmem:[%s801 + $0x48] sm:$0xff]
          %v812 = vld [vmem:[%s801 + $0x50] sm:$0xff]
          %v813 = vld [vmem:[%s801 + $0x58] sm:$0xff]
          %v814 = vld [vmem:[%s801 + $0x60] sm:$0xff]
          %v815 = vld [vmem:[%s801 + $0x68] sm:$0xff]
          %v816 = vld [vmem:[%s801 + $0x70] sm:$0xff]
          %v817 = vld [vmem:[%s801 + $0x78] sm:$0xff]
          %v818 = vld [vmem:[%s801 + $0x80] sm:$0xff]
          %v819 = vld [vmem:[%s801 + $0x88] sm:$0xff]
          %v820 = vld [vmem:[%s801 + $0x90] sm:$0xff]
          %v821 = vld [vmem:[%s801 + $0x98] sm:$0xff]
          %v822 = vld [vmem:[%s801 + $0xa0] sm:$0xff]
          %v823 = vld [vmem:[%s801 + $0xa8] sm:$0xff]
          %v824 = vld [vmem:[%s801 + $0xb0] sm:$0xff]
          %v825 = vld [vmem:[%s801 + $0xb8] sm:$0xff]
          %v826 = vld [vmem:[%s801 + $0xc0] sm:$0xff]
          %v827 = vld [vmem:[%s801 + $0xc8] sm:$0xff]
          %v828 = vld [vmem:[%s801 + $0xd0] sm:$0xff]
          %v829 = vld [vmem:[%s801 + $0xd8] sm:$0xff]
          %v830 = vld [vmem:[%s801 + $0xe0] sm:$0xff]
          %v831 = vld [vmem:[%s801 + $0xe8] sm:$0xff]
          %v832 = vld [vmem:[%s801 + $0xf0] sm:$0xff]
          %v833 = vld [vmem:[%s801 + $0xf8] sm:$0xff]
          %v834 = vld [vmem:[%s801 + $0x100] sm:$0xff]
          %v835 = vld [vmem:[%s801 + $0x108] sm:$0xff]
          %v836 = vld [vmem:[%s801 + $0x110] sm:$0xff]
          %v837 = vld [vmem:[%s801 + $0x118] sm:$0xff]
          %v838 = vld [vmem:[%s801 + $0x120] sm:$0xff]
          %v839 = vld [vmem:[%s801 + $0x128] sm:$0xff]
          %v840 = vld [vmem:[%s801 + $0x130] sm:$0xff]
          %v841 = vld [vmem:[%s801 + $0x138] sm:$0xff]
          %v842 = vld [vmem:[%s801 + $0x140] sm:$0xff]
          %v843 = vld [vmem:[%s801 + $0x148] sm:$0xff]
          %v844 = vld [vmem:[%s801 + $0x150] sm:$0xff]
          %v845 = vld [vmem:[%s801 + $0x158] sm:$0xff]
          %v846 = vld [vmem:[%s801 + $0x160] sm:$0xff]
          %v847 = vld [vmem:[%s801 + $0x168] sm:$0xff]
          %v848 = vld [vmem:[%s801 + $0x170] sm:$0xff]
          %v849 = vld [vmem:[%s801 + $0x178] sm:$0xff]
          %v850 = vld [vmem:[%s801 + $0x180] sm:$0xff]
          %v851 = vld [vmem:[%s801 + $0x188] sm:$0xff]
          %v852 = vld [vmem:[%s801 + $0x190] sm:$0xff]
          %v853 = vld [vmem:[%s801 + $0x198] sm:$0xff]
          %v854 = vld [vmem:[%s801 + $0x1a0] sm:$0xff]
          %v855 = vld [vmem:[%s801 + $0x1a8] sm:$0xff]
          %v856 = vld [vmem:[%s801 + $0x1b0] sm:$0xff]
          %v857 = vld [vmem:[%s801 + $0x1b8] sm:$0xff]
          %v858 = vld [vmem:[%s801 + $0x1c0] sm:$0xff]
          %v859 = vld [vmem:[%s801 + $0x1c8] sm:$0xff]
          %v860 = vld [vmem:[%s801 + $0x1d0] sm:$0xff]
          %v861 = vld [vmem:[%s801 + $0x1d8] sm:$0xff]
          %v862 = vld [vmem:[%s801 + $0x1e0] sm:$0xff]
          %v863 = vld [vmem:[%s801 + $0x1e8] sm:$0xff]
          %v864 = vld [vmem:[%s801 + $0x1f0] sm:$0xff]
          %v865 = vld [vmem:[%s801 + $0x1f8] sm:$0xff]
          %v866 = vld [vmem:[#allocation8] sm:$0x3]
          %v867 = vld [vmem:[#allocation10] sm:$0x3]
          %v868 = vadd.f32 %v802, %v803
          %869 = vadd.xlane.f32.xlu0 %v868
          %v870 = vpop.xlane.xlu0 %869
          %v871 = vadd.f32 %v804, %v805
          %872 = vadd.xlane.f32.xlu0 %v871
          %v873 = vpop.xlane.xlu0 %872
          %v874 = vadd.f32 %v806, %v807
          %875 = vadd.xlane.f32.xlu0 %v874
          %v876 = vpop.xlane.xlu0 %875
          %v877 = vadd.f32 %v808, %v809
          %878 = vadd.xlane.f32.xlu0 %v877
          %v879 = vpop.xlane.xlu0 %878
          %v880 = vadd.f32 %v810, %v811
          %881 = vadd.xlane.f32.xlu0 %v880
          %v882 = vpop.xlane.xlu0 %881
          %v883 = vadd.f32 %v812, %v813
          %884 = vadd.xlane.f32.xlu0 %v883
          %v885 = vpop.xlane.xlu0 %884
          %v886 = vadd.f32 %v814, %v815
          %887 = vadd.xlane.f32.xlu0 %v886
          %v888 = vpop.xlane.xlu0 %887
          %v889 = vadd.f32 %v816, %v817
          %890 = vadd.xlane.f32.xlu0 %v889
          %v891 = vpop.xlane.xlu0 %890
          %v892 = vadd.f32 %v818, %v819
          %893 = vadd.xlane.f32.xlu0 %v892
          %v894 = vpop.xlane.xlu0 %893
          %v895 = vadd.f32 %v820, %v821
          %896 = vadd.xlane.f32.xlu0 %v895
          %v897 = vpop.xlane.xlu0 %896
          %v898 = vadd.f32 %v822, %v823
          %899 = vadd.xlane.f32.xlu0 %v898
          %v900 = vpop.xlane.xlu0 %899
          %v901 = vadd.f32 %v824, %v825
          %902 = vadd.xlane.f32.xlu0 %v901
          %v903 = vpop.xlane.xlu0 %902
          %v904 = vadd.f32 %v826, %v827
          %905 = vadd.xlane.f32.xlu0 %v904
          %v906 = vpop.xlane.xlu0 %905
          %v907 = vadd.f32 %v828, %v829
          %908 = vadd.xlane.f32.xlu0 %v907
          %v909 = vpop.xlane.xlu0 %908
          %v910 = vadd.f32 %v830, %v831
          %911 = vadd.xlane.f32.xlu0 %v910
          %v912 = vpop.xlane.xlu0 %911
          %v913 = vadd.f32 %v832, %v833
          %914 = vadd.xlane.f32.xlu0 %v913
          %v915 = vpop.xlane.xlu0 %914
          %v916 = vadd.f32 %v834, %v835
          %917 = vadd.xlane.f32.xlu0 %v916
          %v918 = vpop.xlane.xlu0 %917
          %v919 = vadd.f32 %v836, %v837
          %920 = vadd.xlane.f32.xlu0 %v919
          %v921 = vpop.xlane.xlu0 %920
          %v922 = vadd.f32 %v838, %v839
          %923 = vadd.xlane.f32.xlu0 %v922
          %v924 = vpop.xlane.xlu0 %923
          %v925 = vadd.f32 %v840, %v841
          %926 = vadd.xlane.f32.xlu0 %v925
          %v927 = vpop.xlane.xlu0 %926
          %v928 = vadd.f32 %v842, %v843
          %929 = vadd.xlane.f32.xlu0 %v928
          %v930 = vpop.xlane.xlu0 %929
          %v931 = vadd.f32 %v844, %v845
          %932 = vadd.xlane.f32.xlu0 %v931
          %v933 = vpop.xlane.xlu0 %932
          %v934 = vadd.f32 %v846, %v847
          %935 = vadd.xlane.f32.xlu0 %v934
          %v936 = vpop.xlane.xlu0 %935
          %v937 = vadd.f32 %v848, %v849
          %938 = vadd.xlane.f32.xlu0 %v937
          %v939 = vpop.xlane.xlu0 %938
          %v940 = vadd.f32 %v850, %v851
          %941 = vadd.xlane.f32.xlu0 %v940
          %v942 = vpop.xlane.xlu0 %941
          %v943 = vadd.f32 %v852, %v853
          %944 = vadd.xlane.f32.xlu0 %v943
          %v945 = vpop.xlane.xlu0 %944
          %v946 = vadd.f32 %v854, %v855
          %947 = vadd.xlane.f32.xlu0 %v946
          %v948 = vpop.xlane.xlu0 %947
          %v949 = vadd.f32 %v856, %v857
          %950 = vadd.xlane.f32.xlu0 %v949
          %v951 = vpop.xlane.xlu0 %950
          %v952 = vadd.f32 %v858, %v859
          %953 = vadd.xlane.f32.xlu0 %v952
          %v954 = vpop.xlane.xlu0 %953
          %v955 = vadd.f32 %v860, %v861
          %956 = vadd.xlane.f32.xlu0 %v955
          %v957 = vpop.xlane.xlu0 %956
          %v958 = vadd.f32 %v862, %v863
          %959 = vadd.xlane.f32.xlu0 %v958
          %v960 = vpop.xlane.xlu0 %959
          %v961 = vadd.f32 %v864, %v865
          %962 = vadd.xlane.f32.xlu0 %v961
          %v963 = vpop.xlane.xlu0 %962
          %v964 = vrcp.pop 256.0
          %v965 = vmul.f32 %v870, %v964
          %v966 = vmul.f32 %v873, %v964
          %v967 = vmul.f32 %v876, %v964
          %v968 = vmul.f32 %v879, %v964
          %v969 = vmul.f32 %v882, %v964
          %v970 = vmul.f32 %v885, %v964
          %v971 = vmul.f32 %v888, %v964
          %v972 = vmul.f32 %v891, %v964
          %v973 = vmul.f32 %v894, %v964
          %v974 = vmul.f32 %v897, %v964
          %v975 = vmul.f32 %v900, %v964
          %v976 = vmul.f32 %v903, %v964
          %v977 = vmul.f32 %v906, %v964
          %v978 = vmul.f32 %v909, %v964
          %v979 = vmul.f32 %v912, %v964
          %v980 = vmul.f32 %v915, %v964
          %v981 = vmul.f32 %v918, %v964
          %v982 = vmul.f32 %v921, %v964
          %v983 = vmul.f32 %v924, %v964
          %v984 = vmul.f32 %v927, %v964
          %v985 = vmul.f32 %v930, %v964
          %v986 = vmul.f32 %v933, %v964
          %v987 = vmul.f32 %v936, %v964
          %v988 = vmul.f32 %v939, %v964
          %v989 = vmul.f32 %v942, %v964
          %v990 = vmul.f32 %v945, %v964
          %v991 = vmul.f32 %v948, %v964
          %v992 = vmul.f32 %v951, %v964
          %v993 = vmul.f32 %v954, %v964
          %v994 = vmul.f32 %v957, %v964
          %v995 = vmul.f32 %v960, %v964
          %v996 = vmul.f32 %v963, %v964
          %v997 = vsub.f32 %v802, %v965
          %v998 = vsub.f32 %v803, %v965
          %v999 = vsub.f32 %v804, %v966
          %v1000 = vsub.f32 %v805, %v966
          %v1001 = vsub.f32 %v806, %v967
          %v1002 = vsub.f32 %v807, %v967
          %v1003 = vsub.f32 %v808, %v968
          %v1004 = vsub.f32 %v809, %v968
          %v1005 = vsub.f32 %v810, %v969
          %v1006 = vsub.f32 %v811, %v969
          %v1007 = vsub.f32 %v812, %v970
          %v1008 = vsub.f32 %v813, %v970
          %v1009 = vsub.f32 %v814, %v971
          %v1010 = vsub.f32 %v815, %v971
          %v1011 = vsub.f32 %v816, %v972
          %v1012 = vsub.f32 %v817, %v972
          %v1013 = vsub.f32 %v818, %v973
          %v1014 = vsub.f32 %v819, %v973
          %v1015 = vsub.f32 %v820, %v974
          %v1016 = vsub.f32 %v821, %v974
          %v1017 = vsub.f32 %v822, %v975
          %v1018 = vsub.f32 %v823, %v975
          %v1019 = vsub.f32 %v824, %v976
          %v1020 = vsub.f32 %v825, %v976
          %v1021 = vsub.f32 %v826, %v977
          %v1022 = vsub.f32 %v827, %v977
          %v1023 = vsub.f32 %v828, %v978
          %v1024 = vsub.f32 %v829, %v978
          %v1025 = vsub.f32 %v830, %v979
          %v1026 = vsub.f32 %v831, %v979
          %v1027 = vsub.f32 %v832, %v980
          %v1028 = vsub.f32 %v833, %v980
          %v1029 = vsub.f32 %v834, %v981
          %v1030 = vsub.f32 %v835, %v981
          %v1031 = vsub.f32 %v836, %v982
          %v1032 = vsub.f32 %v837, %v982
          %v1033 = vsub.f32 %v838, %v983
          %v1034 = vsub.f32 %v839, %v983
          %v1035 = vsub.f32 %v840, %v984
          %v1036 = vsub.f32 %v841, %v984
          %v1037 = vsub.f32 %v842, %v985
          %v1038 = vsub.f32 %v843, %v985
          %v1039 = vsub.f32 %v844, %v986
          %v1040 = vsub.f32 %v845, %v986
          %v1041 = vsub.f32 %v846, %v987
          %v1042 = vsub.f32 %v847, %v987
          %v1043 = vsub.f32 %v848, %v988
          %v1044 = vsub.f32 %v849, %v988
          %v1045 = vsub.f32 %v850, %v989
          %v1046 = vsub.f32 %v851, %v989
          %v1047 = vsub.f32 %v852, %v990
          %v1048 = vsub.f32 %v853, %v990
          %v1049 = vsub.f32 %v854, %v991
          %v1050 = vsub.f32 %v855, %v991
          %v1051 = vsub.f32 %v856, %v992
          %v1052 = vsub.f32 %v857, %v992
          %v1053 = vsub.f32 %v858, %v993
          %v1054 = vsub.f32 %v859, %v993
          %v1055 = vsub.f32 %v860, %v994
          %v1056 = vsub.f32 %v861, %v994
          %v1057 = vsub.f32 %v862, %v995
          %v1058 = vsub.f32 %v863, %v995
          %v1059 = vsub.f32 %v864, %v996
          %v1060 = vsub.f32 %v865, %v996
          %v1061 = vmul.f32 %v997, %v997
          %v1062 = vmul.f32 %v998, %v998
          %v1063 = vmul.f32 %v999, %v999
          %v1064 = vmul.f32 %v1000, %v1000
          %v1065 = vmul.f32 %v1001, %v1001
          %v1066 = vmul.f32 %v1002, %v1002
          %v1067 = vmul.f32 %v1003, %v1003
          %v1068 = vmul.f32 %v1004, %v1004
          %v1069 = vmul.f32 %v1005, %v1005
          %v1070 = vmul.f32 %v1006, %v1006
          %v1071 = vmul.f32 %v1007, %v1007
          %v1072 = vmul.f32 %v1008, %v1008
          %v1073 = vmul.f32 %v1009, %v1009
          %v1074 = vmul.f32 %v1010, %v1010
          %v1075 = vmul.f32 %v1011, %v1011
          %v1076 = vmul.f32 %v1012, %v1012
          %v1077 = vmul.f32 %v1013, %v1013
          %v1078 = vmul.f32 %v1014, %v1014
          %v1079 = vmul.f32 %v1015, %v1015
          %v1080 = vmul.f32 %v1016, %v1016
          %v1081 = vmul.f32 %v1017, %v1017
          %v1082 = vmul.f32 %v1018, %v1018
          %v1083 = vmul.f32 %v1019, %v1019
          %v1084 = vmul.f32 %v1020, %v1020
          %v1085 = vmul.f32 %v1021, %v1021
          %v1086 = vmul.f32 %v1022, %v1022
          %v1087 = vmul.f32 %v1023, %v1023
          %v1088 = vmul.f32 %v1024, %v1024
          %v1089 = vmul.f32 %v1025, %v1025
          %v1090 = vmul.f32 %v1026, %v1026
          %v1091 = vmul.f32 %v1027, %v1027
          %v1092 = vmul.f32 %v1028, %v1028
          %v1093 = vmul.f32 %v1029, %v1029
          %v1094 = vmul.f32 %v1030, %v1030
          %v1095 = vmul.f32 %v1031, %v1031
          %v1096 = vmul.f32 %v1032, %v1032
          %v1097 = vmul.f32 %v1033, %v1033
          %v1098 = vmul.f32 %v1034, %v1034
          %v1099 = vmul.f32 %v1035, %v1035
          %v1100 = vmul.f32 %v1036, %v1036
          %v1101 = vmul.f32 %v1037, %v1037
          %v1102 = vmul.f32 %v1038, %v1038
          %v1103 = vmul.f32 %v1039, %v1039
          %v1104 = vmul.f32 %v1040, %v1040
          %v1105 = vmul.f32 %v1041, %v1041
          %v1106 = vmul.f32 %v1042, %v1042
          %v1107 = vmul.f32 %v1043, %v1043
          %v1108 = vmul.f32 %v1044, %v1044
          %v1109 = vmul.f32 %v1045, %v1045
          %v1110 = vmul.f32 %v1046, %v1046
          %v1111 = vmul.f32 %v1047, %v1047
          %v1112 = vmul.f32 %v1048, %v1048
          %v1113 = vmul.f32 %v1049, %v1049
          %v1114 = vmul.f32 %v1050, %v1050
          %v1115 = vmul.f32 %v1051, %v1051
          %v1116 = vmul.f32 %v1052, %v1052
          %v1117 = vmul.f32 %v1053, %v1053
          %v1118 = vmul.f32 %v1054, %v1054
          %v1119 = vmul.f32 %v1055, %v1055
          %v1120 = vmul.f32 %v1056, %v1056
          %v1121 = vmul.f32 %v1057, %v1057
          %v1122 = vmul.f32 %v1058, %v1058
          %v1123 = vmul.f32 %v1059, %v1059
          %v1124 = vmul.f32 %v1060, %v1060
          %v1125 = vadd.f32 %v1061, %v1062
          %1126 = vadd.xlane.f32.xlu0 %v1125
          %v1127 = vpop.xlane.xlu0 %1126
          %v1128 = vadd.f32 %v1063, %v1064
          %1129 = vadd.xlane.f32.xlu0 %v1128
          %v1130 = vpop.xlane.xlu0 %1129
          %v1131 = vadd.f32 %v1065, %v1066
          %1132 = vadd.xlane.f32.xlu0 %v1131
          %v1133 = vpop.xlane.xlu0 %1132
          %v1134 = vadd.f32 %v1067, %v1068
          %1135 = vadd.xlane.f32.xlu0 %v1134
          %v1136 = vpop.xlane.xlu0 %1135
          %v1137 = vadd.f32 %v1069, %v1070
          %1138 = vadd.xlane.f32.xlu0 %v1137
          %v1139 = vpop.xlane.xlu0 %1138
          %v1140 = vadd.f32 %v1071, %v1072
          %1141 = vadd.xlane.f32.xlu0 %v1140
          %v1142 = vpop.xlane.xlu0 %1141
          %v1143 = vadd.f32 %v1073, %v1074
          %1144 = vadd.xlane.f32.xlu0 %v1143
          %v1145 = vpop.xlane.xlu0 %1144
          %v1146 = vadd.f32 %v1075, %v1076
          %1147 = vadd.xlane.f32.xlu0 %v1146
          %v1148 = vpop.xlane.xlu0 %1147
          %v1149 = vadd.f32 %v1077, %v1078
          %1150 = vadd.xlane.f32.xlu0 %v1149
          %v1151 = vpop.xlane.xlu0 %1150
          %v1152 = vadd.f32 %v1079, %v1080
          %1153 = vadd.xlane.f32.xlu0 %v1152
          %v1154 = vpop.xlane.xlu0 %1153
          %v1155 = vadd.f32 %v1081, %v1082
          %1156 = vadd.xlane.f32.xlu0 %v1155
          %v1157 = vpop.xlane.xlu0 %1156
          %v1158 = vadd.f32 %v1083, %v1084
          %1159 = vadd.xlane.f32.xlu0 %v1158
          %v1160 = vpop.xlane.xlu0 %1159
          %v1161 = vadd.f32 %v1085, %v1086
          %1162 = vadd.xlane.f32.xlu0 %v1161
          %v1163 = vpop.xlane.xlu0 %1162
          %v1164 = vadd.f32 %v1087, %v1088
          %1165 = vadd.xlane.f32.xlu0 %v1164
          %v1166 = vpop.xlane.xlu0 %1165
          %v1167 = vadd.f32 %v1089, %v1090
          %1168 = vadd.xlane.f32.xlu0 %v1167
          %v1169 = vpop.xlane.xlu0 %1168
          %v1170 = vadd.f32 %v1091, %v1092
          %1171 = vadd.xlane.f32.xlu0 %v1170
          %v1172 = vpop.xlane.xlu0 %1171
          %v1173 = vadd.f32 %v1093, %v1094
          %1174 = vadd.xlane.f32.xlu0 %v1173
          %v1175 = vpop.xlane.xlu0 %1174
          %v1176 = vadd.f32 %v1095, %v1096
          %1177 = vadd.xlane.f32.xlu0 %v1176
          %v1178 = vpop.xlane.xlu0 %1177
          %v1179 = vadd.f32 %v1097, %v1098
          %1180 = vadd.xlane.f32.xlu0 %v1179
          %v1181 = vpop.xlane.xlu0 %1180
          %v1182 = vadd.f32 %v1099, %v1100
          %1183 = vadd.xlane.f32.xlu0 %v1182
          %v1184 = vpop.xlane.xlu0 %1183
          %v1185 = vadd.f32 %v1101, %v1102
          %1186 = vadd.xlane.f32.xlu0 %v1185
          %v1187 = vpop.xlane.xlu0 %1186
          %v1188 = vadd.f32 %v1103, %v1104
          %1189 = vadd.xlane.f32.xlu0 %v1188
          %v1190 = vpop.xlane.xlu0 %1189
          %v1191 = vadd.f32 %v1105, %v1106
          %1192 = vadd.xlane.f32.xlu0 %v1191
          %v1193 = vpop.xlane.xlu0 %1192
          %v1194 = vadd.f32 %v1107, %v1108
          %1195 = vadd.xlane.f32.xlu0 %v1194
          %v1196 = vpop.xlane.xlu0 %1195
          %v1197 = vadd.f32 %v1109, %v1110
          %1198 = vadd.xlane.f32.xlu0 %v1197
          %v1199 = vpop.xlane.xlu0 %1198
          %v1200 = vadd.f32 %v1111, %v1112
          %1201 = vadd.xlane.f32.xlu0 %v1200
          %v1202 = vpop.xlane.xlu0 %1201
          %v1203 = vadd.f32 %v1113, %v1114
          %1204 = vadd.xlane.f32.xlu0 %v1203
          %v1205 = vpop.xlane.xlu0 %1204
          %v1206 = vadd.f32 %v1115, %v1116
          %1207 = vadd.xlane.f32.xlu0 %v1206
          %v1208 = vpop.xlane.xlu0 %1207
          %v1209 = vadd.f32 %v1117, %v1118
          %1210 = vadd.xlane.f32.xlu0 %v1209
          %v1211 = vpop.xlane.xlu0 %1210
          %v1212 = vadd.f32 %v1119, %v1120
          %1213 = vadd.xlane.f32.xlu0 %v1212
          %v1214 = vpop.xlane.xlu0 %1213
          %v1215 = vadd.f32 %v1121, %v1122
          %1216 = vadd.xlane.f32.xlu0 %v1215
          %v1217 = vpop.xlane.xlu0 %1216
          %v1218 = vadd.f32 %v1123, %v1124
          %1219 = vadd.xlane.f32.xlu0 %v1218
          %v1220 = vpop.xlane.xlu0 %1219
          %v1221 = vmul.f32 %v1127, %v964
          %v1222 = vmul.f32 %v1130, %v964
          %v1223 = vmul.f32 %v1133, %v964
          %v1224 = vmul.f32 %v1136, %v964
          %v1225 = vmul.f32 %v1139, %v964
          %v1226 = vmul.f32 %v1142, %v964
          %v1227 = vmul.f32 %v1145, %v964
          %v1228 = vmul.f32 %v1148, %v964
          %v1229 = vmul.f32 %v1151, %v964
          %v1230 = vmul.f32 %v1154, %v964
          %v1231 = vmul.f32 %v1157, %v964
          %v1232 = vmul.f32 %v1160, %v964
          %v1233 = vmul.f32 %v1163, %v964
          %v1234 = vmul.f32 %v1166, %v964
          %v1235 = vmul.f32 %v1169, %v964
          %v1236 = vmul.f32 %v1172, %v964
          %v1237 = vmul.f32 %v1175, %v964
          %v1238 = vmul.f32 %v1178, %v964
          %v1239 = vmul.f32 %v1181, %v964
          %v1240 = vmul.f32 %v1184, %v964
          %v1241 = vmul.f32 %v1187, %v964
          %v1242 = vmul.f32 %v1190, %v964
          %v1243 = vmul.f32 %v1193, %v964
          %v1244 = vmul.f32 %v1196, %v964
          %v1245 = vmul.f32 %v1199, %v964
          %v1246 = vmul.f32 %v1202, %v964
          %v1247 = vmul.f32 %v1205, %v964
          %v1248 = vmul.f32 %v1208, %v964
          %v1249 = vmul.f32 %v1211, %v964
          %v1250 = vmul.f32 %v1214, %v964
          %v1251 = vmul.f32 %v1217, %v964
          %v1252 = vmul.f32 %v1220, %v964
          %v1253 = vadd.f32 %v1221, 1e-05
          %v1254 = vadd.f32 %v1222, 1e-05
          %v1255 = vadd.f32 %v1223, 1e-05
          %v1256 = vadd.f32 %v1224, 1e-05
          %v1257 = vadd.f32 %v1225, 1e-05
          %v1258 = vadd.f32 %v1226, 1e-05
          %v1259 = vadd.f32 %v1227, 1e-05
          %v1260 = vadd.f32 %v1228, 1e-05
          %v1261 = vadd.f32 %v1229, 1e-05
          %v1262 = vadd.f32 %v1230, 1e-05
          %v1263 = vadd.f32 %v1231, 1e-05
          %v1264 = vadd.f32 %v1232, 1e-05
          %v1265 = vadd.f32 %v1233, 1e-05
          %v1266 = vadd.f32 %v1234, 1e-05
          %v1267 = vadd.f32 %v1235, 1e-05
          %v1268 = vadd.f32 %v1236, 1e-05
          %v1269 = vadd.f32 %v1237, 1e-05
          %v1270 = vadd.f32 %v1238, 1e-05
          %v1271 = vadd.f32 %v1239, 1e-05
          %v1272 = vadd.f32 %v1240, 1e-05
          %v1273 = vadd.f32 %v1241, 1e-05
          %v1274 = vadd.f32 %v1242, 1e-05
          %v1275 = vadd.f32 %v1243, 1e-05
          %v1276 = vadd.f32 %v1244, 1e-05
          %v1277 = vadd.f32 %v1245, 1e-05
          %v1278 = vadd.f32 %v1246, 1e-05
          %v1279 = vadd.f32 %v1247, 1e-05
          %v1280 = vadd.f32 %v1248, 1e-05
          %v1281 = vadd.f32 %v1249, 1e-05
          %v1282 = vadd.f32 %v1250, 1e-05
          %v1283 = vadd.f32 %v1251, 1e-05
          %v1284 = vadd.f32 %v1252, 1e-05
          %v1285 = vrsqrt.pop %v1253
          %v1286 = vrsqrt.pop %v1254
          %v1287 = vrsqrt.pop %v1255
          %v1288 = vrsqrt.pop %v1256
          %v1289 = vrsqrt.pop %v1257
          %v1290 = vrsqrt.pop %v1258
          %v1291 = vrsqrt.pop %v1259
          %v1292 = vrsqrt.pop %v1260
          %v1293 = vrsqrt.pop %v1261
          %v1294 = vrsqrt.pop %v1262
          %v1295 = vrsqrt.pop %v1263
          %v1296 = vrsqrt.pop %v1264
          %v1297 = vrsqrt.pop %v1265
          %v1298 = vrsqrt.pop %v1266
          %v1299 = vrsqrt.pop %v1267
          %v1300 = vrsqrt.pop %v1268
          %v1301 = vrsqrt.pop %v1269
          %v1302 = vrsqrt.pop %v1270
          %v1303 = vrsqrt.pop %v1271
          %v1304 = vrsqrt.pop %v1272
          %v1305 = vrsqrt.pop %v1273
          %v1306 = vrsqrt.pop %v1274
          %v1307 = vrsqrt.pop %v1275
          %v1308 = vrsqrt.pop %v1276
          %v1309 = vrsqrt.pop %v1277
          %v1310 = vrsqrt.pop %v1278
          %v1311 = vrsqrt.pop %v1279
          %v1312 = vrsqrt.pop %v1280
          %v1313 = vrsqrt.pop %v1281
          %v1314 = vrsqrt.pop %v1282
          %v1315 = vrsqrt.pop %v1283
          %v1316 = vrsqrt.pop %v1284
          %v1317 = vmul.f32 %v997, %v1285
          %v1318 = vmul.f32 %v998, %v1285
          %v1319 = vmul.f32 %v999, %v1286
          %v1320 = vmul.f32 %v1000, %v1286
          %v1321 = vmul.f32 %v1001, %v1287
          %v1322 = vmul.f32 %v1002, %v1287
          %v1323 = vmul.f32 %v1003, %v1288
          %v1324 = vmul.f32 %v1004, %v1288
          %v1325 = vmul.f32 %v1005, %v1289
          %v1326 = vmul.f32 %v1006, %v1289
          %v1327 = vmul.f32 %v1007, %v1290
          %v1328 = vmul.f32 %v1008, %v1290
          %v1329 = vmul.f32 %v1009, %v1291
          %v1330 = vmul.f32 %v1010, %v1291
          %v1331 = vmul.f32 %v1011, %v1292
          %v1332 = vmul.f32 %v1012, %v1292
          %v1333 = vmul.f32 %v1013, %v1293
          %v1334 = vmul.f32 %v1014, %v1293
          %v1335 = vmul.f32 %v1015, %v1294
          %v1336 = vmul.f32 %v1016, %v1294
          %v1337 = vmul.f32 %v1017, %v1295
          %v1338 = vmul.f32 %v1018, %v1295
          %v1339 = vmul.f32 %v1019, %v1296
          %v1340 = vmul.f32 %v1020, %v1296
          %v1341 = vmul.f32 %v1021, %v1297
          %v1342 = vmul.f32 %v1022, %v1297
          %v1343 = vmul.f32 %v1023, %v1298
          %v1344 = vmul.f32 %v1024, %v1298
          %v1345 = vmul.f32 %v1025, %v1299
          %v1346 = vmul.f32 %v1026, %v1299
          %v1347 = vmul.f32 %v1027, %v1300
          %v1348 = vmul.f32 %v1028, %v1300
          %v1349 = vmul.f32 %v1029, %v1301
          %v1350 = vmul.f32 %v1030, %v1301
          %v1351 = vmul.f32 %v1031, %v1302
          %v1352 = vmul.f32 %v1032, %v1302
          %v1353 = vmul.f32 %v1033, %v1303
          %v1354 = vmul.f32 %v1034, %v1303
          %v1355 = vmul.f32 %v1035, %v1304
          %v1356 = vmul.f32 %v1036, %v1304
          %v1357 = vmul.f32 %v1037, %v1305
          %v1358 = vmul.f32 %v1038, %v1305
          %v1359 = vmul.f32 %v1039, %v1306
          %v1360 = vmul.f32 %v1040, %v1306
          %v1361 = vmul.f32 %v1041, %v1307
          %v1362 = vmul.f32 %v1042, %v1307
          %v1363 = vmul.f32 %v1043, %v1308
          %v1364 = vmul.f32 %v1044, %v1308
          %v1365 = vmul.f32 %v1045, %v1309
          %v1366 = vmul.f32 %v1046, %v1309
          %v1367 = vmul.f32 %v1047, %v1310
          %v1368 = vmul.f32 %v1048, %v1310
          %v1369 = vmul.f32 %v1049, %v1311
          %v1370 = vmul.f32 %v1050, %v1311
          %v1371 = vmul.f32 %v1051, %v1312
          %v1372 = vmul.f32 %v1052, %v1312
          %v1373 = vmul.f32 %v1053, %v1313
          %v1374 = vmul.f32 %v1054, %v1313
          %v1375 = vmul.f32 %v1055, %v1314
          %v1376 = vmul.f32 %v1056, %v1314
          %v1377 = vmul.f32 %v1057, %v1315
          %v1378 = vmul.f32 %v1058, %v1315
          %v1379 = vmul.f32 %v1059, %v1316
          %v1380 = vmul.f32 %v1060, %v1316
          %v1382 = vlaneseq
          %v1383 = vshrl.u32 %v1382, 7
          %v1384 = vsub.s32 0, %v1383
          %v1385 = vrot.slane %v866, %v1384
          %v1386 = vlaneseq
          %v1387 = vshrl.u32 %v1386, 7
          %v1388 = vsub.s32 1, %v1387
          %v1389 = vrot.slane %v866, %v1388
          %v1392 = vmul.f32 %v1317, %v1385
          %v1393 = vmul.f32 %v1318, %v1389
          %v1394 = vmul.f32 %v1319, %v1385
          %v1395 = vmul.f32 %v1320, %v1389
          %v1396 = vmul.f32 %v1321, %v1385
          %v1397 = vmul.f32 %v1322, %v1389
          %v1398 = vmul.f32 %v1323, %v1385
          %v1399 = vmul.f32 %v1324, %v1389
          %v1400 = vmul.f32 %v1325, %v1385
          %v1401 = vmul.f32 %v1326, %v1389
          %v1402 = vmul.f32 %v1327, %v1385
          %v1403 = vmul.f32 %v1328, %v1389
          %v1404 = vmul.f32 %v1329, %v1385
          %v1405 = vmul.f32 %v1330, %v1389
          %v1406 = vmul.f32 %v1331, %v1385
          %v1407 = vmul.f32 %v1332, %v1389
          %v1408 = vmul.f32 %v1333, %v1385
          %v1409 = vmul.f32 %v1334, %v1389
          %v1410 = vmul.f32 %v1335, %v1385
          %v1411 = vmul.f32 %v1336, %v1389
          %v1412 = vmul.f32 %v1337, %v1385
          %v1413 = vmul.f32 %v1338, %v1389
          %v1414 = vmul.f32 %v1339, %v1385
          %v1415 = vmul.f32 %v1340, %v1389
          %v1416 = vmul.f32 %v1341, %v1385
          %v1417 = vmul.f32 %v1342, %v1389
          %v1418 = vmul.f32 %v1343, %v1385
          %v1419 = vmul.f32 %v1344, %v1389
          %v1420 = vmul.f32 %v1345, %v1385
          %v1421 = vmul.f32 %v1346, %v1389
          %v1422 = vmul.f32 %v1347, %v1385
          %v1423 = vmul.f32 %v1348, %v1389
          %v1424 = vmul.f32 %v1349, %v1385
          %v1425 = vmul.f32 %v1350, %v1389
          %v1426 = vmul.f32 %v1351, %v1385
          %v1427 = vmul.f32 %v1352, %v1389
          %v1428 = vmul.f32 %v1353, %v1385
          %v1429 = vmul.f32 %v1354, %v1389
          %v1430 = vmul.f32 %v1355, %v1385
          %v1431 = vmul.f32 %v1356, %v1389
          %v1432 = vmul.f32 %v1357, %v1385
          %v1433 = vmul.f32 %v1358, %v1389
          %v1434 = vmul.f32 %v1359, %v1385
          %v1435 = vmul.f32 %v1360, %v1389
          %v1436 = vmul.f32 %v1361, %v1385
          %v1437 = vmul.f32 %v1362, %v1389
          %v1438 = vmul.f32 %v1363, %v1385
          %v1439 = vmul.f32 %v1364, %v1389
          %v1440 = vmul.f32 %v1365, %v1385
          %v1441 = vmul.f32 %v1366, %v1389
          %v1442 = vmul.f32 %v1367, %v1385
          %v1443 = vmul.f32 %v1368, %v1389
          %v1444 = vmul.f32 %v1369, %v1385
          %v1445 = vmul.f32 %v1370, %v1389
          %v1446 = vmul.f32 %v1371, %v1385
          %v1447 = vmul.f32 %v1372, %v1389
          %v1448 = vmul.f32 %v1373, %v1385
          %v1449 = vmul.f32 %v1374, %v1389
          %v1450 = vmul.f32 %v1375, %v1385
          %v1451 = vmul.f32 %v1376, %v1389
          %v1452 = vmul.f32 %v1377, %v1385
          %v1453 = vmul.f32 %v1378, %v1389
          %v1454 = vmul.f32 %v1379, %v1385
          %v1455 = vmul.f32 %v1380, %v1389
          %v1457 = vlaneseq
          %v1458 = vshrl.u32 %v1457, 7
          %v1459 = vsub.s32 0, %v1458
          %v1460 = vrot.slane %v867, %v1459
          %v1461 = vlaneseq
          %v1462 = vshrl.u32 %v1461, 7
          %v1463 = vsub.s32 1, %v1462
          %v1464 = vrot.slane %v867, %v1463
          %v1467 = vadd.f32 %v1392, %v1460
          %v1468 = vadd.f32 %v1393, %v1464
          %v1469 = vadd.f32 %v1394, %v1460
          %v1470 = vadd.f32 %v1395, %v1464
          %v1471 = vadd.f32 %v1396, %v1460
          %v1472 = vadd.f32 %v1397, %v1464
          %v1473 = vadd.f32 %v1398, %v1460
          %v1474 = vadd.f32 %v1399, %v1464
          %v1475 = vadd.f32 %v1400, %v1460
          %v1476 = vadd.f32 %v1401, %v1464
          %v1477 = vadd.f32 %v1402, %v1460
          %v1478 = vadd.f32 %v1403, %v1464
          %v1479 = vadd.f32 %v1404, %v1460
          %v1480 = vadd.f32 %v1405, %v1464
          %v1481 = vadd.f32 %v1406, %v1460
          %v1482 = vadd.f32 %v1407, %v1464
          %v1483 = vadd.f32 %v1408, %v1460
          %v1484 = vadd.f32 %v1409, %v1464
          %v1485 = vadd.f32 %v1410, %v1460
          %v1486 = vadd.f32 %v1411, %v1464
          %v1487 = vadd.f32 %v1412, %v1460
          %v1488 = vadd.f32 %v1413, %v1464
          %v1489 = vadd.f32 %v1414, %v1460
          %v1490 = vadd.f32 %v1415, %v1464
          %v1491 = vadd.f32 %v1416, %v1460
          %v1492 = vadd.f32 %v1417, %v1464
          %v1493 = vadd.f32 %v1418, %v1460
          %v1494 = vadd.f32 %v1419, %v1464
          %v1495 = vadd.f32 %v1420, %v1460
          %v1496 = vadd.f32 %v1421, %v1464
          %v1497 = vadd.f32 %v1422, %v1460
          %v1498 = vadd.f32 %v1423, %v1464
          %v1499 = vadd.f32 %v1424, %v1460
          %v1500 = vadd.f32 %v1425, %v1464
          %v1501 = vadd.f32 %v1426, %v1460
          %v1502 = vadd.f32 %v1427, %v1464
          %v1503 = vadd.f32 %v1428, %v1460
          %v1504 = vadd.f32 %v1429, %v1464
          %v1505 = vadd.f32 %v1430, %v1460
          %v1506 = vadd.f32 %v1431, %v1464
          %v1507 = vadd.f32 %v1432, %v1460
          %v1508 = vadd.f32 %v1433, %v1464
          %v1509 = vadd.f32 %v1434, %v1460
          %v1510 = vadd.f32 %v1435, %v1464
          %v1511 = vadd.f32 %v1436, %v1460
          %v1512 = vadd.f32 %v1437, %v1464
          %v1513 = vadd.f32 %v1438, %v1460
          %v1514 = vadd.f32 %v1439, %v1464
          %v1515 = vadd.f32 %v1440, %v1460
          %v1516 = vadd.f32 %v1441, %v1464
          %v1517 = vadd.f32 %v1442, %v1460
          %v1518 = vadd.f32 %v1443, %v1464
          %v1519 = vadd.f32 %v1444, %v1460
          %v1520 = vadd.f32 %v1445, %v1464
          %v1521 = vadd.f32 %v1446, %v1460
          %v1522 = vadd.f32 %v1447, %v1464
          %v1523 = vadd.f32 %v1448, %v1460
          %v1524 = vadd.f32 %v1449, %v1464
          %v1525 = vadd.f32 %v1450, %v1460
          %v1526 = vadd.f32 %v1451, %v1464
          %v1527 = vadd.f32 %v1452, %v1460
          %v1528 = vadd.f32 %v1453, %v1464
          %v1529 = vadd.f32 %v1454, %v1460
          %v1530 = vadd.f32 %v1455, %v1464
          %v1531 = vpack.c.bf16 %v1469, %v1467
          %v1532 = vpack.c.bf16 %v1470, %v1468
          %v1533 = vpack.c.bf16 %v1473, %v1471
          %v1534 = vpack.c.bf16 %v1474, %v1472
          %v1535 = vpack.c.bf16 %v1477, %v1475
          %v1536 = vpack.c.bf16 %v1478, %v1476
          %v1537 = vpack.c.bf16 %v1481, %v1479
          %v1538 = vpack.c.bf16 %v1482, %v1480
          %v1539 = vpack.c.bf16 %v1485, %v1483
          %v1540 = vpack.c.bf16 %v1486, %v1484
          %v1541 = vpack.c.bf16 %v1489, %v1487
          %v1542 = vpack.c.bf16 %v1490, %v1488
          %v1543 = vpack.c.bf16 %v1493, %v1491
          %v1544 = vpack.c.bf16 %v1494, %v1492
          %v1545 = vpack.c.bf16 %v1497, %v1495
          %v1546 = vpack.c.bf16 %v1498, %v1496
          %v1547 = vpack.c.bf16 %v1501, %v1499
          %v1548 = vpack.c.bf16 %v1502, %v1500
          %v1549 = vpack.c.bf16 %v1505, %v1503
          %v1550 = vpack.c.bf16 %v1506, %v1504
          %v1551 = vpack.c.bf16 %v1509, %v1507
          %v1552 = vpack.c.bf16 %v1510, %v1508
          %v1553 = vpack.c.bf16 %v1513, %v1511
          %v1554 = vpack.c.bf16 %v1514, %v1512
          %v1555 = vpack.c.bf16 %v1517, %v1515
          %v1556 = vpack.c.bf16 %v1518, %v1516
          %v1557 = vpack.c.bf16 %v1521, %v1519
          %v1558 = vpack.c.bf16 %v1522, %v1520
          %v1559 = vpack.c.bf16 %v1525, %v1523
          %v1560 = vpack.c.bf16 %v1526, %v1524
          %v1561 = vpack.c.bf16 %v1529, %v1527
          %v1562 = vpack.c.bf16 %v1530, %v1528
          %v1563 = vld [vmem:[#allocation14] sm:$0xff]
          %v1564 = vld [vmem:[#allocation14 + $0x8] sm:$0xff]
          %v1565 = vld [vmem:[#allocation14 + $0x10] sm:$0xff]
          %v1566 = vld [vmem:[#allocation14 + $0x18] sm:$0xff]
          %v1567 = vld [vmem:[#allocation14 + $0x20] sm:$0xff]
          %v1568 = vld [vmem:[#allocation14 + $0x28] sm:$0xff]
          %v1569 = vld [vmem:[#allocation14 + $0x30] sm:$0xff]
          %v1570 = vld [vmem:[#allocation14 + $0x38] sm:$0xff]
          %v1571 = vld [vmem:[#allocation14 + $0x40] sm:$0xff]
          %v1572 = vld [vmem:[#allocation14 + $0x48] sm:$0xff]
          %v1573 = vld [vmem:[#allocation14 + $0x50] sm:$0xff]
          %v1574 = vld [vmem:[#allocation14 + $0x58] sm:$0xff]
          %v1575 = vld [vmem:[#allocation14 + $0x60] sm:$0xff]
          %v1576 = vld [vmem:[#allocation14 + $0x68] sm:$0xff]
          %v1577 = vld [vmem:[#allocation14 + $0x70] sm:$0xff]
          %v1578 = vld [vmem:[#allocation14 + $0x78] sm:$0xff]
          %v1579 = vld [vmem:[#allocation14 + $0x80] sm:$0xff]
          %v1580 = vld [vmem:[#allocation14 + $0x88] sm:$0xff]
          %v1581 = vld [vmem:[#allocation14 + $0x90] sm:$0xff]
          %v1582 = vld [vmem:[#allocation14 + $0x98] sm:$0xff]
          %v1583 = vld [vmem:[#allocation14 + $0xa0] sm:$0xff]
          %v1584 = vld [vmem:[#allocation14 + $0xa8] sm:$0xff]
          %v1585 = vld [vmem:[#allocation14 + $0xb0] sm:$0xff]
          %v1586 = vld [vmem:[#allocation14 + $0xb8] sm:$0xff]
          %v1587 = vld [vmem:[#allocation14 + $0xc0] sm:$0xff]
          %v1588 = vld [vmem:[#allocation14 + $0xc8] sm:$0xff]
          %v1589 = vld [vmem:[#allocation14 + $0xd0] sm:$0xff]
          %v1590 = vld [vmem:[#allocation14 + $0xd8] sm:$0xff]
          %v1591 = vld [vmem:[#allocation14 + $0xe0] sm:$0xff]
          %v1592 = vld [vmem:[#allocation14 + $0xe8] sm:$0xff]
          %v1593 = vld [vmem:[#allocation14 + $0xf0] sm:$0xff]
          %v1594 = vld [vmem:[#allocation14 + $0xf8] sm:$0xff]
          %v1595 = vld [vmem:[#allocation16] sm:$0x3]
          %v1597 = vlaneseq
          %v1598 = vshrl.u32 %v1597, 7
          %v1599 = vsub.s32 0, %v1598
          %v1600 = vrot.slane %v1595, %v1599
          %v1601 = vlaneseq
          %v1602 = vshrl.u32 %v1601, 7
          %v1603 = vsub.s32 1, %v1602
          %v1604 = vrot.slane %v1595, %v1603
          %v1639 = vunpack.c.l.b16 %v1563
          %v1640 = vunpack.c.h.b16 %v1563
          %v1641 = vunpack.c.l.b16 %v1564
          %v1642 = vunpack.c.h.b16 %v1564
          %v1643 = vunpack.c.l.b16 %v1565
          %v1644 = vunpack.c.h.b16 %v1565
          %v1645 = vunpack.c.l.b16 %v1566
          %v1646 = vunpack.c.h.b16 %v1566
          %v1647 = vunpack.c.l.b16 %v1567
          %v1648 = vunpack.c.h.b16 %v1567
          %v1649 = vunpack.c.l.b16 %v1568
          %v1650 = vunpack.c.h.b16 %v1568
          %v1651 = vunpack.c.l.b16 %v1569
          %v1652 = vunpack.c.h.b16 %v1569
          %v1653 = vunpack.c.l.b16 %v1570
          %v1654 = vunpack.c.h.b16 %v1570
          %v1655 = vunpack.c.l.b16 %v1571
          %v1656 = vunpack.c.h.b16 %v1571
          %v1657 = vunpack.c.l.b16 %v1572
          %v1658 = vunpack.c.h.b16 %v1572
          %v1659 = vunpack.c.l.b16 %v1573
          %v1660 = vunpack.c.h.b16 %v1573
          %v1661 = vunpack.c.l.b16 %v1574
          %v1662 = vunpack.c.h.b16 %v1574
          %v1663 = vunpack.c.l.b16 %v1575
          %v1664 = vunpack.c.h.b16 %v1575
          %v1665 = vunpack.c.l.b16 %v1576
          %v1666 = vunpack.c.h.b16 %v1576
          %v1667 = vunpack.c.l.b16 %v1577
          %v1668 = vunpack.c.h.b16 %v1577
          %v1669 = vunpack.c.l.b16 %v1578
          %v1670 = vunpack.c.h.b16 %v1578
          %v1671 = vunpack.c.l.b16 %v1579
          %v1672 = vunpack.c.h.b16 %v1579
          %v1673 = vunpack.c.l.b16 %v1580
          %v1674 = vunpack.c.h.b16 %v1580
          %v1675 = vunpack.c.l.b16 %v1581
          %v1676 = vunpack.c.h.b16 %v1581
          %v1677 = vunpack.c.l.b16 %v1582
          %v1678 = vunpack.c.h.b16 %v1582
          %v1679 = vunpack.c.l.b16 %v1583
          %v1680 = vunpack.c.h.b16 %v1583
          %v1681 = vunpack.c.l.b16 %v1584
          %v1682 = vunpack.c.h.b16 %v1584
          %v1683 = vunpack.c.l.b16 %v1585
          %v1684 = vunpack.c.h.b16 %v1585
          %v1685 = vunpack.c.l.b16 %v1586
          %v1686 = vunpack.c.h.b16 %v1586
          %v1687 = vunpack.c.l.b16 %v1587
          %v1688 = vunpack.c.h.b16 %v1587
          %v1689 = vunpack.c.l.b16 %v1588
          %v1690 = vunpack.c.h.b16 %v1588
          %v1691 = vunpack.c.l.b16 %v1589
          %v1692 = vunpack.c.h.b16 %v1589
          %v1693 = vunpack.c.l.b16 %v1590
          %v1694 = vunpack.c.h.b16 %v1590
          %v1695 = vunpack.c.l.b16 %v1591
          %v1696 = vunpack.c.h.b16 %v1591
          %v1697 = vunpack.c.l.b16 %v1592
          %v1698 = vunpack.c.h.b16 %v1592
          %v1699 = vunpack.c.l.b16 %v1593
          %v1700 = vunpack.c.h.b16 %v1593
          %v1701 = vunpack.c.l.b16 %v1594
          %v1702 = vunpack.c.h.b16 %v1594
          %v1703 = vpack.c.b16 %v1641, %v1639
          %v1704 = vpack.c.b16 %v1642, %v1640
          %v1705 = vpack.c.b16 %v1645, %v1643
          %v1706 = vpack.c.b16 %v1646, %v1644
          %v1707 = vpack.c.b16 %v1649, %v1647
          %v1708 = vpack.c.b16 %v1650, %v1648
          %v1709 = vpack.c.b16 %v1653, %v1651
          %v1710 = vpack.c.b16 %v1654, %v1652
          %v1711 = vpack.c.b16 %v1657, %v1655
          %v1712 = vpack.c.b16 %v1658, %v1656
          %v1713 = vpack.c.b16 %v1661, %v1659
          %v1714 = vpack.c.b16 %v1662, %v1660
          %v1715 = vpack.c.b16 %v1665, %v1663
          %v1716 = vpack.c.b16 %v1666, %v1664
          %v1717 = vpack.c.b16 %v1669, %v1667
          %v1718 = vpack.c.b16 %v1670, %v1668
          %v1719 = vpack.c.b16 %v1673, %v1671
          %v1720 = vpack.c.b16 %v1674, %v1672
          %v1721 = vpack.c.b16 %v1677, %v1675
          %v1722 = vpack.c.b16 %v1678, %v1676
          %v1723 = vpack.c.b16 %v1681, %v1679
          %v1724 = vpack.c.b16 %v1682, %v1680
          %v1725 = vpack.c.b16 %v1685, %v1683
          %v1726 = vpack.c.b16 %v1686, %v1684
          %v1727 = vpack.c.b16 %v1689, %v1687
          %v1728 = vpack.c.b16 %v1690, %v1688
          %v1729 = vpack.c.b16 %v1693, %v1691
          %v1730 = vpack.c.b16 %v1694, %v1692
          %v1731 = vpack.c.b16 %v1697, %v1695
          %v1732 = vpack.c.b16 %v1698, %v1696
          %v1733 = vpack.c.b16 %v1701, %v1699
          %v1734 = vpack.c.b16 %v1702, %v1700
          %1767 = vmatprep.subr.bf16.mxu0 %v1704
          %1768 = vmatpush1.bf16.msra.mxu0 %v1703
          %1769 = vmatprep.subr.bf16.mxu0 %v1706
          %1770 = vmatpush1.bf16.msra.mxu0 %v1705
          %1771 = vmatprep.subr.bf16.mxu0 %v1708
          %1772 = vmatpush1.bf16.msra.mxu0 %v1707
          %1773 = vmatprep.subr.bf16.mxu0 %v1710
          %1774 = vmatpush1.bf16.msra.mxu0 %v1709
          %1775 = vmatprep.subr.bf16.mxu0 %v1712
          %1776 = vmatpush1.bf16.msra.mxu0 %v1711
          %1777 = vmatprep.subr.bf16.mxu0 %v1714
          %1778 = vmatpush1.bf16.msra.mxu0 %v1713
          %1779 = vmatprep.subr.bf16.mxu0 %v1716
          %1780 = vmatpush1.bf16.msra.mxu0 %v1715
          %1781 = vmatprep.subr.bf16.mxu0 %v1718
          %1782 = vmatpush1.bf16.msra.mxu0 %v1717
          %1783 = vmatprep.subr.bf16.mxu0 %v1720
          %1784 = vmatpush1.bf16.msra.mxu0 %v1719
          %1785 = vmatprep.subr.bf16.mxu0 %v1722
          %1786 = vmatpush1.bf16.msra.mxu0 %v1721
          %1787 = vmatprep.subr.bf16.mxu0 %v1724
          %1788 = vmatpush1.bf16.msra.mxu0 %v1723
          %1789 = vmatprep.subr.bf16.mxu0 %v1726
          %1790 = vmatpush1.bf16.msra.mxu0 %v1725
          %1791 = vmatprep.subr.bf16.mxu0 %v1728
          %1792 = vmatpush1.bf16.msra.mxu0 %v1727
          %1793 = vmatprep.subr.bf16.mxu0 %v1730
          %1794 = vmatpush1.bf16.msra.mxu0 %v1729
          %1795 = vmatprep.subr.bf16.mxu0 %v1732
          %1796 = vmatpush1.bf16.msra.mxu0 %v1731
          %1797 = vmatprep.subr.bf16.mxu0 %v1734
          %1798 = vmatpush1.bf16.msra.mxu0 %v1733
          %1799 = vmatprep.mubr.bf16.mxu0 %v1532
          %1800 = vmatmul.mubr.bf16.gmra.mrb[0].mxu0 %v1531
          %v1801 = vpop.f32.mrb[0].mxu0
          %v1802 = vadd.f32 %v1600, %v1801
          %v1803 = vpop.f32.mrb[0].mxu0
          %v1804 = vadd.f32 %v1604, %v1803
          %v1805 = vpop.f32.mrb[0].mxu0
          %v1806 = vadd.f32 %v1600, %v1805
          %v1807 = vpop.f32.mrb[0].mxu0
          %v1808 = vadd.f32 %v1604, %v1807
          %1809 = vmatprep.mubr.bf16.mxu0 %v1534
          %1810 = vmatmul.mubr.bf16.gmra.mrb[0].mxu0 %v1533
          %v1811 = vpop.f32.mrb[0].mxu0
          %v1812 = vadd.f32 %v1600, %v1811
          %v1813 = vpop.f32.mrb[0].mxu0
          %v1814 = vadd.f32 %v1604, %v1813
          %v1815 = vpop.f32.mrb[0].mxu0
          %v1816 = vadd.f32 %v1600, %v1815
          %v1817 = vpop.f32.mrb[0].mxu0
          %v1818 = vadd.f32 %v1604, %v1817
          %1819 = vmatprep.mubr.bf16.mxu0 %v1536
          %1820 = vmatmul.mubr.bf16.gmra.mrb[0].mxu0 %v1535
          %v1821 = vpop.f32.mrb[0].mxu0
          %v1822 = vadd.f32 %v1600, %v1821
          %v1823 = vpop.f32.mrb[0].mxu0
          %v1824 = vadd.f32 %v1604, %v1823
          %v1825 = vpop.f32.mrb[0].mxu0
          %v1826 = vadd.f32 %v1600, %v1825
          %v1827 = vpop.f32.mrb[0].mxu0
          %v1828 = vadd.f32 %v1604, %v1827
          %1829 = vmatprep.mubr.bf16.mxu0 %v1538
          %1830 = vmatmul.mubr.bf16.gmra.mrb[0].mxu0 %v1537
          %v1831 = vpop.f32.mrb[0].mxu0
          %v1832 = vadd.f32 %v1600, %v1831
          %v1833 = vpop.f32.mrb[0].mxu0
          %v1834 = vadd.f32 %v1604, %v1833
          %v1835 = vpop.f32.mrb[0].mxu0
          %v1836 = vadd.f32 %v1600, %v1835
          %v1837 = vpop.f32.mrb[0].mxu0
          %v1838 = vadd.f32 %v1604, %v1837
          %1839 = vmatprep.mubr.bf16.mxu0 %v1540
          %1840 = vmatmul.mubr.bf16.gmra.mrb[0].mxu0 %v1539
          %v1841 = vpop.f32.mrb[0].mxu0
          %v1842 = vadd.f32 %v1600, %v1841
          %v1843 = vpop.f32.mrb[0].mxu0
          %v1844 = vadd.f32 %v1604, %v1843
          %v1845 = vpop.f32.mrb[0].mxu0
          %v1846 = vadd.f32 %v1600, %v1845
          %v1847 = vpop.f32.mrb[0].mxu0
          %v1848 = vadd.f32 %v1604, %v1847
          %1849 = vmatprep.mubr.bf16.mxu0 %v1542
          %1850 = vmatmul.mubr.bf16.gmra.mrb[0].mxu0 %v1541
          %v1851 = vpop.f32.mrb[0].mxu0
          %v1852 = vadd.f32 %v1600, %v1851
          %v1853 = vpop.f32.mrb[0].mxu0
          %v1854 = vadd.f32 %v1604, %v1853
          %v1855 = vpop.f32.mrb[0].mxu0
          %v1856 = vadd.f32 %v1600, %v1855
          %v1857 = vpop.f32.mrb[0].mxu0
          %v1858 = vadd.f32 %v1604, %v1857
          %1859 = vmatprep.mubr.bf16.mxu0 %v1544
          %1860 = vmatmul.mubr.bf16.gmra.mrb[0].mxu0 %v1543
          %v1861 = vpop.f32.mrb[0].mxu0
          %v1862 = vadd.f32 %v1600, %v1861
          %v1863 = vpop.f32.mrb[0].mxu0
          %v1864 = vadd.f32 %v1604, %v1863
          %v1865 = vpop.f32.mrb[0].mxu0
          %v1866 = vadd.f32 %v1600, %v1865
          %v1867 = vpop.f32.mrb[0].mxu0
          %v1868 = vadd.f32 %v1604, %v1867
          %1869 = vmatprep.mubr.bf16.mxu0 %v1546
          %1870 = vmatmul.mubr.bf16.gmra.mrb[0].mxu0 %v1545
          %v1871 = vpop.f32.mrb[0].mxu0
          %v1872 = vadd.f32 %v1600, %v1871
          %v1873 = vpop.f32.mrb[0].mxu0
          %v1874 = vadd.f32 %v1604, %v1873
          %v1875 = vpop.f32.mrb[0].mxu0
          %v1876 = vadd.f32 %v1600, %v1875
          %v1877 = vpop.f32.mrb[0].mxu0
          %v1878 = vadd.f32 %v1604, %v1877
          %1879 = vmatprep.mubr.bf16.mxu0 %v1548
          %1880 = vmatmul.mubr.bf16.gmra.mrb[0].mxu0 %v1547
          %v1881 = vpop.f32.mrb[0].mxu0
          %v1882 = vadd.f32 %v1600, %v1881
          %v1883 = vpop.f32.mrb[0].mxu0
          %v1884 = vadd.f32 %v1604, %v1883
          %v1885 = vpop.f32.mrb[0].mxu0
          %v1886 = vadd.f32 %v1600, %v1885
          %v1887 = vpop.f32.mrb[0].mxu0
          %v1888 = vadd.f32 %v1604, %v1887
          %1889 = vmatprep.mubr.bf16.mxu0 %v1550
          %1890 = vmatmul.mubr.bf16.gmra.mrb[0].mxu0 %v1549
          %v1891 = vpop.f32.mrb[0].mxu0
          %v1892 = vadd.f32 %v1600, %v1891
          %v1893 = vpop.f32.mrb[0].mxu0
          %v1894 = vadd.f32 %v1604, %v1893
          %v1895 = vpop.f32.mrb[0].mxu0
          %v1896 = vadd.f32 %v1600, %v1895
          %v1897 = vpop.f32.mrb[0].mxu0
          %v1898 = vadd.f32 %v1604, %v1897
          %1899 = vmatprep.mubr.bf16.mxu0 %v1552
          %1900 = vmatmul.mubr.bf16.gmra.mrb[0].mxu0 %v1551
          %v1901 = vpop.f32.mrb[0].mxu0
          %v1902 = vadd.f32 %v1600, %v1901
          %v1903 = vpop.f32.mrb[0].mxu0
          %v1904 = vadd.f32 %v1604, %v1903
          %v1905 = vpop.f32.mrb[0].mxu0
          %v1906 = vadd.f32 %v1600, %v1905
          %v1907 = vpop.f32.mrb[0].mxu0
          %v1908 = vadd.f32 %v1604, %v1907
          %1909 = vmatprep.mubr.bf16.mxu0 %v1554
          %1910 = vmatmul.mubr.bf16.gmra.mrb[0].mxu0 %v1553
          %v1911 = vpop.f32.mrb[0].mxu0
          %v1912 = vadd.f32 %v1600, %v1911
          %v1913 = vpop.f32.mrb[0].mxu0
          %v1914 = vadd.f32 %v1604, %v1913
          %v1915 = vpop.f32.mrb[0].mxu0
          %v1916 = vadd.f32 %v1600, %v1915
          %v1917 = vpop.f32.mrb[0].mxu0
          %v1918 = vadd.f32 %v1604, %v1917
          %1919 = vmatprep.mubr.bf16.mxu0 %v1556
          %1920 = vmatmul.mubr.bf16.gmra.mrb[0].mxu0 %v1555
          %v1921 = vpop.f32.mrb[0].mxu0
          %v1922 = vadd.f32 %v1600, %v1921
          %v1923 = vpop.f32.mrb[0].mxu0
          %v1924 = vadd.f32 %v1604, %v1923
          %v1925 = vpop.f32.mrb[0].mxu0
          %v1926 = vadd.f32 %v1600, %v1925
          %v1927 = vpop.f32.mrb[0].mxu0
          %v1928 = vadd.f32 %v1604, %v1927
          %1929 = vmatprep.mubr.bf16.mxu0 %v1558
          %1930 = vmatmul.mubr.bf16.gmra.mrb[0].mxu0 %v1557
          %v1931 = vpop.f32.mrb[0].mxu0
          %v1932 = vadd.f32 %v1600, %v1931
          %v1933 = vpop.f32.mrb[0].mxu0
          %v1934 = vadd.f32 %v1604, %v1933
          %v1935 = vpop.f32.mrb[0].mxu0
          %v1936 = vadd.f32 %v1600, %v1935
          %v1937 = vpop.f32.mrb[0].mxu0
          %v1938 = vadd.f32 %v1604, %v1937
          %1939 = vmatprep.mubr.bf16.mxu0 %v1560
          %1940 = vmatmul.mubr.bf16.gmra.mrb[0].mxu0 %v1559
          %v1941 = vpop.f32.mrb[0].mxu0
          %v1942 = vadd.f32 %v1600, %v1941
          %v1943 = vpop.f32.mrb[0].mxu0
          %v1944 = vadd.f32 %v1604, %v1943
          %v1945 = vpop.f32.mrb[0].mxu0
          %v1946 = vadd.f32 %v1600, %v1945
          %v1947 = vpop.f32.mrb[0].mxu0
          %v1948 = vadd.f32 %v1604, %v1947
          %1949 = vmatprep.mubr.bf16.mxu0 %v1562
          %1950 = vmatmul.mubr.bf16.gmra.mrb[0].mxu0 %v1561
          %v1951 = vpop.f32.mrb[0].mxu0
          %v1952 = vadd.f32 %v1600, %v1951
          %v1953 = vpop.f32.mrb[0].mxu0
          %v1954 = vadd.f32 %v1604, %v1953
          %v1955 = vpop.f32.mrb[0].mxu0
          %v1956 = vadd.f32 %v1600, %v1955
          %v1957 = vpop.f32.mrb[0].mxu0
          %v1958 = vadd.f32 %v1604, %v1957
          %1959 = vdwg.mxu0
          %v1960 = vld [vmem:[#allocation17] sm:$0xff]
          %v1961 = vld [vmem:[#allocation17 + $0x8] sm:$0xff]
          %v1962 = vld [vmem:[#allocation17 + $0x10] sm:$0xff]
          %v1963 = vld [vmem:[#allocation17 + $0x18] sm:$0xff]
          %v1964 = vld [vmem:[#allocation17 + $0x20] sm:$0xff]
          %v1965 = vld [vmem:[#allocation17 + $0x28] sm:$0xff]
          %v1966 = vld [vmem:[#allocation17 + $0x30] sm:$0xff]
          %v1967 = vld [vmem:[#allocation17 + $0x38] sm:$0xff]
          %v1968 = vld [vmem:[#allocation17 + $0x40] sm:$0xff]
          %v1969 = vld [vmem:[#allocation17 + $0x48] sm:$0xff]
          %v1970 = vld [vmem:[#allocation17 + $0x50] sm:$0xff]
          %v1971 = vld [vmem:[#allocation17 + $0x58] sm:$0xff]
          %v1972 = vld [vmem:[#allocation17 + $0x60] sm:$0xff]
          %v1973 = vld [vmem:[#allocation17 + $0x68] sm:$0xff]
          %v1974 = vld [vmem:[#allocation17 + $0x70] sm:$0xff]
          %v1975 = vld [vmem:[#allocation17 + $0x78] sm:$0xff]
          %v1976 = vld [vmem:[#allocation17 + $0x80] sm:$0xff]
          %v1977 = vld [vmem:[#allocation17 + $0x88] sm:$0xff]
          %v1978 = vld [vmem:[#allocation17 + $0x90] sm:$0xff]
          %v1979 = vld [vmem:[#allocation17 + $0x98] sm:$0xff]
          %v1980 = vld [vmem:[#allocation17 + $0xa0] sm:$0xff]
          %v1981 = vld [vmem:[#allocation17 + $0xa8] sm:$0xff]
          %v1982 = vld [vmem:[#allocation17 + $0xb0] sm:$0xff]
          %v1983 = vld [vmem:[#allocation17 + $0xb8] sm:$0xff]
          %v1984 = vld [vmem:[#allocation17 + $0xc0] sm:$0xff]
          %v1985 = vld [vmem:[#allocation17 + $0xc8] sm:$0xff]
          %v1986 = vld [vmem:[#allocation17 + $0xd0] sm:$0xff]
          %v1987 = vld [vmem:[#allocation17 + $0xd8] sm:$0xff]
          %v1988 = vld [vmem:[#allocation17 + $0xe0] sm:$0xff]
          %v1989 = vld [vmem:[#allocation17 + $0xe8] sm:$0xff]
          %v1990 = vld [vmem:[#allocation17 + $0xf0] sm:$0xff]
          %v1991 = vld [vmem:[#allocation17 + $0xf8] sm:$0xff]
          %v1992 = vld [vmem:[#allocation19] sm:$0x3]
          %v1994 = vlaneseq
          %v1995 = vshrl.u32 %v1994, 7
          %v1996 = vsub.s32 0, %v1995
          %v1997 = vrot.slane %v1992, %v1996
          %v1998 = vlaneseq
          %v1999 = vshrl.u32 %v1998, 7
          %v2000 = vsub.s32 1, %v1999
          %v2001 = vrot.slane %v1992, %v2000
          %v2036 = vunpack.c.l.b16 %v1960
          %v2037 = vunpack.c.h.b16 %v1960
          %v2038 = vunpack.c.l.b16 %v1961
          %v2039 = vunpack.c.h.b16 %v1961
          %v2040 = vunpack.c.l.b16 %v1962
          %v2041 = vunpack.c.h.b16 %v1962
          %v2042 = vunpack.c.l.b16 %v1963
          %v2043 = vunpack.c.h.b16 %v1963
          %v2044 = vunpack.c.l.b16 %v1964
          %v2045 = vunpack.c.h.b16 %v1964
          %v2046 = vunpack.c.l.b16 %v1965
          %v2047 = vunpack.c.h.b16 %v1965
          %v2048 = vunpack.c.l.b16 %v1966
          %v2049 = vunpack.c.h.b16 %v1966
          %v2050 = vunpack.c.l.b16 %v1967
          %v2051 = vunpack.c.h.b16 %v1967
          %v2052 = vunpack.c.l.b16 %v1968
          %v2053 = vunpack.c.h.b16 %v1968
          %v2054 = vunpack.c.l.b16 %v1969
          %v2055 = vunpack.c.h.b16 %v1969
          %v2056 = vunpack.c.l.b16 %v1970
          %v2057 = vunpack.c.h.b16 %v1970
          %v2058 = vunpack.c.l.b16 %v1971
          %v2059 = vunpack.c.h.b16 %v1971
          %v2060 = vunpack.c.l.b16 %v1972
          %v2061 = vunpack.c.h.b16 %v1972
          %v2062 = vunpack.c.l.b16 %v1973
          %v2063 = vunpack.c.h.b16 %v1973
          %v2064 = vunpack.c.l.b16 %v1974
          %v2065 = vunpack.c.h.b16 %v1974
          %v2066 = vunpack.c.l.b16 %v1975
          %v2067 = vunpack.c.h.b16 %v1975
          %v2068 = vunpack.c.l.b16 %v1976
          %v2069 = vunpack.c.h.b16 %v1976
          %v2070 = vunpack.c.l.b16 %v1977
          %v2071 = vunpack.c.h.b16 %v1977
          %v2072 = vunpack.c.l.b16 %v1978
          %v2073 = vunpack.c.h.b16 %v1978
          %v2074 = vunpack.c.l.b16 %v1979
          %v2075 = vunpack.c.h.b16 %v1979
          %v2076 = vunpack.c.l.b16 %v1980
          %v2077 = vunpack.c.h.b16 %v1980
          %v2078 = vunpack.c.l.b16 %v1981
          %v2079 = vunpack.c.h.b16 %v1981
          %v2080 = vunpack.c.l.b16 %v1982
          %v2081 = vunpack.c.h.b16 %v1982
          %v2082 = vunpack.c.l.b16 %v1983
          %v2083 = vunpack.c.h.b16 %v1983
          %v2084 = vunpack.c.l.b16 %v1984
          %v2085 = vunpack.c.h.b16 %v1984
          %v2086 = vunpack.c.l.b16 %v1985
          %v2087 = vunpack.c.h.b16 %v1985
          %v2088 = vunpack.c.l.b16 %v1986
          %v2089 = vunpack.c.h.b16 %v1986
          %v2090 = vunpack.c.l.b16 %v1987
          %v2091 = vunpack.c.h.b16 %v1987
          %v2092 = vunpack.c.l.b16 %v1988
          %v2093 = vunpack.c.h.b16 %v1988
          %v2094 = vunpack.c.l.b16 %v1989
          %v2095 = vunpack.c.h.b16 %v1989
          %v2096 = vunpack.c.l.b16 %v1990
          %v2097 = vunpack.c.h.b16 %v1990
          %v2098 = vunpack.c.l.b16 %v1991
          %v2099 = vunpack.c.h.b16 %v1991
          %v2100 = vpack.c.b16 %v2038, %v2036
          %v2101 = vpack.c.b16 %v2039, %v2037
          %v2102 = vpack.c.b16 %v2042, %v2040
          %v2103 = vpack.c.b16 %v2043, %v2041
          %v2104 = vpack.c.b16 %v2046, %v2044
          %v2105 = vpack.c.b16 %v2047, %v2045
          %v2106 = vpack.c.b16 %v2050, %v2048
          %v2107 = vpack.c.b16 %v2051, %v2049
          %v2108 = vpack.c.b16 %v2054, %v2052
          %v2109 = vpack.c.b16 %v2055, %v2053
          %v2110 = vpack.c.b16 %v2058, %v2056
          %v2111 = vpack.c.b16 %v2059, %v2057
          %v2112 = vpack.c.b16 %v2062, %v2060
          %v2113 = vpack.c.b16 %v2063, %v2061
          %v2114 = vpack.c.b16 %v2066, %v2064
          %v2115 = vpack.c.b16 %v2067, %v2065
          %v2116 = vpack.c.b16 %v2070, %v2068
          %v2117 = vpack.c.b16 %v2071, %v2069
          %v2118 = vpack.c.b16 %v2074, %v2072
          %v2119 = vpack.c.b16 %v2075, %v2073
          %v2120 = vpack.c.b16 %v2078, %v2076
          %v2121 = vpack.c.b16 %v2079, %v2077
          %v2122 = vpack.c.b16 %v2082, %v2080
          %v2123 = vpack.c.b16 %v2083, %v2081
          %v2124 = vpack.c.b16 %v2086, %v2084
          %v2125 = vpack.c.b16 %v2087, %v2085
          %v2126 = vpack.c.b16 %v2090, %v2088
          %v2127 = vpack.c.b16 %v2091, %v2089
          %v2128 = vpack.c.b16 %v2094, %v2092
          %v2129 = vpack.c.b16 %v2095, %v2093
          %v2130 = vpack.c.b16 %v2098, %v2096
          %v2131 = vpack.c.b16 %v2099, %v2097
          %2164 = vmatprep.subr.bf16.mxu0 %v2101
          %2165 = vmatpush1.bf16.msra.mxu0 %v2100
          %2166 = vmatprep.subr.bf16.mxu0 %v2103
          %2167 = vmatpush1.bf16.msra.mxu0 %v2102
          %2168 = vmatprep.subr.bf16.mxu0 %v2105
          %2169 = vmatpush1.bf16.msra.mxu0 %v2104
          %2170 = vmatprep.subr.bf16.mxu0 %v2107
          %2171 = vmatpush1.bf16.msra.mxu0 %v2106
          %2172 = vmatprep.subr.bf16.mxu0 %v2109
          %2173 = vmatpush1.bf16.msra.mxu0 %v2108
          %2174 = vmatprep.subr.bf16.mxu0 %v2111
          %2175 = vmatpush1.bf16.msra.mxu0 %v2110
          %2176 = vmatprep.subr.bf16.mxu0 %v2113
          %2177 = vmatpush1.bf16.msra.mxu0 %v2112
          %2178 = vmatprep.subr.bf16.mxu0 %v2115
          %2179 = vmatpush1.bf16.msra.mxu0 %v2114
          %2180 = vmatprep.subr.bf16.mxu0 %v2117
          %2181 = vmatpush1.bf16.msra.mxu0 %v2116
          %2182 = vmatprep.subr.bf16.mxu0 %v2119
          %2183 = vmatpush1.bf16.msra.mxu0 %v2118
          %2184 = vmatprep.subr.bf16.mxu0 %v2121
          %2185 = vmatpush1.bf16.msra.mxu0 %v2120
          %2186 = vmatprep.subr.bf16.mxu0 %v2123
          %2187 = vmatpush1.bf16.msra.mxu0 %v2122
          %2188 = vmatprep.subr.bf16.mxu0 %v2125
          %2189 = vmatpush1.bf16.msra.mxu0 %v2124
          %2190 = vmatprep.subr.bf16.mxu0 %v2127
          %2191 = vmatpush1.bf16.msra.mxu0 %v2126
          %2192 = vmatprep.subr.bf16.mxu0 %v2129
          %2193 = vmatpush1.bf16.msra.mxu0 %v2128
          %2194 = vmatprep.subr.bf16.mxu0 %v2131
          %2195 = vmatpush1.bf16.msra.mxu0 %v2130
          %2196 = vmatprep.mubr.bf16.mxu0 %v1532
          %2197 = vmatmul.mubr.bf16.gmra.mrb[0].mxu0 %v1531
          %v2198 = vpop.f32.mrb[0].mxu0
          %v2199 = vadd.f32 %v1997, %v2198
          %v2200 = vpop.f32.mrb[0].mxu0
          %v2201 = vadd.f32 %v2001, %v2200
          %v2202 = vpop.f32.mrb[0].mxu0
          %v2203 = vadd.f32 %v1997, %v2202
          %v2204 = vpop.f32.mrb[0].mxu0
          %v2205 = vadd.f32 %v2001, %v2204
          %2206 = vmatprep.mubr.bf16.mxu0 %v1534
          %2207 = vmatmul.mubr.bf16.gmra.mrb[0].mxu0 %v1533
          %v2208 = vpop.f32.mrb[0].mxu0
          %v2209 = vadd.f32 %v1997, %v2208
          %v2210 = vpop.f32.mrb[0].mxu0
          %v2211 = vadd.f32 %v2001, %v2210
          %v2212 = vpop.f32.mrb[0].mxu0
          %v2213 = vadd.f32 %v1997, %v2212
          %v2214 = vpop.f32.mrb[0].mxu0
          %v2215 = vadd.f32 %v2001, %v2214
          %2216 = vmatprep.mubr.bf16.mxu0 %v1536
          %2217 = vmatmul.mubr.bf16.gmra.mrb[0].mxu0 %v1535
          %v2218 = vpop.f32.mrb[0].mxu0
          %v2219 = vadd.f32 %v1997, %v2218
          %v2220 = vpop.f32.mrb[0].mxu0
          %v2221 = vadd.f32 %v2001, %v2220
          %v2222 = vpop.f32.mrb[0].mxu0
          %v2223 = vadd.f32 %v1997, %v2222
          %v2224 = vpop.f32.mrb[0].mxu0
          %v2225 = vadd.f32 %v2001, %v2224
          %2226 = vmatprep.mubr.bf16.mxu0 %v1538
          %2227 = vmatmul.mubr.bf16.gmra.mrb[0].mxu0 %v1537
          %v2228 = vpop.f32.mrb[0].mxu0
          %v2229 = vadd.f32 %v1997, %v2228
          %v2230 = vpop.f32.mrb[0].mxu0
          %v2231 = vadd.f32 %v2001, %v2230
          %v2232 = vpop.f32.mrb[0].mxu0
          %v2233 = vadd.f32 %v1997, %v2232
          %v2234 = vpop.f32.mrb[0].mxu0
          %v2235 = vadd.f32 %v2001, %v2234
          %2236 = vmatprep.mubr.bf16.mxu0 %v1540
          %2237 = vmatmul.mubr.bf16.gmra.mrb[0].mxu0 %v1539
          %v2238 = vpop.f32.mrb[0].mxu0
          %v2239 = vadd.f32 %v1997, %v2238
          %v2240 = vpop.f32.mrb[0].mxu0
          %v2241 = vadd.f32 %v2001, %v2240
          %v2242 = vpop.f32.mrb[0].mxu0
          %v2243 = vadd.f32 %v1997, %v2242
          %v2244 = vpop.f32.mrb[0].mxu0
          %v2245 = vadd.f32 %v2001, %v2244
          %2246 = vmatprep.mubr.bf16.mxu0 %v1542
          %2247 = vmatmul.mubr.bf16.gmra.mrb[0].mxu0 %v1541
          %v2248 = vpop.f32.mrb[0].mxu0
          %v2249 = vadd.f32 %v1997, %v2248
          %v2250 = vpop.f32.mrb[0].mxu0
          %v2251 = vadd.f32 %v2001, %v2250
          %v2252 = vpop.f32.mrb[0].mxu0
          %v2253 = vadd.f32 %v1997, %v2252
          %v2254 = vpop.f32.mrb[0].mxu0
          %v2255 = vadd.f32 %v2001, %v2254
          %2256 = vmatprep.mubr.bf16.mxu0 %v1544
          %2257 = vmatmul.mubr.bf16.gmra.mrb[0].mxu0 %v1543
          %v2258 = vpop.f32.mrb[0].mxu0
          %v2259 = vadd.f32 %v1997, %v2258
          %v2260 = vpop.f32.mrb[0].mxu0
          %v2261 = vadd.f32 %v2001, %v2260
          %v2262 = vpop.f32.mrb[0].mxu0
          %v2263 = vadd.f32 %v1997, %v2262
          %v2264 = vpop.f32.mrb[0].mxu0
          %v2265 = vadd.f32 %v2001, %v2264
          %2266 = vmatprep.mubr.bf16.mxu0 %v1546
          %2267 = vmatmul.mubr.bf16.gmra.mrb[0].mxu0 %v1545
          %v2268 = vpop.f32.mrb[0].mxu0
          %v2269 = vadd.f32 %v1997, %v2268
          %v2270 = vpop.f32.mrb[0].mxu0
          %v2271 = vadd.f32 %v2001, %v2270
          %v2272 = vpop.f32.mrb[0].mxu0
          %v2273 = vadd.f32 %v1997, %v2272
          %v2274 = vpop.f32.mrb[0].mxu0
          %v2275 = vadd.f32 %v2001, %v2274
          %2276 = vmatprep.mubr.bf16.mxu0 %v1548
          %2277 = vmatmul.mubr.bf16.gmra.mrb[0].mxu0 %v1547
          %v2278 = vpop.f32.mrb[0].mxu0
          %v2279 = vadd.f32 %v1997, %v2278
          %v2280 = vpop.f32.mrb[0].mxu0
          %v2281 = vadd.f32 %v2001, %v2280
          %v2282 = vpop.f32.mrb[0].mxu0
          %v2283 = vadd.f32 %v1997, %v2282
          %v2284 = vpop.f32.mrb[0].mxu0
          %v2285 = vadd.f32 %v2001, %v2284
          %2286 = vmatprep.mubr.bf16.mxu0 %v1550
          %2287 = vmatmul.mubr.bf16.gmra.mrb[0].mxu0 %v1549
          %v2288 = vpop.f32.mrb[0].mxu0
          %v2289 = vadd.f32 %v1997, %v2288
          %v2290 = vpop.f32.mrb[0].mxu0
          %v2291 = vadd.f32 %v2001, %v2290
          %v2292 = vpop.f32.mrb[0].mxu0
          %v2293 = vadd.f32 %v1997, %v2292
          %v2294 = vpop.f32.mrb[0].mxu0
          %v2295 = vadd.f32 %v2001, %v2294
          %2296 = vmatprep.mubr.bf16.mxu0 %v1552
          %2297 = vmatmul.mubr.bf16.gmra.mrb[0].mxu0 %v1551
          %v2298 = vpop.f32.mrb[0].mxu0
          %v2299 = vadd.f32 %v1997, %v2298
          %v2300 = vpop.f32.mrb[0].mxu0
          %v2301 = vadd.f32 %v2001, %v2300
          %v2302 = vpop.f32.mrb[0].mxu0
          %v2303 = vadd.f32 %v1997, %v2302
          %v2304 = vpop.f32.mrb[0].mxu0
          %v2305 = vadd.f32 %v2001, %v2304
          %2306 = vmatprep.mubr.bf16.mxu0 %v1554
          %2307 = vmatmul.mubr.bf16.gmra.mrb[0].mxu0 %v1553
          %v2308 = vpop.f32.mrb[0].mxu0
          %v2309 = vadd.f32 %v1997, %v2308
          %v2310 = vpop.f32.mrb[0].mxu0
          %v2311 = vadd.f32 %v2001, %v2310
          %v2312 = vpop.f32.mrb[0].mxu0
          %v2313 = vadd.f32 %v1997, %v2312
          %v2314 = vpop.f32.mrb[0].mxu0
          %v2315 = vadd.f32 %v2001, %v2314
          %2316 = vmatprep.mubr.bf16.mxu0 %v1556
          %2317 = vmatmul.mubr.bf16.gmra.mrb[0].mxu0 %v1555
          %v2318 = vpop.f32.mrb[0].mxu0
          %v2319 = vadd.f32 %v1997, %v2318
          %v2320 = vpop.f32.mrb[0].mxu0
          %v2321 = vadd.f32 %v2001, %v2320
          %v2322 = vpop.f32.mrb[0].mxu0
          %v2323 = vadd.f32 %v1997, %v2322
          %v2324 = vpop.f32.mrb[0].mxu0
          %v2325 = vadd.f32 %v2001, %v2324
          %2326 = vmatprep.mubr.bf16.mxu0 %v1558
          %2327 = vmatmul.mubr.bf16.gmra.mrb[0].mxu0 %v1557
          %v2328 = vpop.f32.mrb[0].mxu0
          %v2329 = vadd.f32 %v1997, %v2328
          %v2330 = vpop.f32.mrb[0].mxu0
          %v2331 = vadd.f32 %v2001, %v2330
          %v2332 = vpop.f32.mrb[0].mxu0
          %v2333 = vadd.f32 %v1997, %v2332
          %v2334 = vpop.f32.mrb[0].mxu0
          %v2335 = vadd.f32 %v2001, %v2334
          %2336 = vmatprep.mubr.bf16.mxu0 %v1560
          %2337 = vmatmul.mubr.bf16.gmra.mrb[0].mxu0 %v1559
          %v2338 = vpop.f32.mrb[0].mxu0
          %v2339 = vadd.f32 %v1997, %v2338
          %v2340 = vpop.f32.mrb[0].mxu0
          %v2341 = vadd.f32 %v2001, %v2340
          %v2342 = vpop.f32.mrb[0].mxu0
          %v2343 = vadd.f32 %v1997, %v2342
          %v2344 = vpop.f32.mrb[0].mxu0
          %v2345 = vadd.f32 %v2001, %v2344
          %2346 = vmatprep.mubr.bf16.mxu0 %v1562
          %2347 = vmatmul.mubr.bf16.gmra.mrb[0].mxu0 %v1561
          %v2348 = vpop.f32.mrb[0].mxu0
          %v2349 = vadd.f32 %v1997, %v2348
          %v2350 = vpop.f32.mrb[0].mxu0
          %v2351 = vadd.f32 %v2001, %v2350
          %v2352 = vpop.f32.mrb[0].mxu0
          %v2353 = vadd.f32 %v1997, %v2352
          %v2354 = vpop.f32.mrb[0].mxu0
          %v2355 = vadd.f32 %v2001, %v2354
          %2356 = vdwg.mxu0
          %v2357 = vpack.c.bf16 %v1806, %v1802
          %v2358 = vpack.c.bf16 %v1808, %v1804
          %v2359 = vpack.c.bf16 %v1816, %v1812
          %v2360 = vpack.c.bf16 %v1818, %v1814
          %v2361 = vpack.c.bf16 %v1826, %v1822
          %v2362 = vpack.c.bf16 %v1828, %v1824
          %v2363 = vpack.c.bf16 %v1836, %v1832
          %v2364 = vpack.c.bf16 %v1838, %v1834
          %v2365 = vpack.c.bf16 %v1846, %v1842
          %v2366 = vpack.c.bf16 %v1848, %v1844
          %v2367 = vpack.c.bf16 %v1856, %v1852
          %v2368 = vpack.c.bf16 %v1858, %v1854
          %v2369 = vpack.c.bf16 %v1866, %v1862
          %v2370 = vpack.c.bf16 %v1868, %v1864
          %v2371 = vpack.c.bf16 %v1876, %v1872
          %v2372 = vpack.c.bf16 %v1878, %v1874
          %v2373 = vpack.c.bf16 %v1886, %v1882
          %v2374 = vpack.c.bf16 %v1888, %v1884
          %v2375 = vpack.c.bf16 %v1896, %v1892
          %v2376 = vpack.c.bf16 %v1898, %v1894
          %v2377 = vpack.c.bf16 %v1906, %v1902
          %v2378 = vpack.c.bf16 %v1908, %v1904
          %v2379 = vpack.c.bf16 %v1916, %v1912
          %v2380 = vpack.c.bf16 %v1918, %v1914
          %v2381 = vpack.c.bf16 %v1926, %v1922
          %v2382 = vpack.c.bf16 %v1928, %v1924
          %v2383 = vpack.c.bf16 %v1936, %v1932
          %v2384 = vpack.c.bf16 %v1938, %v1934
          %v2385 = vpack.c.bf16 %v1946, %v1942
          %v2386 = vpack.c.bf16 %v1948, %v1944
          %v2387 = vpack.c.bf16 %v1956, %v1952
          %v2388 = vpack.c.bf16 %v1958, %v1954
          %s2389 = smul.u32 0, 2
          %s2390 = smul.addr %s2389, 8
          %s2391 = scalar_lea.vmem [#allocation2], %s2390
          %2392 = vst [vmem:[%s2391] sm:$0xff] %v2357
          %2393 = vst [vmem:[%s2391 + $0x8] sm:$0xff] %v2358
          %2394 = vst [vmem:[%s2391 + $0x10] sm:$0xff] %v2359
          %2395 = vst [vmem:[%s2391 + $0x18] sm:$0xff] %v2360
          %2396 = vst [vmem:[%s2391 + $0x20] sm:$0xff] %v2361
          %2397 = vst [vmem:[%s2391 + $0x28] sm:$0xff] %v2362
          %2398 = vst [vmem:[%s2391 + $0x30] sm:$0xff] %v2363
          %2399 = vst [vmem:[%s2391 + $0x38] sm:$0xff] %v2364
          %2400 = vst [vmem:[%s2391 + $0x40] sm:$0xff] %v2365
          %2401 = vst [vmem:[%s2391 + $0x48] sm:$0xff] %v2366
          %2402 = vst [vmem:[%s2391 + $0x50] sm:$0xff] %v2367
          %2403 = vst [vmem:[%s2391 + $0x58] sm:$0xff] %v2368
          %2404 = vst [vmem:[%s2391 + $0x60] sm:$0xff] %v2369
          %2405 = vst [vmem:[%s2391 + $0x68] sm:$0xff] %v2370
          %2406 = vst [vmem:[%s2391 + $0x70] sm:$0xff] %v2371
          %2407 = vst [vmem:[%s2391 + $0x78] sm:$0xff] %v2372
          %2408 = vst [vmem:[%s2391 + $0x80] sm:$0xff] %v2373
          %2409 = vst [vmem:[%s2391 + $0x88] sm:$0xff] %v2374
          %2410 = vst [vmem:[%s2391 + $0x90] sm:$0xff] %v2375
          %2411 = vst [vmem:[%s2391 + $0x98] sm:$0xff] %v2376
          %2412 = vst [vmem:[%s2391 + $0xa0] sm:$0xff] %v2377
          %2413 = vst [vmem:[%s2391 + $0xa8] sm:$0xff] %v2378
          %2414 = vst [vmem:[%s2391 + $0xb0] sm:$0xff] %v2379
          %2415 = vst [vmem:[%s2391 + $0xb8] sm:$0xff] %v2380
          %2416 = vst [vmem:[%s2391 + $0xc0] sm:$0xff] %v2381
          %2417 = vst [vmem:[%s2391 + $0xc8] sm:$0xff] %v2382
          %2418 = vst [vmem:[%s2391 + $0xd0] sm:$0xff] %v2383
          %2419 = vst [vmem:[%s2391 + $0xd8] sm:$0xff] %v2384
          %2420 = vst [vmem:[%s2391 + $0xe0] sm:$0xff] %v2385
          %2421 = vst [vmem:[%s2391 + $0xe8] sm:$0xff] %v2386
          %2422 = vst [vmem:[%s2391 + $0xf0] sm:$0xff] %v2387
          %2423 = vst [vmem:[%s2391 + $0xf8] sm:$0xff] %v2388
          %v2424 = vpack.c.bf16 %v2203, %v2199
          %v2425 = vpack.c.bf16 %v2205, %v2201
          %v2426 = vpack.c.bf16 %v2213, %v2209
          %v2427 = vpack.c.bf16 %v2215, %v2211
          %v2428 = vpack.c.bf16 %v2223, %v2219
          %v2429 = vpack.c.bf16 %v2225, %v2221
          %v2430 = vpack.c.bf16 %v2233, %v2229
          %v2431 = vpack.c.bf16 %v2235, %v2231
          %v2432 = vpack.c.bf16 %v2243, %v2239
          %v2433 = vpack.c.bf16 %v2245, %v2241
          %v2434 = vpack.c.bf16 %v2253, %v2249
          %v2435 = vpack.c.bf16 %v2255, %v2251
          %v2436 = vpack.c.bf16 %v2263, %v2259
          %v2437 = vpack.c.bf16 %v2265, %v2261
          %v2438 = vpack.c.bf16 %v2273, %v2269
          %v2439 = vpack.c.bf16 %v2275, %v2271
          %v2440 = vpack.c.bf16 %v2283, %v2279
          %v2441 = vpack.c.bf16 %v2285, %v2281
          %v2442 = vpack.c.bf16 %v2293, %v2289
          %v2443 = vpack.c.bf16 %v2295, %v2291
          %v2444 = vpack.c.bf16 %v2303, %v2299
          %v2445 = vpack.c.bf16 %v2305, %v2301
          %v2446 = vpack.c.bf16 %v2313, %v2309
          %v2447 = vpack.c.bf16 %v2315, %v2311
          %v2448 = vpack.c.bf16 %v2323, %v2319
          %v2449 = vpack.c.bf16 %v2325, %v2321
          %v2450 = vpack.c.bf16 %v2333, %v2329
          %v2451 = vpack.c.bf16 %v2335, %v2331
          %v2452 = vpack.c.bf16 %v2343, %v2339
          %v2453 = vpack.c.bf16 %v2345, %v2341
          %v2454 = vpack.c.bf16 %v2353, %v2349
          %v2455 = vpack.c.bf16 %v2355, %v2351
          %s2456 = smul.addr %s2389, 8
          %s2457 = scalar_lea.vmem [#allocation3], %s2456
          %2458 = vst [vmem:[%s2457] sm:$0xff] %v2424
          %2459 = vst [vmem:[%s2457 + $0x8] sm:$0xff] %v2425
          %2460 = vst [vmem:[%s2457 + $0x10] sm:$0xff] %v2426
          %2461 = vst [vmem:[%s2457 + $0x18] sm:$0xff] %v2427
          %2462 = vst [vmem:[%s2457 + $0x20] sm:$0xff] %v2428
          %2463 = vst [vmem:[%s2457 + $0x28] sm:$0xff] %v2429
          %2464 = vst [vmem:[%s2457 + $0x30] sm:$0xff] %v2430
          %2465 = vst [vmem:[%s2457 + $0x38] sm:$0xff] %v2431
          %2466 = vst [vmem:[%s2457 + $0x40] sm:$0xff] %v2432
          %2467 = vst [vmem:[%s2457 + $0x48] sm:$0xff] %v2433
          %2468 = vst [vmem:[%s2457 + $0x50] sm:$0xff] %v2434
          %2469 = vst [vmem:[%s2457 + $0x58] sm:$0xff] %v2435
          %2470 = vst [vmem:[%s2457 + $0x60] sm:$0xff] %v2436
          %2471 = vst [vmem:[%s2457 + $0x68] sm:$0xff] %v2437
          %2472 = vst [vmem:[%s2457 + $0x70] sm:$0xff] %v2438
          %2473 = vst [vmem:[%s2457 + $0x78] sm:$0xff] %v2439
          %2474 = vst [vmem:[%s2457 + $0x80] sm:$0xff] %v2440
          %2475 = vst [vmem:[%s2457 + $0x88] sm:$0xff] %v2441
          %2476 = vst [vmem:[%s2457 + $0x90] sm:$0xff] %v2442
          %2477 = vst [vmem:[%s2457 + $0x98] sm:$0xff] %v2443
          %2478 = vst [vmem:[%s2457 + $0xa0] sm:$0xff] %v2444
          %2479 = vst [vmem:[%s2457 + $0xa8] sm:$0xff] %v2445
          %2480 = vst [vmem:[%s2457 + $0xb0] sm:$0xff] %v2446
          %2481 = vst [vmem:[%s2457 + $0xb8] sm:$0xff] %v2447
          %2482 = vst [vmem:[%s2457 + $0xc0] sm:$0xff] %v2448
          %2483 = vst [vmem:[%s2457 + $0xc8] sm:$0xff] %v2449
          %2484 = vst [vmem:[%s2457 + $0xd0] sm:$0xff] %v2450
          %2485 = vst [vmem:[%s2457 + $0xd8] sm:$0xff] %v2451
          %2486 = vst [vmem:[%s2457 + $0xe0] sm:$0xff] %v2452
          %2487 = vst [vmem:[%s2457 + $0xe8] sm:$0xff] %v2453
          %2488 = vst [vmem:[%s2457 + $0xf0] sm:$0xff] %v2454
          %2489 = vst [vmem:[%s2457 + $0xf8] sm:$0xff] %v2455
        $region160: #{tpu_custom_call.1} parent=87 // pred_fallthru
          _
        %s2490 = smul.u32 %s47, 128
        %s2491 = sshra.s32 %s2490, 3
        %s2492 = sand.u32 %s2490, 7
        %s2493 = smul.u32 %s2491, 2
        %s2494 = smul.addr %s2493, 8
        %s2495 = scalar_lea.vmem %s678, %s2494 [#allocation5]
        %v2496 = vld [vmem:[%s2495] sm:$0xff]
        %v2497 = vld [vmem:[%s2495 + $0x8] sm:$0xff]
        %v2498 = vld [vmem:[%s2495 + $0x10] sm:$0xff]
        %v2499 = vld [vmem:[%s2495 + $0x18] sm:$0xff]
        %v2500 = vld [vmem:[%s2495 + $0x20] sm:$0xff]
        %v2501 = vld [vmem:[%s2495 + $0x28] sm:$0xff]
        %v2502 = vld [vmem:[%s2495 + $0x30] sm:$0xff]
        %v2503 = vld [vmem:[%s2495 + $0x38] sm:$0xff]
        %v2504 = vld [vmem:[%s2495 + $0x40] sm:$0xff]
        %v2505 = vld [vmem:[%s2495 + $0x48] sm:$0xff]
        %v2506 = vld [vmem:[%s2495 + $0x50] sm:$0xff]
        %v2507 = vld [vmem:[%s2495 + $0x58] sm:$0xff]
        %v2508 = vld [vmem:[%s2495 + $0x60] sm:$0xff]
        %v2509 = vld [vmem:[%s2495 + $0x68] sm:$0xff]
        %v2510 = vld [vmem:[%s2495 + $0x70] sm:$0xff]
        %v2511 = vld [vmem:[%s2495 + $0x78] sm:$0xff]
        %v2512 = vld [vmem:[%s2495 + $0x80] sm:$0xff]
        %v2513 = vld [vmem:[%s2495 + $0x88] sm:$0xff]
        %v2514 = vld [vmem:[%s2495 + $0x90] sm:$0xff]
        %v2515 = vld [vmem:[%s2495 + $0x98] sm:$0xff]
        %v2516 = vld [vmem:[%s2495 + $0xa0] sm:$0xff]
        %v2517 = vld [vmem:[%s2495 + $0xa8] sm:$0xff]
        %v2518 = vld [vmem:[%s2495 + $0xb0] sm:$0xff]
        %v2519 = vld [vmem:[%s2495 + $0xb8] sm:$0xff]
        %v2520 = vld [vmem:[%s2495 + $0xc0] sm:$0xff]
        %v2521 = vld [vmem:[%s2495 + $0xc8] sm:$0xff]
        %v2522 = vld [vmem:[%s2495 + $0xd0] sm:$0xff]
        %v2523 = vld [vmem:[%s2495 + $0xd8] sm:$0xff]
        %v2524 = vld [vmem:[%s2495 + $0xe0] sm:$0xff]
        %v2525 = vld [vmem:[%s2495 + $0xe8] sm:$0xff]
        %v2526 = vld [vmem:[%s2495 + $0xf0] sm:$0xff]
        %v2527 = vld [vmem:[%s2495 + $0xf8] sm:$0xff]
        %v2528 = vld [vmem:[#allocation8] sm:$0x3]
        %v2529 = vld [vmem:[#allocation10] sm:$0x3]
        %v2530 = vadd.f32 %v2496, %v2497
        %2531 = vadd.xlane.f32.xlu0 %v2530
        %v2532 = vpop.xlane.xlu0 %2531
        %v2533 = vadd.f32 %v2498, %v2499
        %2534 = vadd.xlane.f32.xlu0 %v2533
        %v2535 = vpop.xlane.xlu0 %2534
        %v2536 = vadd.f32 %v2500, %v2501
        %2537 = vadd.xlane.f32.xlu0 %v2536
        %v2538 = vpop.xlane.xlu0 %2537
        %v2539 = vadd.f32 %v2502, %v2503
        %2540 = vadd.xlane.f32.xlu0 %v2539
        %v2541 = vpop.xlane.xlu0 %2540
        %v2542 = vadd.f32 %v2504, %v2505
        %2543 = vadd.xlane.f32.xlu0 %v2542
        %v2544 = vpop.xlane.xlu0 %2543
        %v2545 = vadd.f32 %v2506, %v2507
        %2546 = vadd.xlane.f32.xlu0 %v2545
        %v2547 = vpop.xlane.xlu0 %2546
        %v2548 = vadd.f32 %v2508, %v2509
        %2549 = vadd.xlane.f32.xlu0 %v2548
        %v2550 = vpop.xlane.xlu0 %2549
        %v2551 = vadd.f32 %v2510, %v2511
        %2552 = vadd.xlane.f32.xlu0 %v2551
        %v2553 = vpop.xlane.xlu0 %2552
        %v2554 = vadd.f32 %v2512, %v2513
        %2555 = vadd.xlane.f32.xlu0 %v2554
        %v2556 = vpop.xlane.xlu0 %2555
        %v2557 = vadd.f32 %v2514, %v2515
        %2558 = vadd.xlane.f32.xlu0 %v2557
        %v2559 = vpop.xlane.xlu0 %2558
        %v2560 = vadd.f32 %v2516, %v2517
        %2561 = vadd.xlane.f32.xlu0 %v2560
        %v2562 = vpop.xlane.xlu0 %2561
        %v2563 = vadd.f32 %v2518, %v2519
        %2564 = vadd.xlane.f32.xlu0 %v2563
        %v2565 = vpop.xlane.xlu0 %2564
        %v2566 = vadd.f32 %v2520, %v2521
        %2567 = vadd.xlane.f32.xlu0 %v2566
        %v2568 = vpop.xlane.xlu0 %2567
        %v2569 = vadd.f32 %v2522, %v2523
        %2570 = vadd.xlane.f32.xlu0 %v2569
        %v2571 = vpop.xlane.xlu0 %2570
        %v2572 = vadd.f32 %v2524, %v2525
        %2573 = vadd.xlane.f32.xlu0 %v2572
        %v2574 = vpop.xlane.xlu0 %2573
        %v2575 = vadd.f32 %v2526, %v2527
        %2576 = vadd.xlane.f32.xlu0 %v2575
        %v2577 = vpop.xlane.xlu0 %2576
        %v2578 = vrcp.pop 256.0
        %v2579 = vmul.f32 %v2532, %v2578
        %v2580 = vmul.f32 %v2535, %v2578
        %v2581 = vmul.f32 %v2538, %v2578
        %v2582 = vmul.f32 %v2541, %v2578
        %v2583 = vmul.f32 %v2544, %v2578
        %v2584 = vmul.f32 %v2547, %v2578
        %v2585 = vmul.f32 %v2550, %v2578
        %v2586 = vmul.f32 %v2553, %v2578
        %v2587 = vmul.f32 %v2556, %v2578
        %v2588 = vmul.f32 %v2559, %v2578
        %v2589 = vmul.f32 %v2562, %v2578
        %v2590 = vmul.f32 %v2565, %v2578
        %v2591 = vmul.f32 %v2568, %v2578
        %v2592 = vmul.f32 %v2571, %v2578
        %v2593 = vmul.f32 %v2574, %v2578
        %v2594 = vmul.f32 %v2577, %v2578
        %v2595 = vsub.f32 %v2496, %v2579
        %v2596 = vsub.f32 %v2497, %v2579
        %v2597 = vsub.f32 %v2498, %v2580
        %v2598 = vsub.f32 %v2499, %v2580
        %v2599 = vsub.f32 %v2500, %v2581
        %v2600 = vsub.f32 %v2501, %v2581
        %v2601 = vsub.f32 %v2502, %v2582
        %v2602 = vsub.f32 %v2503, %v2582
        %v2603 = vsub.f32 %v2504, %v2583
        %v2604 = vsub.f32 %v2505, %v2583
        %v2605 = vsub.f32 %v2506, %v2584
        %v2606 = vsub.f32 %v2507, %v2584
        %v2607 = vsub.f32 %v2508, %v2585
        %v2608 = vsub.f32 %v2509, %v2585
        %v2609 = vsub.f32 %v2510, %v2586
        %v2610 = vsub.f32 %v2511, %v2586
        %v2611 = vsub.f32 %v2512, %v2587
        %v2612 = vsub.f32 %v2513, %v2587
        %v2613 = vsub.f32 %v2514, %v2588
        %v2614 = vsub.f32 %v2515, %v2588
        %v2615 = vsub.f32 %v2516, %v2589
        %v2616 = vsub.f32 %v2517, %v2589
        %v2617 = vsub.f32 %v2518, %v2590
        %v2618 = vsub.f32 %v2519, %v2590
        %v2619 = vsub.f32 %v2520, %v2591
        %v2620 = vsub.f32 %v2521, %v2591
        %v2621 = vsub.f32 %v2522, %v2592
        %v2622 = vsub.f32 %v2523, %v2592
        %v2623 = vsub.f32 %v2524, %v2593
        %v2624 = vsub.f32 %v2525, %v2593
        %v2625 = vsub.f32 %v2526, %v2594
        %v2626 = vsub.f32 %v2527, %v2594
        %v2627 = vmul.f32 %v2595, %v2595
        %v2628 = vmul.f32 %v2596, %v2596
        %v2629 = vmul.f32 %v2597, %v2597
        %v2630 = vmul.f32 %v2598, %v2598
        %v2631 = vmul.f32 %v2599, %v2599
        %v2632 = vmul.f32 %v2600, %v2600
        %v2633 = vmul.f32 %v2601, %v2601
        %v2634 = vmul.f32 %v2602, %v2602
        %v2635 = vmul.f32 %v2603, %v2603
        %v2636 = vmul.f32 %v2604, %v2604
        %v2637 = vmul.f32 %v2605, %v2605
        %v2638 = vmul.f32 %v2606, %v2606
        %v2639 = vmul.f32 %v2607, %v2607
        %v2640 = vmul.f32 %v2608, %v2608
        %v2641 = vmul.f32 %v2609, %v2609
        %v2642 = vmul.f32 %v2610, %v2610
        %v2643 = vmul.f32 %v2611, %v2611
        %v2644 = vmul.f32 %v2612, %v2612
        %v2645 = vmul.f32 %v2613, %v2613
        %v2646 = vmul.f32 %v2614, %v2614
        %v2647 = vmul.f32 %v2615, %v2615
        %v2648 = vmul.f32 %v2616, %v2616
        %v2649 = vmul.f32 %v2617, %v2617
        %v2650 = vmul.f32 %v2618, %v2618
        %v2651 = vmul.f32 %v2619, %v2619
        %v2652 = vmul.f32 %v2620, %v2620
        %v2653 = vmul.f32 %v2621, %v2621
        %v2654 = vmul.f32 %v2622, %v2622
        %v2655 = vmul.f32 %v2623, %v2623
        %v2656 = vmul.f32 %v2624, %v2624
        %v2657 = vmul.f32 %v2625, %v2625
        %v2658 = vmul.f32 %v2626, %v2626
        %v2659 = vadd.f32 %v2627, %v2628
        %2660 = vadd.xlane.f32.xlu0 %v2659
        %v2661 = vpop.xlane.xlu0 %2660
        %v2662 = vadd.f32 %v2629, %v2630
        %2663 = vadd.xlane.f32.xlu0 %v2662
        %v2664 = vpop.xlane.xlu0 %2663
        %v2665 = vadd.f32 %v2631, %v2632
        %2666 = vadd.xlane.f32.xlu0 %v2665
        %v2667 = vpop.xlane.xlu0 %2666
        %v2668 = vadd.f32 %v2633, %v2634
        %2669 = vadd.xlane.f32.xlu0 %v2668
        %v2670 = vpop.xlane.xlu0 %2669
        %v2671 = vadd.f32 %v2635, %v2636
        %2672 = vadd.xlane.f32.xlu0 %v2671
        %v2673 = vpop.xlane.xlu0 %2672
        %v2674 = vadd.f32 %v2637, %v2638
        %2675 = vadd.xlane.f32.xlu0 %v2674
        %v2676 = vpop.xlane.xlu0 %2675
        %v2677 = vadd.f32 %v2639, %v2640
        %2678 = vadd.xlane.f32.xlu0 %v2677
        %v2679 = vpop.xlane.xlu0 %2678
        %v2680 = vadd.f32 %v2641, %v2642
        %2681 = vadd.xlane.f32.xlu0 %v2680
        %v2682 = vpop.xlane.xlu0 %2681
        %v2683 = vadd.f32 %v2643, %v2644
        %2684 = vadd.xlane.f32.xlu0 %v2683
        %v2685 = vpop.xlane.xlu0 %2684
        %v2686 = vadd.f32 %v2645, %v2646
        %2687 = vadd.xlane.f32.xlu0 %v2686
        %v2688 = vpop.xlane.xlu0 %2687
        %v2689 = vadd.f32 %v2647, %v2648
        %2690 = vadd.xlane.f32.xlu0 %v2689
        %v2691 = vpop.xlane.xlu0 %2690
        %v2692 = vadd.f32 %v2649, %v2650
        %2693 = vadd.xlane.f32.xlu0 %v2692
        %v2694 = vpop.xlane.xlu0 %2693
        %v2695 = vadd.f32 %v2651, %v2652
        %2696 = vadd.xlane.f32.xlu0 %v2695
        %v2697 = vpop.xlane.xlu0 %2696
        %v2698 = vadd.f32 %v2653, %v2654
        %2699 = vadd.xlane.f32.xlu0 %v2698
        %v2700 = vpop.xlane.xlu0 %2699
        %v2701 = vadd.f32 %v2655, %v2656
        %2702 = vadd.xlane.f32.xlu0 %v2701
        %v2703 = vpop.xlane.xlu0 %2702
        %v2704 = vadd.f32 %v2657, %v2658
        %2705 = vadd.xlane.f32.xlu0 %v2704
        %v2706 = vpop.xlane.xlu0 %2705
        %v2707 = vmul.f32 %v2661, %v2578
        %v2708 = vmul.f32 %v2664, %v2578
        %v2709 = vmul.f32 %v2667, %v2578
        %v2710 = vmul.f32 %v2670, %v2578
        %v2711 = vmul.f32 %v2673, %v2578
        %v2712 = vmul.f32 %v2676, %v2578
        %v2713 = vmul.f32 %v2679, %v2578
        %v2714 = vmul.f32 %v2682, %v2578
        %v2715 = vmul.f32 %v2685, %v2578
        %v2716 = vmul.f32 %v2688, %v2578
        %v2717 = vmul.f32 %v2691, %v2578
        %v2718 = vmul.f32 %v2694, %v2578
        %v2719 = vmul.f32 %v2697, %v2578
        %v2720 = vmul.f32 %v2700, %v2578
        %v2721 = vmul.f32 %v2703, %v2578
        %v2722 = vmul.f32 %v2706, %v2578
        %v2723 = vadd.f32 %v2707, 1e-05
        %v2724 = vadd.f32 %v2708, 1e-05
        %v2725 = vadd.f32 %v2709, 1e-05
        %v2726 = vadd.f32 %v2710, 1e-05
        %v2727 = vadd.f32 %v2711, 1e-05
        %v2728 = vadd.f32 %v2712, 1e-05
        %v2729 = vadd.f32 %v2713, 1e-05
        %v2730 = vadd.f32 %v2714, 1e-05
        %v2731 = vadd.f32 %v2715, 1e-05
        %v2732 = vadd.f32 %v2716, 1e-05
        %v2733 = vadd.f32 %v2717, 1e-05
        %v2734 = vadd.f32 %v2718, 1e-05
        %v2735 = vadd.f32 %v2719, 1e-05
        %v2736 = vadd.f32 %v2720, 1e-05
        %v2737 = vadd.f32 %v2721, 1e-05
        %v2738 = vadd.f32 %v2722, 1e-05
        %v2739 = vrsqrt.pop %v2723
        %v2740 = vrsqrt.pop %v2724
        %v2741 = vrsqrt.pop %v2725
        %v2742 = vrsqrt.pop %v2726
        %v2743 = vrsqrt.pop %v2727
        %v2744 = vrsqrt.pop %v2728
        %v2745 = vrsqrt.pop %v2729
        %v2746 = vrsqrt.pop %v2730
        %v2747 = vrsqrt.pop %v2731
        %v2748 = vrsqrt.pop %v2732
        %v2749 = vrsqrt.pop %v2733
        %v2750 = vrsqrt.pop %v2734
        %v2751 = vrsqrt.pop %v2735
        %v2752 = vrsqrt.pop %v2736
        %v2753 = vrsqrt.pop %v2737
        %v2754 = vrsqrt.pop %v2738
        %v2755 = vmul.f32 %v2595, %v2739
        %v2756 = vmul.f32 %v2596, %v2739
        %v2757 = vmul.f32 %v2597, %v2740
        %v2758 = vmul.f32 %v2598, %v2740
        %v2759 = vmul.f32 %v2599, %v2741
        %v2760 = vmul.f32 %v2600, %v2741
        %v2761 = vmul.f32 %v2601, %v2742
        %v2762 = vmul.f32 %v2602, %v2742
        %v2763 = vmul.f32 %v2603, %v2743
        %v2764 = vmul.f32 %v2604, %v2743
        %v2765 = vmul.f32 %v2605, %v2744
        %v2766 = vmul.f32 %v2606, %v2744
        %v2767 = vmul.f32 %v2607, %v2745
        %v2768 = vmul.f32 %v2608, %v2745
        %v2769 = vmul.f32 %v2609, %v2746
        %v2770 = vmul.f32 %v2610, %v2746
        %v2771 = vmul.f32 %v2611, %v2747
        %v2772 = vmul.f32 %v2612, %v2747
        %v2773 = vmul.f32 %v2613, %v2748
        %v2774 = vmul.f32 %v2614, %v2748
        %v2775 = vmul.f32 %v2615, %v2749
        %v2776 = vmul.f32 %v2616, %v2749
        %v2777 = vmul.f32 %v2617, %v2750
        %v2778 = vmul.f32 %v2618, %v2750
        %v2779 = vmul.f32 %v2619, %v2751
        %v2780 = vmul.f32 %v2620, %v2751
        %v2781 = vmul.f32 %v2621, %v2752
        %v2782 = vmul.f32 %v2622, %v2752
        %v2783 = vmul.f32 %v2623, %v2753
        %v2784 = vmul.f32 %v2624, %v2753
        %v2785 = vmul.f32 %v2625, %v2754
        %v2786 = vmul.f32 %v2626, %v2754
        %v2788 = vlaneseq
        %v2789 = vshrl.u32 %v2788, 7
        %v2790 = vsub.s32 0, %v2789
        %v2791 = vrot.slane %v2528, %v2790
        %v2792 = vlaneseq
        %v2793 = vshrl.u32 %v2792, 7
        %v2794 = vsub.s32 1, %v2793
        %v2795 = vrot.slane %v2528, %v2794
        %v2798 = vmul.f32 %v2755, %v2791
        %v2799 = vmul.f32 %v2756, %v2795
        %v2800 = vmul.f32 %v2757, %v2791
        %v2801 = vmul.f32 %v2758, %v2795
        %v2802 = vmul.f32 %v2759, %v2791
        %v2803 = vmul.f32 %v2760, %v2795
        %v2804 = vmul.f32 %v2761, %v2791
        %v2805 = vmul.f32 %v2762, %v2795
        %v2806 = vmul.f32 %v2763, %v2791
        %v2807 = vmul.f32 %v2764, %v2795
        %v2808 = vmul.f32 %v2765, %v2791
        %v2809 = vmul.f32 %v2766, %v2795
        %v2810 = vmul.f32 %v2767, %v2791
        %v2811 = vmul.f32 %v2768, %v2795
        %v2812 = vmul.f32 %v2769, %v2791
        %v2813 = vmul.f32 %v2770, %v2795
        %v2814 = vmul.f32 %v2771, %v2791
        %v2815 = vmul.f32 %v2772, %v2795
        %v2816 = vmul.f32 %v2773, %v2791
        %v2817 = vmul.f32 %v2774, %v2795
        %v2818 = vmul.f32 %v2775, %v2791
        %v2819 = vmul.f32 %v2776, %v2795
        %v2820 = vmul.f32 %v2777, %v2791
        %v2821 = vmul.f32 %v2778, %v2795
        %v2822 = vmul.f32 %v2779, %v2791
        %v2823 = vmul.f32 %v2780, %v2795
        %v2824 = vmul.f32 %v2781, %v2791
        %v2825 = vmul.f32 %v2782, %v2795
        %v2826 = vmul.f32 %v2783, %v2791
        %v2827 = vmul.f32 %v2784, %v2795
        %v2828 = vmul.f32 %v2785, %v2791
        %v2829 = vmul.f32 %v2786, %v2795
        %v2831 = vlaneseq
        %v2832 = vshrl.u32 %v2831, 7
        %v2833 = vsub.s32 0, %v2832
        %v2834 = vrot.slane %v2529, %v2833
        %v2835 = vlaneseq
        %v2836 = vshrl.u32 %v2835, 7
        %v2837 = vsub.s32 1, %v2836
        %v2838 = vrot.slane %v2529, %v2837
        %v2841 = vadd.f32 %v2798, %v2834
        %v2842 = vadd.f32 %v2799, %v2838
        %v2843 = vadd.f32 %v2800, %v2834
        %v2844 = vadd.f32 %v2801, %v2838
        %v2845 = vadd.f32 %v2802, %v2834
        %v2846 = vadd.f32 %v2803, %v2838
        %v2847 = vadd.f32 %v2804, %v2834
        %v2848 = vadd.f32 %v2805, %v2838
        %v2849 = vadd.f32 %v2806, %v2834
        %v2850 = vadd.f32 %v2807, %v2838
        %v2851 = vadd.f32 %v2808, %v2834
        %v2852 = vadd.f32 %v2809, %v2838
        %v2853 = vadd.f32 %v2810, %v2834
        %v2854 = vadd.f32 %v2811, %v2838
        %v2855 = vadd.f32 %v2812, %v2834
        %v2856 = vadd.f32 %v2813, %v2838
        %v2857 = vadd.f32 %v2814, %v2834
        %v2858 = vadd.f32 %v2815, %v2838
        %v2859 = vadd.f32 %v2816, %v2834
        %v2860 = vadd.f32 %v2817, %v2838
        %v2861 = vadd.f32 %v2818, %v2834
        %v2862 = vadd.f32 %v2819, %v2838
        %v2863 = vadd.f32 %v2820, %v2834
        %v2864 = vadd.f32 %v2821, %v2838
        %v2865 = vadd.f32 %v2822, %v2834
        %v2866 = vadd.f32 %v2823, %v2838
        %v2867 = vadd.f32 %v2824, %v2834
        %v2868 = vadd.f32 %v2825, %v2838
        %v2869 = vadd.f32 %v2826, %v2834
        %v2870 = vadd.f32 %v2827, %v2838
        %v2871 = vadd.f32 %v2828, %v2834
        %v2872 = vadd.f32 %v2829, %v2838
        %v2873 = vpack.c.bf16 %v2843, %v2841
        %v2874 = vpack.c.bf16 %v2844, %v2842
        %v2875 = vpack.c.bf16 %v2847, %v2845
        %v2876 = vpack.c.bf16 %v2848, %v2846
        %v2877 = vpack.c.bf16 %v2851, %v2849
        %v2878 = vpack.c.bf16 %v2852, %v2850
        %v2879 = vpack.c.bf16 %v2855, %v2853
        %v2880 = vpack.c.bf16 %v2856, %v2854
        %v2881 = vpack.c.bf16 %v2859, %v2857
        %v2882 = vpack.c.bf16 %v2860, %v2858
        %v2883 = vpack.c.bf16 %v2863, %v2861
        %v2884 = vpack.c.bf16 %v2864, %v2862
        %v2885 = vpack.c.bf16 %v2867, %v2865
        %v2886 = vpack.c.bf16 %v2868, %v2866
        %v2887 = vpack.c.bf16 %v2871, %v2869
        %v2888 = vpack.c.bf16 %v2872, %v2870
        %v2889 = vld [vmem:[#allocation11] sm:$0xff]
        %v2890 = vld [vmem:[#allocation11 + $0x8] sm:$0xff]
        %v2891 = vld [vmem:[#allocation11 + $0x10] sm:$0xff]
        %v2892 = vld [vmem:[#allocation11 + $0x18] sm:$0xff]
        %v2893 = vld [vmem:[#allocation11 + $0x20] sm:$0xff]
        %v2894 = vld [vmem:[#allocation11 + $0x28] sm:$0xff]
        %v2895 = vld [vmem:[#allocation11 + $0x30] sm:$0xff]
        %v2896 = vld [vmem:[#allocation11 + $0x38] sm:$0xff]
        %v2897 = vld [vmem:[#allocation11 + $0x40] sm:$0xff]
        %v2898 = vld [vmem:[#allocation11 + $0x48] sm:$0xff]
        %v2899 = vld [vmem:[#allocation11 + $0x50] sm:$0xff]
        %v2900 = vld [vmem:[#allocation11 + $0x58] sm:$0xff]
        %v2901 = vld [vmem:[#allocation11 + $0x60] sm:$0xff]
        %v2902 = vld [vmem:[#allocation11 + $0x68] sm:$0xff]
        %v2903 = vld [vmem:[#allocation11 + $0x70] sm:$0xff]
        %v2904 = vld [vmem:[#allocation11 + $0x78] sm:$0xff]
        %v2905 = vld [vmem:[#allocation11 + $0x80] sm:$0xff]
        %v2906 = vld [vmem:[#allocation11 + $0x88] sm:$0xff]
        %v2907 = vld [vmem:[#allocation11 + $0x90] sm:$0xff]
        %v2908 = vld [vmem:[#allocation11 + $0x98] sm:$0xff]
        %v2909 = vld [vmem:[#allocation11 + $0xa0] sm:$0xff]
        %v2910 = vld [vmem:[#allocation11 + $0xa8] sm:$0xff]
        %v2911 = vld [vmem:[#allocation11 + $0xb0] sm:$0xff]
        %v2912 = vld [vmem:[#allocation11 + $0xb8] sm:$0xff]
        %v2913 = vld [vmem:[#allocation11 + $0xc0] sm:$0xff]
        %v2914 = vld [vmem:[#allocation11 + $0xc8] sm:$0xff]
        %v2915 = vld [vmem:[#allocation11 + $0xd0] sm:$0xff]
        %v2916 = vld [vmem:[#allocation11 + $0xd8] sm:$0xff]
        %v2917 = vld [vmem:[#allocation11 + $0xe0] sm:$0xff]
        %v2918 = vld [vmem:[#allocation11 + $0xe8] sm:$0xff]
        %v2919 = vld [vmem:[#allocation11 + $0xf0] sm:$0xff]
        %v2920 = vld [vmem:[#allocation11 + $0xf8] sm:$0xff]
        %v2921 = vld [vmem:[#allocation13] sm:$0x3]
        %v2923 = vlaneseq
        %v2924 = vshrl.u32 %v2923, 7
        %v2925 = vsub.s32 0, %v2924
        %v2926 = vrot.slane %v2921, %v2925
        %v2927 = vlaneseq
        %v2928 = vshrl.u32 %v2927, 7
        %v2929 = vsub.s32 1, %v2928
        %v2930 = vrot.slane %v2921, %v2929
        %v2965 = vunpack.c.l.b16 %v2889
        %v2966 = vunpack.c.h.b16 %v2889
        %v2967 = vunpack.c.l.b16 %v2890
        %v2968 = vunpack.c.h.b16 %v2890
        %v2969 = vunpack.c.l.b16 %v2891
        %v2970 = vunpack.c.h.b16 %v2891
        %v2971 = vunpack.c.l.b16 %v2892
        %v2972 = vunpack.c.h.b16 %v2892
        %v2973 = vunpack.c.l.b16 %v2893
        %v2974 = vunpack.c.h.b16 %v2893
        %v2975 = vunpack.c.l.b16 %v2894
        %v2976 = vunpack.c.h.b16 %v2894
        %v2977 = vunpack.c.l.b16 %v2895
        %v2978 = vunpack.c.h.b16 %v2895
        %v2979 = vunpack.c.l.b16 %v2896
        %v2980 = vunpack.c.h.b16 %v2896
        %v2981 = vunpack.c.l.b16 %v2897
        %v2982 = vunpack.c.h.b16 %v2897
        %v2983 = vunpack.c.l.b16 %v2898
        %v2984 = vunpack.c.h.b16 %v2898
        %v2985 = vunpack.c.l.b16 %v2899
        %v2986 = vunpack.c.h.b16 %v2899
        %v2987 = vunpack.c.l.b16 %v2900
        %v2988 = vunpack.c.h.b16 %v2900
        %v2989 = vunpack.c.l.b16 %v2901
        %v2990 = vunpack.c.h.b16 %v2901
        %v2991 = vunpack.c.l.b16 %v2902
        %v2992 = vunpack.c.h.b16 %v2902
        %v2993 = vunpack.c.l.b16 %v2903
        %v2994 = vunpack.c.h.b16 %v2903
        %v2995 = vunpack.c.l.b16 %v2904
        %v2996 = vunpack.c.h.b16 %v2904
        %v2997 = vunpack.c.l.b16 %v2905
        %v2998 = vunpack.c.h.b16 %v2905
        %v2999 = vunpack.c.l.b16 %v2906
        %v3000 = vunpack.c.h.b16 %v2906
        %v3001 = vunpack.c.l.b16 %v2907
        %v3002 = vunpack.c.h.b16 %v2907
        %v3003 = vunpack.c.l.b16 %v2908
        %v3004 = vunpack.c.h.b16 %v2908
        %v3005 = vunpack.c.l.b16 %v2909
        %v3006 = vunpack.c.h.b16 %v2909
        %v3007 = vunpack.c.l.b16 %v2910
        %v3008 = vunpack.c.h.b16 %v2910
        %v3009 = vunpack.c.l.b16 %v2911
        %v3010 = vunpack.c.h.b16 %v2911
        %v3011 = vunpack.c.l.b16 %v2912
        %v3012 = vunpack.c.h.b16 %v2912
        %v3013 = vunpack.c.l.b16 %v2913
        %v3014 = vunpack.c.h.b16 %v2913
        %v3015 = vunpack.c.l.b16 %v2914
        %v3016 = vunpack.c.h.b16 %v2914
        %v3017 = vunpack.c.l.b16 %v2915
        %v3018 = vunpack.c.h.b16 %v2915
        %v3019 = vunpack.c.l.b16 %v2916
        %v3020 = vunpack.c.h.b16 %v2916
        %v3021 = vunpack.c.l.b16 %v2917
        %v3022 = vunpack.c.h.b16 %v2917
        %v3023 = vunpack.c.l.b16 %v2918
        %v3024 = vunpack.c.h.b16 %v2918
        %v3025 = vunpack.c.l.b16 %v2919
        %v3026 = vunpack.c.h.b16 %v2919
        %v3027 = vunpack.c.l.b16 %v2920
        %v3028 = vunpack.c.h.b16 %v2920
        %v3029 = vpack.c.b16 %v2967, %v2965
        %v3030 = vpack.c.b16 %v2968, %v2966
        %v3031 = vpack.c.b16 %v2971, %v2969
        %v3032 = vpack.c.b16 %v2972, %v2970
        %v3033 = vpack.c.b16 %v2975, %v2973
        %v3034 = vpack.c.b16 %v2976, %v2974
        %v3035 = vpack.c.b16 %v2979, %v2977
        %v3036 = vpack.c.b16 %v2980, %v2978
        %v3037 = vpack.c.b16 %v2983, %v2981
        %v3038 = vpack.c.b16 %v2984, %v2982
        %v3039 = vpack.c.b16 %v2987, %v2985
        %v3040 = vpack.c.b16 %v2988, %v2986
        %v3041 = vpack.c.b16 %v2991, %v2989
        %v3042 = vpack.c.b16 %v2992, %v2990
        %v3043 = vpack.c.b16 %v2995, %v2993
        %v3044 = vpack.c.b16 %v2996, %v2994
        %v3045 = vpack.c.b16 %v2999, %v2997
        %v3046 = vpack.c.b16 %v3000, %v2998
        %v3047 = vpack.c.b16 %v3003, %v3001
        %v3048 = vpack.c.b16 %v3004, %v3002
        %v3049 = vpack.c.b16 %v3007, %v3005
        %v3050 = vpack.c.b16 %v3008, %v3006
        %v3051 = vpack.c.b16 %v3011, %v3009
        %v3052 = vpack.c.b16 %v3012, %v3010
        %v3053 = vpack.c.b16 %v3015, %v3013
        %v3054 = vpack.c.b16 %v3016, %v3014
        %v3055 = vpack.c.b16 %v3019, %v3017
        %v3056 = vpack.c.b16 %v3020, %v3018
        %v3057 = vpack.c.b16 %v3023, %v3021
        %v3058 = vpack.c.b16 %v3024, %v3022
        %v3059 = vpack.c.b16 %v3027, %v3025
        %v3060 = vpack.c.b16 %v3028, %v3026
        %3093 = vmatprep.subr.bf16.mxu0 %v3030
        %3094 = vmatpush1.bf16.msra.mxu0 %v3029
        %3095 = vmatprep.subr.bf16.mxu0 %v3032
        %3096 = vmatpush1.bf16.msra.mxu0 %v3031
        %3097 = vmatprep.subr.bf16.mxu0 %v3034
        %3098 = vmatpush1.bf16.msra.mxu0 %v3033
        %3099 = vmatprep.subr.bf16.mxu0 %v3036
        %3100 = vmatpush1.bf16.msra.mxu0 %v3035
        %3101 = vmatprep.subr.bf16.mxu0 %v3038
        %3102 = vmatpush1.bf16.msra.mxu0 %v3037
        %3103 = vmatprep.subr.bf16.mxu0 %v3040
        %3104 = vmatpush1.bf16.msra.mxu0 %v3039
        %3105 = vmatprep.subr.bf16.mxu0 %v3042
        %3106 = vmatpush1.bf16.msra.mxu0 %v3041
        %3107 = vmatprep.subr.bf16.mxu0 %v3044
        %3108 = vmatpush1.bf16.msra.mxu0 %v3043
        %3109 = vmatprep.subr.bf16.mxu0 %v3046
        %3110 = vmatpush1.bf16.msra.mxu0 %v3045
        %3111 = vmatprep.subr.bf16.mxu0 %v3048
        %3112 = vmatpush1.bf16.msra.mxu0 %v3047
        %3113 = vmatprep.subr.bf16.mxu0 %v3050
        %3114 = vmatpush1.bf16.msra.mxu0 %v3049
        %3115 = vmatprep.subr.bf16.mxu0 %v3052
        %3116 = vmatpush1.bf16.msra.mxu0 %v3051
        %3117 = vmatprep.subr.bf16.mxu0 %v3054
        %3118 = vmatpush1.bf16.msra.mxu0 %v3053
        %3119 = vmatprep.subr.bf16.mxu0 %v3056
        %3120 = vmatpush1.bf16.msra.mxu0 %v3055
        %3121 = vmatprep.subr.bf16.mxu0 %v3058
        %3122 = vmatpush1.bf16.msra.mxu0 %v3057
        %3123 = vmatprep.subr.bf16.mxu0 %v3060
        %3124 = vmatpush1.bf16.msra.mxu0 %v3059
        %3125 = vmatprep.mubr.bf16.mxu0 %v2874
        %3126 = vmatmul.mubr.bf16.gmra.mrb[0].mxu0 %v2873
        %v3127 = vpop.f32.mrb[0].mxu0
        %v3128 = vadd.f32 %v2926, %v3127
        %v3129 = vpop.f32.mrb[0].mxu0
        %v3130 = vadd.f32 %v2930, %v3129
        %v3131 = vpop.f32.mrb[0].mxu0
        %v3132 = vadd.f32 %v2926, %v3131
        %v3133 = vpop.f32.mrb[0].mxu0
        %v3134 = vadd.f32 %v2930, %v3133
        %3135 = vmatprep.mubr.bf16.mxu0 %v2876
        %3136 = vmatmul.mubr.bf16.gmra.mrb[0].mxu0 %v2875
        %v3137 = vpop.f32.mrb[0].mxu0
        %v3138 = vadd.f32 %v2926, %v3137
        %v3139 = vpop.f32.mrb[0].mxu0
        %v3140 = vadd.f32 %v2930, %v3139
        %v3141 = vpop.f32.mrb[0].mxu0
        %v3142 = vadd.f32 %v2926, %v3141
        %v3143 = vpop.f32.mrb[0].mxu0
        %v3144 = vadd.f32 %v2930, %v3143
        %3145 = vmatprep.mubr.bf16.mxu0 %v2878
        %3146 = vmatmul.mubr.bf16.gmra.mrb[0].mxu0 %v2877
        %v3147 = vpop.f32.mrb[0].mxu0
        %v3148 = vadd.f32 %v2926, %v3147
        %v3149 = vpop.f32.mrb[0].mxu0
        %v3150 = vadd.f32 %v2930, %v3149
        %v3151 = vpop.f32.mrb[0].mxu0
        %v3152 = vadd.f32 %v2926, %v3151
        %v3153 = vpop.f32.mrb[0].mxu0
        %v3154 = vadd.f32 %v2930, %v3153
        %3155 = vmatprep.mubr.bf16.mxu0 %v2880
        %3156 = vmatmul.mubr.bf16.gmra.mrb[0].mxu0 %v2879
        %v3157 = vpop.f32.mrb[0].mxu0
        %v3158 = vadd.f32 %v2926, %v3157
        %v3159 = vpop.f32.mrb[0].mxu0
        %v3160 = vadd.f32 %v2930, %v3159
        %v3161 = vpop.f32.mrb[0].mxu0
        %v3162 = vadd.f32 %v2926, %v3161
        %v3163 = vpop.f32.mrb[0].mxu0
        %v3164 = vadd.f32 %v2930, %v3163
        %3165 = vmatprep.mubr.bf16.mxu0 %v2882
        %3166 = vmatmul.mubr.bf16.gmra.mrb[0].mxu0 %v2881
        %v3167 = vpop.f32.mrb[0].mxu0
        %v3168 = vadd.f32 %v2926, %v3167
        %v3169 = vpop.f32.mrb[0].mxu0
        %v3170 = vadd.f32 %v2930, %v3169
        %v3171 = vpop.f32.mrb[0].mxu0
        %v3172 = vadd.f32 %v2926, %v3171
        %v3173 = vpop.f32.mrb[0].mxu0
        %v3174 = vadd.f32 %v2930, %v3173
        %3175 = vmatprep.mubr.bf16.mxu0 %v2884
        %3176 = vmatmul.mubr.bf16.gmra.mrb[0].mxu0 %v2883
        %v3177 = vpop.f32.mrb[0].mxu0
        %v3178 = vadd.f32 %v2926, %v3177
        %v3179 = vpop.f32.mrb[0].mxu0
        %v3180 = vadd.f32 %v2930, %v3179
        %v3181 = vpop.f32.mrb[0].mxu0
        %v3182 = vadd.f32 %v2926, %v3181
        %v3183 = vpop.f32.mrb[0].mxu0
        %v3184 = vadd.f32 %v2930, %v3183
        %3185 = vmatprep.mubr.bf16.mxu0 %v2886
        %3186 = vmatmul.mubr.bf16.gmra.mrb[0].mxu0 %v2885
        %v3187 = vpop.f32.mrb[0].mxu0
        %v3188 = vadd.f32 %v2926, %v3187
        %v3189 = vpop.f32.mrb[0].mxu0
        %v3190 = vadd.f32 %v2930, %v3189
        %v3191 = vpop.f32.mrb[0].mxu0
        %v3192 = vadd.f32 %v2926, %v3191
        %v3193 = vpop.f32.mrb[0].mxu0
        %v3194 = vadd.f32 %v2930, %v3193
        %3195 = vmatprep.mubr.bf16.mxu0 %v2888
        %3196 = vmatmul.mubr.bf16.gmra.mrb[0].mxu0 %v2887
        %v3197 = vpop.f32.mrb[0].mxu0
        %v3198 = vadd.f32 %v2926, %v3197
        %v3199 = vpop.f32.mrb[0].mxu0
        %v3200 = vadd.f32 %v2930, %v3199
        %v3201 = vpop.f32.mrb[0].mxu0
        %v3202 = vadd.f32 %v2926, %v3201
        %v3203 = vpop.f32.mrb[0].mxu0
        %v3204 = vadd.f32 %v2930, %v3203
        %3205 = vdwg.mxu0
        %v3206 = vpack.c.bf16 %v3132, %v3128
        %v3207 = vpack.c.bf16 %v3134, %v3130
        %v3208 = vpack.c.bf16 %v3142, %v3138
        %v3209 = vpack.c.bf16 %v3144, %v3140
        %v3210 = vpack.c.bf16 %v3152, %v3148
        %v3211 = vpack.c.bf16 %v3154, %v3150
        %v3212 = vpack.c.bf16 %v3162, %v3158
        %v3213 = vpack.c.bf16 %v3164, %v3160
        %v3214 = vpack.c.bf16 %v3172, %v3168
        %v3215 = vpack.c.bf16 %v3174, %v3170
        %v3216 = vpack.c.bf16 %v3182, %v3178
        %v3217 = vpack.c.bf16 %v3184, %v3180
        %v3218 = vpack.c.bf16 %v3192, %v3188
        %v3219 = vpack.c.bf16 %v3194, %v3190
        %v3220 = vpack.c.bf16 %v3202, %v3198
        %v3221 = vpack.c.bf16 %v3204, %v3200
        %v3222 = vld [vmem:[#allocation2] sm:$0xff]
        %v3223 = vld [vmem:[#allocation2 + $0x10] sm:$0xff]
        %v3224 = vld [vmem:[#allocation2 + $0x20] sm:$0xff]
        %v3225 = vld [vmem:[#allocation2 + $0x30] sm:$0xff]
        %v3226 = vld [vmem:[#allocation2 + $0x40] sm:$0xff]
        %v3227 = vld [vmem:[#allocation2 + $0x50] sm:$0xff]
        %v3228 = vld [vmem:[#allocation2 + $0x60] sm:$0xff]
        %v3229 = vld [vmem:[#allocation2 + $0x70] sm:$0xff]
        %v3230 = vld [vmem:[#allocation2 + $0x80] sm:$0xff]
        %v3231 = vld [vmem:[#allocation2 + $0x90] sm:$0xff]
        %v3232 = vld [vmem:[#allocation2 + $0xa0] sm:$0xff]
        %v3233 = vld [vmem:[#allocation2 + $0xb0] sm:$0xff]
        %v3234 = vld [vmem:[#allocation2 + $0xc0] sm:$0xff]
        %v3235 = vld [vmem:[#allocation2 + $0xd0] sm:$0xff]
        %v3236 = vld [vmem:[#allocation2 + $0xe0] sm:$0xff]
        %v3237 = vld [vmem:[#allocation2 + $0xf0] sm:$0xff]
        %v3238 = vld [vmem:[#allocation3] sm:$0xff]
        %v3239 = vld [vmem:[#allocation3 + $0x10] sm:$0xff]
        %v3240 = vld [vmem:[#allocation3 + $0x20] sm:$0xff]
        %v3241 = vld [vmem:[#allocation3 + $0x30] sm:$0xff]
        %v3242 = vld [vmem:[#allocation3 + $0x40] sm:$0xff]
        %v3243 = vld [vmem:[#allocation3 + $0x50] sm:$0xff]
        %v3244 = vld [vmem:[#allocation3 + $0x60] sm:$0xff]
        %v3245 = vld [vmem:[#allocation3 + $0x70] sm:$0xff]
        %v3246 = vld [vmem:[#allocation3 + $0x80] sm:$0xff]
        %v3247 = vld [vmem:[#allocation3 + $0x90] sm:$0xff]
        %v3248 = vld [vmem:[#allocation3 + $0xa0] sm:$0xff]
        %v3249 = vld [vmem:[#allocation3 + $0xb0] sm:$0xff]
        %v3250 = vld [vmem:[#allocation3 + $0xc0] sm:$0xff]
        %v3251 = vld [vmem:[#allocation3 + $0xd0] sm:$0xff]
        %v3252 = vld [vmem:[#allocation3 + $0xe0] sm:$0xff]
        %v3253 = vld [vmem:[#allocation3 + $0xf0] sm:$0xff]
        %3254 = vmatprep.subr.bf16.mxu0 0
        %3255 = vmatpush1.bf16.xpose.msra.mxu0 %v3222
        %3256 = vmatprep.subr.bf16.mxu0 0
        %3257 = vmatpush1.bf16.xpose.msra.mxu0 %v3223
        %3258 = vmatprep.subr.bf16.mxu0 0
        %3259 = vmatpush1.bf16.xpose.msra.mxu0 %v3224
        %3260 = vmatprep.subr.bf16.mxu0 0
        %3261 = vmatpush1.bf16.xpose.msra.mxu0 %v3225
        %3262 = vmatprep.subr.bf16.mxu0 0
        %3263 = vmatpush1.bf16.xpose.msra.mxu0 %v3226
        %3264 = vmatprep.subr.bf16.mxu0 0
        %3265 = vmatpush1.bf16.xpose.msra.mxu0 %v3227
        %3266 = vmatprep.subr.bf16.mxu0 0
        %3267 = vmatpush1.bf16.xpose.msra.mxu0 %v3228
        %3268 = vmatprep.subr.bf16.mxu0 0
        %3269 = vmatpush1.bf16.xpose.msra.mxu0 %v3229
        %3270 = vmatprep.subr.bf16.mxu0 0
        %3271 = vmatpush1.bf16.xpose.msra.mxu0 %v3230
        %3272 = vmatprep.subr.bf16.mxu0 0
        %3273 = vmatpush1.bf16.xpose.msra.mxu0 %v3231
        %3274 = vmatprep.subr.bf16.mxu0 0
        %3275 = vmatpush1.bf16.xpose.msra.mxu0 %v3232
        %3276 = vmatprep.subr.bf16.mxu0 0
        %3277 = vmatpush1.bf16.xpose.msra.mxu0 %v3233
        %3278 = vmatprep.subr.bf16.mxu0 0
        %3279 = vmatpush1.bf16.xpose.msra.mxu0 %v3234
        %3280 = vmatprep.subr.bf16.mxu0 0
        %3281 = vmatpush1.bf16.xpose.msra.mxu0 %v3235
        %3282 = vmatprep.subr.bf16.mxu0 0
        %3283 = vmatpush1.bf16.xpose.msra.mxu0 %v3236
        %3284 = vmatprep.subr.bf16.mxu0 0
        %3285 = vmatpush1.bf16.xpose.msra.mxu0 %v3237
        %3286 = vmatprep.mubr.bf16.mxu0 0
        %3287 = vmatmul.mubr.bf16.gmra.mrb[0].mxu0 %v3206
        %v3288 = vpop.f32.mrb[0].mxu0
        %v3289 = vadd.f32 0.0, %v3288
        %v3290 = vpop.f32.mrb[0].mxu0
        %v3291 = vadd.f32 0.0, %v3290
        %v3292 = vpop.f32.mrb[0].mxu0
        %v3293 = vadd.f32 0.0, %v3292
        %v3294 = vpop.f32.mrb[0].mxu0
        %v3295 = vadd.f32 0.0, %v3294
        %3296 = vmatprep.mubr.bf16.mxu0 0
        %3297 = vmatmul.mubr.bf16.gmra.mrb[0].mxu0 %v3208
        %v3298 = vpop.f32.mrb[0].mxu0
        %v3299 = vadd.f32 0.0, %v3298
        %v3300 = vpop.f32.mrb[0].mxu0
        %v3301 = vadd.f32 0.0, %v3300
        %v3302 = vpop.f32.mrb[0].mxu0
        %v3303 = vadd.f32 0.0, %v3302
        %v3304 = vpop.f32.mrb[0].mxu0
        %v3305 = vadd.f32 0.0, %v3304
        %3306 = vmatprep.mubr.bf16.mxu0 0
        %3307 = vmatmul.mubr.bf16.gmra.mrb[0].mxu0 %v3210
        %v3308 = vpop.f32.mrb[0].mxu0
        %v3309 = vadd.f32 0.0, %v3308
        %v3310 = vpop.f32.mrb[0].mxu0
        %v3311 = vadd.f32 0.0, %v3310
        %v3312 = vpop.f32.mrb[0].mxu0
        %v3313 = vadd.f32 0.0, %v3312
        %v3314 = vpop.f32.mrb[0].mxu0
        %v3315 = vadd.f32 0.0, %v3314
        %3316 = vmatprep.mubr.bf16.mxu0 0
        %3317 = vmatmul.mubr.bf16.gmra.mrb[0].mxu0 %v3212
        %v3318 = vpop.f32.mrb[0].mxu0
        %v3319 = vadd.f32 0.0, %v3318
        %v3320 = vpop.f32.mrb[0].mxu0
        %v3321 = vadd.f32 0.0, %v3320
        %v3322 = vpop.f32.mrb[0].mxu0
        %v3323 = vadd.f32 0.0, %v3322
        %v3324 = vpop.f32.mrb[0].mxu0
        %v3325 = vadd.f32 0.0, %v3324
        %3326 = vmatprep.mubr.bf16.mxu0 0
        %3327 = vmatmul.mubr.bf16.gmra.mrb[0].mxu0 %v3214
        %v3328 = vpop.f32.mrb[0].mxu0
        %v3329 = vadd.f32 0.0, %v3328
        %v3330 = vpop.f32.mrb[0].mxu0
        %v3331 = vadd.f32 0.0, %v3330
        %v3332 = vpop.f32.mrb[0].mxu0
        %v3333 = vadd.f32 0.0, %v3332
        %v3334 = vpop.f32.mrb[0].mxu0
        %v3335 = vadd.f32 0.0, %v3334
        %3336 = vmatprep.mubr.bf16.mxu0 0
        %3337 = vmatmul.mubr.bf16.gmra.mrb[0].mxu0 %v3216
        %v3338 = vpop.f32.mrb[0].mxu0
        %v3339 = vadd.f32 0.0, %v3338
        %v3340 = vpop.f32.mrb[0].mxu0
        %v3341 = vadd.f32 0.0, %v3340
        %v3342 = vpop.f32.mrb[0].mxu0
        %v3343 = vadd.f32 0.0, %v3342
        %v3344 = vpop.f32.mrb[0].mxu0
        %v3345 = vadd.f32 0.0, %v3344
        %3346 = vmatprep.mubr.bf16.mxu0 0
        %3347 = vmatmul.mubr.bf16.gmra.mrb[0].mxu0 %v3218
        %v3348 = vpop.f32.mrb[0].mxu0
        %v3349 = vadd.f32 0.0, %v3348
        %v3350 = vpop.f32.mrb[0].mxu0
        %v3351 = vadd.f32 0.0, %v3350
        %v3352 = vpop.f32.mrb[0].mxu0
        %v3353 = vadd.f32 0.0, %v3352
        %v3354 = vpop.f32.mrb[0].mxu0
        %v3355 = vadd.f32 0.0, %v3354
        %3356 = vmatprep.mubr.bf16.mxu0 0
        %3357 = vmatmul.mubr.bf16.gmra.mrb[0].mxu0 %v3220
        %v3358 = vpop.f32.mrb[0].mxu0
        %v3359 = vadd.f32 0.0, %v3358
        %v3360 = vpop.f32.mrb[0].mxu0
        %v3361 = vadd.f32 0.0, %v3360
        %v3362 = vpop.f32.mrb[0].mxu0
        %v3363 = vadd.f32 0.0, %v3362
        %v3364 = vpop.f32.mrb[0].mxu0
        %v3365 = vadd.f32 0.0, %v3364
        %3366 = vdwg.mxu0
        %v3367 = vmax.f32 %v3289, %v3291
        %3368 = vmax.xlane.f32.xlu0 %v3367
        %v3369 = vpop.xlane.xlu0 %3368
        %v3370 = vmax.f32 %v3293, %v3295
        %3371 = vmax.xlane.f32.xlu0 %v3370
        %v3372 = vpop.xlane.xlu0 %3371
        %v3373 = vmax.f32 %v3299, %v3301
        %3374 = vmax.xlane.f32.xlu0 %v3373
        %v3375 = vpop.xlane.xlu0 %3374
        %v3376 = vmax.f32 %v3303, %v3305
        %3377 = vmax.xlane.f32.xlu0 %v3376
        %v3378 = vpop.xlane.xlu0 %3377
        %v3379 = vmax.f32 %v3309, %v3311
        %3380 = vmax.xlane.f32.xlu0 %v3379
        %v3381 = vpop.xlane.xlu0 %3380
        %v3382 = vmax.f32 %v3313, %v3315
        %3383 = vmax.xlane.f32.xlu0 %v3382
        %v3384 = vpop.xlane.xlu0 %3383
        %v3385 = vmax.f32 %v3319, %v3321
        %3386 = vmax.xlane.f32.xlu0 %v3385
        %v3387 = vpop.xlane.xlu0 %3386
        %v3388 = vmax.f32 %v3323, %v3325
        %3389 = vmax.xlane.f32.xlu0 %v3388
        %v3390 = vpop.xlane.xlu0 %3389
        %v3391 = vmax.f32 %v3329, %v3331
        %3392 = vmax.xlane.f32.xlu0 %v3391
        %v3393 = vpop.xlane.xlu0 %3392
        %v3394 = vmax.f32 %v3333, %v3335
        %3395 = vmax.xlane.f32.xlu0 %v3394
        %v3396 = vpop.xlane.xlu0 %3395
        %v3397 = vmax.f32 %v3339, %v3341
        %3398 = vmax.xlane.f32.xlu0 %v3397
        %v3399 = vpop.xlane.xlu0 %3398
        %v3400 = vmax.f32 %v3343, %v3345
        %3401 = vmax.xlane.f32.xlu0 %v3400
        %v3402 = vpop.xlane.xlu0 %3401
        %v3403 = vmax.f32 %v3349, %v3351
        %3404 = vmax.xlane.f32.xlu0 %v3403
        %v3405 = vpop.xlane.xlu0 %3404
        %v3406 = vmax.f32 %v3353, %v3355
        %3407 = vmax.xlane.f32.xlu0 %v3406
        %v3408 = vpop.xlane.xlu0 %3407
        %v3409 = vmax.f32 %v3359, %v3361
        %3410 = vmax.xlane.f32.xlu0 %v3409
        %v3411 = vpop.xlane.xlu0 %3410
        %v3412 = vmax.f32 %v3363, %v3365
        %3413 = vmax.xlane.f32.xlu0 %v3412
        %v3414 = vpop.xlane.xlu0 %3413
        %v3415 = vsub.f32 %v3289, %v3369
        %v3416 = vsub.f32 %v3291, %v3369
        %v3417 = vsub.f32 %v3293, %v3372
        %v3418 = vsub.f32 %v3295, %v3372
        %v3419 = vsub.f32 %v3299, %v3375
        %v3420 = vsub.f32 %v3301, %v3375
        %v3421 = vsub.f32 %v3303, %v3378
        %v3422 = vsub.f32 %v3305, %v3378
        %v3423 = vsub.f32 %v3309, %v3381
        %v3424 = vsub.f32 %v3311, %v3381
        %v3425 = vsub.f32 %v3313, %v3384
        %v3426 = vsub.f32 %v3315, %v3384
        %v3427 = vsub.f32 %v3319, %v3387
        %v3428 = vsub.f32 %v3321, %v3387
        %v3429 = vsub.f32 %v3323, %v3390
        %v3430 = vsub.f32 %v3325, %v3390
        %v3431 = vsub.f32 %v3329, %v3393
        %v3432 = vsub.f32 %v3331, %v3393
        %v3433 = vsub.f32 %v3333, %v3396
        %v3434 = vsub.f32 %v3335, %v3396
        %v3435 = vsub.f32 %v3339, %v3399
        %v3436 = vsub.f32 %v3341, %v3399
        %v3437 = vsub.f32 %v3343, %v3402
        %v3438 = vsub.f32 %v3345, %v3402
        %v3439 = vsub.f32 %v3349, %v3405
        %v3440 = vsub.f32 %v3351, %v3405
        %v3441 = vsub.f32 %v3353, %v3408
        %v3442 = vsub.f32 %v3355, %v3408
        %v3443 = vsub.f32 %v3359, %v3411
        %v3444 = vsub.f32 %v3361, %v3411
        %v3445 = vsub.f32 %v3363, %v3414
        %v3446 = vsub.f32 %v3365, %v3414
        %v3447 = vmul.f32 %v3415, 1.442695
        %v3448 = vpow.pop %v3447
        %v3449 = vmul.f32 %v3416, 1.442695
        %v3450 = vpow.pop %v3449
        %v3451 = vmul.f32 %v3417, 1.442695
        %v3452 = vpow.pop %v3451
        %v3453 = vmul.f32 %v3418, 1.442695
        %v3454 = vpow.pop %v3453
        %v3455 = vmul.f32 %v3419, 1.442695
        %v3456 = vpow.pop %v3455
        %v3457 = vmul.f32 %v3420, 1.442695
        %v3458 = vpow.pop %v3457
        %v3459 = vmul.f32 %v3421, 1.442695
        %v3460 = vpow.pop %v3459
        %v3461 = vmul.f32 %v3422, 1.442695
        %v3462 = vpow.pop %v3461
        %v3463 = vmul.f32 %v3423, 1.442695
        %v3464 = vpow.pop %v3463
        %v3465 = vmul.f32 %v3424, 1.442695
        %v3466 = vpow.pop %v3465
        %v3467 = vmul.f32 %v3425, 1.442695
        %v3468 = vpow.pop %v3467
        %v3469 = vmul.f32 %v3426, 1.442695
        %v3470 = vpow.pop %v3469
        %v3471 = vmul.f32 %v3427, 1.442695
        %v3472 = vpow.pop %v3471
        %v3473 = vmul.f32 %v3428, 1.442695
        %v3474 = vpow.pop %v3473
        %v3475 = vmul.f32 %v3429, 1.442695
        %v3476 = vpow.pop %v3475
        %v3477 = vmul.f32 %v3430, 1.442695
        %v3478 = vpow.pop %v3477
        %v3479 = vmul.f32 %v3431, 1.442695
        %v3480 = vpow.pop %v3479
        %v3481 = vmul.f32 %v3432, 1.442695
        %v3482 = vpow.pop %v3481
        %v3483 = vmul.f32 %v3433, 1.442695
        %v3484 = vpow.pop %v3483
        %v3485 = vmul.f32 %v3434, 1.442695
        %v3486 = vpow.pop %v3485
        %v3487 = vmul.f32 %v3435, 1.442695
        %v3488 = vpow.pop %v3487
        %v3489 = vmul.f32 %v3436, 1.442695
        %v3490 = vpow.pop %v3489
        %v3491 = vmul.f32 %v3437, 1.442695
        %v3492 = vpow.pop %v3491
        %v3493 = vmul.f32 %v3438, 1.442695
        %v3494 = vpow.pop %v3493
        %v3495 = vmul.f32 %v3439, 1.442695
        %v3496 = vpow.pop %v3495
        %v3497 = vmul.f32 %v3440, 1.442695
        %v3498 = vpow.pop %v3497
        %v3499 = vmul.f32 %v3441, 1.442695
        %v3500 = vpow.pop %v3499
        %v3501 = vmul.f32 %v3442, 1.442695
        %v3502 = vpow.pop %v3501
        %v3503 = vmul.f32 %v3443, 1.442695
        %v3504 = vpow.pop %v3503
        %v3505 = vmul.f32 %v3444, 1.442695
        %v3506 = vpow.pop %v3505
        %v3507 = vmul.f32 %v3445, 1.442695
        %v3508 = vpow.pop %v3507
        %v3509 = vmul.f32 %v3446, 1.442695
        %v3510 = vpow.pop %v3509
        %v3511 = vadd.f32 %v3448, %v3450
        %3512 = vadd.xlane.f32.xlu0 %v3511
        %v3513 = vpop.xlane.xlu0 %3512
        %v3514 = vadd.f32 %v3452, %v3454
        %3515 = vadd.xlane.f32.xlu0 %v3514
        %v3516 = vpop.xlane.xlu0 %3515
        %v3517 = vadd.f32 %v3456, %v3458
        %3518 = vadd.xlane.f32.xlu0 %v3517
        %v3519 = vpop.xlane.xlu0 %3518
        %v3520 = vadd.f32 %v3460, %v3462
        %3521 = vadd.xlane.f32.xlu0 %v3520
        %v3522 = vpop.xlane.xlu0 %3521
        %v3523 = vadd.f32 %v3464, %v3466
        %3524 = vadd.xlane.f32.xlu0 %v3523
        %v3525 = vpop.xlane.xlu0 %3524
        %v3526 = vadd.f32 %v3468, %v3470
        %3527 = vadd.xlane.f32.xlu0 %v3526
        %v3528 = vpop.xlane.xlu0 %3527
        %v3529 = vadd.f32 %v3472, %v3474
        %3530 = vadd.xlane.f32.xlu0 %v3529
        %v3531 = vpop.xlane.xlu0 %3530
        %v3532 = vadd.f32 %v3476, %v3478
        %3533 = vadd.xlane.f32.xlu0 %v3532
        %v3534 = vpop.xlane.xlu0 %3533
        %v3535 = vadd.f32 %v3480, %v3482
        %3536 = vadd.xlane.f32.xlu0 %v3535
        %v3537 = vpop.xlane.xlu0 %3536
        %v3538 = vadd.f32 %v3484, %v3486
        %3539 = vadd.xlane.f32.xlu0 %v3538
        %v3540 = vpop.xlane.xlu0 %3539
        %v3541 = vadd.f32 %v3488, %v3490
        %3542 = vadd.xlane.f32.xlu0 %v3541
        %v3543 = vpop.xlane.xlu0 %3542
        %v3544 = vadd.f32 %v3492, %v3494
        %3545 = vadd.xlane.f32.xlu0 %v3544
        %v3546 = vpop.xlane.xlu0 %3545
        %v3547 = vadd.f32 %v3496, %v3498
        %3548 = vadd.xlane.f32.xlu0 %v3547
        %v3549 = vpop.xlane.xlu0 %3548
        %v3550 = vadd.f32 %v3500, %v3502
        %3551 = vadd.xlane.f32.xlu0 %v3550
        %v3552 = vpop.xlane.xlu0 %3551
        %v3553 = vadd.f32 %v3504, %v3506
        %3554 = vadd.xlane.f32.xlu0 %v3553
        %v3555 = vpop.xlane.xlu0 %3554
        %v3556 = vadd.f32 %v3508, %v3510
        %3557 = vadd.xlane.f32.xlu0 %v3556
        %v3558 = vpop.xlane.xlu0 %3557
        %v3559 = vrcp.pop %v3513
        %v3560 = vrcp.pop %v3516
        %v3561 = vrcp.pop %v3519
        %v3562 = vrcp.pop %v3522
        %v3563 = vrcp.pop %v3525
        %v3564 = vrcp.pop %v3528
        %v3565 = vrcp.pop %v3531
        %v3566 = vrcp.pop %v3534
        %v3567 = vrcp.pop %v3537
        %v3568 = vrcp.pop %v3540
        %v3569 = vrcp.pop %v3543
        %v3570 = vrcp.pop %v3546
        %v3571 = vrcp.pop %v3549
        %v3572 = vrcp.pop %v3552
        %v3573 = vrcp.pop %v3555
        %v3574 = vrcp.pop %v3558
        %v3575 = vpack.c.bf16 %v3452, %v3448
        %v3576 = vpack.c.bf16 %v3454, %v3450
        %v3577 = vpack.c.bf16 %v3460, %v3456
        %v3578 = vpack.c.bf16 %v3462, %v3458
        %v3579 = vpack.c.bf16 %v3468, %v3464
        %v3580 = vpack.c.bf16 %v3470, %v3466
        %v3581 = vpack.c.bf16 %v3476, %v3472
        %v3582 = vpack.c.bf16 %v3478, %v3474
        %v3583 = vpack.c.bf16 %v3484, %v3480
        %v3584 = vpack.c.bf16 %v3486, %v3482
        %v3585 = vpack.c.bf16 %v3492, %v3488
        %v3586 = vpack.c.bf16 %v3494, %v3490
        %v3587 = vpack.c.bf16 %v3500, %v3496
        %v3588 = vpack.c.bf16 %v3502, %v3498
        %v3589 = vpack.c.bf16 %v3508, %v3504
        %v3590 = vpack.c.bf16 %v3510, %v3506
        %3591 = vmatprep.subr.bf16.mxu0 0
        %3592 = vmatpush1.bf16.msra.mxu0 %v3238
        %3593 = vmatprep.subr.bf16.mxu0 0
        %3594 = vmatpush1.bf16.msra.mxu0 %v3239
        %3595 = vmatprep.subr.bf16.mxu0 0
        %3596 = vmatpush1.bf16.msra.mxu0 %v3240
        %3597 = vmatprep.subr.bf16.mxu0 0
        %3598 = vmatpush1.bf16.msra.mxu0 %v3241
        %3599 = vmatprep.subr.bf16.mxu0 0
        %3600 = vmatpush1.bf16.msra.mxu0 %v3242
        %3601 = vmatprep.subr.bf16.mxu0 0
        %3602 = vmatpush1.bf16.msra.mxu0 %v3243
        %3603 = vmatprep.subr.bf16.mxu0 0
        %3604 = vmatpush1.bf16.msra.mxu0 %v3244
        %3605 = vmatprep.subr.bf16.mxu0 0
        %3606 = vmatpush1.bf16.msra.mxu0 %v3245
        %3607 = vmatprep.subr.bf16.mxu0 0
        %3608 = vmatpush1.bf16.msra.mxu0 %v3246
        %3609 = vmatprep.subr.bf16.mxu0 0
        %3610 = vmatpush1.bf16.msra.mxu0 %v3247
        %3611 = vmatprep.subr.bf16.mxu0 0
        %3612 = vmatpush1.bf16.msra.mxu0 %v3248
        %3613 = vmatprep.subr.bf16.mxu0 0
        %3614 = vmatpush1.bf16.msra.mxu0 %v3249
        %3615 = vmatprep.subr.bf16.mxu0 0
        %3616 = vmatpush1.bf16.msra.mxu0 %v3250
        %3617 = vmatprep.subr.bf16.mxu0 0
        %3618 = vmatpush1.bf16.msra.mxu0 %v3251
        %3619 = vmatprep.subr.bf16.mxu0 0
        %3620 = vmatpush1.bf16.msra.mxu0 %v3252
        %3621 = vmatprep.subr.bf16.mxu0 0
        %3622 = vmatpush1.bf16.msra.mxu0 %v3253
        %3623 = vmatprep.mubr.bf16.mxu0 %v3576
        %3624 = vmatmul.mubr.bf16.gmra.mrb[0].mxu0 %v3575
        %v3625 = vpop.f32.mrb[0].mxu0
        %v3626 = vadd.f32 0.0, %v3625
        %v3627 = vpop.f32.mrb[0].mxu0
        %v3628 = vpop.f32.mrb[0].mxu0
        %v3629 = vadd.f32 0.0, %v3628
        %v3630 = vpop.f32.mrb[0].mxu0
        %3631 = vmatprep.mubr.bf16.mxu0 %v3578
        %3632 = vmatmul.mubr.bf16.gmra.mrb[0].mxu0 %v3577
        %v3633 = vpop.f32.mrb[0].mxu0
        %v3634 = vadd.f32 0.0, %v3633
        %v3635 = vpop.f32.mrb[0].mxu0
        %v3636 = vpop.f32.mrb[0].mxu0
        %v3637 = vadd.f32 0.0, %v3636
        %v3638 = vpop.f32.mrb[0].mxu0
        %3639 = vmatprep.mubr.bf16.mxu0 %v3580
        %3640 = vmatmul.mubr.bf16.gmra.mrb[0].mxu0 %v3579
        %v3641 = vpop.f32.mrb[0].mxu0
        %v3642 = vadd.f32 0.0, %v3641
        %v3643 = vpop.f32.mrb[0].mxu0
        %v3644 = vpop.f32.mrb[0].mxu0
        %v3645 = vadd.f32 0.0, %v3644
        %v3646 = vpop.f32.mrb[0].mxu0
        %3647 = vmatprep.mubr.bf16.mxu0 %v3582
        %3648 = vmatmul.mubr.bf16.gmra.mrb[0].mxu0 %v3581
        %v3649 = vpop.f32.mrb[0].mxu0
        %v3650 = vadd.f32 0.0, %v3649
        %v3651 = vpop.f32.mrb[0].mxu0
        %v3652 = vpop.f32.mrb[0].mxu0
        %v3653 = vadd.f32 0.0, %v3652
        %v3654 = vpop.f32.mrb[0].mxu0
        %3655 = vmatprep.mubr.bf16.mxu0 %v3584
        %3656 = vmatmul.mubr.bf16.gmra.mrb[0].mxu0 %v3583
        %v3657 = vpop.f32.mrb[0].mxu0
        %v3658 = vadd.f32 0.0, %v3657
        %v3659 = vpop.f32.mrb[0].mxu0
        %v3660 = vpop.f32.mrb[0].mxu0
        %v3661 = vadd.f32 0.0, %v3660
        %v3662 = vpop.f32.mrb[0].mxu0
        %3663 = vmatprep.mubr.bf16.mxu0 %v3586
        %3664 = vmatmul.mubr.bf16.gmra.mrb[0].mxu0 %v3585
        %v3665 = vpop.f32.mrb[0].mxu0
        %v3666 = vadd.f32 0.0, %v3665
        %v3667 = vpop.f32.mrb[0].mxu0
        %v3668 = vpop.f32.mrb[0].mxu0
        %v3669 = vadd.f32 0.0, %v3668
        %v3670 = vpop.f32.mrb[0].mxu0
        %3671 = vmatprep.mubr.bf16.mxu0 %v3588
        %3672 = vmatmul.mubr.bf16.gmra.mrb[0].mxu0 %v3587
        %v3673 = vpop.f32.mrb[0].mxu0
        %v3674 = vadd.f32 0.0, %v3673
        %v3675 = vpop.f32.mrb[0].mxu0
        %v3676 = vpop.f32.mrb[0].mxu0
        %v3677 = vadd.f32 0.0, %v3676
        %v3678 = vpop.f32.mrb[0].mxu0
        %3679 = vmatprep.mubr.bf16.mxu0 %v3590
        %3680 = vmatmul.mubr.bf16.gmra.mrb[0].mxu0 %v3589
        %v3681 = vpop.f32.mrb[0].mxu0
        %v3682 = vadd.f32 0.0, %v3681
        %v3683 = vpop.f32.mrb[0].mxu0
        %v3684 = vpop.f32.mrb[0].mxu0
        %v3685 = vadd.f32 0.0, %v3684
        %v3686 = vpop.f32.mrb[0].mxu0
        %3687 = vdwg.mxu0
        %v3688 = vmul.f32 %v3626, %v3559
        %v3689 = vmul.f32 %v3629, %v3560
        %v3690 = vmul.f32 %v3634, %v3561
        %v3691 = vmul.f32 %v3637, %v3562
        %v3692 = vmul.f32 %v3642, %v3563
        %v3693 = vmul.f32 %v3645, %v3564
        %v3694 = vmul.f32 %v3650, %v3565
        %v3695 = vmul.f32 %v3653, %v3566
        %v3696 = vmul.f32 %v3658, %v3567
        %v3697 = vmul.f32 %v3661, %v3568
        %v3698 = vmul.f32 %v3666, %v3569
        %v3699 = vmul.f32 %v3669, %v3570
        %v3700 = vmul.f32 %v3674, %v3571
        %v3701 = vmul.f32 %v3677, %v3572
        %v3702 = vmul.f32 %v3682, %v3573
        %v3703 = vmul.f32 %v3685, %v3574
        %v3704 = vpack.c.bf16 %v3689, %v3688
        %v3705 = vpack.c.bf16 %v3691, %v3690
        %v3706 = vpack.c.bf16 %v3693, %v3692
        %v3707 = vpack.c.bf16 %v3695, %v3694
        %v3708 = vpack.c.bf16 %v3697, %v3696
        %v3709 = vpack.c.bf16 %v3699, %v3698
        %v3710 = vpack.c.bf16 %v3701, %v3700
        %v3711 = vpack.c.bf16 %v3703, %v3702
        %3712 = vst [vmem:[#allocation4] sm:$0xff] %v3704
        %3713 = vst [vmem:[#allocation4 + $0x10] sm:$0xff] %v3705
        %3714 = vst [vmem:[#allocation4 + $0x20] sm:$0xff] %v3706
        %3715 = vst [vmem:[#allocation4 + $0x30] sm:$0xff] %v3707
        %3716 = vst [vmem:[#allocation4 + $0x40] sm:$0xff] %v3708
        %3717 = vst [vmem:[#allocation4 + $0x50] sm:$0xff] %v3709
        %3718 = vst [vmem:[#allocation4 + $0x60] sm:$0xff] %v3710
        %3719 = vst [vmem:[#allocation4 + $0x70] sm:$0xff] %v3711
        %v3720 = vld [vmem:[#allocation2 + $0x8] sm:$0xff]
        %v3721 = vld [vmem:[#allocation2 + $0x18] sm:$0xff]
        %v3722 = vld [vmem:[#allocation2 + $0x28] sm:$0xff]
        %v3723 = vld [vmem:[#allocation2 + $0x38] sm:$0xff]
        %v3724 = vld [vmem:[#allocation2 + $0x48] sm:$0xff]
        %v3725 = vld [vmem:[#allocation2 + $0x58] sm:$0xff]
        %v3726 = vld [vmem:[#allocation2 + $0x68] sm:$0xff]
        %v3727 = vld [vmem:[#allocation2 + $0x78] sm:$0xff]
        %v3728 = vld [vmem:[#allocation2 + $0x88] sm:$0xff]
        %v3729 = vld [vmem:[#allocation2 + $0x98] sm:$0xff]
        %v3730 = vld [vmem:[#allocation2 + $0xa8] sm:$0xff]
        %v3731 = vld [vmem:[#allocation2 + $0xb8] sm:$0xff]
        %v3732 = vld [vmem:[#allocation2 + $0xc8] sm:$0xff]
        %v3733 = vld [vmem:[#allocation2 + $0xd8] sm:$0xff]
        %v3734 = vld [vmem:[#allocation2 + $0xe8] sm:$0xff]
        %v3735 = vld [vmem:[#allocation2 + $0xf8] sm:$0xff]
        %v3736 = vld [vmem:[#allocation3 + $0x8] sm:$0xff]
        %v3737 = vld [vmem:[#allocation3 + $0x18] sm:$0xff]
        %v3738 = vld [vmem:[#allocation3 + $0x28] sm:$0xff]
        %v3739 = vld [vmem:[#allocation3 + $0x38] sm:$0xff]
        %v3740 = vld [vmem:[#allocation3 + $0x48] sm:$0xff]
        %v3741 = vld [vmem:[#allocation3 + $0x58] sm:$0xff]
        %v3742 = vld [vmem:[#allocation3 + $0x68] sm:$0xff]
        %v3743 = vld [vmem:[#allocation3 + $0x78] sm:$0xff]
        %v3744 = vld [vmem:[#allocation3 + $0x88] sm:$0xff]
        %v3745 = vld [vmem:[#allocation3 + $0x98] sm:$0xff]
        %v3746 = vld [vmem:[#allocation3 + $0xa8] sm:$0xff]
        %v3747 = vld [vmem:[#allocation3 + $0xb8] sm:$0xff]
        %v3748 = vld [vmem:[#allocation3 + $0xc8] sm:$0xff]
        %v3749 = vld [vmem:[#allocation3 + $0xd8] sm:$0xff]
        %v3750 = vld [vmem:[#allocation3 + $0xe8] sm:$0xff]
        %v3751 = vld [vmem:[#allocation3 + $0xf8] sm:$0xff]
        %3752 = vmatprep.subr.bf16.mxu0 0
        %3753 = vmatpush1.bf16.xpose.msra.mxu0 %v3720
        %3754 = vmatprep.subr.bf16.mxu0 0
        %3755 = vmatpush1.bf16.xpose.msra.mxu0 %v3721
        %3756 = vmatprep.subr.bf16.mxu0 0
        %3757 = vmatpush1.bf16.xpose.msra.mxu0 %v3722
        %3758 = vmatprep.subr.bf16.mxu0 0
        %3759 = vmatpush1.bf16.xpose.msra.mxu0 %v3723
        %3760 = vmatprep.subr.bf16.mxu0 0
        %3761 = vmatpush1.bf16.xpose.msra.mxu0 %v3724
        %3762 = vmatprep.subr.bf16.mxu0 0
        %3763 = vmatpush1.bf16.xpose.msra.mxu0 %v3725
        %3764 = vmatprep.subr.bf16.mxu0 0
        %3765 = vmatpush1.bf16.xpose.msra.mxu0 %v3726
        %3766 = vmatprep.subr.bf16.mxu0 0
        %3767 = vmatpush1.bf16.xpose.msra.mxu0 %v3727
        %3768 = vmatprep.subr.bf16.mxu0 0
        %3769 = vmatpush1.bf16.xpose.msra.mxu0 %v3728
        %3770 = vmatprep.subr.bf16.mxu0 0
        %3771 = vmatpush1.bf16.xpose.msra.mxu0 %v3729
        %3772 = vmatprep.subr.bf16.mxu0 0
        %3773 = vmatpush1.bf16.xpose.msra.mxu0 %v3730
        %3774 = vmatprep.subr.bf16.mxu0 0
        %3775 = vmatpush1.bf16.xpose.msra.mxu0 %v3731
        %3776 = vmatprep.subr.bf16.mxu0 0
        %3777 = vmatpush1.bf16.xpose.msra.mxu0 %v3732
        %3778 = vmatprep.subr.bf16.mxu0 0
        %3779 = vmatpush1.bf16.xpose.msra.mxu0 %v3733
        %3780 = vmatprep.subr.bf16.mxu0 0
        %3781 = vmatpush1.bf16.xpose.msra.mxu0 %v3734
        %3782 = vmatprep.subr.bf16.mxu0 0
        %3783 = vmatpush1.bf16.xpose.msra.mxu0 %v3735
        %3784 = vmatprep.mubr.bf16.mxu0 0
        %3785 = vmatmul.mubr.bf16.gmra.mrb[0].mxu0 %v3207
        %v3786 = vpop.f32.mrb[0].mxu0
        %v3787 = vadd.f32 0.0, %v3786
        %v3788 = vpop.f32.mrb[0].mxu0
        %v3789 = vadd.f32 0.0, %v3788
        %v3790 = vpop.f32.mrb[0].mxu0
        %v3791 = vadd.f32 0.0, %v3790
        %v3792 = vpop.f32.mrb[0].mxu0
        %v3793 = vadd.f32 0.0, %v3792
        %3794 = vmatprep.mubr.bf16.mxu0 0
        %3795 = vmatmul.mubr.bf16.gmra.mrb[0].mxu0 %v3209
        %v3796 = vpop.f32.mrb[0].mxu0
        %v3797 = vadd.f32 0.0, %v3796
        %v3798 = vpop.f32.mrb[0].mxu0
        %v3799 = vadd.f32 0.0, %v3798
        %v3800 = vpop.f32.mrb[0].mxu0
        %v3801 = vadd.f32 0.0, %v3800
        %v3802 = vpop.f32.mrb[0].mxu0
        %v3803 = vadd.f32 0.0, %v3802
        %3804 = vmatprep.mubr.bf16.mxu0 0
        %3805 = vmatmul.mubr.bf16.gmra.mrb[0].mxu0 %v3211
        %v3806 = vpop.f32.mrb[0].mxu0
        %v3807 = vadd.f32 0.0, %v3806
        %v3808 = vpop.f32.mrb[0].mxu0
        %v3809 = vadd.f32 0.0, %v3808
        %v3810 = vpop.f32.mrb[0].mxu0
        %v3811 = vadd.f32 0.0, %v3810
        %v3812 = vpop.f32.mrb[0].mxu0
        %v3813 = vadd.f32 0.0, %v3812
        %3814 = vmatprep.mubr.bf16.mxu0 0
        %3815 = vmatmul.mubr.bf16.gmra.mrb[0].mxu0 %v3213
        %v3816 = vpop.f32.mrb[0].mxu0
        %v3817 = vadd.f32 0.0, %v3816
        %v3818 = vpop.f32.mrb[0].mxu0
        %v3819 = vadd.f32 0.0, %v3818
        %v3820 = vpop.f32.mrb[0].mxu0
        %v3821 = vadd.f32 0.0, %v3820
        %v3822 = vpop.f32.mrb[0].mxu0
        %v3823 = vadd.f32 0.0, %v3822
        %3824 = vmatprep.mubr.bf16.mxu0 0
        %3825 = vmatmul.mubr.bf16.gmra.mrb[0].mxu0 %v3215
        %v3826 = vpop.f32.mrb[0].mxu0
        %v3827 = vadd.f32 0.0, %v3826
        %v3828 = vpop.f32.mrb[0].mxu0
        %v3829 = vadd.f32 0.0, %v3828
        %v3830 = vpop.f32.mrb[0].mxu0
        %v3831 = vadd.f32 0.0, %v3830
        %v3832 = vpop.f32.mrb[0].mxu0
        %v3833 = vadd.f32 0.0, %v3832
        %3834 = vmatprep.mubr.bf16.mxu0 0
        %3835 = vmatmul.mubr.bf16.gmra.mrb[0].mxu0 %v3217
        %v3836 = vpop.f32.mrb[0].mxu0
        %v3837 = vadd.f32 0.0, %v3836
        %v3838 = vpop.f32.mrb[0].mxu0
        %v3839 = vadd.f32 0.0, %v3838
        %v3840 = vpop.f32.mrb[0].mxu0
        %v3841 = vadd.f32 0.0, %v3840
        %v3842 = vpop.f32.mrb[0].mxu0
        %v3843 = vadd.f32 0.0, %v3842
        %3844 = vmatprep.mubr.bf16.mxu0 0
        %3845 = vmatmul.mubr.bf16.gmra.mrb[0].mxu0 %v3219
        %v3846 = vpop.f32.mrb[0].mxu0
        %v3847 = vadd.f32 0.0, %v3846
        %v3848 = vpop.f32.mrb[0].mxu0
        %v3849 = vadd.f32 0.0, %v3848
        %v3850 = vpop.f32.mrb[0].mxu0
        %v3851 = vadd.f32 0.0, %v3850
        %v3852 = vpop.f32.mrb[0].mxu0
        %v3853 = vadd.f32 0.0, %v3852
        %3854 = vmatprep.mubr.bf16.mxu0 0
        %3855 = vmatmul.mubr.bf16.gmra.mrb[0].mxu0 %v3221
        %v3856 = vpop.f32.mrb[0].mxu0
        %v3857 = vadd.f32 0.0, %v3856
        %v3858 = vpop.f32.mrb[0].mxu0
        %v3859 = vadd.f32 0.0, %v3858
        %v3860 = vpop.f32.mrb[0].mxu0
        %v3861 = vadd.f32 0.0, %v3860
        %v3862 = vpop.f32.mrb[0].mxu0
        %v3863 = vadd.f32 0.0, %v3862
        %3864 = vdwg.mxu0
        %v3865 = vmax.f32 %v3787, %v3789
        %3866 = vmax.xlane.f32.xlu0 %v3865
        %v3867 = vpop.xlane.xlu0 %3866
        %v3868 = vmax.f32 %v3791, %v3793
        %3869 = vmax.xlane.f32.xlu0 %v3868
        %v3870 = vpop.xlane.xlu0 %3869
        %v3871 = vmax.f32 %v3797, %v3799
        %3872 = vmax.xlane.f32.xlu0 %v3871
        %v3873 = vpop.xlane.xlu0 %3872
        %v3874 = vmax.f32 %v3801, %v3803
        %3875 = vmax.xlane.f32.xlu0 %v3874
        %v3876 = vpop.xlane.xlu0 %3875
        %v3877 = vmax.f32 %v3807, %v3809
        %3878 = vmax.xlane.f32.xlu0 %v3877
        %v3879 = vpop.xlane.xlu0 %3878
        %v3880 = vmax.f32 %v3811, %v3813
        %3881 = vmax.xlane.f32.xlu0 %v3880
        %v3882 = vpop.xlane.xlu0 %3881
        %v3883 = vmax.f32 %v3817, %v3819
        %3884 = vmax.xlane.f32.xlu0 %v3883
        %v3885 = vpop.xlane.xlu0 %3884
        %v3886 = vmax.f32 %v3821, %v3823
        %3887 = vmax.xlane.f32.xlu0 %v3886
        %v3888 = vpop.xlane.xlu0 %3887
        %v3889 = vmax.f32 %v3827, %v3829
        %3890 = vmax.xlane.f32.xlu0 %v3889
        %v3891 = vpop.xlane.xlu0 %3890
        %v3892 = vmax.f32 %v3831, %v3833
        %3893 = vmax.xlane.f32.xlu0 %v3892
        %v3894 = vpop.xlane.xlu0 %3893
        %v3895 = vmax.f32 %v3837, %v3839
        %3896 = vmax.xlane.f32.xlu0 %v3895
        %v3897 = vpop.xlane.xlu0 %3896
        %v3898 = vmax.f32 %v3841, %v3843
        %3899 = vmax.xlane.f32.xlu0 %v3898
        %v3900 = vpop.xlane.xlu0 %3899
        %v3901 = vmax.f32 %v3847, %v3849
        %3902 = vmax.xlane.f32.xlu0 %v3901
        %v3903 = vpop.xlane.xlu0 %3902
        %v3904 = vmax.f32 %v3851, %v3853
        %3905 = vmax.xlane.f32.xlu0 %v3904
        %v3906 = vpop.xlane.xlu0 %3905
        %v3907 = vmax.f32 %v3857, %v3859
        %3908 = vmax.xlane.f32.xlu0 %v3907
        %v3909 = vpop.xlane.xlu0 %3908
        %v3910 = vmax.f32 %v3861, %v3863
        %3911 = vmax.xlane.f32.xlu0 %v3910
        %v3912 = vpop.xlane.xlu0 %3911
        %v3913 = vsub.f32 %v3787, %v3867
        %v3914 = vsub.f32 %v3789, %v3867
        %v3915 = vsub.f32 %v3791, %v3870
        %v3916 = vsub.f32 %v3793, %v3870
        %v3917 = vsub.f32 %v3797, %v3873
        %v3918 = vsub.f32 %v3799, %v3873
        %v3919 = vsub.f32 %v3801, %v3876
        %v3920 = vsub.f32 %v3803, %v3876
        %v3921 = vsub.f32 %v3807, %v3879
        %v3922 = vsub.f32 %v3809, %v3879
        %v3923 = vsub.f32 %v3811, %v3882
        %v3924 = vsub.f32 %v3813, %v3882
        %v3925 = vsub.f32 %v3817, %v3885
        %v3926 = vsub.f32 %v3819, %v3885
        %v3927 = vsub.f32 %v3821, %v3888
        %v3928 = vsub.f32 %v3823, %v3888
        %v3929 = vsub.f32 %v3827, %v3891
        %v3930 = vsub.f32 %v3829, %v3891
        %v3931 = vsub.f32 %v3831, %v3894
        %v3932 = vsub.f32 %v3833, %v3894
        %v3933 = vsub.f32 %v3837, %v3897
        %v3934 = vsub.f32 %v3839, %v3897
        %v3935 = vsub.f32 %v3841, %v3900
        %v3936 = vsub.f32 %v3843, %v3900
        %v3937 = vsub.f32 %v3847, %v3903
        %v3938 = vsub.f32 %v3849, %v3903
        %v3939 = vsub.f32 %v3851, %v3906
        %v3940 = vsub.f32 %v3853, %v3906
        %v3941 = vsub.f32 %v3857, %v3909
        %v3942 = vsub.f32 %v3859, %v3909
        %v3943 = vsub.f32 %v3861, %v3912
        %v3944 = vsub.f32 %v3863, %v3912
        %v3945 = vmul.f32 %v3913, 1.442695
        %v3946 = vpow.pop %v3945
        %v3947 = vmul.f32 %v3914, 1.442695
        %v3948 = vpow.pop %v3947
        %v3949 = vmul.f32 %v3915, 1.442695
        %v3950 = vpow.pop %v3949
        %v3951 = vmul.f32 %v3916, 1.442695
        %v3952 = vpow.pop %v3951
        %v3953 = vmul.f32 %v3917, 1.442695
        %v3954 = vpow.pop %v3953
        %v3955 = vmul.f32 %v3918, 1.442695
        %v3956 = vpow.pop %v3955
        %v3957 = vmul.f32 %v3919, 1.442695
        %v3958 = vpow.pop %v3957
        %v3959 = vmul.f32 %v3920, 1.442695
        %v3960 = vpow.pop %v3959
        %v3961 = vmul.f32 %v3921, 1.442695
        %v3962 = vpow.pop %v3961
        %v3963 = vmul.f32 %v3922, 1.442695
        %v3964 = vpow.pop %v3963
        %v3965 = vmul.f32 %v3923, 1.442695
        %v3966 = vpow.pop %v3965
        %v3967 = vmul.f32 %v3924, 1.442695
        %v3968 = vpow.pop %v3967
        %v3969 = vmul.f32 %v3925, 1.442695
        %v3970 = vpow.pop %v3969
        %v3971 = vmul.f32 %v3926, 1.442695
        %v3972 = vpow.pop %v3971
        %v3973 = vmul.f32 %v3927, 1.442695
        %v3974 = vpow.pop %v3973
        %v3975 = vmul.f32 %v3928, 1.442695
        %v3976 = vpow.pop %v3975
        %v3977 = vmul.f32 %v3929, 1.442695
        %v3978 = vpow.pop %v3977
        %v3979 = vmul.f32 %v3930, 1.442695
        %v3980 = vpow.pop %v3979
        %v3981 = vmul.f32 %v3931, 1.442695
        %v3982 = vpow.pop %v3981
        %v3983 = vmul.f32 %v3932, 1.442695
        %v3984 = vpow.pop %v3983
        %v3985 = vmul.f32 %v3933, 1.442695
        %v3986 = vpow.pop %v3985
        %v3987 = vmul.f32 %v3934, 1.442695
        %v3988 = vpow.pop %v3987
        %v3989 = vmul.f32 %v3935, 1.442695
        %v3990 = vpow.pop %v3989
        %v3991 = vmul.f32 %v3936, 1.442695
        %v3992 = vpow.pop %v3991
        %v3993 = vmul.f32 %v3937, 1.442695
        %v3994 = vpow.pop %v3993
        %v3995 = vmul.f32 %v3938, 1.442695
        %v3996 = vpow.pop %v3995
        %v3997 = vmul.f32 %v3939, 1.442695
        %v3998 = vpow.pop %v3997
        %v3999 = vmul.f32 %v3940, 1.442695
        %v4000 = vpow.pop %v3999
        %v4001 = vmul.f32 %v3941, 1.442695
        %v4002 = vpow.pop %v4001
        %v4003 = vmul.f32 %v3942, 1.442695
        %v4004 = vpow.pop %v4003
        %v4005 = vmul.f32 %v3943, 1.442695
        %v4006 = vpow.pop %v4005
        %v4007 = vmul.f32 %v3944, 1.442695
        %v4008 = vpow.pop %v4007
        %v4009 = vadd.f32 %v3946, %v3948
        %4010 = vadd.xlane.f32.xlu0 %v4009
        %v4011 = vpop.xlane.xlu0 %4010
        %v4012 = vadd.f32 %v3950, %v3952
        %4013 = vadd.xlane.f32.xlu0 %v4012
        %v4014 = vpop.xlane.xlu0 %4013
        %v4015 = vadd.f32 %v3954, %v3956
        %4016 = vadd.xlane.f32.xlu0 %v4015
        %v4017 = vpop.xlane.xlu0 %4016
        %v4018 = vadd.f32 %v3958, %v3960
        %4019 = vadd.xlane.f32.xlu0 %v4018
        %v4020 = vpop.xlane.xlu0 %4019
        %v4021 = vadd.f32 %v3962, %v3964
        %4022 = vadd.xlane.f32.xlu0 %v4021
        %v4023 = vpop.xlane.xlu0 %4022
        %v4024 = vadd.f32 %v3966, %v3968
        %4025 = vadd.xlane.f32.xlu0 %v4024
        %v4026 = vpop.xlane.xlu0 %4025
        %v4027 = vadd.f32 %v3970, %v3972
        %4028 = vadd.xlane.f32.xlu0 %v4027
        %v4029 = vpop.xlane.xlu0 %4028
        %v4030 = vadd.f32 %v3974, %v3976
        %4031 = vadd.xlane.f32.xlu0 %v4030
        %v4032 = vpop.xlane.xlu0 %4031
        %v4033 = vadd.f32 %v3978, %v3980
        %4034 = vadd.xlane.f32.xlu0 %v4033
        %v4035 = vpop.xlane.xlu0 %4034
        %v4036 = vadd.f32 %v3982, %v3984
        %4037 = vadd.xlane.f32.xlu0 %v4036
        %v4038 = vpop.xlane.xlu0 %4037
        %v4039 = vadd.f32 %v3986, %v3988
        %4040 = vadd.xlane.f32.xlu0 %v4039
        %v4041 = vpop.xlane.xlu0 %4040
        %v4042 = vadd.f32 %v3990, %v3992
        %4043 = vadd.xlane.f32.xlu0 %v4042
        %v4044 = vpop.xlane.xlu0 %4043
        %v4045 = vadd.f32 %v3994, %v3996
        %4046 = vadd.xlane.f32.xlu0 %v4045
        %v4047 = vpop.xlane.xlu0 %4046
        %v4048 = vadd.f32 %v3998, %v4000
        %4049 = vadd.xlane.f32.xlu0 %v4048
        %v4050 = vpop.xlane.xlu0 %4049
        %v4051 = vadd.f32 %v4002, %v4004
        %4052 = vadd.xlane.f32.xlu0 %v4051
        %v4053 = vpop.xlane.xlu0 %4052
        %v4054 = vadd.f32 %v4006, %v4008
        %4055 = vadd.xlane.f32.xlu0 %v4054
        %v4056 = vpop.xlane.xlu0 %4055
        %v4057 = vrcp.pop %v4011
        %v4058 = vrcp.pop %v4014
        %v4059 = vrcp.pop %v4017
        %v4060 = vrcp.pop %v4020
        %v4061 = vrcp.pop %v4023
        %v4062 = vrcp.pop %v4026
        %v4063 = vrcp.pop %v4029
        %v4064 = vrcp.pop %v4032
        %v4065 = vrcp.pop %v4035
        %v4066 = vrcp.pop %v4038
        %v4067 = vrcp.pop %v4041
        %v4068 = vrcp.pop %v4044
        %v4069 = vrcp.pop %v4047
        %v4070 = vrcp.pop %v4050
        %v4071 = vrcp.pop %v4053
        %v4072 = vrcp.pop %v4056
        %v4073 = vpack.c.bf16 %v3950, %v3946
        %v4074 = vpack.c.bf16 %v3952, %v3948
        %v4075 = vpack.c.bf16 %v3958, %v3954
        %v4076 = vpack.c.bf16 %v3960, %v3956
        %v4077 = vpack.c.bf16 %v3966, %v3962
        %v4078 = vpack.c.bf16 %v3968, %v3964
        %v4079 = vpack.c.bf16 %v3974, %v3970
        %v4080 = vpack.c.bf16 %v3976, %v3972
        %v4081 = vpack.c.bf16 %v3982, %v3978
        %v4082 = vpack.c.bf16 %v3984, %v3980
        %v4083 = vpack.c.bf16 %v3990, %v3986
        %v4084 = vpack.c.bf16 %v3992, %v3988
        %v4085 = vpack.c.bf16 %v3998, %v3994
        %v4086 = vpack.c.bf16 %v4000, %v3996
        %v4087 = vpack.c.bf16 %v4006, %v4002
        %v4088 = vpack.c.bf16 %v4008, %v4004
        %4089 = vmatprep.subr.bf16.mxu0 0
        %4090 = vmatpush1.bf16.msra.mxu0 %v3736
        %4091 = vmatprep.subr.bf16.mxu0 0
        %4092 = vmatpush1.bf16.msra.mxu0 %v3737
        %4093 = vmatprep.subr.bf16.mxu0 0
        %4094 = vmatpush1.bf16.msra.mxu0 %v3738
        %4095 = vmatprep.subr.bf16.mxu0 0
        %4096 = vmatpush1.bf16.msra.mxu0 %v3739
        %4097 = vmatprep.subr.bf16.mxu0 0
        %4098 = vmatpush1.bf16.msra.mxu0 %v3740
        %4099 = vmatprep.subr.bf16.mxu0 0
        %4100 = vmatpush1.bf16.msra.mxu0 %v3741
        %4101 = vmatprep.subr.bf16.mxu0 0
        %4102 = vmatpush1.bf16.msra.mxu0 %v3742
        %4103 = vmatprep.subr.bf16.mxu0 0
        %4104 = vmatpush1.bf16.msra.mxu0 %v3743
        %4105 = vmatprep.subr.bf16.mxu0 0
        %4106 = vmatpush1.bf16.msra.mxu0 %v3744
        %4107 = vmatprep.subr.bf16.mxu0 0
        %4108 = vmatpush1.bf16.msra.mxu0 %v3745
        %4109 = vmatprep.subr.bf16.mxu0 0
        %4110 = vmatpush1.bf16.msra.mxu0 %v3746
        %4111 = vmatprep.subr.bf16.mxu0 0
        %4112 = vmatpush1.bf16.msra.mxu0 %v3747
        %4113 = vmatprep.subr.bf16.mxu0 0
        %4114 = vmatpush1.bf16.msra.mxu0 %v3748
        %4115 = vmatprep.subr.bf16.mxu0 0
        %4116 = vmatpush1.bf16.msra.mxu0 %v3749
        %4117 = vmatprep.subr.bf16.mxu0 0
        %4118 = vmatpush1.bf16.msra.mxu0 %v3750
        %4119 = vmatprep.subr.bf16.mxu0 0
        %4120 = vmatpush1.bf16.msra.mxu0 %v3751
        %4121 = vmatprep.mubr.bf16.mxu0 %v4074
        %4122 = vmatmul.mubr.bf16.gmra.mrb[0].mxu0 %v4073
        %v4123 = vpop.f32.mrb[0].mxu0
        %v4124 = vadd.f32 0.0, %v4123
        %v4125 = vpop.f32.mrb[0].mxu0
        %v4126 = vpop.f32.mrb[0].mxu0
        %v4127 = vadd.f32 0.0, %v4126
        %v4128 = vpop.f32.mrb[0].mxu0
        %4129 = vmatprep.mubr.bf16.mxu0 %v4076
        %4130 = vmatmul.mubr.bf16.gmra.mrb[0].mxu0 %v4075
        %v4131 = vpop.f32.mrb[0].mxu0
        %v4132 = vadd.f32 0.0, %v4131
        %v4133 = vpop.f32.mrb[0].mxu0
        %v4134 = vpop.f32.mrb[0].mxu0
        %v4135 = vadd.f32 0.0, %v4134
        %v4136 = vpop.f32.mrb[0].mxu0
        %4137 = vmatprep.mubr.bf16.mxu0 %v4078
        %4138 = vmatmul.mubr.bf16.gmra.mrb[0].mxu0 %v4077
        %v4139 = vpop.f32.mrb[0].mxu0
        %v4140 = vadd.f32 0.0, %v4139
        %v4141 = vpop.f32.mrb[0].mxu0
        %v4142 = vpop.f32.mrb[0].mxu0
        %v4143 = vadd.f32 0.0, %v4142
        %v4144 = vpop.f32.mrb[0].mxu0
        %4145 = vmatprep.mubr.bf16.mxu0 %v4080
        %4146 = vmatmul.mubr.bf16.gmra.mrb[0].mxu0 %v4079
        %v4147 = vpop.f32.mrb[0].mxu0
        %v4148 = vadd.f32 0.0, %v4147
        %v4149 = vpop.f32.mrb[0].mxu0
        %v4150 = vpop.f32.mrb[0].mxu0
        %v4151 = vadd.f32 0.0, %v4150
        %v4152 = vpop.f32.mrb[0].mxu0
        %4153 = vmatprep.mubr.bf16.mxu0 %v4082
        %4154 = vmatmul.mubr.bf16.gmra.mrb[0].mxu0 %v4081
        %v4155 = vpop.f32.mrb[0].mxu0
        %v4156 = vadd.f32 0.0, %v4155
        %v4157 = vpop.f32.mrb[0].mxu0
        %v4158 = vpop.f32.mrb[0].mxu0
        %v4159 = vadd.f32 0.0, %v4158
        %v4160 = vpop.f32.mrb[0].mxu0
        %4161 = vmatprep.mubr.bf16.mxu0 %v4084
        %4162 = vmatmul.mubr.bf16.gmra.mrb[0].mxu0 %v4083
        %v4163 = vpop.f32.mrb[0].mxu0
        %v4164 = vadd.f32 0.0, %v4163
        %v4165 = vpop.f32.mrb[0].mxu0
        %v4166 = vpop.f32.mrb[0].mxu0
        %v4167 = vadd.f32 0.0, %v4166
        %v4168 = vpop.f32.mrb[0].mxu0
        %4169 = vmatprep.mubr.bf16.mxu0 %v4086
        %4170 = vmatmul.mubr.bf16.gmra.mrb[0].mxu0 %v4085
        %v4171 = vpop.f32.mrb[0].mxu0
        %v4172 = vadd.f32 0.0, %v4171
        %v4173 = vpop.f32.mrb[0].mxu0
        %v4174 = vpop.f32.mrb[0].mxu0
        %v4175 = vadd.f32 0.0, %v4174
        %v4176 = vpop.f32.mrb[0].mxu0
        %4177 = vmatprep.mubr.bf16.mxu0 %v4088
        %4178 = vmatmul.mubr.bf16.gmra.mrb[0].mxu0 %v4087
        %v4179 = vpop.f32.mrb[0].mxu0
        %v4180 = vadd.f32 0.0, %v4179
        %v4181 = vpop.f32.mrb[0].mxu0
        %v4182 = vpop.f32.mrb[0].mxu0
        %v4183 = vadd.f32 0.0, %v4182
        %v4184 = vpop.f32.mrb[0].mxu0
        %4185 = vdwg.mxu0
        %v4186 = vmul.f32 %v4124, %v4057
        %v4187 = vmul.f32 %v4127, %v4058
        %v4188 = vmul.f32 %v4132, %v4059
        %v4189 = vmul.f32 %v4135, %v4060
        %v4190 = vmul.f32 %v4140, %v4061
        %v4191 = vmul.f32 %v4143, %v4062
        %v4192 = vmul.f32 %v4148, %v4063
        %v4193 = vmul.f32 %v4151, %v4064
        %v4194 = vmul.f32 %v4156, %v4065
        %v4195 = vmul.f32 %v4159, %v4066
        %v4196 = vmul.f32 %v4164, %v4067
        %v4197 = vmul.f32 %v4167, %v4068
        %v4198 = vmul.f32 %v4172, %v4069
        %v4199 = vmul.f32 %v4175, %v4070
        %v4200 = vmul.f32 %v4180, %v4071
        %v4201 = vmul.f32 %v4183, %v4072
        %v4202 = vpack.c.bf16 %v4187, %v4186
        %v4203 = vpack.c.bf16 %v4189, %v4188
        %v4204 = vpack.c.bf16 %v4191, %v4190
        %v4205 = vpack.c.bf16 %v4193, %v4192
        %v4206 = vpack.c.bf16 %v4195, %v4194
        %v4207 = vpack.c.bf16 %v4197, %v4196
        %v4208 = vpack.c.bf16 %v4199, %v4198
        %v4209 = vpack.c.bf16 %v4201, %v4200
        %4210 = vst [vmem:[#allocation4 + $0x8] sm:$0xff] %v4202
        %4211 = vst [vmem:[#allocation4 + $0x18] sm:$0xff] %v4203
        %4212 = vst [vmem:[#allocation4 + $0x28] sm:$0xff] %v4204
        %4213 = vst [vmem:[#allocation4 + $0x38] sm:$0xff] %v4205
        %4214 = vst [vmem:[#allocation4 + $0x48] sm:$0xff] %v4206
        %4215 = vst [vmem:[#allocation4 + $0x58] sm:$0xff] %v4207
        %4216 = vst [vmem:[#allocation4 + $0x68] sm:$0xff] %v4208
        %4217 = vst [vmem:[#allocation4 + $0x78] sm:$0xff] %v4209
        %v4218 = vld [vmem:[#allocation4] sm:$0xff]
        %v4219 = vld [vmem:[#allocation4 + $0x8] sm:$0xff]
        %v4220 = vld [vmem:[#allocation4 + $0x10] sm:$0xff]
        %v4221 = vld [vmem:[#allocation4 + $0x18] sm:$0xff]
        %v4222 = vld [vmem:[#allocation4 + $0x20] sm:$0xff]
        %v4223 = vld [vmem:[#allocation4 + $0x28] sm:$0xff]
        %v4224 = vld [vmem:[#allocation4 + $0x30] sm:$0xff]
        %v4225 = vld [vmem:[#allocation4 + $0x38] sm:$0xff]
        %v4226 = vld [vmem:[#allocation4 + $0x40] sm:$0xff]
        %v4227 = vld [vmem:[#allocation4 + $0x48] sm:$0xff]
        %v4228 = vld [vmem:[#allocation4 + $0x50] sm:$0xff]
        %v4229 = vld [vmem:[#allocation4 + $0x58] sm:$0xff]
        %v4230 = vld [vmem:[#allocation4 + $0x60] sm:$0xff]
        %v4231 = vld [vmem:[#allocation4 + $0x68] sm:$0xff]
        %v4232 = vld [vmem:[#allocation4 + $0x70] sm:$0xff]
        %v4233 = vld [vmem:[#allocation4 + $0x78] sm:$0xff]
        %v4234 = vld [vmem:[#allocation20] sm:$0xff]
        %v4235 = vld [vmem:[#allocation20 + $0x8] sm:$0xff]
        %v4236 = vld [vmem:[#allocation20 + $0x10] sm:$0xff]
        %v4237 = vld [vmem:[#allocation20 + $0x18] sm:$0xff]
        %v4238 = vld [vmem:[#allocation20 + $0x20] sm:$0xff]
        %v4239 = vld [vmem:[#allocation20 + $0x28] sm:$0xff]
        %v4240 = vld [vmem:[#allocation20 + $0x30] sm:$0xff]
        %v4241 = vld [vmem:[#allocation20 + $0x38] sm:$0xff]
        %v4242 = vld [vmem:[#allocation20 + $0x40] sm:$0xff]
        %v4243 = vld [vmem:[#allocation20 + $0x48] sm:$0xff]
        %v4244 = vld [vmem:[#allocation20 + $0x50] sm:$0xff]
        %v4245 = vld [vmem:[#allocation20 + $0x58] sm:$0xff]
        %v4246 = vld [vmem:[#allocation20 + $0x60] sm:$0xff]
        %v4247 = vld [vmem:[#allocation20 + $0x68] sm:$0xff]
        %v4248 = vld [vmem:[#allocation20 + $0x70] sm:$0xff]
        %v4249 = vld [vmem:[#allocation20 + $0x78] sm:$0xff]
        %v4250 = vld [vmem:[#allocation20 + $0x80] sm:$0xff]
        %v4251 = vld [vmem:[#allocation20 + $0x88] sm:$0xff]
        %v4252 = vld [vmem:[#allocation20 + $0x90] sm:$0xff]
        %v4253 = vld [vmem:[#allocation20 + $0x98] sm:$0xff]
        %v4254 = vld [vmem:[#allocation20 + $0xa0] sm:$0xff]
        %v4255 = vld [vmem:[#allocation20 + $0xa8] sm:$0xff]
        %v4256 = vld [vmem:[#allocation20 + $0xb0] sm:$0xff]
        %v4257 = vld [vmem:[#allocation20 + $0xb8] sm:$0xff]
        %v4258 = vld [vmem:[#allocation20 + $0xc0] sm:$0xff]
        %v4259 = vld [vmem:[#allocation20 + $0xc8] sm:$0xff]
        %v4260 = vld [vmem:[#allocation20 + $0xd0] sm:$0xff]
        %v4261 = vld [vmem:[#allocation20 + $0xd8] sm:$0xff]
        %v4262 = vld [vmem:[#allocation20 + $0xe0] sm:$0xff]
        %v4263 = vld [vmem:[#allocation20 + $0xe8] sm:$0xff]
        %v4264 = vld [vmem:[#allocation20 + $0xf0] sm:$0xff]
        %v4265 = vld [vmem:[#allocation20 + $0xf8] sm:$0xff]
        %v4266 = vld [vmem:[#allocation22] sm:$0x3]
        %v4268 = vlaneseq
        %v4269 = vshrl.u32 %v4268, 7
        %v4270 = vsub.s32 0, %v4269
        %v4271 = vrot.slane %v4266, %v4270
        %v4272 = vlaneseq
        %v4273 = vshrl.u32 %v4272, 7
        %v4274 = vsub.s32 1, %v4273
        %v4275 = vrot.slane %v4266, %v4274
        %v4310 = vunpack.c.l.b16 %v4234
        %v4311 = vunpack.c.h.b16 %v4234
        %v4312 = vunpack.c.l.b16 %v4235
        %v4313 = vunpack.c.h.b16 %v4235
        %v4314 = vunpack.c.l.b16 %v4236
        %v4315 = vunpack.c.h.b16 %v4236
        %v4316 = vunpack.c.l.b16 %v4237
        %v4317 = vunpack.c.h.b16 %v4237
        %v4318 = vunpack.c.l.b16 %v4238
        %v4319 = vunpack.c.h.b16 %v4238
        %v4320 = vunpack.c.l.b16 %v4239
        %v4321 = vunpack.c.h.b16 %v4239
        %v4322 = vunpack.c.l.b16 %v4240
        %v4323 = vunpack.c.h.b16 %v4240
        %v4324 = vunpack.c.l.b16 %v4241
        %v4325 = vunpack.c.h.b16 %v4241
        %v4326 = vunpack.c.l.b16 %v4242
        %v4327 = vunpack.c.h.b16 %v4242
        %v4328 = vunpack.c.l.b16 %v4243
        %v4329 = vunpack.c.h.b16 %v4243
        %v4330 = vunpack.c.l.b16 %v4244
        %v4331 = vunpack.c.h.b16 %v4244
        %v4332 = vunpack.c.l.b16 %v4245
        %v4333 = vunpack.c.h.b16 %v4245
        %v4334 = vunpack.c.l.b16 %v4246
        %v4335 = vunpack.c.h.b16 %v4246
        %v4336 = vunpack.c.l.b16 %v4247
        %v4337 = vunpack.c.h.b16 %v4247
        %v4338 = vunpack.c.l.b16 %v4248
        %v4339 = vunpack.c.h.b16 %v4248
        %v4340 = vunpack.c.l.b16 %v4249
        %v4341 = vunpack.c.h.b16 %v4249
        %v4342 = vunpack.c.l.b16 %v4250
        %v4343 = vunpack.c.h.b16 %v4250
        %v4344 = vunpack.c.l.b16 %v4251
        %v4345 = vunpack.c.h.b16 %v4251
        %v4346 = vunpack.c.l.b16 %v4252
        %v4347 = vunpack.c.h.b16 %v4252
        %v4348 = vunpack.c.l.b16 %v4253
        %v4349 = vunpack.c.h.b16 %v4253
        %v4350 = vunpack.c.l.b16 %v4254
        %v4351 = vunpack.c.h.b16 %v4254
        %v4352 = vunpack.c.l.b16 %v4255
        %v4353 = vunpack.c.h.b16 %v4255
        %v4354 = vunpack.c.l.b16 %v4256
        %v4355 = vunpack.c.h.b16 %v4256
        %v4356 = vunpack.c.l.b16 %v4257
        %v4357 = vunpack.c.h.b16 %v4257
        %v4358 = vunpack.c.l.b16 %v4258
        %v4359 = vunpack.c.h.b16 %v4258
        %v4360 = vunpack.c.l.b16 %v4259
        %v4361 = vunpack.c.h.b16 %v4259
        %v4362 = vunpack.c.l.b16 %v4260
        %v4363 = vunpack.c.h.b16 %v4260
        %v4364 = vunpack.c.l.b16 %v4261
        %v4365 = vunpack.c.h.b16 %v4261
        %v4366 = vunpack.c.l.b16 %v4262
        %v4367 = vunpack.c.h.b16 %v4262
        %v4368 = vunpack.c.l.b16 %v4263
        %v4369 = vunpack.c.h.b16 %v4263
        %v4370 = vunpack.c.l.b16 %v4264
        %v4371 = vunpack.c.h.b16 %v4264
        %v4372 = vunpack.c.l.b16 %v4265
        %v4373 = vunpack.c.h.b16 %v4265
        %v4374 = vpack.c.b16 %v4312, %v4310
        %v4375 = vpack.c.b16 %v4313, %v4311
        %v4376 = vpack.c.b16 %v4316, %v4314
        %v4377 = vpack.c.b16 %v4317, %v4315
        %v4378 = vpack.c.b16 %v4320, %v4318
        %v4379 = vpack.c.b16 %v4321, %v4319
        %v4380 = vpack.c.b16 %v4324, %v4322
        %v4381 = vpack.c.b16 %v4325, %v4323
        %v4382 = vpack.c.b16 %v4328, %v4326
        %v4383 = vpack.c.b16 %v4329, %v4327
        %v4384 = vpack.c.b16 %v4332, %v4330
        %v4385 = vpack.c.b16 %v4333, %v4331
        %v4386 = vpack.c.b16 %v4336, %v4334
        %v4387 = vpack.c.b16 %v4337, %v4335
        %v4388 = vpack.c.b16 %v4340, %v4338
        %v4389 = vpack.c.b16 %v4341, %v4339
        %v4390 = vpack.c.b16 %v4344, %v4342
        %v4391 = vpack.c.b16 %v4345, %v4343
        %v4392 = vpack.c.b16 %v4348, %v4346
        %v4393 = vpack.c.b16 %v4349, %v4347
        %v4394 = vpack.c.b16 %v4352, %v4350
        %v4395 = vpack.c.b16 %v4353, %v4351
        %v4396 = vpack.c.b16 %v4356, %v4354
        %v4397 = vpack.c.b16 %v4357, %v4355
        %v4398 = vpack.c.b16 %v4360, %v4358
        %v4399 = vpack.c.b16 %v4361, %v4359
        %v4400 = vpack.c.b16 %v4364, %v4362
        %v4401 = vpack.c.b16 %v4365, %v4363
        %v4402 = vpack.c.b16 %v4368, %v4366
        %v4403 = vpack.c.b16 %v4369, %v4367
        %v4404 = vpack.c.b16 %v4372, %v4370
        %v4405 = vpack.c.b16 %v4373, %v4371
        %4438 = vmatprep.subr.bf16.mxu0 %v4375
        %4439 = vmatpush1.bf16.msra.mxu0 %v4374
        %4440 = vmatprep.subr.bf16.mxu0 %v4377
        %4441 = vmatpush1.bf16.msra.mxu0 %v4376
        %4442 = vmatprep.subr.bf16.mxu0 %v4379
        %4443 = vmatpush1.bf16.msra.mxu0 %v4378
        %4444 = vmatprep.subr.bf16.mxu0 %v4381
        %4445 = vmatpush1.bf16.msra.mxu0 %v4380
        %4446 = vmatprep.subr.bf16.mxu0 %v4383
        %4447 = vmatpush1.bf16.msra.mxu0 %v4382
        %4448 = vmatprep.subr.bf16.mxu0 %v4385
        %4449 = vmatpush1.bf16.msra.mxu0 %v4384
        %4450 = vmatprep.subr.bf16.mxu0 %v4387
        %4451 = vmatpush1.bf16.msra.mxu0 %v4386
        %4452 = vmatprep.subr.bf16.mxu0 %v4389
        %4453 = vmatpush1.bf16.msra.mxu0 %v4388
        %4454 = vmatprep.subr.bf16.mxu0 %v4391
        %4455 = vmatpush1.bf16.msra.mxu0 %v4390
        %4456 = vmatprep.subr.bf16.mxu0 %v4393
        %4457 = vmatpush1.bf16.msra.mxu0 %v4392
        %4458 = vmatprep.subr.bf16.mxu0 %v4395
        %4459 = vmatpush1.bf16.msra.mxu0 %v4394
        %4460 = vmatprep.subr.bf16.mxu0 %v4397
        %4461 = vmatpush1.bf16.msra.mxu0 %v4396
        %4462 = vmatprep.subr.bf16.mxu0 %v4399
        %4463 = vmatpush1.bf16.msra.mxu0 %v4398
        %4464 = vmatprep.subr.bf16.mxu0 %v4401
        %4465 = vmatpush1.bf16.msra.mxu0 %v4400
        %4466 = vmatprep.subr.bf16.mxu0 %v4403
        %4467 = vmatpush1.bf16.msra.mxu0 %v4402
        %4468 = vmatprep.subr.bf16.mxu0 %v4405
        %4469 = vmatpush1.bf16.msra.mxu0 %v4404
        %4470 = vmatprep.mubr.bf16.mxu0 %v4219
        %4471 = vmatmul.mubr.bf16.gmra.mrb[0].mxu0 %v4218
        %v4472 = vpop.f32.mrb[0].mxu0
        %v4473 = vadd.f32 %v4271, %v4472
        %v4474 = vpop.f32.mrb[0].mxu0
        %v4475 = vadd.f32 %v4275, %v4474
        %v4476 = vpop.f32.mrb[0].mxu0
        %v4477 = vadd.f32 %v4271, %v4476
        %v4478 = vpop.f32.mrb[0].mxu0
        %v4479 = vadd.f32 %v4275, %v4478
        %4480 = vmatprep.mubr.bf16.mxu0 %v4221
        %4481 = vmatmul.mubr.bf16.gmra.mrb[0].mxu0 %v4220
        %v4482 = vpop.f32.mrb[0].mxu0
        %v4483 = vadd.f32 %v4271, %v4482
        %v4484 = vpop.f32.mrb[0].mxu0
        %v4485 = vadd.f32 %v4275, %v4484
        %v4486 = vpop.f32.mrb[0].mxu0
        %v4487 = vadd.f32 %v4271, %v4486
        %v4488 = vpop.f32.mrb[0].mxu0
        %v4489 = vadd.f32 %v4275, %v4488
        %4490 = vmatprep.mubr.bf16.mxu0 %v4223
        %4491 = vmatmul.mubr.bf16.gmra.mrb[0].mxu0 %v4222
        %v4492 = vpop.f32.mrb[0].mxu0
        %v4493 = vadd.f32 %v4271, %v4492
        %v4494 = vpop.f32.mrb[0].mxu0
        %v4495 = vadd.f32 %v4275, %v4494
        %v4496 = vpop.f32.mrb[0].mxu0
        %v4497 = vadd.f32 %v4271, %v4496
        %v4498 = vpop.f32.mrb[0].mxu0
        %v4499 = vadd.f32 %v4275, %v4498
        %4500 = vmatprep.mubr.bf16.mxu0 %v4225
        %4501 = vmatmul.mubr.bf16.gmra.mrb[0].mxu0 %v4224
        %v4502 = vpop.f32.mrb[0].mxu0
        %v4503 = vadd.f32 %v4271, %v4502
        %v4504 = vpop.f32.mrb[0].mxu0
        %v4505 = vadd.f32 %v4275, %v4504
        %v4506 = vpop.f32.mrb[0].mxu0
        %v4507 = vadd.f32 %v4271, %v4506
        %v4508 = vpop.f32.mrb[0].mxu0
        %v4509 = vadd.f32 %v4275, %v4508
        %4510 = vmatprep.mubr.bf16.mxu0 %v4227
        %4511 = vmatmul.mubr.bf16.gmra.mrb[0].mxu0 %v4226
        %v4512 = vpop.f32.mrb[0].mxu0
        %v4513 = vadd.f32 %v4271, %v4512
        %v4514 = vpop.f32.mrb[0].mxu0
        %v4515 = vadd.f32 %v4275, %v4514
        %v4516 = vpop.f32.mrb[0].mxu0
        %v4517 = vadd.f32 %v4271, %v4516
        %v4518 = vpop.f32.mrb[0].mxu0
        %v4519 = vadd.f32 %v4275, %v4518
        %4520 = vmatprep.mubr.bf16.mxu0 %v4229
        %4521 = vmatmul.mubr.bf16.gmra.mrb[0].mxu0 %v4228
        %v4522 = vpop.f32.mrb[0].mxu0
        %v4523 = vadd.f32 %v4271, %v4522
        %v4524 = vpop.f32.mrb[0].mxu0
        %v4525 = vadd.f32 %v4275, %v4524
        %v4526 = vpop.f32.mrb[0].mxu0
        %v4527 = vadd.f32 %v4271, %v4526
        %v4528 = vpop.f32.mrb[0].mxu0
        %v4529 = vadd.f32 %v4275, %v4528
        %4530 = vmatprep.mubr.bf16.mxu0 %v4231
        %4531 = vmatmul.mubr.bf16.gmra.mrb[0].mxu0 %v4230
        %v4532 = vpop.f32.mrb[0].mxu0
        %v4533 = vadd.f32 %v4271, %v4532
        %v4534 = vpop.f32.mrb[0].mxu0
        %v4535 = vadd.f32 %v4275, %v4534
        %v4536 = vpop.f32.mrb[0].mxu0
        %v4537 = vadd.f32 %v4271, %v4536
        %v4538 = vpop.f32.mrb[0].mxu0
        %v4539 = vadd.f32 %v4275, %v4538
        %4540 = vmatprep.mubr.bf16.mxu0 %v4233
        %4541 = vmatmul.mubr.bf16.gmra.mrb[0].mxu0 %v4232
        %v4542 = vpop.f32.mrb[0].mxu0
        %v4543 = vadd.f32 %v4271, %v4542
        %v4544 = vpop.f32.mrb[0].mxu0
        %v4545 = vadd.f32 %v4275, %v4544
        %v4546 = vpop.f32.mrb[0].mxu0
        %v4547 = vadd.f32 %v4271, %v4546
        %v4548 = vpop.f32.mrb[0].mxu0
        %v4549 = vadd.f32 %v4275, %v4548
        %4550 = vdwg.mxu0
        %v4551 = vadd.f32 %v2496, %v4473
        %v4552 = vadd.f32 %v2497, %v4475
        %v4553 = vadd.f32 %v2498, %v4477
        %v4554 = vadd.f32 %v2499, %v4479
        %v4555 = vadd.f32 %v2500, %v4483
        %v4556 = vadd.f32 %v2501, %v4485
        %v4557 = vadd.f32 %v2502, %v4487
        %v4558 = vadd.f32 %v2503, %v4489
        %v4559 = vadd.f32 %v2504, %v4493
        %v4560 = vadd.f32 %v2505, %v4495
        %v4561 = vadd.f32 %v2506, %v4497
        %v4562 = vadd.f32 %v2507, %v4499
        %v4563 = vadd.f32 %v2508, %v4503
        %v4564 = vadd.f32 %v2509, %v4505
        %v4565 = vadd.f32 %v2510, %v4507
        %v4566 = vadd.f32 %v2511, %v4509
        %v4567 = vadd.f32 %v2512, %v4513
        %v4568 = vadd.f32 %v2513, %v4515
        %v4569 = vadd.f32 %v2514, %v4517
        %v4570 = vadd.f32 %v2515, %v4519
        %v4571 = vadd.f32 %v2516, %v4523
        %v4572 = vadd.f32 %v2517, %v4525
        %v4573 = vadd.f32 %v2518, %v4527
        %v4574 = vadd.f32 %v2519, %v4529
        %v4575 = vadd.f32 %v2520, %v4533
        %v4576 = vadd.f32 %v2521, %v4535
        %v4577 = vadd.f32 %v2522, %v4537
        %v4578 = vadd.f32 %v2523, %v4539
        %v4579 = vadd.f32 %v2524, %v4543
        %v4580 = vadd.f32 %v2525, %v4545
        %v4581 = vadd.f32 %v2526, %v4547
        %v4582 = vadd.f32 %v2527, %v4549
        %v4583 = vld [vmem:[#allocation23] sm:$0x3]
        %v4584 = vld [vmem:[#allocation25] sm:$0x3]
        %v4585 = vadd.f32 %v4551, %v4552
        %4586 = vadd.xlane.f32.xlu0 %v4585
        %v4587 = vpop.xlane.xlu0 %4586
        %v4588 = vadd.f32 %v4553, %v4554
        %4589 = vadd.xlane.f32.xlu0 %v4588
        %v4590 = vpop.xlane.xlu0 %4589
        %v4591 = vadd.f32 %v4555, %v4556
        %4592 = vadd.xlane.f32.xlu0 %v4591
        %v4593 = vpop.xlane.xlu0 %4592
        %v4594 = vadd.f32 %v4557, %v4558
        %4595 = vadd.xlane.f32.xlu0 %v4594
        %v4596 = vpop.xlane.xlu0 %4595
        %v4597 = vadd.f32 %v4559, %v4560
        %4598 = vadd.xlane.f32.xlu0 %v4597
        %v4599 = vpop.xlane.xlu0 %4598
        %v4600 = vadd.f32 %v4561, %v4562
        %4601 = vadd.xlane.f32.xlu0 %v4600
        %v4602 = vpop.xlane.xlu0 %4601
        %v4603 = vadd.f32 %v4563, %v4564
        %4604 = vadd.xlane.f32.xlu0 %v4603
        %v4605 = vpop.xlane.xlu0 %4604
        %v4606 = vadd.f32 %v4565, %v4566
        %4607 = vadd.xlane.f32.xlu0 %v4606
        %v4608 = vpop.xlane.xlu0 %4607
        %v4609 = vadd.f32 %v4567, %v4568
        %4610 = vadd.xlane.f32.xlu0 %v4609
        %v4611 = vpop.xlane.xlu0 %4610
        %v4612 = vadd.f32 %v4569, %v4570
        %4613 = vadd.xlane.f32.xlu0 %v4612
        %v4614 = vpop.xlane.xlu0 %4613
        %v4615 = vadd.f32 %v4571, %v4572
        %4616 = vadd.xlane.f32.xlu0 %v4615
        %v4617 = vpop.xlane.xlu0 %4616
        %v4618 = vadd.f32 %v4573, %v4574
        %4619 = vadd.xlane.f32.xlu0 %v4618
        %v4620 = vpop.xlane.xlu0 %4619
        %v4621 = vadd.f32 %v4575, %v4576
        %4622 = vadd.xlane.f32.xlu0 %v4621
        %v4623 = vpop.xlane.xlu0 %4622
        %v4624 = vadd.f32 %v4577, %v4578
        %4625 = vadd.xlane.f32.xlu0 %v4624
        %v4626 = vpop.xlane.xlu0 %4625
        %v4627 = vadd.f32 %v4579, %v4580
        %4628 = vadd.xlane.f32.xlu0 %v4627
        %v4629 = vpop.xlane.xlu0 %4628
        %v4630 = vadd.f32 %v4581, %v4582
        %4631 = vadd.xlane.f32.xlu0 %v4630
        %v4632 = vpop.xlane.xlu0 %4631
        %v4633 = vmul.f32 %v4587, %v2578
        %v4634 = vmul.f32 %v4590, %v2578
        %v4635 = vmul.f32 %v4593, %v2578
        %v4636 = vmul.f32 %v4596, %v2578
        %v4637 = vmul.f32 %v4599, %v2578
        %v4638 = vmul.f32 %v4602, %v2578
        %v4639 = vmul.f32 %v4605, %v2578
        %v4640 = vmul.f32 %v4608, %v2578
        %v4641 = vmul.f32 %v4611, %v2578
        %v4642 = vmul.f32 %v4614, %v2578
        %v4643 = vmul.f32 %v4617, %v2578
        %v4644 = vmul.f32 %v4620, %v2578
        %v4645 = vmul.f32 %v4623, %v2578
        %v4646 = vmul.f32 %v4626, %v2578
        %v4647 = vmul.f32 %v4629, %v2578
        %v4648 = vmul.f32 %v4632, %v2578
        %v4649 = vsub.f32 %v4551, %v4633
        %v4650 = vsub.f32 %v4552, %v4633
        %v4651 = vsub.f32 %v4553, %v4634
        %v4652 = vsub.f32 %v4554, %v4634
        %v4653 = vsub.f32 %v4555, %v4635
        %v4654 = vsub.f32 %v4556, %v4635
        %v4655 = vsub.f32 %v4557, %v4636
        %v4656 = vsub.f32 %v4558, %v4636
        %v4657 = vsub.f32 %v4559, %v4637
        %v4658 = vsub.f32 %v4560, %v4637
        %v4659 = vsub.f32 %v4561, %v4638
        %v4660 = vsub.f32 %v4562, %v4638
        %v4661 = vsub.f32 %v4563, %v4639
        %v4662 = vsub.f32 %v4564, %v4639
        %v4663 = vsub.f32 %v4565, %v4640
        %v4664 = vsub.f32 %v4566, %v4640
        %v4665 = vsub.f32 %v4567, %v4641
        %v4666 = vsub.f32 %v4568, %v4641
        %v4667 = vsub.f32 %v4569, %v4642
        %v4668 = vsub.f32 %v4570, %v4642
        %v4669 = vsub.f32 %v4571, %v4643
        %v4670 = vsub.f32 %v4572, %v4643
        %v4671 = vsub.f32 %v4573, %v4644
        %v4672 = vsub.f32 %v4574, %v4644
        %v4673 = vsub.f32 %v4575, %v4645
        %v4674 = vsub.f32 %v4576, %v4645
        %v4675 = vsub.f32 %v4577, %v4646
        %v4676 = vsub.f32 %v4578, %v4646
        %v4677 = vsub.f32 %v4579, %v4647
        %v4678 = vsub.f32 %v4580, %v4647
        %v4679 = vsub.f32 %v4581, %v4648
        %v4680 = vsub.f32 %v4582, %v4648
        %v4681 = vmul.f32 %v4649, %v4649
        %v4682 = vmul.f32 %v4650, %v4650
        %v4683 = vmul.f32 %v4651, %v4651
        %v4684 = vmul.f32 %v4652, %v4652
        %v4685 = vmul.f32 %v4653, %v4653
        %v4686 = vmul.f32 %v4654, %v4654
        %v4687 = vmul.f32 %v4655, %v4655
        %v4688 = vmul.f32 %v4656, %v4656
        %v4689 = vmul.f32 %v4657, %v4657
        %v4690 = vmul.f32 %v4658, %v4658
        %v4691 = vmul.f32 %v4659, %v4659
        %v4692 = vmul.f32 %v4660, %v4660
        %v4693 = vmul.f32 %v4661, %v4661
        %v4694 = vmul.f32 %v4662, %v4662
        %v4695 = vmul.f32 %v4663, %v4663
        %v4696 = vmul.f32 %v4664, %v4664
        %v4697 = vmul.f32 %v4665, %v4665
        %v4698 = vmul.f32 %v4666, %v4666
        %v4699 = vmul.f32 %v4667, %v4667
        %v4700 = vmul.f32 %v4668, %v4668
        %v4701 = vmul.f32 %v4669, %v4669
        %v4702 = vmul.f32 %v4670, %v4670
        %v4703 = vmul.f32 %v4671, %v4671
        %v4704 = vmul.f32 %v4672, %v4672
        %v4705 = vmul.f32 %v4673, %v4673
        %v4706 = vmul.f32 %v4674, %v4674
        %v4707 = vmul.f32 %v4675, %v4675
        %v4708 = vmul.f32 %v4676, %v4676
        %v4709 = vmul.f32 %v4677, %v4677
        %v4710 = vmul.f32 %v4678, %v4678
        %v4711 = vmul.f32 %v4679, %v4679
        %v4712 = vmul.f32 %v4680, %v4680
        %v4713 = vadd.f32 %v4681, %v4682
        %4714 = vadd.xlane.f32.xlu0 %v4713
        %v4715 = vpop.xlane.xlu0 %4714
        %v4716 = vadd.f32 %v4683, %v4684
        %4717 = vadd.xlane.f32.xlu0 %v4716
        %v4718 = vpop.xlane.xlu0 %4717
        %v4719 = vadd.f32 %v4685, %v4686
        %4720 = vadd.xlane.f32.xlu0 %v4719
        %v4721 = vpop.xlane.xlu0 %4720
        %v4722 = vadd.f32 %v4687, %v4688
        %4723 = vadd.xlane.f32.xlu0 %v4722
        %v4724 = vpop.xlane.xlu0 %4723
        %v4725 = vadd.f32 %v4689, %v4690
        %4726 = vadd.xlane.f32.xlu0 %v4725
        %v4727 = vpop.xlane.xlu0 %4726
        %v4728 = vadd.f32 %v4691, %v4692
        %4729 = vadd.xlane.f32.xlu0 %v4728
        %v4730 = vpop.xlane.xlu0 %4729
        %v4731 = vadd.f32 %v4693, %v4694
        %4732 = vadd.xlane.f32.xlu0 %v4731
        %v4733 = vpop.xlane.xlu0 %4732
        %v4734 = vadd.f32 %v4695, %v4696
        %4735 = vadd.xlane.f32.xlu0 %v4734
        %v4736 = vpop.xlane.xlu0 %4735
        %v4737 = vadd.f32 %v4697, %v4698
        %4738 = vadd.xlane.f32.xlu0 %v4737
        %v4739 = vpop.xlane.xlu0 %4738
        %v4740 = vadd.f32 %v4699, %v4700
        %4741 = vadd.xlane.f32.xlu0 %v4740
        %v4742 = vpop.xlane.xlu0 %4741
        %v4743 = vadd.f32 %v4701, %v4702
        %4744 = vadd.xlane.f32.xlu0 %v4743
        %v4745 = vpop.xlane.xlu0 %4744
        %v4746 = vadd.f32 %v4703, %v4704
        %4747 = vadd.xlane.f32.xlu0 %v4746
        %v4748 = vpop.xlane.xlu0 %4747
        %v4749 = vadd.f32 %v4705, %v4706
        %4750 = vadd.xlane.f32.xlu0 %v4749
        %v4751 = vpop.xlane.xlu0 %4750
        %v4752 = vadd.f32 %v4707, %v4708
        %4753 = vadd.xlane.f32.xlu0 %v4752
        %v4754 = vpop.xlane.xlu0 %4753
        %v4755 = vadd.f32 %v4709, %v4710
        %4756 = vadd.xlane.f32.xlu0 %v4755
        %v4757 = vpop.xlane.xlu0 %4756
        %v4758 = vadd.f32 %v4711, %v4712
        %4759 = vadd.xlane.f32.xlu0 %v4758
        %v4760 = vpop.xlane.xlu0 %4759
        %v4761 = vmul.f32 %v4715, %v2578
        %v4762 = vmul.f32 %v4718, %v2578
        %v4763 = vmul.f32 %v4721, %v2578
        %v4764 = vmul.f32 %v4724, %v2578
        %v4765 = vmul.f32 %v4727, %v2578
        %v4766 = vmul.f32 %v4730, %v2578
        %v4767 = vmul.f32 %v4733, %v2578
        %v4768 = vmul.f32 %v4736, %v2578
        %v4769 = vmul.f32 %v4739, %v2578
        %v4770 = vmul.f32 %v4742, %v2578
        %v4771 = vmul.f32 %v4745, %v2578
        %v4772 = vmul.f32 %v4748, %v2578
        %v4773 = vmul.f32 %v4751, %v2578
        %v4774 = vmul.f32 %v4754, %v2578
        %v4775 = vmul.f32 %v4757, %v2578
        %v4776 = vmul.f32 %v4760, %v2578
        %v4777 = vadd.f32 %v4761, 1e-05
        %v4778 = vadd.f32 %v4762, 1e-05
        %v4779 = vadd.f32 %v4763, 1e-05
        %v4780 = vadd.f32 %v4764, 1e-05
        %v4781 = vadd.f32 %v4765, 1e-05
        %v4782 = vadd.f32 %v4766, 1e-05
        %v4783 = vadd.f32 %v4767, 1e-05
        %v4784 = vadd.f32 %v4768, 1e-05
        %v4785 = vadd.f32 %v4769, 1e-05
        %v4786 = vadd.f32 %v4770, 1e-05
        %v4787 = vadd.f32 %v4771, 1e-05
        %v4788 = vadd.f32 %v4772, 1e-05
        %v4789 = vadd.f32 %v4773, 1e-05
        %v4790 = vadd.f32 %v4774, 1e-05
        %v4791 = vadd.f32 %v4775, 1e-05
        %v4792 = vadd.f32 %v4776, 1e-05
        %v4793 = vrsqrt.pop %v4777
        %v4794 = vrsqrt.pop %v4778
        %v4795 = vrsqrt.pop %v4779
        %v4796 = vrsqrt.pop %v4780
        %v4797 = vrsqrt.pop %v4781
        %v4798 = vrsqrt.pop %v4782
        %v4799 = vrsqrt.pop %v4783
        %v4800 = vrsqrt.pop %v4784
        %v4801 = vrsqrt.pop %v4785
        %v4802 = vrsqrt.pop %v4786
        %v4803 = vrsqrt.pop %v4787
        %v4804 = vrsqrt.pop %v4788
        %v4805 = vrsqrt.pop %v4789
        %v4806 = vrsqrt.pop %v4790
        %v4807 = vrsqrt.pop %v4791
        %v4808 = vrsqrt.pop %v4792
        %v4809 = vmul.f32 %v4649, %v4793
        %v4810 = vmul.f32 %v4650, %v4793
        %v4811 = vmul.f32 %v4651, %v4794
        %v4812 = vmul.f32 %v4652, %v4794
        %v4813 = vmul.f32 %v4653, %v4795
        %v4814 = vmul.f32 %v4654, %v4795
        %v4815 = vmul.f32 %v4655, %v4796
        %v4816 = vmul.f32 %v4656, %v4796
        %v4817 = vmul.f32 %v4657, %v4797
        %v4818 = vmul.f32 %v4658, %v4797
        %v4819 = vmul.f32 %v4659, %v4798
        %v4820 = vmul.f32 %v4660, %v4798
        %v4821 = vmul.f32 %v4661, %v4799
        %v4822 = vmul.f32 %v4662, %v4799
        %v4823 = vmul.f32 %v4663, %v4800
        %v4824 = vmul.f32 %v4664, %v4800
        %v4825 = vmul.f32 %v4665, %v4801
        %v4826 = vmul.f32 %v4666, %v4801
        %v4827 = vmul.f32 %v4667, %v4802
        %v4828 = vmul.f32 %v4668, %v4802
        %v4829 = vmul.f32 %v4669, %v4803
        %v4830 = vmul.f32 %v4670, %v4803
        %v4831 = vmul.f32 %v4671, %v4804
        %v4832 = vmul.f32 %v4672, %v4804
        %v4833 = vmul.f32 %v4673, %v4805
        %v4834 = vmul.f32 %v4674, %v4805
        %v4835 = vmul.f32 %v4675, %v4806
        %v4836 = vmul.f32 %v4676, %v4806
        %v4837 = vmul.f32 %v4677, %v4807
        %v4838 = vmul.f32 %v4678, %v4807
        %v4839 = vmul.f32 %v4679, %v4808
        %v4840 = vmul.f32 %v4680, %v4808
        %v4842 = vlaneseq
        %v4843 = vshrl.u32 %v4842, 7
        %v4844 = vsub.s32 0, %v4843
        %v4845 = vrot.slane %v4583, %v4844
        %v4846 = vlaneseq
        %v4847 = vshrl.u32 %v4846, 7
        %v4848 = vsub.s32 1, %v4847
        %v4849 = vrot.slane %v4583, %v4848
        %v4852 = vmul.f32 %v4809, %v4845
        %v4853 = vmul.f32 %v4810, %v4849
        %v4854 = vmul.f32 %v4811, %v4845
        %v4855 = vmul.f32 %v4812, %v4849
        %v4856 = vmul.f32 %v4813, %v4845
        %v4857 = vmul.f32 %v4814, %v4849
        %v4858 = vmul.f32 %v4815, %v4845
        %v4859 = vmul.f32 %v4816, %v4849
        %v4860 = vmul.f32 %v4817, %v4845
        %v4861 = vmul.f32 %v4818, %v4849
        %v4862 = vmul.f32 %v4819, %v4845
        %v4863 = vmul.f32 %v4820, %v4849
        %v4864 = vmul.f32 %v4821, %v4845
        %v4865 = vmul.f32 %v4822, %v4849
        %v4866 = vmul.f32 %v4823, %v4845
        %v4867 = vmul.f32 %v4824, %v4849
        %v4868 = vmul.f32 %v4825, %v4845
        %v4869 = vmul.f32 %v4826, %v4849
        %v4870 = vmul.f32 %v4827, %v4845
        %v4871 = vmul.f32 %v4828, %v4849
        %v4872 = vmul.f32 %v4829, %v4845
        %v4873 = vmul.f32 %v4830, %v4849
        %v4874 = vmul.f32 %v4831, %v4845
        %v4875 = vmul.f32 %v4832, %v4849
        %v4876 = vmul.f32 %v4833, %v4845
        %v4877 = vmul.f32 %v4834, %v4849
        %v4878 = vmul.f32 %v4835, %v4845
        %v4879 = vmul.f32 %v4836, %v4849
        %v4880 = vmul.f32 %v4837, %v4845
        %v4881 = vmul.f32 %v4838, %v4849
        %v4882 = vmul.f32 %v4839, %v4845
        %v4883 = vmul.f32 %v4840, %v4849
        %v4885 = vlaneseq
        %v4886 = vshrl.u32 %v4885, 7
        %v4887 = vsub.s32 0, %v4886
        %v4888 = vrot.slane %v4584, %v4887
        %v4889 = vlaneseq
        %v4890 = vshrl.u32 %v4889, 7
        %v4891 = vsub.s32 1, %v4890
        %v4892 = vrot.slane %v4584, %v4891
        %v4895 = vadd.f32 %v4852, %v4888
        %v4896 = vadd.f32 %v4853, %v4892
        %v4897 = vadd.f32 %v4854, %v4888
        %v4898 = vadd.f32 %v4855, %v4892
        %v4899 = vadd.f32 %v4856, %v4888
        %v4900 = vadd.f32 %v4857, %v4892
        %v4901 = vadd.f32 %v4858, %v4888
        %v4902 = vadd.f32 %v4859, %v4892
        %v4903 = vadd.f32 %v4860, %v4888
        %v4904 = vadd.f32 %v4861, %v4892
        %v4905 = vadd.f32 %v4862, %v4888
        %v4906 = vadd.f32 %v4863, %v4892
        %v4907 = vadd.f32 %v4864, %v4888
        %v4908 = vadd.f32 %v4865, %v4892
        %v4909 = vadd.f32 %v4866, %v4888
        %v4910 = vadd.f32 %v4867, %v4892
        %v4911 = vadd.f32 %v4868, %v4888
        %v4912 = vadd.f32 %v4869, %v4892
        %v4913 = vadd.f32 %v4870, %v4888
        %v4914 = vadd.f32 %v4871, %v4892
        %v4915 = vadd.f32 %v4872, %v4888
        %v4916 = vadd.f32 %v4873, %v4892
        %v4917 = vadd.f32 %v4874, %v4888
        %v4918 = vadd.f32 %v4875, %v4892
        %v4919 = vadd.f32 %v4876, %v4888
        %v4920 = vadd.f32 %v4877, %v4892
        %v4921 = vadd.f32 %v4878, %v4888
        %v4922 = vadd.f32 %v4879, %v4892
        %v4923 = vadd.f32 %v4880, %v4888
        %v4924 = vadd.f32 %v4881, %v4892
        %v4925 = vadd.f32 %v4882, %v4888
        %v4926 = vadd.f32 %v4883, %v4892
        %v4927 = vpack.c.bf16 %v4897, %v4895
        %v4928 = vpack.c.bf16 %v4898, %v4896
        %v4929 = vpack.c.bf16 %v4901, %v4899
        %v4930 = vpack.c.bf16 %v4902, %v4900
        %v4931 = vpack.c.bf16 %v4905, %v4903
        %v4932 = vpack.c.bf16 %v4906, %v4904
        %v4933 = vpack.c.bf16 %v4909, %v4907
        %v4934 = vpack.c.bf16 %v4910, %v4908
        %v4935 = vpack.c.bf16 %v4913, %v4911
        %v4936 = vpack.c.bf16 %v4914, %v4912
        %v4937 = vpack.c.bf16 %v4917, %v4915
        %v4938 = vpack.c.bf16 %v4918, %v4916
        %v4939 = vpack.c.bf16 %v4921, %v4919
        %v4940 = vpack.c.bf16 %v4922, %v4920
        %v4941 = vpack.c.bf16 %v4925, %v4923
        %v4942 = vpack.c.bf16 %v4926, %v4924
        %v4943 = vld [vmem:[#allocation26] sm:$0xff]
        %v4944 = vld [vmem:[#allocation26 + $0x8] sm:$0xff]
        %v4945 = vld [vmem:[#allocation26 + $0x10] sm:$0xff]
        %v4946 = vld [vmem:[#allocation26 + $0x18] sm:$0xff]
        %v4947 = vld [vmem:[#allocation26 + $0x20] sm:$0xff]
        %v4948 = vld [vmem:[#allocation26 + $0x28] sm:$0xff]
        %v4949 = vld [vmem:[#allocation26 + $0x30] sm:$0xff]
        %v4950 = vld [vmem:[#allocation26 + $0x38] sm:$0xff]
        %v4951 = vld [vmem:[#allocation26 + $0x40] sm:$0xff]
        %v4952 = vld [vmem:[#allocation26 + $0x48] sm:$0xff]
        %v4953 = vld [vmem:[#allocation26 + $0x50] sm:$0xff]
        %v4954 = vld [vmem:[#allocation26 + $0x58] sm:$0xff]
        %v4955 = vld [vmem:[#allocation26 + $0x60] sm:$0xff]
        %v4956 = vld [vmem:[#allocation26 + $0x68] sm:$0xff]
        %v4957 = vld [vmem:[#allocation26 + $0x70] sm:$0xff]
        %v4958 = vld [vmem:[#allocation26 + $0x78] sm:$0xff]
        %v4959 = vld [vmem:[#allocation26 + $0x80] sm:$0xff]
        %v4960 = vld [vmem:[#allocation26 + $0x88] sm:$0xff]
        %v4961 = vld [vmem:[#allocation26 + $0x90] sm:$0xff]
        %v4962 = vld [vmem:[#allocation26 + $0x98] sm:$0xff]
        %v4963 = vld [vmem:[#allocation26 + $0xa0] sm:$0xff]
        %v4964 = vld [vmem:[#allocation26 + $0xa8] sm:$0xff]
        %v4965 = vld [vmem:[#allocation26 + $0xb0] sm:$0xff]
        %v4966 = vld [vmem:[#allocation26 + $0xb8] sm:$0xff]
        %v4967 = vld [vmem:[#allocation26 + $0xc0] sm:$0xff]
        %v4968 = vld [vmem:[#allocation26 + $0xc8] sm:$0xff]
        %v4969 = vld [vmem:[#allocation26 + $0xd0] sm:$0xff]
        %v4970 = vld [vmem:[#allocation26 + $0xd8] sm:$0xff]
        %v4971 = vld [vmem:[#allocation26 + $0xe0] sm:$0xff]
        %v4972 = vld [vmem:[#allocation26 + $0xe8] sm:$0xff]
        %v4973 = vld [vmem:[#allocation26 + $0xf0] sm:$0xff]
        %v4974 = vld [vmem:[#allocation26 + $0xf8] sm:$0xff]
        %v4975 = vld [vmem:[#allocation26 + $0x100] sm:$0xff]
        %v4976 = vld [vmem:[#allocation26 + $0x108] sm:$0xff]
        %v4977 = vld [vmem:[#allocation26 + $0x110] sm:$0xff]
        %v4978 = vld [vmem:[#allocation26 + $0x118] sm:$0xff]
        %v4979 = vld [vmem:[#allocation26 + $0x120] sm:$0xff]
        %v4980 = vld [vmem:[#allocation26 + $0x128] sm:$0xff]
        %v4981 = vld [vmem:[#allocation26 + $0x130] sm:$0xff]
        %v4982 = vld [vmem:[#allocation26 + $0x138] sm:$0xff]
        %v4983 = vld [vmem:[#allocation26 + $0x140] sm:$0xff]
        %v4984 = vld [vmem:[#allocation26 + $0x148] sm:$0xff]
        %v4985 = vld [vmem:[#allocation26 + $0x150] sm:$0xff]
        %v4986 = vld [vmem:[#allocation26 + $0x158] sm:$0xff]
        %v4987 = vld [vmem:[#allocation26 + $0x160] sm:$0xff]
        %v4988 = vld [vmem:[#allocation26 + $0x168] sm:$0xff]
        %v4989 = vld [vmem:[#allocation26 + $0x170] sm:$0xff]
        %v4990 = vld [vmem:[#allocation26 + $0x178] sm:$0xff]
        %v4991 = vld [vmem:[#allocation26 + $0x180] sm:$0xff]
        %v4992 = vld [vmem:[#allocation26 + $0x188] sm:$0xff]
        %v4993 = vld [vmem:[#allocation26 + $0x190] sm:$0xff]
        %v4994 = vld [vmem:[#allocation26 + $0x198] sm:$0xff]
        %v4995 = vld [vmem:[#allocation26 + $0x1a0] sm:$0xff]
        %v4996 = vld [vmem:[#allocation26 + $0x1a8] sm:$0xff]
        %v4997 = vld [vmem:[#allocation26 + $0x1b0] sm:$0xff]
        %v4998 = vld [vmem:[#allocation26 + $0x1b8] sm:$0xff]
        %v4999 = vld [vmem:[#allocation26 + $0x1c0] sm:$0xff]
        %v5000 = vld [vmem:[#allocation26 + $0x1c8] sm:$0xff]
        %v5001 = vld [vmem:[#allocation26 + $0x1d0] sm:$0xff]
        %v5002 = vld [vmem:[#allocation26 + $0x1d8] sm:$0xff]
        %v5003 = vld [vmem:[#allocation26 + $0x1e0] sm:$0xff]
        %v5004 = vld [vmem:[#allocation26 + $0x1e8] sm:$0xff]
        %v5005 = vld [vmem:[#allocation26 + $0x1f0] sm:$0xff]
        %v5006 = vld [vmem:[#allocation26 + $0x1f8] sm:$0xff]
        %v5007 = vld [vmem:[#allocation28] sm:$0xf]
        %v5009 = vlaneseq
        %v5010 = vshrl.u32 %v5009, 7
        %v5011 = vsub.s32 0, %v5010
        %v5012 = vrot.slane %v5007, %v5011
        %v5013 = vlaneseq
        %v5014 = vshrl.u32 %v5013, 7
        %v5015 = vsub.s32 1, %v5014
        %v5016 = vrot.slane %v5007, %v5015
        %v5017 = vlaneseq
        %v5018 = vshrl.u32 %v5017, 7
        %v5019 = vsub.s32 2, %v5018
        %v5020 = vrot.slane %v5007, %v5019
        %v5021 = vlaneseq
        %v5022 = vshrl.u32 %v5021, 7
        %v5023 = vsub.s32 3, %v5022
        %v5024 = vrot.slane %v5007, %v5023
        %v5093 = vunpack.c.l.b16 %v4943
        %v5094 = vunpack.c.h.b16 %v4943
        %v5095 = vunpack.c.l.b16 %v4944
        %v5096 = vunpack.c.h.b16 %v4944
        %v5097 = vunpack.c.l.b16 %v4945
        %v5098 = vunpack.c.h.b16 %v4945
        %v5099 = vunpack.c.l.b16 %v4946
        %v5100 = vunpack.c.h.b16 %v4946
        %v5101 = vunpack.c.l.b16 %v4947
        %v5102 = vunpack.c.h.b16 %v4947
        %v5103 = vunpack.c.l.b16 %v4948
        %v5104 = vunpack.c.h.b16 %v4948
        %v5105 = vunpack.c.l.b16 %v4949
        %v5106 = vunpack.c.h.b16 %v4949
        %v5107 = vunpack.c.l.b16 %v4950
        %v5108 = vunpack.c.h.b16 %v4950
        %v5109 = vunpack.c.l.b16 %v4951
        %v5110 = vunpack.c.h.b16 %v4951
        %v5111 = vunpack.c.l.b16 %v4952
        %v5112 = vunpack.c.h.b16 %v4952
        %v5113 = vunpack.c.l.b16 %v4953
        %v5114 = vunpack.c.h.b16 %v4953
        %v5115 = vunpack.c.l.b16 %v4954
        %v5116 = vunpack.c.h.b16 %v4954
        %v5117 = vunpack.c.l.b16 %v4955
        %v5118 = vunpack.c.h.b16 %v4955
        %v5119 = vunpack.c.l.b16 %v4956
        %v5120 = vunpack.c.h.b16 %v4956
        %v5121 = vunpack.c.l.b16 %v4957
        %v5122 = vunpack.c.h.b16 %v4957
        %v5123 = vunpack.c.l.b16 %v4958
        %v5124 = vunpack.c.h.b16 %v4958
        %v5125 = vunpack.c.l.b16 %v4959
        %v5126 = vunpack.c.h.b16 %v4959
        %v5127 = vunpack.c.l.b16 %v4960
        %v5128 = vunpack.c.h.b16 %v4960
        %v5129 = vunpack.c.l.b16 %v4961
        %v5130 = vunpack.c.h.b16 %v4961
        %v5131 = vunpack.c.l.b16 %v4962
        %v5132 = vunpack.c.h.b16 %v4962
        %v5133 = vunpack.c.l.b16 %v4963
        %v5134 = vunpack.c.h.b16 %v4963
        %v5135 = vunpack.c.l.b16 %v4964
        %v5136 = vunpack.c.h.b16 %v4964
        %v5137 = vunpack.c.l.b16 %v4965
        %v5138 = vunpack.c.h.b16 %v4965
        %v5139 = vunpack.c.l.b16 %v4966
        %v5140 = vunpack.c.h.b16 %v4966
        %v5141 = vunpack.c.l.b16 %v4967
        %v5142 = vunpack.c.h.b16 %v4967
        %v5143 = vunpack.c.l.b16 %v4968
        %v5144 = vunpack.c.h.b16 %v4968
        %v5145 = vunpack.c.l.b16 %v4969
        %v5146 = vunpack.c.h.b16 %v4969
        %v5147 = vunpack.c.l.b16 %v4970
        %v5148 = vunpack.c.h.b16 %v4970
        %v5149 = vunpack.c.l.b16 %v4971
        %v5150 = vunpack.c.h.b16 %v4971
        %v5151 = vunpack.c.l.b16 %v4972
        %v5152 = vunpack.c.h.b16 %v4972
        %v5153 = vunpack.c.l.b16 %v4973
        %v5154 = vunpack.c.h.b16 %v4973
        %v5155 = vunpack.c.l.b16 %v4974
        %v5156 = vunpack.c.h.b16 %v4974
        %v5157 = vunpack.c.l.b16 %v4975
        %v5158 = vunpack.c.h.b16 %v4975
        %v5159 = vunpack.c.l.b16 %v4976
        %v5160 = vunpack.c.h.b16 %v4976
        %v5161 = vunpack.c.l.b16 %v4977
        %v5162 = vunpack.c.h.b16 %v4977
        %v5163 = vunpack.c.l.b16 %v4978
        %v5164 = vunpack.c.h.b16 %v4978
        %v5165 = vunpack.c.l.b16 %v4979
        %v5166 = vunpack.c.h.b16 %v4979
        %v5167 = vunpack.c.l.b16 %v4980
        %v5168 = vunpack.c.h.b16 %v4980
        %v5169 = vunpack.c.l.b16 %v4981
        %v5170 = vunpack.c.h.b16 %v4981
        %v5171 = vunpack.c.l.b16 %v4982
        %v5172 = vunpack.c.h.b16 %v4982
        %v5173 = vunpack.c.l.b16 %v4983
        %v5174 = vunpack.c.h.b16 %v4983
        %v5175 = vunpack.c.l.b16 %v4984
        %v5176 = vunpack.c.h.b16 %v4984
        %v5177 = vunpack.c.l.b16 %v4985
        %v5178 = vunpack.c.h.b16 %v4985
        %v5179 = vunpack.c.l.b16 %v4986
        %v5180 = vunpack.c.h.b16 %v4986
        %v5181 = vunpack.c.l.b16 %v4987
        %v5182 = vunpack.c.h.b16 %v4987
        %v5183 = vunpack.c.l.b16 %v4988
        %v5184 = vunpack.c.h.b16 %v4988
        %v5185 = vunpack.c.l.b16 %v4989
        %v5186 = vunpack.c.h.b16 %v4989
        %v5187 = vunpack.c.l.b16 %v4990
        %v5188 = vunpack.c.h.b16 %v4990
        %v5189 = vunpack.c.l.b16 %v4991
        %v5190 = vunpack.c.h.b16 %v4991
        %v5191 = vunpack.c.l.b16 %v4992
        %v5192 = vunpack.c.h.b16 %v4992
        %v5193 = vunpack.c.l.b16 %v4993
        %v5194 = vunpack.c.h.b16 %v4993
        %v5195 = vunpack.c.l.b16 %v4994
        %v5196 = vunpack.c.h.b16 %v4994
        %v5197 = vunpack.c.l.b16 %v4995
        %v5198 = vunpack.c.h.b16 %v4995
        %v5199 = vunpack.c.l.b16 %v4996
        %v5200 = vunpack.c.h.b16 %v4996
        %v5201 = vunpack.c.l.b16 %v4997
        %v5202 = vunpack.c.h.b16 %v4997
        %v5203 = vunpack.c.l.b16 %v4998
        %v5204 = vunpack.c.h.b16 %v4998
        %v5205 = vunpack.c.l.b16 %v4999
        %v5206 = vunpack.c.h.b16 %v4999
        %v5207 = vunpack.c.l.b16 %v5000
        %v5208 = vunpack.c.h.b16 %v5000
        %v5209 = vunpack.c.l.b16 %v5001
        %v5210 = vunpack.c.h.b16 %v5001
        %v5211 = vunpack.c.l.b16 %v5002
        %v5212 = vunpack.c.h.b16 %v5002
        %v5213 = vunpack.c.l.b16 %v5003
        %v5214 = vunpack.c.h.b16 %v5003
        %v5215 = vunpack.c.l.b16 %v5004
        %v5216 = vunpack.c.h.b16 %v5004
        %v5217 = vunpack.c.l.b16 %v5005
        %v5218 = vunpack.c.h.b16 %v5005
        %v5219 = vunpack.c.l.b16 %v5006
        %v5220 = vunpack.c.h.b16 %v5006
        %v5221 = vpack.c.b16 %v5097, %v5093
        %v5222 = vpack.c.b16 %v5098, %v5094
        %v5223 = vpack.c.b16 %v5099, %v5095
        %v5224 = vpack.c.b16 %v5100, %v5096
        %v5225 = vpack.c.b16 %v5105, %v5101
        %v5226 = vpack.c.b16 %v5106, %v5102
        %v5227 = vpack.c.b16 %v5107, %v5103
        %v5228 = vpack.c.b16 %v5108, %v5104
        %v5229 = vpack.c.b16 %v5113, %v5109
        %v5230 = vpack.c.b16 %v5114, %v5110
        %v5231 = vpack.c.b16 %v5115, %v5111
        %v5232 = vpack.c.b16 %v5116, %v5112
        %v5233 = vpack.c.b16 %v5121, %v5117
        %v5234 = vpack.c.b16 %v5122, %v5118
        %v5235 = vpack.c.b16 %v5123, %v5119
        %v5236 = vpack.c.b16 %v5124, %v5120
        %v5237 = vpack.c.b16 %v5129, %v5125
        %v5238 = vpack.c.b16 %v5130, %v5126
        %v5239 = vpack.c.b16 %v5131, %v5127
        %v5240 = vpack.c.b16 %v5132, %v5128
        %v5241 = vpack.c.b16 %v5137, %v5133
        %v5242 = vpack.c.b16 %v5138, %v5134
        %v5243 = vpack.c.b16 %v5139, %v5135
        %v5244 = vpack.c.b16 %v5140, %v5136
        %v5245 = vpack.c.b16 %v5145, %v5141
        %v5246 = vpack.c.b16 %v5146, %v5142
        %v5247 = vpack.c.b16 %v5147, %v5143
        %v5248 = vpack.c.b16 %v5148, %v5144
        %v5249 = vpack.c.b16 %v5153, %v5149
        %v5250 = vpack.c.b16 %v5154, %v5150
        %v5251 = vpack.c.b16 %v5155, %v5151
        %v5252 = vpack.c.b16 %v5156, %v5152
        %v5253 = vpack.c.b16 %v5161, %v5157
        %v5254 = vpack.c.b16 %v5162, %v5158
        %v5255 = vpack.c.b16 %v5163, %v5159
        %v5256 = vpack.c.b16 %v5164, %v5160
        %v5257 = vpack.c.b16 %v5169, %v5165
        %v5258 = vpack.c.b16 %v5170, %v5166
        %v5259 = vpack.c.b16 %v5171, %v5167
        %v5260 = vpack.c.b16 %v5172, %v5168
        %v5261 = vpack.c.b16 %v5177, %v5173
        %v5262 = vpack.c.b16 %v5178, %v5174
        %v5263 = vpack.c.b16 %v5179, %v5175
        %v5264 = vpack.c.b16 %v5180, %v5176
        %v5265 = vpack.c.b16 %v5185, %v5181
        %v5266 = vpack.c.b16 %v5186, %v5182
        %v5267 = vpack.c.b16 %v5187, %v5183
        %v5268 = vpack.c.b16 %v5188, %v5184
        %v5269 = vpack.c.b16 %v5193, %v5189
        %v5270 = vpack.c.b16 %v5194, %v5190
        %v5271 = vpack.c.b16 %v5195, %v5191
        %v5272 = vpack.c.b16 %v5196, %v5192
        %v5273 = vpack.c.b16 %v5201, %v5197
        %v5274 = vpack.c.b16 %v5202, %v5198
        %v5275 = vpack.c.b16 %v5203, %v5199
        %v5276 = vpack.c.b16 %v5204, %v5200
        %v5277 = vpack.c.b16 %v5209, %v5205
        %v5278 = vpack.c.b16 %v5210, %v5206
        %v5279 = vpack.c.b16 %v5211, %v5207
        %v5280 = vpack.c.b16 %v5212, %v5208
        %v5281 = vpack.c.b16 %v5217, %v5213
        %v5282 = vpack.c.b16 %v5218, %v5214
        %v5283 = vpack.c.b16 %v5219, %v5215
        %v5284 = vpack.c.b16 %v5220, %v5216
        %5349 = vmatprep.subr.bf16.mxu0 %v5222
        %5350 = vmatpush1.bf16.msra.mxu0 %v5221
        %5351 = vmatprep.subr.bf16.mxu0 %v5226
        %5352 = vmatpush1.bf16.msra.mxu0 %v5225
        %5353 = vmatprep.subr.bf16.mxu0 %v5230
        %5354 = vmatpush1.bf16.msra.mxu0 %v5229
        %5355 = vmatprep.subr.bf16.mxu0 %v5234
        %5356 = vmatpush1.bf16.msra.mxu0 %v5233
        %5357 = vmatprep.subr.bf16.mxu0 %v5238
        %5358 = vmatpush1.bf16.msra.mxu0 %v5237
        %5359 = vmatprep.subr.bf16.mxu0 %v5242
        %5360 = vmatpush1.bf16.msra.mxu0 %v5241
        %5361 = vmatprep.subr.bf16.mxu0 %v5246
        %5362 = vmatpush1.bf16.msra.mxu0 %v5245
        %5363 = vmatprep.subr.bf16.mxu0 %v5250
        %5364 = vmatpush1.bf16.msra.mxu0 %v5249
        %5365 = vmatprep.subr.bf16.mxu0 %v5254
        %5366 = vmatpush1.bf16.msra.mxu0 %v5253
        %5367 = vmatprep.subr.bf16.mxu0 %v5258
        %5368 = vmatpush1.bf16.msra.mxu0 %v5257
        %5369 = vmatprep.subr.bf16.mxu0 %v5262
        %5370 = vmatpush1.bf16.msra.mxu0 %v5261
        %5371 = vmatprep.subr.bf16.mxu0 %v5266
        %5372 = vmatpush1.bf16.msra.mxu0 %v5265
        %5373 = vmatprep.subr.bf16.mxu0 %v5270
        %5374 = vmatpush1.bf16.msra.mxu0 %v5269
        %5375 = vmatprep.subr.bf16.mxu0 %v5274
        %5376 = vmatpush1.bf16.msra.mxu0 %v5273
        %5377 = vmatprep.subr.bf16.mxu0 %v5278
        %5378 = vmatpush1.bf16.msra.mxu0 %v5277
        %5379 = vmatprep.subr.bf16.mxu0 %v5282
        %5380 = vmatpush1.bf16.msra.mxu0 %v5281
        %5381 = vmatprep.mubr.bf16.mxu0 %v4928
        %5382 = vmatmul.mubr.bf16.gmra.mrb[0].mxu0 %v4927
        %v5383 = vpop.f32.mrb[0].mxu0
        %v5384 = vadd.f32 %v5012, %v5383
        %v5385 = vpop.f32.mrb[0].mxu0
        %v5386 = vadd.f32 %v5016, %v5385
        %v5387 = vpop.f32.mrb[0].mxu0
        %v5388 = vadd.f32 %v5012, %v5387
        %v5389 = vpop.f32.mrb[0].mxu0
        %v5390 = vadd.f32 %v5016, %v5389
        %5391 = vmatprep.mubr.bf16.mxu0 %v4930
        %5392 = vmatmul.mubr.bf16.gmra.mrb[0].mxu0 %v4929
        %v5393 = vpop.f32.mrb[0].mxu0
        %v5394 = vadd.f32 %v5012, %v5393
        %v5395 = vpop.f32.mrb[0].mxu0
        %v5396 = vadd.f32 %v5016, %v5395
        %v5397 = vpop.f32.mrb[0].mxu0
        %v5398 = vadd.f32 %v5012, %v5397
        %v5399 = vpop.f32.mrb[0].mxu0
        %v5400 = vadd.f32 %v5016, %v5399
        %5401 = vmatprep.mubr.bf16.mxu0 %v4932
        %5402 = vmatmul.mubr.bf16.gmra.mrb[0].mxu0 %v4931
        %v5403 = vpop.f32.mrb[0].mxu0
        %v5404 = vadd.f32 %v5012, %v5403
        %v5405 = vpop.f32.mrb[0].mxu0
        %v5406 = vadd.f32 %v5016, %v5405
        %v5407 = vpop.f32.mrb[0].mxu0
        %v5408 = vadd.f32 %v5012, %v5407
        %v5409 = vpop.f32.mrb[0].mxu0
        %v5410 = vadd.f32 %v5016, %v5409
        %5411 = vmatprep.mubr.bf16.mxu0 %v4934
        %5412 = vmatmul.mubr.bf16.gmra.mrb[0].mxu0 %v4933
        %v5413 = vpop.f32.mrb[0].mxu0
        %v5414 = vadd.f32 %v5012, %v5413
        %v5415 = vpop.f32.mrb[0].mxu0
        %v5416 = vadd.f32 %v5016, %v5415
        %v5417 = vpop.f32.mrb[0].mxu0
        %v5418 = vadd.f32 %v5012, %v5417
        %v5419 = vpop.f32.mrb[0].mxu0
        %v5420 = vadd.f32 %v5016, %v5419
        %5421 = vmatprep.mubr.bf16.mxu0 %v4936
        %5422 = vmatmul.mubr.bf16.gmra.mrb[0].mxu0 %v4935
        %v5423 = vpop.f32.mrb[0].mxu0
        %v5424 = vadd.f32 %v5012, %v5423
        %v5425 = vpop.f32.mrb[0].mxu0
        %v5426 = vadd.f32 %v5016, %v5425
        %v5427 = vpop.f32.mrb[0].mxu0
        %v5428 = vadd.f32 %v5012, %v5427
        %v5429 = vpop.f32.mrb[0].mxu0
        %v5430 = vadd.f32 %v5016, %v5429
        %5431 = vmatprep.mubr.bf16.mxu0 %v4938
        %5432 = vmatmul.mubr.bf16.gmra.mrb[0].mxu0 %v4937
        %v5433 = vpop.f32.mrb[0].mxu0
        %v5434 = vadd.f32 %v5012, %v5433
        %v5435 = vpop.f32.mrb[0].mxu0
        %v5436 = vadd.f32 %v5016, %v5435
        %v5437 = vpop.f32.mrb[0].mxu0
        %v5438 = vadd.f32 %v5012, %v5437
        %v5439 = vpop.f32.mrb[0].mxu0
        %v5440 = vadd.f32 %v5016, %v5439
        %5441 = vmatprep.mubr.bf16.mxu0 %v4940
        %5442 = vmatmul.mubr.bf16.gmra.mrb[0].mxu0 %v4939
        %v5443 = vpop.f32.mrb[0].mxu0
        %v5444 = vadd.f32 %v5012, %v5443
        %v5445 = vpop.f32.mrb[0].mxu0
        %v5446 = vadd.f32 %v5016, %v5445
        %v5447 = vpop.f32.mrb[0].mxu0
        %v5448 = vadd.f32 %v5012, %v5447
        %v5449 = vpop.f32.mrb[0].mxu0
        %v5450 = vadd.f32 %v5016, %v5449
        %5451 = vmatprep.mubr.bf16.mxu0 %v4942
        %5452 = vmatmul.mubr.bf16.gmra.mrb[0].mxu0 %v4941
        %v5453 = vpop.f32.mrb[0].mxu0
        %v5454 = vadd.f32 %v5012, %v5453
        %v5455 = vpop.f32.mrb[0].mxu0
        %v5456 = vadd.f32 %v5016, %v5455
        %v5457 = vpop.f32.mrb[0].mxu0
        %v5458 = vadd.f32 %v5012, %v5457
        %v5459 = vpop.f32.mrb[0].mxu0
        %v5460 = vadd.f32 %v5016, %v5459
        %5461 = vdwg.mxu0
        %5462 = vmatprep.subr.bf16.mxu0 %v5224
        %5463 = vmatpush1.bf16.msra.mxu0 %v5223
        %5464 = vmatprep.subr.bf16.mxu0 %v5228
        %5465 = vmatpush1.bf16.msra.mxu0 %v5227
        %5466 = vmatprep.subr.bf16.mxu0 %v5232
        %5467 = vmatpush1.bf16.msra.mxu0 %v5231
        %5468 = vmatprep.subr.bf16.mxu0 %v5236
        %5469 = vmatpush1.bf16.msra.mxu0 %v5235
        %5470 = vmatprep.subr.bf16.mxu0 %v5240
        %5471 = vmatpush1.bf16.msra.mxu0 %v5239
        %5472 = vmatprep.subr.bf16.mxu0 %v5244
        %5473 = vmatpush1.bf16.msra.mxu0 %v5243
        %5474 = vmatprep.subr.bf16.mxu0 %v5248
        %5475 = vmatpush1.bf16.msra.mxu0 %v5247
        %5476 = vmatprep.subr.bf16.mxu0 %v5252
        %5477 = vmatpush1.bf16.msra.mxu0 %v5251
        %5478 = vmatprep.subr.bf16.mxu0 %v5256
        %5479 = vmatpush1.bf16.msra.mxu0 %v5255
        %5480 = vmatprep.subr.bf16.mxu0 %v5260
        %5481 = vmatpush1.bf16.msra.mxu0 %v5259
        %5482 = vmatprep.subr.bf16.mxu0 %v5264
        %5483 = vmatpush1.bf16.msra.mxu0 %v5263
        %5484 = vmatprep.subr.bf16.mxu0 %v5268
        %5485 = vmatpush1.bf16.msra.mxu0 %v5267
        %5486 = vmatprep.subr.bf16.mxu0 %v5272
        %5487 = vmatpush1.bf16.msra.mxu0 %v5271
        %5488 = vmatprep.subr.bf16.mxu0 %v5276
        %5489 = vmatpush1.bf16.msra.mxu0 %v5275
        %5490 = vmatprep.subr.bf16.mxu0 %v5280
        %5491 = vmatpush1.bf16.msra.mxu0 %v5279
        %5492 = vmatprep.subr.bf16.mxu0 %v5284
        %5493 = vmatpush1.bf16.msra.mxu0 %v5283
        %5494 = vmatprep.mubr.bf16.mxu0 %v4928
        %5495 = vmatmul.mubr.bf16.gmra.mrb[0].mxu0 %v4927
        %v5496 = vpop.f32.mrb[0].mxu0
        %v5497 = vadd.f32 %v5020, %v5496
        %v5498 = vpop.f32.mrb[0].mxu0
        %v5499 = vadd.f32 %v5024, %v5498
        %v5500 = vpop.f32.mrb[0].mxu0
        %v5501 = vadd.f32 %v5020, %v5500
        %v5502 = vpop.f32.mrb[0].mxu0
        %v5503 = vadd.f32 %v5024, %v5502
        %5504 = vmatprep.mubr.bf16.mxu0 %v4930
        %5505 = vmatmul.mubr.bf16.gmra.mrb[0].mxu0 %v4929
        %v5506 = vpop.f32.mrb[0].mxu0
        %v5507 = vadd.f32 %v5020, %v5506
        %v5508 = vpop.f32.mrb[0].mxu0
        %v5509 = vadd.f32 %v5024, %v5508
        %v5510 = vpop.f32.mrb[0].mxu0
        %v5511 = vadd.f32 %v5020, %v5510
        %v5512 = vpop.f32.mrb[0].mxu0
        %v5513 = vadd.f32 %v5024, %v5512
        %5514 = vmatprep.mubr.bf16.mxu0 %v4932
        %5515 = vmatmul.mubr.bf16.gmra.mrb[0].mxu0 %v4931
        %v5516 = vpop.f32.mrb[0].mxu0
        %v5517 = vadd.f32 %v5020, %v5516
        %v5518 = vpop.f32.mrb[0].mxu0
        %v5519 = vadd.f32 %v5024, %v5518
        %v5520 = vpop.f32.mrb[0].mxu0
        %v5521 = vadd.f32 %v5020, %v5520
        %v5522 = vpop.f32.mrb[0].mxu0
        %v5523 = vadd.f32 %v5024, %v5522
        %5524 = vmatprep.mubr.bf16.mxu0 %v4934
        %5525 = vmatmul.mubr.bf16.gmra.mrb[0].mxu0 %v4933
        %v5526 = vpop.f32.mrb[0].mxu0
        %v5527 = vadd.f32 %v5020, %v5526
        %v5528 = vpop.f32.mrb[0].mxu0
        %v5529 = vadd.f32 %v5024, %v5528
        %v5530 = vpop.f32.mrb[0].mxu0
        %v5531 = vadd.f32 %v5020, %v5530
        %v5532 = vpop.f32.mrb[0].mxu0
        %v5533 = vadd.f32 %v5024, %v5532
        %5534 = vmatprep.mubr.bf16.mxu0 %v4936
        %5535 = vmatmul.mubr.bf16.gmra.mrb[0].mxu0 %v4935
        %v5536 = vpop.f32.mrb[0].mxu0
        %v5537 = vadd.f32 %v5020, %v5536
        %v5538 = vpop.f32.mrb[0].mxu0
        %v5539 = vadd.f32 %v5024, %v5538
        %v5540 = vpop.f32.mrb[0].mxu0
        %v5541 = vadd.f32 %v5020, %v5540
        %v5542 = vpop.f32.mrb[0].mxu0
        %v5543 = vadd.f32 %v5024, %v5542
        %5544 = vmatprep.mubr.bf16.mxu0 %v4938
        %5545 = vmatmul.mubr.bf16.gmra.mrb[0].mxu0 %v4937
        %v5546 = vpop.f32.mrb[0].mxu0
        %v5547 = vadd.f32 %v5020, %v5546
        %v5548 = vpop.f32.mrb[0].mxu0
        %v5549 = vadd.f32 %v5024, %v5548
        %v5550 = vpop.f32.mrb[0].mxu0
        %v5551 = vadd.f32 %v5020, %v5550
        %v5552 = vpop.f32.mrb[0].mxu0
        %v5553 = vadd.f32 %v5024, %v5552
        %5554 = vmatprep.mubr.bf16.mxu0 %v4940
        %5555 = vmatmul.mubr.bf16.gmra.mrb[0].mxu0 %v4939
        %v5556 = vpop.f32.mrb[0].mxu0
        %v5557 = vadd.f32 %v5020, %v5556
        %v5558 = vpop.f32.mrb[0].mxu0
        %v5559 = vadd.f32 %v5024, %v5558
        %v5560 = vpop.f32.mrb[0].mxu0
        %v5561 = vadd.f32 %v5020, %v5560
        %v5562 = vpop.f32.mrb[0].mxu0
        %v5563 = vadd.f32 %v5024, %v5562
        %5564 = vmatprep.mubr.bf16.mxu0 %v4942
        %5565 = vmatmul.mubr.bf16.gmra.mrb[0].mxu0 %v4941
        %v5566 = vpop.f32.mrb[0].mxu0
        %v5567 = vadd.f32 %v5020, %v5566
        %v5568 = vpop.f32.mrb[0].mxu0
        %v5569 = vadd.f32 %v5024, %v5568
        %v5570 = vpop.f32.mrb[0].mxu0
        %v5571 = vadd.f32 %v5020, %v5570
        %v5572 = vpop.f32.mrb[0].mxu0
        %v5573 = vadd.f32 %v5024, %v5572
        %5574 = vdwg.mxu0
        %v5575 = vmax.f32 %v5384, 0.0
        %v5576 = vmax.f32 %v5386, 0.0
        %v5577 = vmax.f32 %v5497, 0.0
        %v5578 = vmax.f32 %v5499, 0.0
        %v5579 = vmax.f32 %v5388, 0.0
        %v5580 = vmax.f32 %v5390, 0.0
        %v5581 = vmax.f32 %v5501, 0.0
        %v5582 = vmax.f32 %v5503, 0.0
        %v5583 = vmax.f32 %v5394, 0.0
        %v5584 = vmax.f32 %v5396, 0.0
        %v5585 = vmax.f32 %v5507, 0.0
        %v5586 = vmax.f32 %v5509, 0.0
        %v5587 = vmax.f32 %v5398, 0.0
        %v5588 = vmax.f32 %v5400, 0.0
        %v5589 = vmax.f32 %v5511, 0.0
        %v5590 = vmax.f32 %v5513, 0.0
        %v5591 = vmax.f32 %v5404, 0.0
        %v5592 = vmax.f32 %v5406, 0.0
        %v5593 = vmax.f32 %v5517, 0.0
        %v5594 = vmax.f32 %v5519, 0.0
        %v5595 = vmax.f32 %v5408, 0.0
        %v5596 = vmax.f32 %v5410, 0.0
        %v5597 = vmax.f32 %v5521, 0.0
        %v5598 = vmax.f32 %v5523, 0.0
        %v5599 = vmax.f32 %v5414, 0.0
        %v5600 = vmax.f32 %v5416, 0.0
        %v5601 = vmax.f32 %v5527, 0.0
        %v5602 = vmax.f32 %v5529, 0.0
        %v5603 = vmax.f32 %v5418, 0.0
        %v5604 = vmax.f32 %v5420, 0.0
        %v5605 = vmax.f32 %v5531, 0.0
        %v5606 = vmax.f32 %v5533, 0.0
        %v5607 = vmax.f32 %v5424, 0.0
        %v5608 = vmax.f32 %v5426, 0.0
        %v5609 = vmax.f32 %v5537, 0.0
        %v5610 = vmax.f32 %v5539, 0.0
        %v5611 = vmax.f32 %v5428, 0.0
        %v5612 = vmax.f32 %v5430, 0.0
        %v5613 = vmax.f32 %v5541, 0.0
        %v5614 = vmax.f32 %v5543, 0.0
        %v5615 = vmax.f32 %v5434, 0.0
        %v5616 = vmax.f32 %v5436, 0.0
        %v5617 = vmax.f32 %v5547, 0.0
        %v5618 = vmax.f32 %v5549, 0.0
        %v5619 = vmax.f32 %v5438, 0.0
        %v5620 = vmax.f32 %v5440, 0.0
        %v5621 = vmax.f32 %v5551, 0.0
        %v5622 = vmax.f32 %v5553, 0.0
        %v5623 = vmax.f32 %v5444, 0.0
        %v5624 = vmax.f32 %v5446, 0.0
        %v5625 = vmax.f32 %v5557, 0.0
        %v5626 = vmax.f32 %v5559, 0.0
        %v5627 = vmax.f32 %v5448, 0.0
        %v5628 = vmax.f32 %v5450, 0.0
        %v5629 = vmax.f32 %v5561, 0.0
        %v5630 = vmax.f32 %v5563, 0.0
        %v5631 = vmax.f32 %v5454, 0.0
        %v5632 = vmax.f32 %v5456, 0.0
        %v5633 = vmax.f32 %v5567, 0.0
        %v5634 = vmax.f32 %v5569, 0.0
        %v5635 = vmax.f32 %v5458, 0.0
        %v5636 = vmax.f32 %v5460, 0.0
        %v5637 = vmax.f32 %v5571, 0.0
        %v5638 = vmax.f32 %v5573, 0.0
        %v5639 = vpack.c.bf16 %v5579, %v5575
        %v5640 = vpack.c.bf16 %v5580, %v5576
        %v5641 = vpack.c.bf16 %v5581, %v5577
        %v5642 = vpack.c.bf16 %v5582, %v5578
        %v5643 = vpack.c.bf16 %v5587, %v5583
        %v5644 = vpack.c.bf16 %v5588, %v5584
        %v5645 = vpack.c.bf16 %v5589, %v5585
        %v5646 = vpack.c.bf16 %v5590, %v5586
        %v5647 = vpack.c.bf16 %v5595, %v5591
        %v5648 = vpack.c.bf16 %v5596, %v5592
        %v5649 = vpack.c.bf16 %v5597, %v5593
        %v5650 = vpack.c.bf16 %v5598, %v5594
        %v5651 = vpack.c.bf16 %v5603, %v5599
        %v5652 = vpack.c.bf16 %v5604, %v5600
        %v5653 = vpack.c.bf16 %v5605, %v5601
        %v5654 = vpack.c.bf16 %v5606, %v5602
        %v5655 = vpack.c.bf16 %v5611, %v5607
        %v5656 = vpack.c.bf16 %v5612, %v5608
        %v5657 = vpack.c.bf16 %v5613, %v5609
        %v5658 = vpack.c.bf16 %v5614, %v5610
        %v5659 = vpack.c.bf16 %v5619, %v5615
        %v5660 = vpack.c.bf16 %v5620, %v5616
        %v5661 = vpack.c.bf16 %v5621, %v5617
        %v5662 = vpack.c.bf16 %v5622, %v5618
        %v5663 = vpack.c.bf16 %v5627, %v5623
        %v5664 = vpack.c.bf16 %v5628, %v5624
        %v5665 = vpack.c.bf16 %v5629, %v5625
        %v5666 = vpack.c.bf16 %v5630, %v5626
        %v5667 = vpack.c.bf16 %v5635, %v5631
        %v5668 = vpack.c.bf16 %v5636, %v5632
        %v5669 = vpack.c.bf16 %v5637, %v5633
        %v5670 = vpack.c.bf16 %v5638, %v5634
        %v5671 = vld [vmem:[#allocation29] sm:$0xff]
        %v5672 = vld [vmem:[#allocation29 + $0x8] sm:$0xff]
        %v5673 = vld [vmem:[#allocation29 + $0x10] sm:$0xff]
        %v5674 = vld [vmem:[#allocation29 + $0x18] sm:$0xff]
        %v5675 = vld [vmem:[#allocation29 + $0x20] sm:$0xff]
        %v5676 = vld [vmem:[#allocation29 + $0x28] sm:$0xff]
        %v5677 = vld [vmem:[#allocation29 + $0x30] sm:$0xff]
        %v5678 = vld [vmem:[#allocation29 + $0x38] sm:$0xff]
        %v5679 = vld [vmem:[#allocation29 + $0x40] sm:$0xff]
        %v5680 = vld [vmem:[#allocation29 + $0x48] sm:$0xff]
        %v5681 = vld [vmem:[#allocation29 + $0x50] sm:$0xff]
        %v5682 = vld [vmem:[#allocation29 + $0x58] sm:$0xff]
        %v5683 = vld [vmem:[#allocation29 + $0x60] sm:$0xff]
        %v5684 = vld [vmem:[#allocation29 + $0x68] sm:$0xff]
        %v5685 = vld [vmem:[#allocation29 + $0x70] sm:$0xff]
        %v5686 = vld [vmem:[#allocation29 + $0x78] sm:$0xff]
        %v5687 = vld [vmem:[#allocation29 + $0x80] sm:$0xff]
        %v5688 = vld [vmem:[#allocation29 + $0x88] sm:$0xff]
        %v5689 = vld [vmem:[#allocation29 + $0x90] sm:$0xff]
        %v5690 = vld [vmem:[#allocation29 + $0x98] sm:$0xff]
        %v5691 = vld [vmem:[#allocation29 + $0xa0] sm:$0xff]
        %v5692 = vld [vmem:[#allocation29 + $0xa8] sm:$0xff]
        %v5693 = vld [vmem:[#allocation29 + $0xb0] sm:$0xff]
        %v5694 = vld [vmem:[#allocation29 + $0xb8] sm:$0xff]
        %v5695 = vld [vmem:[#allocation29 + $0xc0] sm:$0xff]
        %v5696 = vld [vmem:[#allocation29 + $0xc8] sm:$0xff]
        %v5697 = vld [vmem:[#allocation29 + $0xd0] sm:$0xff]
        %v5698 = vld [vmem:[#allocation29 + $0xd8] sm:$0xff]
        %v5699 = vld [vmem:[#allocation29 + $0xe0] sm:$0xff]
        %v5700 = vld [vmem:[#allocation29 + $0xe8] sm:$0xff]
        %v5701 = vld [vmem:[#allocation29 + $0xf0] sm:$0xff]
        %v5702 = vld [vmem:[#allocation29 + $0xf8] sm:$0xff]
        %v5703 = vld [vmem:[#allocation29 + $0x100] sm:$0xff]
        %v5704 = vld [vmem:[#allocation29 + $0x108] sm:$0xff]
        %v5705 = vld [vmem:[#allocation29 + $0x110] sm:$0xff]
        %v5706 = vld [vmem:[#allocation29 + $0x118] sm:$0xff]
        %v5707 = vld [vmem:[#allocation29 + $0x120] sm:$0xff]
        %v5708 = vld [vmem:[#allocation29 + $0x128] sm:$0xff]
        %v5709 = vld [vmem:[#allocation29 + $0x130] sm:$0xff]
        %v5710 = vld [vmem:[#allocation29 + $0x138] sm:$0xff]
        %v5711 = vld [vmem:[#allocation29 + $0x140] sm:$0xff]
        %v5712 = vld [vmem:[#allocation29 + $0x148] sm:$0xff]
        %v5713 = vld [vmem:[#allocation29 + $0x150] sm:$0xff]
        %v5714 = vld [vmem:[#allocation29 + $0x158] sm:$0xff]
        %v5715 = vld [vmem:[#allocation29 + $0x160] sm:$0xff]
        %v5716 = vld [vmem:[#allocation29 + $0x168] sm:$0xff]
        %v5717 = vld [vmem:[#allocation29 + $0x170] sm:$0xff]
        %v5718 = vld [vmem:[#allocation29 + $0x178] sm:$0xff]
        %v5719 = vld [vmem:[#allocation29 + $0x180] sm:$0xff]
        %v5720 = vld [vmem:[#allocation29 + $0x188] sm:$0xff]
        %v5721 = vld [vmem:[#allocation29 + $0x190] sm:$0xff]
        %v5722 = vld [vmem:[#allocation29 + $0x198] sm:$0xff]
        %v5723 = vld [vmem:[#allocation29 + $0x1a0] sm:$0xff]
        %v5724 = vld [vmem:[#allocation29 + $0x1a8] sm:$0xff]
        %v5725 = vld [vmem:[#allocation29 + $0x1b0] sm:$0xff]
        %v5726 = vld [vmem:[#allocation29 + $0x1b8] sm:$0xff]
        %v5727 = vld [vmem:[#allocation29 + $0x1c0] sm:$0xff]
        %v5728 = vld [vmem:[#allocation29 + $0x1c8] sm:$0xff]
        %v5729 = vld [vmem:[#allocation29 + $0x1d0] sm:$0xff]
        %v5730 = vld [vmem:[#allocation29 + $0x1d8] sm:$0xff]
        %v5731 = vld [vmem:[#allocation29 + $0x1e0] sm:$0xff]
        %v5732 = vld [vmem:[#allocation29 + $0x1e8] sm:$0xff]
        %v5733 = vld [vmem:[#allocation29 + $0x1f0] sm:$0xff]
        %v5734 = vld [vmem:[#allocation29 + $0x1f8] sm:$0xff]
        %v5735 = vld [vmem:[#allocation31] sm:$0x3]
        %v5737 = vlaneseq
        %v5738 = vshrl.u32 %v5737, 7
        %v5739 = vsub.s32 0, %v5738
        %v5740 = vrot.slane %v5735, %v5739
        %v5741 = vlaneseq
        %v5742 = vshrl.u32 %v5741, 7
        %v5743 = vsub.s32 1, %v5742
        %v5744 = vrot.slane %v5735, %v5743
        %v5811 = vunpack.c.l.b16 %v5671
        %v5812 = vunpack.c.h.b16 %v5671
        %v5813 = vunpack.c.l.b16 %v5672
        %v5814 = vunpack.c.h.b16 %v5672
        %v5815 = vunpack.c.l.b16 %v5673
        %v5816 = vunpack.c.h.b16 %v5673
        %v5817 = vunpack.c.l.b16 %v5674
        %v5818 = vunpack.c.h.b16 %v5674
        %v5819 = vunpack.c.l.b16 %v5675
        %v5820 = vunpack.c.h.b16 %v5675
        %v5821 = vunpack.c.l.b16 %v5676
        %v5822 = vunpack.c.h.b16 %v5676
        %v5823 = vunpack.c.l.b16 %v5677
        %v5824 = vunpack.c.h.b16 %v5677
        %v5825 = vunpack.c.l.b16 %v5678
        %v5826 = vunpack.c.h.b16 %v5678
        %v5827 = vunpack.c.l.b16 %v5679
        %v5828 = vunpack.c.h.b16 %v5679
        %v5829 = vunpack.c.l.b16 %v5680
        %v5830 = vunpack.c.h.b16 %v5680
        %v5831 = vunpack.c.l.b16 %v5681
        %v5832 = vunpack.c.h.b16 %v5681
        %v5833 = vunpack.c.l.b16 %v5682
        %v5834 = vunpack.c.h.b16 %v5682
        %v5835 = vunpack.c.l.b16 %v5683
        %v5836 = vunpack.c.h.b16 %v5683
        %v5837 = vunpack.c.l.b16 %v5684
        %v5838 = vunpack.c.h.b16 %v5684
        %v5839 = vunpack.c.l.b16 %v5685
        %v5840 = vunpack.c.h.b16 %v5685
        %v5841 = vunpack.c.l.b16 %v5686
        %v5842 = vunpack.c.h.b16 %v5686
        %v5843 = vunpack.c.l.b16 %v5687
        %v5844 = vunpack.c.h.b16 %v5687
        %v5845 = vunpack.c.l.b16 %v5688
        %v5846 = vunpack.c.h.b16 %v5688
        %v5847 = vunpack.c.l.b16 %v5689
        %v5848 = vunpack.c.h.b16 %v5689
        %v5849 = vunpack.c.l.b16 %v5690
        %v5850 = vunpack.c.h.b16 %v5690
        %v5851 = vunpack.c.l.b16 %v5691
        %v5852 = vunpack.c.h.b16 %v5691
        %v5853 = vunpack.c.l.b16 %v5692
        %v5854 = vunpack.c.h.b16 %v5692
        %v5855 = vunpack.c.l.b16 %v5693
        %v5856 = vunpack.c.h.b16 %v5693
        %v5857 = vunpack.c.l.b16 %v5694
        %v5858 = vunpack.c.h.b16 %v5694
        %v5859 = vunpack.c.l.b16 %v5695
        %v5860 = vunpack.c.h.b16 %v5695
        %v5861 = vunpack.c.l.b16 %v5696
        %v5862 = vunpack.c.h.b16 %v5696
        %v5863 = vunpack.c.l.b16 %v5697
        %v5864 = vunpack.c.h.b16 %v5697
        %v5865 = vunpack.c.l.b16 %v5698
        %v5866 = vunpack.c.h.b16 %v5698
        %v5867 = vunpack.c.l.b16 %v5699
        %v5868 = vunpack.c.h.b16 %v5699
        %v5869 = vunpack.c.l.b16 %v5700
        %v5870 = vunpack.c.h.b16 %v5700
        %v5871 = vunpack.c.l.b16 %v5701
        %v5872 = vunpack.c.h.b16 %v5701
        %v5873 = vunpack.c.l.b16 %v5702
        %v5874 = vunpack.c.h.b16 %v5702
        %v5875 = vunpack.c.l.b16 %v5703
        %v5876 = vunpack.c.h.b16 %v5703
        %v5877 = vunpack.c.l.b16 %v5704
        %v5878 = vunpack.c.h.b16 %v5704
        %v5879 = vunpack.c.l.b16 %v5705
        %v5880 = vunpack.c.h.b16 %v5705
        %v5881 = vunpack.c.l.b16 %v5706
        %v5882 = vunpack.c.h.b16 %v5706
        %v5883 = vunpack.c.l.b16 %v5707
        %v5884 = vunpack.c.h.b16 %v5707
        %v5885 = vunpack.c.l.b16 %v5708
        %v5886 = vunpack.c.h.b16 %v5708
        %v5887 = vunpack.c.l.b16 %v5709
        %v5888 = vunpack.c.h.b16 %v5709
        %v5889 = vunpack.c.l.b16 %v5710
        %v5890 = vunpack.c.h.b16 %v5710
        %v5891 = vunpack.c.l.b16 %v5711
        %v5892 = vunpack.c.h.b16 %v5711
        %v5893 = vunpack.c.l.b16 %v5712
        %v5894 = vunpack.c.h.b16 %v5712
        %v5895 = vunpack.c.l.b16 %v5713
        %v5896 = vunpack.c.h.b16 %v5713
        %v5897 = vunpack.c.l.b16 %v5714
        %v5898 = vunpack.c.h.b16 %v5714
        %v5899 = vunpack.c.l.b16 %v5715
        %v5900 = vunpack.c.h.b16 %v5715
        %v5901 = vunpack.c.l.b16 %v5716
        %v5902 = vunpack.c.h.b16 %v5716
        %v5903 = vunpack.c.l.b16 %v5717
        %v5904 = vunpack.c.h.b16 %v5717
        %v5905 = vunpack.c.l.b16 %v5718
        %v5906 = vunpack.c.h.b16 %v5718
        %v5907 = vunpack.c.l.b16 %v5719
        %v5908 = vunpack.c.h.b16 %v5719
        %v5909 = vunpack.c.l.b16 %v5720
        %v5910 = vunpack.c.h.b16 %v5720
        %v5911 = vunpack.c.l.b16 %v5721
        %v5912 = vunpack.c.h.b16 %v5721
        %v5913 = vunpack.c.l.b16 %v5722
        %v5914 = vunpack.c.h.b16 %v5722
        %v5915 = vunpack.c.l.b16 %v5723
        %v5916 = vunpack.c.h.b16 %v5723
        %v5917 = vunpack.c.l.b16 %v5724
        %v5918 = vunpack.c.h.b16 %v5724
        %v5919 = vunpack.c.l.b16 %v5725
        %v5920 = vunpack.c.h.b16 %v5725
        %v5921 = vunpack.c.l.b16 %v5726
        %v5922 = vunpack.c.h.b16 %v5726
        %v5923 = vunpack.c.l.b16 %v5727
        %v5924 = vunpack.c.h.b16 %v5727
        %v5925 = vunpack.c.l.b16 %v5728
        %v5926 = vunpack.c.h.b16 %v5728
        %v5927 = vunpack.c.l.b16 %v5729
        %v5928 = vunpack.c.h.b16 %v5729
        %v5929 = vunpack.c.l.b16 %v5730
        %v5930 = vunpack.c.h.b16 %v5730
        %v5931 = vunpack.c.l.b16 %v5731
        %v5932 = vunpack.c.h.b16 %v5731
        %v5933 = vunpack.c.l.b16 %v5732
        %v5934 = vunpack.c.h.b16 %v5732
        %v5935 = vunpack.c.l.b16 %v5733
        %v5936 = vunpack.c.h.b16 %v5733
        %v5937 = vunpack.c.l.b16 %v5734
        %v5938 = vunpack.c.h.b16 %v5734
        %v5939 = vpack.c.b16 %v5813, %v5811
        %v5940 = vpack.c.b16 %v5814, %v5812
        %v5941 = vpack.c.b16 %v5817, %v5815
        %v5942 = vpack.c.b16 %v5818, %v5816
        %v5943 = vpack.c.b16 %v5821, %v5819
        %v5944 = vpack.c.b16 %v5822, %v5820
        %v5945 = vpack.c.b16 %v5825, %v5823
        %v5946 = vpack.c.b16 %v5826, %v5824
        %v5947 = vpack.c.b16 %v5829, %v5827
        %v5948 = vpack.c.b16 %v5830, %v5828
        %v5949 = vpack.c.b16 %v5833, %v5831
        %v5950 = vpack.c.b16 %v5834, %v5832
        %v5951 = vpack.c.b16 %v5837, %v5835
        %v5952 = vpack.c.b16 %v5838, %v5836
        %v5953 = vpack.c.b16 %v5841, %v5839
        %v5954 = vpack.c.b16 %v5842, %v5840
        %v5955 = vpack.c.b16 %v5845, %v5843
        %v5956 = vpack.c.b16 %v5846, %v5844
        %v5957 = vpack.c.b16 %v5849, %v5847
        %v5958 = vpack.c.b16 %v5850, %v5848
        %v5959 = vpack.c.b16 %v5853, %v5851
        %v5960 = vpack.c.b16 %v5854, %v5852
        %v5961 = vpack.c.b16 %v5857, %v5855
        %v5962 = vpack.c.b16 %v5858, %v5856
        %v5963 = vpack.c.b16 %v5861, %v5859
        %v5964 = vpack.c.b16 %v5862, %v5860
        %v5965 = vpack.c.b16 %v5865, %v5863
        %v5966 = vpack.c.b16 %v5866, %v5864
        %v5967 = vpack.c.b16 %v5869, %v5867
        %v5968 = vpack.c.b16 %v5870, %v5868
        %v5969 = vpack.c.b16 %v5873, %v5871
        %v5970 = vpack.c.b16 %v5874, %v5872
        %v5971 = vpack.c.b16 %v5877, %v5875
        %v5972 = vpack.c.b16 %v5878, %v5876
        %v5973 = vpack.c.b16 %v5881, %v5879
        %v5974 = vpack.c.b16 %v5882, %v5880
        %v5975 = vpack.c.b16 %v5885, %v5883
        %v5976 = vpack.c.b16 %v5886, %v5884
        %v5977 = vpack.c.b16 %v5889, %v5887
        %v5978 = vpack.c.b16 %v5890, %v5888
        %v5979 = vpack.c.b16 %v5893, %v5891
        %v5980 = vpack.c.b16 %v5894, %v5892
        %v5981 = vpack.c.b16 %v5897, %v5895
        %v5982 = vpack.c.b16 %v5898, %v5896
        %v5983 = vpack.c.b16 %v5901, %v5899
        %v5984 = vpack.c.b16 %v5902, %v5900
        %v5985 = vpack.c.b16 %v5905, %v5903
        %v5986 = vpack.c.b16 %v5906, %v5904
        %v5987 = vpack.c.b16 %v5909, %v5907
        %v5988 = vpack.c.b16 %v5910, %v5908
        %v5989 = vpack.c.b16 %v5913, %v5911
        %v5990 = vpack.c.b16 %v5914, %v5912
        %v5991 = vpack.c.b16 %v5917, %v5915
        %v5992 = vpack.c.b16 %v5918, %v5916
        %v5993 = vpack.c.b16 %v5921, %v5919
        %v5994 = vpack.c.b16 %v5922, %v5920
        %v5995 = vpack.c.b16 %v5925, %v5923
        %v5996 = vpack.c.b16 %v5926, %v5924
        %v5997 = vpack.c.b16 %v5929, %v5927
        %v5998 = vpack.c.b16 %v5930, %v5928
        %v5999 = vpack.c.b16 %v5933, %v5931
        %v6000 = vpack.c.b16 %v5934, %v5932
        %v6001 = vpack.c.b16 %v5937, %v5935
        %v6002 = vpack.c.b16 %v5938, %v5936
        %6067 = vmatprep.subr.bf16.mxu0 %v5940
        %6068 = vmatpush1.bf16.msra.mxu0 %v5939
        %6069 = vmatprep.subr.bf16.mxu0 %v5942
        %6070 = vmatpush1.bf16.msra.mxu0 %v5941
        %6071 = vmatprep.subr.bf16.mxu0 %v5944
        %6072 = vmatpush1.bf16.msra.mxu0 %v5943
        %6073 = vmatprep.subr.bf16.mxu0 %v5946
        %6074 = vmatpush1.bf16.msra.mxu0 %v5945
        %6075 = vmatprep.subr.bf16.mxu0 %v5948
        %6076 = vmatpush1.bf16.msra.mxu0 %v5947
        %6077 = vmatprep.subr.bf16.mxu0 %v5950
        %6078 = vmatpush1.bf16.msra.mxu0 %v5949
        %6079 = vmatprep.subr.bf16.mxu0 %v5952
        %6080 = vmatpush1.bf16.msra.mxu0 %v5951
        %6081 = vmatprep.subr.bf16.mxu0 %v5954
        %6082 = vmatpush1.bf16.msra.mxu0 %v5953
        %6083 = vmatprep.subr.bf16.mxu0 %v5956
        %6084 = vmatpush1.bf16.msra.mxu0 %v5955
        %6085 = vmatprep.subr.bf16.mxu0 %v5958
        %6086 = vmatpush1.bf16.msra.mxu0 %v5957
        %6087 = vmatprep.subr.bf16.mxu0 %v5960
        %6088 = vmatpush1.bf16.msra.mxu0 %v5959
        %6089 = vmatprep.subr.bf16.mxu0 %v5962
        %6090 = vmatpush1.bf16.msra.mxu0 %v5961
        %6091 = vmatprep.subr.bf16.mxu0 %v5964
        %6092 = vmatpush1.bf16.msra.mxu0 %v5963
        %6093 = vmatprep.subr.bf16.mxu0 %v5966
        %6094 = vmatpush1.bf16.msra.mxu0 %v5965
        %6095 = vmatprep.subr.bf16.mxu0 %v5968
        %6096 = vmatpush1.bf16.msra.mxu0 %v5967
        %6097 = vmatprep.subr.bf16.mxu0 %v5970
        %6098 = vmatpush1.bf16.msra.mxu0 %v5969
        %6099 = vmatprep.mubr.bf16.mxu0 %v5640
        %6100 = vmatmul.mubr.bf16.gmra.mrb[0].mxu0 %v5639
        %v6101 = vpop.f32.mrb[0].mxu0
        %v6102 = vadd.f32 %v5740, %v6101
        %v6103 = vpop.f32.mrb[0].mxu0
        %v6104 = vadd.f32 %v5744, %v6103
        %v6105 = vpop.f32.mrb[0].mxu0
        %v6106 = vadd.f32 %v5740, %v6105
        %v6107 = vpop.f32.mrb[0].mxu0
        %v6108 = vadd.f32 %v5744, %v6107
        %6109 = vmatprep.mubr.bf16.mxu0 %v5644
        %6110 = vmatmul.mubr.bf16.gmra.mrb[0].mxu0 %v5643
        %v6111 = vpop.f32.mrb[0].mxu0
        %v6112 = vadd.f32 %v5740, %v6111
        %v6113 = vpop.f32.mrb[0].mxu0
        %v6114 = vadd.f32 %v5744, %v6113
        %v6115 = vpop.f32.mrb[0].mxu0
        %v6116 = vadd.f32 %v5740, %v6115
        %v6117 = vpop.f32.mrb[0].mxu0
        %v6118 = vadd.f32 %v5744, %v6117
        %6119 = vmatprep.mubr.bf16.mxu0 %v5648
        %6120 = vmatmul.mubr.bf16.gmra.mrb[0].mxu0 %v5647
        %v6121 = vpop.f32.mrb[0].mxu0
        %v6122 = vadd.f32 %v5740, %v6121
        %v6123 = vpop.f32.mrb[0].mxu0
        %v6124 = vadd.f32 %v5744, %v6123
        %v6125 = vpop.f32.mrb[0].mxu0
        %v6126 = vadd.f32 %v5740, %v6125
        %v6127 = vpop.f32.mrb[0].mxu0
        %v6128 = vadd.f32 %v5744, %v6127
        %6129 = vmatprep.mubr.bf16.mxu0 %v5652
        %6130 = vmatmul.mubr.bf16.gmra.mrb[0].mxu0 %v5651
        %v6131 = vpop.f32.mrb[0].mxu0
        %v6132 = vadd.f32 %v5740, %v6131
        %v6133 = vpop.f32.mrb[0].mxu0
        %v6134 = vadd.f32 %v5744, %v6133
        %v6135 = vpop.f32.mrb[0].mxu0
        %v6136 = vadd.f32 %v5740, %v6135
        %v6137 = vpop.f32.mrb[0].mxu0
        %v6138 = vadd.f32 %v5744, %v6137
        %6139 = vmatprep.mubr.bf16.mxu0 %v5656
        %6140 = vmatmul.mubr.bf16.gmra.mrb[0].mxu0 %v5655
        %v6141 = vpop.f32.mrb[0].mxu0
        %v6142 = vadd.f32 %v5740, %v6141
        %v6143 = vpop.f32.mrb[0].mxu0
        %v6144 = vadd.f32 %v5744, %v6143
        %v6145 = vpop.f32.mrb[0].mxu0
        %v6146 = vadd.f32 %v5740, %v6145
        %v6147 = vpop.f32.mrb[0].mxu0
        %v6148 = vadd.f32 %v5744, %v6147
        %6149 = vmatprep.mubr.bf16.mxu0 %v5660
        %6150 = vmatmul.mubr.bf16.gmra.mrb[0].mxu0 %v5659
        %v6151 = vpop.f32.mrb[0].mxu0
        %v6152 = vadd.f32 %v5740, %v6151
        %v6153 = vpop.f32.mrb[0].mxu0
        %v6154 = vadd.f32 %v5744, %v6153
        %v6155 = vpop.f32.mrb[0].mxu0
        %v6156 = vadd.f32 %v5740, %v6155
        %v6157 = vpop.f32.mrb[0].mxu0
        %v6158 = vadd.f32 %v5744, %v6157
        %6159 = vmatprep.mubr.bf16.mxu0 %v5664
        %6160 = vmatmul.mubr.bf16.gmra.mrb[0].mxu0 %v5663
        %v6161 = vpop.f32.mrb[0].mxu0
        %v6162 = vadd.f32 %v5740, %v6161
        %v6163 = vpop.f32.mrb[0].mxu0
        %v6164 = vadd.f32 %v5744, %v6163
        %v6165 = vpop.f32.mrb[0].mxu0
        %v6166 = vadd.f32 %v5740, %v6165
        %v6167 = vpop.f32.mrb[0].mxu0
        %v6168 = vadd.f32 %v5744, %v6167
        %6169 = vmatprep.mubr.bf16.mxu0 %v5668
        %6170 = vmatmul.mubr.bf16.gmra.mrb[0].mxu0 %v5667
        %v6171 = vpop.f32.mrb[0].mxu0
        %v6172 = vadd.f32 %v5740, %v6171
        %v6173 = vpop.f32.mrb[0].mxu0
        %v6174 = vadd.f32 %v5744, %v6173
        %v6175 = vpop.f32.mrb[0].mxu0
        %v6176 = vadd.f32 %v5740, %v6175
        %v6177 = vpop.f32.mrb[0].mxu0
        %v6178 = vadd.f32 %v5744, %v6177
        %6179 = vdwg.mxu0
        %6180 = vmatprep.subr.bf16.mxu0 %v5972
        %6181 = vmatpush1.bf16.msra.mxu0 %v5971
        %6182 = vmatprep.subr.bf16.mxu0 %v5974
        %6183 = vmatpush1.bf16.msra.mxu0 %v5973
        %6184 = vmatprep.subr.bf16.mxu0 %v5976
        %6185 = vmatpush1.bf16.msra.mxu0 %v5975
        %6186 = vmatprep.subr.bf16.mxu0 %v5978
        %6187 = vmatpush1.bf16.msra.mxu0 %v5977
        %6188 = vmatprep.subr.bf16.mxu0 %v5980
        %6189 = vmatpush1.bf16.msra.mxu0 %v5979
        %6190 = vmatprep.subr.bf16.mxu0 %v5982
        %6191 = vmatpush1.bf16.msra.mxu0 %v5981
        %6192 = vmatprep.subr.bf16.mxu0 %v5984
        %6193 = vmatpush1.bf16.msra.mxu0 %v5983
        %6194 = vmatprep.subr.bf16.mxu0 %v5986
        %6195 = vmatpush1.bf16.msra.mxu0 %v5985
        %6196 = vmatprep.subr.bf16.mxu0 %v5988
        %6197 = vmatpush1.bf16.msra.mxu0 %v5987
        %6198 = vmatprep.subr.bf16.mxu0 %v5990
        %6199 = vmatpush1.bf16.msra.mxu0 %v5989
        %6200 = vmatprep.subr.bf16.mxu0 %v5992
        %6201 = vmatpush1.bf16.msra.mxu0 %v5991
        %6202 = vmatprep.subr.bf16.mxu0 %v5994
        %6203 = vmatpush1.bf16.msra.mxu0 %v5993
        %6204 = vmatprep.subr.bf16.mxu0 %v5996
        %6205 = vmatpush1.bf16.msra.mxu0 %v5995
        %6206 = vmatprep.subr.bf16.mxu0 %v5998
        %6207 = vmatpush1.bf16.msra.mxu0 %v5997
        %6208 = vmatprep.subr.bf16.mxu0 %v6000
        %6209 = vmatpush1.bf16.msra.mxu0 %v5999
        %6210 = vmatprep.subr.bf16.mxu0 %v6002
        %6211 = vmatpush1.bf16.msra.mxu0 %v6001
        %6212 = vmatprep.mubr.bf16.mxu0 %v5642
        %6213 = vmatmul.mubr.bf16.gmra.mrb[0].mxu0 %v5641
        %v6214 = vpop.f32.mrb[0].mxu0
        %v6215 = vadd.f32 %v6102, %v6214
        %v6216 = vpop.f32.mrb[0].mxu0
        %v6217 = vadd.f32 %v6104, %v6216
        %v6218 = vpop.f32.mrb[0].mxu0
        %v6219 = vadd.f32 %v6106, %v6218
        %v6220 = vpop.f32.mrb[0].mxu0
        %v6221 = vadd.f32 %v6108, %v6220
        %6222 = vmatprep.mubr.bf16.mxu0 %v5646
        %6223 = vmatmul.mubr.bf16.gmra.mrb[0].mxu0 %v5645
        %v6224 = vpop.f32.mrb[0].mxu0
        %v6225 = vadd.f32 %v6112, %v6224
        %v6226 = vpop.f32.mrb[0].mxu0
        %v6227 = vadd.f32 %v6114, %v6226
        %v6228 = vpop.f32.mrb[0].mxu0
        %v6229 = vadd.f32 %v6116, %v6228
        %v6230 = vpop.f32.mrb[0].mxu0
        %v6231 = vadd.f32 %v6118, %v6230
        %6232 = vmatprep.mubr.bf16.mxu0 %v5650
        %6233 = vmatmul.mubr.bf16.gmra.mrb[0].mxu0 %v5649
        %v6234 = vpop.f32.mrb[0].mxu0
        %v6235 = vadd.f32 %v6122, %v6234
        %v6236 = vpop.f32.mrb[0].mxu0
        %v6237 = vadd.f32 %v6124, %v6236
        %v6238 = vpop.f32.mrb[0].mxu0
        %v6239 = vadd.f32 %v6126, %v6238
        %v6240 = vpop.f32.mrb[0].mxu0
        %v6241 = vadd.f32 %v6128, %v6240
        %6242 = vmatprep.mubr.bf16.mxu0 %v5654
        %6243 = vmatmul.mubr.bf16.gmra.mrb[0].mxu0 %v5653
        %v6244 = vpop.f32.mrb[0].mxu0
        %v6245 = vadd.f32 %v6132, %v6244
        %v6246 = vpop.f32.mrb[0].mxu0
        %v6247 = vadd.f32 %v6134, %v6246
        %v6248 = vpop.f32.mrb[0].mxu0
        %v6249 = vadd.f32 %v6136, %v6248
        %v6250 = vpop.f32.mrb[0].mxu0
        %v6251 = vadd.f32 %v6138, %v6250
        %6252 = vmatprep.mubr.bf16.mxu0 %v5658
        %6253 = vmatmul.mubr.bf16.gmra.mrb[0].mxu0 %v5657
        %v6254 = vpop.f32.mrb[0].mxu0
        %v6255 = vadd.f32 %v6142, %v6254
        %v6256 = vpop.f32.mrb[0].mxu0
        %v6257 = vadd.f32 %v6144, %v6256
        %v6258 = vpop.f32.mrb[0].mxu0
        %v6259 = vadd.f32 %v6146, %v6258
        %v6260 = vpop.f32.mrb[0].mxu0
        %v6261 = vadd.f32 %v6148, %v6260
        %6262 = vmatprep.mubr.bf16.mxu0 %v5662
        %6263 = vmatmul.mubr.bf16.gmra.mrb[0].mxu0 %v5661
        %v6264 = vpop.f32.mrb[0].mxu0
        %v6265 = vadd.f32 %v6152, %v6264
        %v6266 = vpop.f32.mrb[0].mxu0
        %v6267 = vadd.f32 %v6154, %v6266
        %v6268 = vpop.f32.mrb[0].mxu0
        %v6269 = vadd.f32 %v6156, %v6268
        %v6270 = vpop.f32.mrb[0].mxu0
        %v6271 = vadd.f32 %v6158, %v6270
        %6272 = vmatprep.mubr.bf16.mxu0 %v5666
        %6273 = vmatmul.mubr.bf16.gmra.mrb[0].mxu0 %v5665
        %v6274 = vpop.f32.mrb[0].mxu0
        %v6275 = vadd.f32 %v6162, %v6274
        %v6276 = vpop.f32.mrb[0].mxu0
        %v6277 = vadd.f32 %v6164, %v6276
        %v6278 = vpop.f32.mrb[0].mxu0
        %v6279 = vadd.f32 %v6166, %v6278
        %v6280 = vpop.f32.mrb[0].mxu0
        %v6281 = vadd.f32 %v6168, %v6280
        %6282 = vmatprep.mubr.bf16.mxu0 %v5670
        %6283 = vmatmul.mubr.bf16.gmra.mrb[0].mxu0 %v5669
        %v6284 = vpop.f32.mrb[0].mxu0
        %v6285 = vadd.f32 %v6172, %v6284
        %v6286 = vpop.f32.mrb[0].mxu0
        %v6287 = vadd.f32 %v6174, %v6286
        %v6288 = vpop.f32.mrb[0].mxu0
        %v6289 = vadd.f32 %v6176, %v6288
        %v6290 = vpop.f32.mrb[0].mxu0
        %v6291 = vadd.f32 %v6178, %v6290
        %6292 = vdwg.mxu0
        %v6293 = vadd.f32 %v4551, %v6215
        %v6294 = vadd.f32 %v4552, %v6217
        %v6295 = vadd.f32 %v4553, %v6219
        %v6296 = vadd.f32 %v4554, %v6221
        %v6297 = vadd.f32 %v4555, %v6225
        %v6298 = vadd.f32 %v4556, %v6227
        %v6299 = vadd.f32 %v4557, %v6229
        %v6300 = vadd.f32 %v4558, %v6231
        %v6301 = vadd.f32 %v4559, %v6235
        %v6302 = vadd.f32 %v4560, %v6237
        %v6303 = vadd.f32 %v4561, %v6239
        %v6304 = vadd.f32 %v4562, %v6241
        %v6305 = vadd.f32 %v4563, %v6245
        %v6306 = vadd.f32 %v4564, %v6247
        %v6307 = vadd.f32 %v4565, %v6249
        %v6308 = vadd.f32 %v4566, %v6251
        %v6309 = vadd.f32 %v4567, %v6255
        %v6310 = vadd.f32 %v4568, %v6257
        %v6311 = vadd.f32 %v4569, %v6259
        %v6312 = vadd.f32 %v4570, %v6261
        %v6313 = vadd.f32 %v4571, %v6265
        %v6314 = vadd.f32 %v4572, %v6267
        %v6315 = vadd.f32 %v4573, %v6269
        %v6316 = vadd.f32 %v4574, %v6271
        %v6317 = vadd.f32 %v4575, %v6275
        %v6318 = vadd.f32 %v4576, %v6277
        %v6319 = vadd.f32 %v4577, %v6279
        %v6320 = vadd.f32 %v4578, %v6281
        %v6321 = vadd.f32 %v4579, %v6285
        %v6322 = vadd.f32 %v4580, %v6287
        %v6323 = vadd.f32 %v4581, %v6289
        %v6324 = vadd.f32 %v4582, %v6291
        %6325 = vst [vmem:[%s792] sm:$0xff] %v6293
        %6326 = vst [vmem:[%s792 + $0x8] sm:$0xff] %v6294
        %6327 = vst [vmem:[%s792 + $0x10] sm:$0xff] %v6295
        %6328 = vst [vmem:[%s792 + $0x18] sm:$0xff] %v6296
        %6329 = vst [vmem:[%s792 + $0x20] sm:$0xff] %v6297
        %6330 = vst [vmem:[%s792 + $0x28] sm:$0xff] %v6298
        %6331 = vst [vmem:[%s792 + $0x30] sm:$0xff] %v6299
        %6332 = vst [vmem:[%s792 + $0x38] sm:$0xff] %v6300
        %6333 = vst [vmem:[%s792 + $0x40] sm:$0xff] %v6301
        %6334 = vst [vmem:[%s792 + $0x48] sm:$0xff] %v6302
        %6335 = vst [vmem:[%s792 + $0x50] sm:$0xff] %v6303
        %6336 = vst [vmem:[%s792 + $0x58] sm:$0xff] %v6304
        %6337 = vst [vmem:[%s792 + $0x60] sm:$0xff] %v6305
        %6338 = vst [vmem:[%s792 + $0x68] sm:$0xff] %v6306
        %6339 = vst [vmem:[%s792 + $0x70] sm:$0xff] %v6307
        %6340 = vst [vmem:[%s792 + $0x78] sm:$0xff] %v6308
        %6341 = vst [vmem:[%s792 + $0x80] sm:$0xff] %v6309
        %6342 = vst [vmem:[%s792 + $0x88] sm:$0xff] %v6310
        %6343 = vst [vmem:[%s792 + $0x90] sm:$0xff] %v6311
        %6344 = vst [vmem:[%s792 + $0x98] sm:$0xff] %v6312
        %6345 = vst [vmem:[%s792 + $0xa0] sm:$0xff] %v6313
        %6346 = vst [vmem:[%s792 + $0xa8] sm:$0xff] %v6314
        %6347 = vst [vmem:[%s792 + $0xb0] sm:$0xff] %v6315
        %6348 = vst [vmem:[%s792 + $0xb8] sm:$0xff] %v6316
        %6349 = vst [vmem:[%s792 + $0xc0] sm:$0xff] %v6317
        %6350 = vst [vmem:[%s792 + $0xc8] sm:$0xff] %v6318
        %6351 = vst [vmem:[%s792 + $0xd0] sm:$0xff] %v6319
        %6352 = vst [vmem:[%s792 + $0xd8] sm:$0xff] %v6320
        %6353 = vst [vmem:[%s792 + $0xe0] sm:$0xff] %v6321
        %6354 = vst [vmem:[%s792 + $0xe8] sm:$0xff] %v6322
        %6355 = vst [vmem:[%s792 + $0xf0] sm:$0xff] %v6323
        %6356 = vst [vmem:[%s792 + $0xf8] sm:$0xff] %v6324
        %s6357 = sand.u32 %s426, 1
        %s6358 = scalar_lea.sflag [#allocation7], %s6357
        %s6359 = sand.u32 %s426, 1
        %s6360 = smul.addr %s6359, 256
        %s6361 = scalar_lea.vmem [#allocation32], %s6360
        // Predicated region
        $region161: #{tpu_custom_call.1} parent=87 // pred_check
          %p6362 = pneg %p436
        $region162: #{tpu_custom_call.1} parent=87 // pred_check_branch
          %6364 = sbr.rel (%p6362) target = $region164
        $region163: #{tpu_custom_call.1} parent=87 // pred_region
          %s6365 = smul.u32 16, %s47
          %s6367 = ssub.s32 4096, 4096
          %6368 = vsyncadd %s6358, %s6367
          %s6369 = smul.addr %s6365, 2
          %s6370 = smul.addr %s46, 64
          %s6371 = sadd.s32 %s6369, %s6370
          %s6372 = smul.addr %s6371, 128
          %s6373 = scalar_lea.hbm %s17, %s6372
          %s6374 = sshll.u32 %s6361, 4
          %s6375 = int_to_ptr.vmem [resolvable:$true] %s6374
          %6380 = dma.vmem_to_hbm [thread:$0]  %s6375, 4096, %s6373, %s6358, 256, 256, 16
        $region164: #{tpu_custom_call.1} parent=87 // pred_fallthru
          _
      $region88: #{tpu_custom_call.1} parent=5 // pred_fallthru
        _
      %p6381 = scmp.le.s32.totalorder 2, %s37
      // Predicated region
      $region165: #{tpu_custom_call.1} parent=5 // pred_check
        %p6382 = pneg %p6381
      $region166: #{tpu_custom_call.1} parent=5 // pred_check_branch
        %6384 = sbr.rel (%p6382) target = $region168
      $region167: #{tpu_custom_call.1} parent=5 // pred_region
        %s6385 = ssub.s32 %s37, 2
        // Predicated region
        $region169: #{tpu_custom_call.1} parent=167 // pred_check
          %p6386 = pneg %p442
        $region170: #{tpu_custom_call.1} parent=167 // pred_check_branch
          %6388 = sbr.rel (%p6386) target = $region172
        $region171: #{tpu_custom_call.1} parent=167 // pred_region
          %s6389 = sand.u32 %s427, 1
          %s6390 = scalar_lea.sflag [#allocation7], %s6389
          %s6391 = sand.u32 %s427, 1
          %s6392 = smul.addr %s6391, 256
          %s6393 = scalar_lea.vmem [#allocation32], %s6392
          %6394 = dma.done %s6390, 4096
        $region172: #{tpu_custom_call.1} parent=167 // pred_fallthru
          _
      $region168: #{tpu_custom_call.1} parent=5 // pred_fallthru
        _
    $region6: #{tpu_custom_call.1} parent=1 // loop_footer
      %s41 = sadd.s32 1, %s37
    $region7: #{tpu_custom_call.1} parent=1 // loop_footer_branch
      %36 = sbr.rel target = $region3
    $region8: #{tpu_custom_call.1} parent=1 // loop_exit
      _
    %6395 = vsyncpa [#allocation6], 1
    %s6396 = scalar_lea.sflag [#allocation6], 1
    %6397 = vsyncpa %s6396, 1
    %6398 = vsyncpa [#allocation9], 1
    %6399 = vsyncpa [#allocation12], 1
    %6400 = vsyncpa [#allocation15], 1
    %6401 = vsyncpa [#allocation18], 1
    %6402 = vsyncpa [#allocation21], 1
    %6403 = vsyncpa [#allocation24], 1
    %6404 = vsyncpa [#allocation27], 1
    %6405 = vsyncpa [#allocation30], 1
    %6406 = vsyncpa [#allocation7], 1
    %s6407 = scalar_lea.sflag [#allocation7], 1
    %6408 = vsyncpa %s6407, 1

</llo_original>
